<compile_context>
chip_gen: v6e
topology: v6e:2x2x1
jax: 0.10.0
libtpu: 0.0.40
codegen_flags: <defaults>
</compile_context>

<pallas_src>
import math
from functools import partial

import jax
import jax.numpy as jnp
from jax.experimental import pallas as pl
from jax.experimental.pallas import tpu as pltpu

# ----------------------- toy config (mirrors ViT-base / BertLayer structure) -----------------------
B = 2            # batch of samples
IMGS = 3         # images per sample  -> pos_num = SEQ * 3 (analogue of 197 * 3)
C_IN = 3
IMG = 16
PATCH = 8
GRID = IMG // PATCH          # 2
N_PATCH = GRID * GRID        # 4
SEQ = N_PATCH + 1            # 5 tokens per image (cls + patches)
HID = 32                     # out_embed / hidden size
HEADS = 4
HEAD_DIM = HID // HEADS      # 8
MLP = 4 * HID                # 128
VIT_LAYERS = 2
POS_NUM = SEQ * IMGS         # 15
LN_EPS = 1e-12               # HF ViT / BERT layer_norm_eps
PATCH_DIM = C_IN * PATCH * PATCH   # 192

# rows of the packed global HID-wide vector table (vec_g)
G_LNF_G, G_LNF_B = 0, 1                    # ViT final LayerNorm
G_BQ, G_BK, G_BV, G_BO = 2, 3, 4, 5        # BertLayer attention biases
G_LNA_G, G_LNA_B = 6, 7                    # BertLayer attention-output LayerNorm
G_BO2, G_LNO_G, G_LNO_B = 8, 9, 10         # BertLayer output dense bias + output LayerNorm
N_GVEC = 11

# rows of the per-ViT-layer packed vector table (v_vec[l])
V_LN1_G, V_LN1_B = 0, 1
V_BQ, V_BK, V_BV, V_BO = 2, 3, 4, 5
V_LN2_G, V_LN2_B, V_BFC2 = 6, 7, 8
N_VVEC = 9


# ------------------------------------- in-kernel building blocks -----------------------------------
def _layernorm(x, g, b):
    # f32 math (v5e has no bf16 VPU; rsqrt goes to the EUP slot)
    mu = jnp.mean(x, axis=-1, keepdims=True)
    xc = x - mu
    var = jnp.mean(xc * xc, axis=-1, keepdims=True)
    return xc * jax.lax.rsqrt(var + LN_EPS) * g + b


def _gelu(x):
    # exact (erf) GELU, matching torch.nn.functional.gelu default; f32 math
    return 0.5 * x * (1.0 + jax.lax.erf(x * (1.0 / math.sqrt(2.0))))


def _bf16(x):
    return x.astype(jnp.bfloat16)


def _attention(x, wqkv, bq, bk, bv, wo, bo, ctx_scr, seg, n_seg):
    """Multi-head self-attention over n_seg independent length-`seg` segments (no mask).

    * one fused (T,HID)@(HID,3*HID) bf16 QKV matmul (f32 accumulation)
    * per-segment, head-batched score / P.V einsums, softmax in f32
    * per-head contexts are stored into the merged-layout VMEM scratch so the head merge is a
      SINGLE full-K (T,HID)@(HID,HID) matmul (no K=HEAD_DIM dot chain, no lane concat values)
    * softmax normalisation uses pl.reciprocal(..., approx=True) (EUP slot, ~1e-3 rel. error;
      swap for an exact divide if bitwise-ish parity vs. torch is required)
    """
    qkv = jnp.dot(_bf16(x), wqkv, preferred_element_type=jnp.float32)   # (T, 3*HID) f32
    q_all = qkv[:, 0 * HID:1 * HID] + bq
    k_all = qkv[:, 1 * HID:2 * HID] + bk
    v_all = qkv[:, 2 * HID:3 * HID] + bv
    scale = 1.0 / math.sqrt(HEAD_DIM)
    for i in range(n_seg):
        r0 = i * seg

        def split(blk):
            # (T,HID) -> (HEADS, seg, HEAD_DIM) bf16 via static row/lane slices + leading stack
            return _bf16(jnp.stack(
                [blk[r0:r0 + seg, h * HEAD_DIM:(h + 1) * HEAD_DIM] for h in range(HEADS)],
                axis=0))

        q, k, v = split(q_all), split(k_all), split(v_all)
        s = jnp.einsum("hqd,hkd->hqk", q, k, preferred_element_type=jnp.float32) * scale
        s = s - jnp.max(s, axis=-1, keepdims=True)
        p = jnp.exp(s)
        p = p * pl.reciprocal(jnp.sum(p, axis=-1, keepdims=True), approx=True)
        ctx = jnp.einsum("hqk,hkd->hqd", _bf16(p), v,
                         preferred_element_type=jnp.float32)            # (HEADS, seg, D) f32
        for h in range(HEADS):
            ctx_scr[pl.ds(r0, seg), pl.ds(h * HEAD_DIM, HEAD_DIM)] = ctx[h]
    merged = _bf16(ctx_scr[...])                                        # (T, HID)
    return jnp.dot(merged, wo, preferred_element_type=jnp.float32) + bo


# ------------------------------------------ fused kernel -------------------------------------------
def _encoder_kernel(n_img,
                    patches_ref, pos_pack_ref, vec_g_ref, v_vec_ref, mlp_b_ref,
                    patch_w_ref, v_wqkv_ref, v_wo_ref, v_fc1_ref, v_fc2_ref,
                    b_wqkv_ref, b_wo_ref, b_wi_ref, b_wo2_ref,
                    out_ref, ctx_scr):
    # ---- packed tiny params: load once ----
    tok_add = pos_pack_ref[0]          # (t_all, HID): cls_token/conv-bias + ViT pos, interleaved
    pos_cross = pos_pack_ref[1]        # (t_all, HID): learned cross-image position embedding
    vg = vec_g_ref[...]                # (N_GVEC, HID)
    mlp_b = mlp_b_ref[...]             # (VIT_LAYERS + 1, MLP)

    # ---- ViT patch embedding: one aligned bf16 matmul + add (no per-row assembly loop) ----
    # cls positions are zero rows in `patches`, so the matmul contributes 0 there and tok_add
    # supplies cls_token + pos[0]; patch rows get conv_bias + pos[1:] from tok_add.
    x = (jnp.dot(patches_ref[0], patch_w_ref[...], preferred_element_type=jnp.float32)
         + tok_add)                                                     # (t_all, HID) f32

    # ---- ViT encoder layers (pre-LN blocks); per-image attention, so no mask is needed ----
    for l in range(VIT_LAYERS):
        vec = v_vec_ref[l]                                              # (N_VVEC, HID)
        h = _layernorm(x, vec[V_LN1_G:V_LN1_G + 1], vec[V_LN1_B:V_LN1_B + 1])
        x = x + _attention(h, v_wqkv_ref[l],
                           vec[V_BQ:V_BQ + 1], vec[V_BK:V_BK + 1], vec[V_BV:V_BV + 1],
                           v_wo_ref[l], vec[V_BO:V_BO + 1],
                           ctx_scr, SEQ, n_img)
        h = _layernorm(x, vec[V_LN2_G:V_LN2_G + 1], vec[V_LN2_B:V_LN2_B + 1])
        m = _gelu(jnp.dot(_bf16(h), v_fc1_ref[l], preferred_element_type=jnp.float32)
                  + mlp_b[l:l + 1, :])
        x = x + (jnp.dot(_bf16(m), v_fc2_ref[l], preferred_element_type=jnp.float32)
                 + vec[V_BFC2:V_BFC2 + 1])

    # final ViT LayerNorm -> last_hidden_state
    x = _layernorm(x, vg[G_LNF_G:G_LNF_G + 1], vg[G_LNF_B:G_LNF_B + 1])

    # ---- use_image_cross branch: + learned position embedding, one BertLayer (post-LN) ----
    x = x + pos_cross
    attn = _attention(x, b_wqkv_ref[...],
                      vg[G_BQ:G_BQ + 1], vg[G_BK:G_BK + 1], vg[G_BV:G_BV + 1],
                      b_wo_ref[...], vg[G_BO:G_BO + 1],
                      ctx_scr, n_img * SEQ, 1)
    h = _layernorm(x + attn, vg[G_LNA_G:G_LNA_G + 1], vg[G_LNA_B:G_LNA_B + 1])
    inter = _gelu(jnp.dot(_bf16(h), b_wi_ref[...], preferred_element_type=jnp.float32)
                  + mlp_b[VIT_LAYERS:VIT_LAYERS + 1, :])
    out = (jnp.dot(_bf16(inter), b_wo2_ref[...], preferred_element_type=jnp.float32)
           + vg[G_BO2:G_BO2 + 1])
    # TODO(synk): at real HID=768 the output store is already lane-dense (6x128); at HID=32 the
    #             masked-lane store is 15 rows total per sample, so no pad/reshape is done here.
    out_ref[0] = _layernorm(h + out, vg[G_LNO_G:G_LNO_G + 1], vg[G_LNO_B:G_LNO_B + 1])


# --------------------------------------------- wrapper ---------------------------------------------
def _rep_spec(arr):
    """Full-array block, constant index_map (loaded into VMEM once, reused across grid steps)."""
    return pl.BlockSpec(arr.shape, lambda *args, n=arr.ndim: (0,) * n)


def image_encoder_forward(pixel_values, params):
    """Mirrors ImageEncoderModel.forward (eval mode, dropout_prob = 0.0)."""
    assert pixel_values.ndim in (4, 5)
    if pixel_values.ndim == 4:
        batch_size = 1
        pv = pixel_values
    else:
        batch_size = pixel_values.shape[0]
        pv = pixel_values.reshape(-1, pixel_values.shape[-3],
                                  pixel_values.shape[-2], pixel_values.shape[-1])
    n_total = pv.shape[0]
    n_img = n_total // batch_size
    t_all = n_img * SEQ

    vit, bert = params["vit"], params["bert"]
    battn = bert["attn"]

    # one-time XLA prep at the input boundary:
    # patchify (stride==kernel conv -> matmul rows) and insert one zero row per image at the
    # cls position so the kernel's embedding is a single aligned (t_all, PATCH_DIM) matmul.
    patches = pv.reshape(batch_size, n_img, C_IN, GRID, PATCH, GRID, PATCH)
    patches = patches.transpose(0, 1, 3, 5, 2, 4, 6).reshape(batch_size, n_img, N_PATCH, PATCH_DIM)
    patches = jnp.concatenate(
        [jnp.zeros((batch_size, n_img, 1, PATCH_DIM), patches.dtype), patches], axis=2)
    patches = patches.reshape(batch_size, t_all, PATCH_DIM).astype(jnp.bfloat16)

    # additive token table: cls rows get cls_token + pos[0], patch rows get conv_bias + pos[1:]
    vit_pos = vit["pos_emb"].reshape(SEQ, HID)
    per_img = jnp.concatenate(
        [vit["cls"].reshape(1, HID) + vit_pos[0:1],
         vit["patch_b"].reshape(1, HID) + vit_pos[1:]], axis=0)           # (SEQ, HID)
    tok_add = jnp.tile(per_img, (n_img, 1))                               # (t_all, HID)

    # learned cross-image position embeddings (position_ids gather; identity for arange ids)
    pos_cross = jnp.take(params["wpe"], params["position_ids"], axis=0)   # (t_all, HID)
    assert pos_cross.shape[0] == t_all
    pos_pack = jnp.stack([tok_add, pos_cross], axis=0)                    # (2, t_all, HID) f32

    # ---- pack tiny vectors (f32) into one array per shape class ----
    def row(a):
        return a.reshape(1, HID)

    vec_g = jnp.concatenate([
        row(vit["ln_f_g"]), row(vit["ln_f_b"]),
        row(battn["bq"]), row(battn["bk"]), row(battn["bv"]), row(battn["bo"]),
        row(bert["ln_attn_g"]), row(bert["ln_attn_b"]),
        row(bert["b_o"]), row(bert["ln_out_g"]), row(bert["ln_out_b"]),
    ], axis=0)                                                            # (N_GVEC, HID)

    v_vec = jnp.stack([
        jnp.concatenate([row(lp["ln1_g"]), row(lp["ln1_b"]),
                         row(lp["attn"]["bq"]), row(lp["attn"]["bk"]), row(lp["attn"]["bv"]),
                         row(lp["attn"]["bo"]),
                         row(lp["ln2_g"]), row(lp["ln2_b"]), row(lp["b_fc2"])], axis=0)
        for lp in vit["layers"]], axis=0)                                 # (L, N_VVEC, HID)

    mlp_b = jnp.concatenate(
        [jnp.stack([lp["b_fc1"] for lp in vit["layers"]], axis=0),
         bert["b_i"][None, :]], axis=0)                                   # (L+1, MLP)

    # ---- weights in bf16 (MXU-native on v5e/v6e/v7x; halves HBM->VMEM weight bytes) ----
    def bf(a):
        return a.astype(jnp.bfloat16)

    def qkv_cat(a):   # fuse Q/K/V into one (HID, 3*HID) weight
        return bf(jnp.concatenate([a["wq"], a["wk"], a["wv"]], axis=1))

    patch_w = bf(vit["patch_w"])
    v_wqkv = jnp.stack([qkv_cat(lp["attn"]) for lp in vit["layers"]], axis=0)
    v_wo = jnp.stack([bf(lp["attn"]["wo"]) for lp in vit["layers"]], axis=0)
    v_fc1 = jnp.stack([bf(lp["w_fc1"]) for lp in vit["layers"]], axis=0)
    v_fc2 = jnp.stack([bf(lp["w_fc2"]) for lp in vit["layers"]], axis=0)
    b_wqkv = qkv_cat(battn)
    b_wo = bf(battn["wo"])
    b_wi = bf(bert["w_i"])
    b_wo2 = bf(bert["w_o"])

    param_inputs = (pos_pack, vec_g, v_vec, mlp_b,
                    patch_w, v_wqkv, v_wo, v_fc1, v_fc2,
                    b_wqkv, b_wo, b_wi, b_wo2)

    in_specs = [pl.BlockSpec((1, t_all, PATCH_DIM), lambda i: (i, 0, 0))]
    in_specs += [_rep_spec(a) for a in param_inputs]

    out = pl.pallas_call(
        partial(_encoder_kernel, n_img),
        grid=(batch_size,),
        in_specs=in_specs,
        out_specs=pl.BlockSpec((1, t_all, HID), lambda i: (i, 0, 0)),
        out_shape=jax.ShapeDtypeStruct((batch_size, t_all, HID), jnp.float32),
        scratch_shapes=[pltpu.VMEM((t_all, HID), jnp.float32)],   # merged attention context
        compiler_params=pltpu.CompilerParams(dimension_semantics=("parallel",)),
    )(patches, *param_inputs)

    return out.reshape(batch_size, 1, t_all, HID)


# ------------------------------------ deterministic parameters ------------------------------------
class KeyGen:
    def __init__(self, key):
        self.key = key

    def __call__(self):
        self.key, sub = jax.random.split(self.key)
        return sub


def _nrm(key, shape, scale=0.02):
    return scale * jax.random.normal(key, shape, jnp.float32)


def _attn_params(kg):
    return {
        "wq": _nrm(kg(), (HID, HID)), "bq": jnp.zeros((HID,), jnp.float32),
        "wk": _nrm(kg(), (HID, HID)), "bk": jnp.zeros((HID,), jnp.float32),
        "wv": _nrm(kg(), (HID, HID)), "bv": jnp.zeros((HID,), jnp.float32),
        "wo": _nrm(kg(), (HID, HID)), "bo": jnp.zeros((HID,), jnp.float32),
    }


def _vit_layer_params(kg):
    return {
        "ln1_g": jnp.ones((HID,), jnp.float32), "ln1_b": jnp.zeros((HID,), jnp.float32),
        "attn": _attn_params(kg),
        "ln2_g": jnp.ones((HID,), jnp.float32), "ln2_b": jnp.zeros((HID,), jnp.float32),
        "w_fc1": _nrm(kg(), (HID, MLP)), "b_fc1": jnp.zeros((MLP,), jnp.float32),
        "w_fc2": _nrm(kg(), (MLP, HID)), "b_fc2": jnp.zeros((HID,), jnp.float32),
    }


def init_params(key):
    # TODO(synk): real module loads pretrained ViT-base / bert-base-chinese weights; here we
    #             initialize the same-shaped (toy-sized) parameters synthetically.  The conv
    #             kernel is stored flattened in (C, Ph, Pw) order matching the wrapper patchify.
    kg = KeyGen(key)
    vit = {
        "patch_w": _nrm(kg(), (PATCH_DIM, HID)),
        "patch_b": jnp.zeros((HID,), jnp.float32),
        "cls": _nrm(kg(), (1, 1, HID)),
        "pos_emb": _nrm(kg(), (1, SEQ, HID)),
        "layers": [_vit_layer_params(kg) for _ in range(VIT_LAYERS)],
        "ln_f_g": jnp.ones((HID,), jnp.float32), "ln_f_b": jnp.zeros((HID,), jnp.float32),
    }
    bert = {
        "attn": _attn_params(kg),
        "ln_attn_g": jnp.ones((HID,), jnp.float32), "ln_attn_b": jnp.zeros((HID,), jnp.float32),
        "w_i": _nrm(kg(), (HID, MLP)), "b_i": jnp.zeros((MLP,), jnp.float32),
        "w_o": _nrm(kg(), (MLP, HID)), "b_o": jnp.zeros((HID,), jnp.float32),
        "ln_out_g": jnp.ones((HID,), jnp.float32), "ln_out_b": jnp.zeros((HID,), jnp.float32),
    }
    return {
        "vit": vit,
        "bert": bert,
        "wpe": _nrm(kg(), (POS_NUM, HID)),
        "position_ids": jnp.arange(POS_NUM, dtype=jnp.int32),
    }


# ------------------------------------------------ main --------------------------------------------
if __name__ == "__main__":
    key = jax.random.PRNGKey(0)
    kparam, kdata = jax.random.split(key)
    params = init_params(kparam)

    # 5-D pixel_values -> batch_size = shape[0], inner views flattened (matches forward())
    pixel_values = jax.random.normal(kdata, (B, IMGS, C_IN, IMG, IMG), jnp.float32)

    fwd = jax.jit(lambda pv: image_encoder_forward(pv, params))
    out = jax.block_until_ready(fwd(pixel_values))

    assert out.shape == (B, 1, IMGS * SEQ, HID), out.shape
    assert bool(jnp.isfinite(out).all())
    print("KERNEL_OK")
</pallas_src>

<mosaic_0001>
module attributes {stable_mosaic.version = 11 : i64} {
  func.func @_encoder_kernel(%arg0: i32, %arg1: memref<1x15x192xbf16, #tpu.memory_space<vmem>>, %arg2: memref<2x15x32xf32, #tpu.memory_space<vmem>>, %arg3: memref<11x32xf32, #tpu.memory_space<vmem>>, %arg4: memref<2x9x32xf32, #tpu.memory_space<vmem>>, %arg5: memref<3x128xf32, #tpu.memory_space<vmem>>, %arg6: memref<192x32xbf16, #tpu.memory_space<vmem>>, %arg7: memref<2x32x96xbf16, #tpu.memory_space<vmem>>, %arg8: memref<2x32x32xbf16, #tpu.memory_space<vmem>>, %arg9: memref<2x32x128xbf16, #tpu.memory_space<vmem>>, %arg10: memref<2x128x32xbf16, #tpu.memory_space<vmem>>, %arg11: memref<32x96xbf16, #tpu.memory_space<vmem>>, %arg12: memref<32x32xbf16, #tpu.memory_space<vmem>>, %arg13: memref<32x128xbf16, #tpu.memory_space<vmem>>, %arg14: memref<128x32xbf16, #tpu.memory_space<vmem>>, %arg15: memref<1x15x32xf32, #tpu.memory_space<vmem>>, %arg16: memref<15x32xf32, #tpu.memory_space<vmem>>) attributes {dimension_semantics = [#tpu.dimension_semantics<parallel>], iteration_bounds = array<i64: 2>, scalar_prefetch = 0 : i64, scratch_operands = 1 : i64, tpu.core_type = #tpu.core_type<tc>, window_params = [{transform_indices = @transform_0, window_bounds = array<i64: 1, 15, 192>}, {pipeline_mode = #tpu.pipeline_mode<synchronous>, transform_indices = @transform_1, window_bounds = array<i64: 2, 15, 32>}, {pipeline_mode = #tpu.pipeline_mode<synchronous>, transform_indices = @transform_2, window_bounds = array<i64: 11, 32>}, {pipeline_mode = #tpu.pipeline_mode<synchronous>, transform_indices = @transform_3, window_bounds = array<i64: 2, 9, 32>}, {pipeline_mode = #tpu.pipeline_mode<synchronous>, transform_indices = @transform_4, window_bounds = array<i64: 3, 128>}, {pipeline_mode = #tpu.pipeline_mode<synchronous>, transform_indices = @transform_5, window_bounds = array<i64: 192, 32>}, {pipeline_mode = #tpu.pipeline_mode<synchronous>, transform_indices = @transform_6, window_bounds = array<i64: 2, 32, 96>}, {pipeline_mode = #tpu.pipeline_mode<synchronous>, transform_indices = @transform_7, window_bounds = array<i64: 2, 32, 32>}, {pipeline_mode = #tpu.pipeline_mode<synchronous>, transform_indices = @transform_8, window_bounds = array<i64: 2, 32, 128>}, {pipeline_mode = #tpu.pipeline_mode<synchronous>, transform_indices = @transform_9, window_bounds = array<i64: 2, 128, 32>}, {pipeline_mode = #tpu.pipeline_mode<synchronous>, transform_indices = @transform_10, window_bounds = array<i64: 32, 96>}, {pipeline_mode = #tpu.pipeline_mode<synchronous>, transform_indices = @transform_11, window_bounds = array<i64: 32, 32>}, {pipeline_mode = #tpu.pipeline_mode<synchronous>, transform_indices = @transform_12, window_bounds = array<i64: 32, 128>}, {pipeline_mode = #tpu.pipeline_mode<synchronous>, transform_indices = @transform_13, window_bounds = array<i64: 128, 32>}, {transform_indices = @transform_14, window_bounds = array<i64: 1, 15, 32>}]} {
    %c0 = arith.constant 0 : index
    %c0_0 = arith.constant 0 : index
    %c0_1 = arith.constant 0 : index
    %0 = vector.load %arg2[%c0, %c0_0, %c0_1] : memref<2x15x32xf32, #tpu.memory_space<vmem>>, vector<1x15x32xf32>
    %1 = vector.shape_cast %0 : vector<1x15x32xf32> to vector<15x32xf32>
    %c1 = arith.constant 1 : index
    %c0_2 = arith.constant 0 : index
    %c0_3 = arith.constant 0 : index
    %2 = vector.load %arg2[%c1, %c0_2, %c0_3] : memref<2x15x32xf32, #tpu.memory_space<vmem>>, vector<1x15x32xf32>
    %3 = vector.shape_cast %2 : vector<1x15x32xf32> to vector<15x32xf32>
    %c0_4 = arith.constant 0 : index
    %c0_5 = arith.constant 0 : index
    %4 = vector.load %arg3[%c0_4, %c0_5] : memref<11x32xf32, #tpu.memory_space<vmem>>, vector<11x32xf32>
    %c0_6 = arith.constant 0 : index
    %c0_7 = arith.constant 0 : index
    %5 = vector.load %arg5[%c0_6, %c0_7] : memref<3x128xf32, #tpu.memory_space<vmem>>, vector<3x128xf32>
    %c0_8 = arith.constant 0 : index
    %c0_9 = arith.constant 0 : index
    %c0_10 = arith.constant 0 : index
    %6 = vector.load %arg1[%c0_8, %c0_9, %c0_10] : memref<1x15x192xbf16, #tpu.memory_space<vmem>>, vector<1x15x192xbf16>
    %7 = vector.shape_cast %6 : vector<1x15x192xbf16> to vector<15x192xbf16>
    %c0_11 = arith.constant 0 : index
    %c0_12 = arith.constant 0 : index
    %8 = vector.load %arg6[%c0_11, %c0_12] : memref<192x32xbf16, #tpu.memory_space<vmem>>, vector<192x32xbf16>
    %cst = arith.constant dense<0.000000e+00> : vector<15x32xf32>
    %9 = tpu.matmul %7, %8, %cst {dimension_numbers = #tpu.dot_dimension_numbers<[1], [0], [0], [1], [0, 0, 1, 1], [], []>} : vector<15x192xbf16>, vector<192x32xbf16>, vector<15x32xf32> -> vector<15x32xf32>
    %10 = arith.addf %9, %1 : vector<15x32xf32>
    %c0_13 = arith.constant 0 : index
    %c0_14 = arith.constant 0 : index
    %c0_15 = arith.constant 0 : index
    %11 = vector.load %arg4[%c0_13, %c0_14, %c0_15] : memref<2x9x32xf32, #tpu.memory_space<vmem>>, vector<1x9x32xf32>
    %12 = vector.shape_cast %11 : vector<1x9x32xf32> to vector<9x32xf32>
    %13 = vector.extract_strided_slice %12 {offsets = [0, 0], sizes = [1, 32], strides = [1, 1]} : vector<9x32xf32> to vector<1x32xf32>
    %14 = vector.extract_strided_slice %12 {offsets = [1, 0], sizes = [1, 32], strides = [1, 1]} : vector<9x32xf32> to vector<1x32xf32>
    %cst_16 = arith.constant dense<0.000000e+00> : vector<15xf32>
    %15 = vector.multi_reduction <add>, %10, %cst_16 [1] : vector<15x32xf32> to vector<15xf32>
    %16 = vector.shape_cast %15 : vector<15xf32> to vector<15x1xf32>
    %cst_17 = arith.constant 3.200000e+01 : f32
    %17 = vector.broadcast %cst_17 : f32 to vector<15x1xf32>
    %18 = arith.divf %16, %17 : vector<15x1xf32>
    %19 = vector.broadcast %18 : vector<15x1xf32> to vector<15x32xf32>
    %20 = arith.subf %10, %19 : vector<15x32xf32>
    %21 = arith.mulf %20, %20 : vector<15x32xf32>
    %cst_18 = arith.constant dense<0.000000e+00> : vector<15xf32>
    %22 = vector.multi_reduction <add>, %21, %cst_18 [1] : vector<15x32xf32> to vector<15xf32>
    %23 = vector.shape_cast %22 : vector<15xf32> to vector<15x1xf32>
    %cst_19 = arith.constant 3.200000e+01 : f32
    %24 = vector.broadcast %cst_19 : f32 to vector<15x1xf32>
    %25 = arith.divf %23, %24 : vector<15x1xf32>
    %cst_20 = arith.constant 9.99999996E-13 : f32
    %26 = vector.broadcast %cst_20 : f32 to vector<15x1xf32>
    %27 = arith.addf %25, %26 : vector<15x1xf32>
    %28 = math.rsqrt %27 : vector<15x1xf32>
    %29 = vector.broadcast %28 : vector<15x1xf32> to vector<15x32xf32>
    %30 = arith.mulf %20, %29 : vector<15x32xf32>
    %31 = vector.broadcast %13 : vector<1x32xf32> to vector<15x32xf32>
    %32 = arith.mulf %30, %31 : vector<15x32xf32>
    %33 = vector.broadcast %14 : vector<1x32xf32> to vector<15x32xf32>
    %34 = arith.addf %32, %33 : vector<15x32xf32>
    %c0_21 = arith.constant 0 : index
    %c0_22 = arith.constant 0 : index
    %c0_23 = arith.constant 0 : index
    %35 = vector.load %arg7[%c0_21, %c0_22, %c0_23] : memref<2x32x96xbf16, #tpu.memory_space<vmem>>, vector<1x32x96xbf16>
    %36 = vector.shape_cast %35 : vector<1x32x96xbf16> to vector<32x96xbf16>
    %37 = vector.extract_strided_slice %12 {offsets = [2, 0], sizes = [1, 32], strides = [1, 1]} : vector<9x32xf32> to vector<1x32xf32>
    %38 = vector.extract_strided_slice %12 {offsets = [3, 0], sizes = [1, 32], strides = [1, 1]} : vector<9x32xf32> to vector<1x32xf32>
    %39 = vector.extract_strided_slice %12 {offsets = [4, 0], sizes = [1, 32], strides = [1, 1]} : vector<9x32xf32> to vector<1x32xf32>
    %c0_24 = arith.constant 0 : index
    %c0_25 = arith.constant 0 : index
    %c0_26 = arith.constant 0 : index
    %40 = vector.load %arg8[%c0_24, %c0_25, %c0_26] : memref<2x32x32xbf16, #tpu.memory_space<vmem>>, vector<1x32x32xbf16>
    %41 = vector.shape_cast %40 : vector<1x32x32xbf16> to vector<32x32xbf16>
    %42 = vector.extract_strided_slice %12 {offsets = [5, 0], sizes = [1, 32], strides = [1, 1]} : vector<9x32xf32> to vector<1x32xf32>
    %43 = arith.truncf %34 : vector<15x32xf32> to vector<15x32xbf16>
    %cst_27 = arith.constant dense<0.000000e+00> : vector<15x96xf32>
    %44 = tpu.matmul %43, %36, %cst_27 {dimension_numbers = #tpu.dot_dimension_numbers<[1], [0], [0], [1], [0, 0, 1, 1], [], []>} : vector<15x32xbf16>, vector<32x96xbf16>, vector<15x96xf32> -> vector<15x96xf32>
    %45 = vector.extract_strided_slice %44 {offsets = [0, 0], sizes = [15, 32], strides = [1, 1]} : vector<15x96xf32> to vector<15x32xf32>
    %46 = vector.broadcast %37 : vector<1x32xf32> to vector<15x32xf32>
    %47 = arith.addf %45, %46 : vector<15x32xf32>
    %48 = vector.extract_strided_slice %44 {offsets = [0, 32], sizes = [15, 32], strides = [1, 1]} : vector<15x96xf32> to vector<15x32xf32>
    %49 = vector.broadcast %38 : vector<1x32xf32> to vector<15x32xf32>
    %50 = arith.addf %48, %49 : vector<15x32xf32>
    %51 = vector.extract_strided_slice %44 {offsets = [0, 64], sizes = [15, 32], strides = [1, 1]} : vector<15x96xf32> to vector<15x32xf32>
    %52 = vector.broadcast %39 : vector<1x32xf32> to vector<15x32xf32>
    %53 = arith.addf %51, %52 : vector<15x32xf32>
    %54 = vector.extract_strided_slice %47 {offsets = [0, 0], sizes = [5, 8], strides = [1, 1]} : vector<15x32xf32> to vector<5x8xf32>
    %55 = vector.extract_strided_slice %47 {offsets = [0, 8], sizes = [5, 8], strides = [1, 1]} : vector<15x32xf32> to vector<5x8xf32>
    %56 = vector.extract_strided_slice %47 {offsets = [0, 16], sizes = [5, 8], strides = [1, 1]} : vector<15x32xf32> to vector<5x8xf32>
    %57 = vector.extract_strided_slice %47 {offsets = [0, 24], sizes = [5, 8], strides = [1, 1]} : vector<15x32xf32> to vector<5x8xf32>
    %58 = vector.shape_cast %54 : vector<5x8xf32> to vector<1x5x8xf32>
    %59 = vector.shape_cast %55 : vector<5x8xf32> to vector<1x5x8xf32>
    %60 = vector.shape_cast %56 : vector<5x8xf32> to vector<1x5x8xf32>
    %61 = vector.shape_cast %57 : vector<5x8xf32> to vector<1x5x8xf32>
    %62 = tpu.concatenate %58, %59, %60, %61 in 0 : vector<1x5x8xf32>, vector<1x5x8xf32>, vector<1x5x8xf32>, vector<1x5x8xf32> -> vector<4x5x8xf32>
    %63 = arith.truncf %62 : vector<4x5x8xf32> to vector<4x5x8xbf16>
    %64 = vector.extract_strided_slice %50 {offsets = [0, 0], sizes = [5, 8], strides = [1, 1]} : vector<15x32xf32> to vector<5x8xf32>
    %65 = vector.extract_strided_slice %50 {offsets = [0, 8], sizes = [5, 8], strides = [1, 1]} : vector<15x32xf32> to vector<5x8xf32>
    %66 = vector.extract_strided_slice %50 {offsets = [0, 16], sizes = [5, 8], strides = [1, 1]} : vector<15x32xf32> to vector<5x8xf32>
    %67 = vector.extract_strided_slice %50 {offsets = [0, 24], sizes = [5, 8], strides = [1, 1]} : vector<15x32xf32> to vector<5x8xf32>
    %68 = vector.shape_cast %64 : vector<5x8xf32> to vector<1x5x8xf32>
    %69 = vector.shape_cast %65 : vector<5x8xf32> to vector<1x5x8xf32>
    %70 = vector.shape_cast %66 : vector<5x8xf32> to vector<1x5x8xf32>
    %71 = vector.shape_cast %67 : vector<5x8xf32> to vector<1x5x8xf32>
    %72 = tpu.concatenate %68, %69, %70, %71 in 0 : vector<1x5x8xf32>, vector<1x5x8xf32>, vector<1x5x8xf32>, vector<1x5x8xf32> -> vector<4x5x8xf32>
    %73 = arith.truncf %72 : vector<4x5x8xf32> to vector<4x5x8xbf16>
    %74 = vector.extract_strided_slice %53 {offsets = [0, 0], sizes = [5, 8], strides = [1, 1]} : vector<15x32xf32> to vector<5x8xf32>
    %75 = vector.extract_strided_slice %53 {offsets = [0, 8], sizes = [5, 8], strides = [1, 1]} : vector<15x32xf32> to vector<5x8xf32>
    %76 = vector.extract_strided_slice %53 {offsets = [0, 16], sizes = [5, 8], strides = [1, 1]} : vector<15x32xf32> to vector<5x8xf32>
    %77 = vector.extract_strided_slice %53 {offsets = [0, 24], sizes = [5, 8], strides = [1, 1]} : vector<15x32xf32> to vector<5x8xf32>
    %78 = vector.shape_cast %74 : vector<5x8xf32> to vector<1x5x8xf32>
    %79 = vector.shape_cast %75 : vector<5x8xf32> to vector<1x5x8xf32>
    %80 = vector.shape_cast %76 : vector<5x8xf32> to vector<1x5x8xf32>
    %81 = vector.shape_cast %77 : vector<5x8xf32> to vector<1x5x8xf32>
    %82 = tpu.concatenate %78, %79, %80, %81 in 0 : vector<1x5x8xf32>, vector<1x5x8xf32>, vector<1x5x8xf32>, vector<1x5x8xf32> -> vector<4x5x8xf32>
    %83 = arith.truncf %82 : vector<4x5x8xf32> to vector<4x5x8xbf16>
    "tpu.trace_start"() <{level = 10 : i32, message = "hqd,hkd->hqk"}> : () -> ()
    %cst_28 = arith.constant dense<0.000000e+00> : vector<4x5x5xf32>
    %84 = tpu.matmul %63, %73, %cst_28 {dimension_numbers = #tpu.dot_dimension_numbers<[2], [2], [1], [1], [0, 0, 0, 1, 1, 1], [0], [0]>} : vector<4x5x8xbf16>, vector<4x5x8xbf16>, vector<4x5x5xf32> -> vector<4x5x5xf32>
    "tpu.trace_stop"() : () -> ()
    %cst_29 = arith.constant 0.353553385 : f32
    %85 = vector.broadcast %cst_29 : f32 to vector<4x5x5xf32>
    %86 = arith.mulf %84, %85 : vector<4x5x5xf32>
    %cst_30 = arith.constant dense<0xFF800000> : vector<4x5xf32>
    %87 = vector.multi_reduction <maximumf>, %86, %cst_30 [2] : vector<4x5x5xf32> to vector<4x5xf32>
    %88 = vector.shape_cast %87 : vector<4x5xf32> to vector<4x5x1xf32>
    %89 = vector.broadcast %88 : vector<4x5x1xf32> to vector<4x5x5xf32>
    %90 = arith.subf %86, %89 : vector<4x5x5xf32>
    %91 = math.exp %90 : vector<4x5x5xf32>
    %cst_31 = arith.constant dense<0.000000e+00> : vector<4x5xf32>
    %92 = vector.multi_reduction <add>, %91, %cst_31 [2] : vector<4x5x5xf32> to vector<4x5xf32>
    %93 = vector.shape_cast %92 : vector<4x5xf32> to vector<4x5x1xf32>
    %94 = tpu.reciprocal %93 {approx = true} : vector<4x5x1xf32> -> vector<4x5x1xf32>
    %95 = vector.broadcast %94 : vector<4x5x1xf32> to vector<4x5x5xf32>
    %96 = arith.mulf %91, %95 : vector<4x5x5xf32>
    %97 = arith.truncf %96 : vector<4x5x5xf32> to vector<4x5x5xbf16>
    "tpu.trace_start"() <{level = 10 : i32, message = "hqk,hkd->hqd"}> : () -> ()
    %cst_32 = arith.constant dense<0.000000e+00> : vector<4x5x8xf32>
    %98 = tpu.matmul %97, %83, %cst_32 {dimension_numbers = #tpu.dot_dimension_numbers<[2], [1], [1], [2], [0, 0, 0, 1, 1, 2], [0], [0]>} : vector<4x5x5xbf16>, vector<4x5x8xbf16>, vector<4x5x8xf32> -> vector<4x5x8xf32>
    "tpu.trace_stop"() : () -> ()
    %99 = vector.extract_strided_slice %98 {offsets = [0, 0, 0], sizes = [1, 5, 8], strides = [1, 1, 1]} : vector<4x5x8xf32> to vector<1x5x8xf32>
    %100 = vector.shape_cast %99 : vector<1x5x8xf32> to vector<5x8xf32>
    %c0_33 = arith.constant 0 : index
    %c0_34 = arith.constant 0 : index
    %101 = vector.load %arg16[%c0_33, %c0_34] : memref<15x32xf32, #tpu.memory_space<vmem>>, vector<5x8xf32>
    tpu.vector_store %arg16[%c0_33, %c0_34], %100 {strides = array<i32>} : memref<15x32xf32, #tpu.memory_space<vmem>>, vector<5x8xf32>,
    %102 = vector.extract_strided_slice %98 {offsets = [1, 0, 0], sizes = [1, 5, 8], strides = [1, 1, 1]} : vector<4x5x8xf32> to vector<1x5x8xf32>
    %103 = vector.shape_cast %102 : vector<1x5x8xf32> to vector<5x8xf32>
    %c0_35 = arith.constant 0 : index
    %c8 = arith.constant 8 : index
    %104 = vector.load %arg16[%c0_35, %c8] : memref<15x32xf32, #tpu.memory_space<vmem>>, vector<5x8xf32>
    tpu.vector_store %arg16[%c0_35, %c8], %103 {strides = array<i32>} : memref<15x32xf32, #tpu.memory_space<vmem>>, vector<5x8xf32>,
    %105 = vector.extract_strided_slice %98 {offsets = [2, 0, 0], sizes = [1, 5, 8], strides = [1, 1, 1]} : vector<4x5x8xf32> to vector<1x5x8xf32>
    %106 = vector.shape_cast %105 : vector<1x5x8xf32> to vector<5x8xf32>
    %c0_36 = arith.constant 0 : index
    %c16 = arith.constant 16 : index
    %107 = vector.load %arg16[%c0_36, %c16] : memref<15x32xf32, #tpu.memory_space<vmem>>, vector<5x8xf32>
    tpu.vector_store %arg16[%c0_36, %c16], %106 {strides = array<i32>} : memref<15x32xf32, #tpu.memory_space<vmem>>, vector<5x8xf32>,
    %108 = vector.extract_strided_slice %98 {offsets = [3, 0, 0], sizes = [1, 5, 8], strides = [1, 1, 1]} : vector<4x5x8xf32> to vector<1x5x8xf32>
    %109 = vector.shape_cast %108 : vector<1x5x8xf32> to vector<5x8xf32>
    %c0_37 = arith.constant 0 : index
    %c24 = arith.constant 24 : index
    %110 = vector.load %arg16[%c0_37, %c24] : memref<15x32xf32, #tpu.memory_space<vmem>>, vector<5x8xf32>
    tpu.vector_store %arg16[%c0_37, %c24], %109 {strides = array<i32>} : memref<15x32xf32, #tpu.memory_space<vmem>>, vector<5x8xf32>,
    %111 = vector.extract_strided_slice %47 {offsets = [5, 0], sizes = [5, 8], strides = [1, 1]} : vector<15x32xf32> to vector<5x8xf32>
    %112 = vector.extract_strided_slice %47 {offsets = [5, 8], sizes = [5, 8], strides = [1, 1]} : vector<15x32xf32> to vector<5x8xf32>
    %113 = vector.extract_strided_slice %47 {offsets = [5, 16], sizes = [5, 8], strides = [1, 1]} : vector<15x32xf32> to vector<5x8xf32>
    %114 = vector.extract_strided_slice %47 {offsets = [5, 24], sizes = [5, 8], strides = [1, 1]} : vector<15x32xf32> to vector<5x8xf32>
    %115 = vector.shape_cast %111 : vector<5x8xf32> to vector<1x5x8xf32>
    %116 = vector.shape_cast %112 : vector<5x8xf32> to vector<1x5x8xf32>
    %117 = vector.shape_cast %113 : vector<5x8xf32> to vector<1x5x8xf32>
    %118 = vector.shape_cast %114 : vector<5x8xf32> to vector<1x5x8xf32>
    %119 = tpu.concatenate %115, %116, %117, %118 in 0 : vector<1x5x8xf32>, vector<1x5x8xf32>, vector<1x5x8xf32>, vector<1x5x8xf32> -> vector<4x5x8xf32>
    %120 = arith.truncf %119 : vector<4x5x8xf32> to vector<4x5x8xbf16>
    %121 = vector.extract_strided_slice %50 {offsets = [5, 0], sizes = [5, 8], strides = [1, 1]} : vector<15x32xf32> to vector<5x8xf32>
    %122 = vector.extract_strided_slice %50 {offsets = [5, 8], sizes = [5, 8], strides = [1, 1]} : vector<15x32xf32> to vector<5x8xf32>
    %123 = vector.extract_strided_slice %50 {offsets = [5, 16], sizes = [5, 8], strides = [1, 1]} : vector<15x32xf32> to vector<5x8xf32>
    %124 = vector.extract_strided_slice %50 {offsets = [5, 24], sizes = [5, 8], strides = [1, 1]} : vector<15x32xf32> to vector<5x8xf32>
    %125 = vector.shape_cast %121 : vector<5x8xf32> to vector<1x5x8xf32>
    %126 = vector.shape_cast %122 : vector<5x8xf32> to vector<1x5x8xf32>
    %127 = vector.shape_cast %123 : vector<5x8xf32> to vector<1x5x8xf32>
    %128 = vector.shape_cast %124 : vector<5x8xf32> to vector<1x5x8xf32>
    %129 = tpu.concatenate %125, %126, %127, %128 in 0 : vector<1x5x8xf32>, vector<1x5x8xf32>, vector<1x5x8xf32>, vector<1x5x8xf32> -> vector<4x5x8xf32>
    %130 = arith.truncf %129 : vector<4x5x8xf32> to vector<4x5x8xbf16>
    %131 = vector.extract_strided_slice %53 {offsets = [5, 0], sizes = [5, 8], strides = [1, 1]} : vector<15x32xf32> to vector<5x8xf32>
    %132 = vector.extract_strided_slice %53 {offsets = [5, 8], sizes = [5, 8], strides = [1, 1]} : vector<15x32xf32> to vector<5x8xf32>
    %133 = vector.extract_strided_slice %53 {offsets = [5, 16], sizes = [5, 8], strides = [1, 1]} : vector<15x32xf32> to vector<5x8xf32>
    %134 = vector.extract_strided_slice %53 {offsets = [5, 24], sizes = [5, 8], strides = [1, 1]} : vector<15x32xf32> to vector<5x8xf32>
    %135 = vector.shape_cast %131 : vector<5x8xf32> to vector<1x5x8xf32>
    %136 = vector.shape_cast %132 : vector<5x8xf32> to vector<1x5x8xf32>
    %137 = vector.shape_cast %133 : vector<5x8xf32> to vector<1x5x8xf32>
    %138 = vector.shape_cast %134 : vector<5x8xf32> to vector<1x5x8xf32>
    %139 = tpu.concatenate %135, %136, %137, %138 in 0 : vector<1x5x8xf32>, vector<1x5x8xf32>, vector<1x5x8xf32>, vector<1x5x8xf32> -> vector<4x5x8xf32>
    %140 = arith.truncf %139 : vector<4x5x8xf32> to vector<4x5x8xbf16>
    "tpu.trace_start"() <{level = 10 : i32, message = "hqd,hkd->hqk"}> : () -> ()
    %cst_38 = arith.constant dense<0.000000e+00> : vector<4x5x5xf32>
    %141 = tpu.matmul %120, %130, %cst_38 {dimension_numbers = #tpu.dot_dimension_numbers<[2], [2], [1], [1], [0, 0, 0, 1, 1, 1], [0], [0]>} : vector<4x5x8xbf16>, vector<4x5x8xbf16>, vector<4x5x5xf32> -> vector<4x5x5xf32>
    "tpu.trace_stop"() : () -> ()
    %cst_39 = arith.constant 0.353553385 : f32
    %142 = vector.broadcast %cst_39 : f32 to vector<4x5x5xf32>
    %143 = arith.mulf %141, %142 : vector<4x5x5xf32>
    %cst_40 = arith.constant dense<0xFF800000> : vector<4x5xf32>
    %144 = vector.multi_reduction <maximumf>, %143, %cst_40 [2] : vector<4x5x5xf32> to vector<4x5xf32>
    %145 = vector.shape_cast %144 : vector<4x5xf32> to vector<4x5x1xf32>
    %146 = vector.broadcast %145 : vector<4x5x1xf32> to vector<4x5x5xf32>
    %147 = arith.subf %143, %146 : vector<4x5x5xf32>
    %148 = math.exp %147 : vector<4x5x5xf32>
    %cst_41 = arith.constant dense<0.000000e+00> : vector<4x5xf32>
    %149 = vector.multi_reduction <add>, %148, %cst_41 [2] : vector<4x5x5xf32> to vector<4x5xf32>
    %150 = vector.shape_cast %149 : vector<4x5xf32> to vector<4x5x1xf32>
    %151 = tpu.reciprocal %150 {approx = true} : vector<4x5x1xf32> -> vector<4x5x1xf32>
    %152 = vector.broadcast %151 : vector<4x5x1xf32> to vector<4x5x5xf32>
    %153 = arith.mulf %148, %152 : vector<4x5x5xf32>
    %154 = arith.truncf %153 : vector<4x5x5xf32> to vector<4x5x5xbf16>
    "tpu.trace_start"() <{level = 10 : i32, message = "hqk,hkd->hqd"}> : () -> ()
    %cst_42 = arith.constant dense<0.000000e+00> : vector<4x5x8xf32>
    %155 = tpu.matmul %154, %140, %cst_42 {dimension_numbers = #tpu.dot_dimension_numbers<[2], [1], [1], [2], [0, 0, 0, 1, 1, 2], [0], [0]>} : vector<4x5x5xbf16>, vector<4x5x8xbf16>, vector<4x5x8xf32> -> vector<4x5x8xf32>
    "tpu.trace_stop"() : () -> ()
    %156 = vector.extract_strided_slice %155 {offsets = [0, 0, 0], sizes = [1, 5, 8], strides = [1, 1, 1]} : vector<4x5x8xf32> to vector<1x5x8xf32>
    %157 = vector.shape_cast %156 : vector<1x5x8xf32> to vector<5x8xf32>
    %c5 = arith.constant 5 : index
    %c0_43 = arith.constant 0 : index
    %158 = vector.load %arg16[%c5, %c0_43] : memref<15x32xf32, #tpu.memory_space<vmem>>, vector<5x8xf32>
    tpu.vector_store %arg16[%c5, %c0_43], %157 {strides = array<i32>} : memref<15x32xf32, #tpu.memory_space<vmem>>, vector<5x8xf32>,
    %159 = vector.extract_strided_slice %155 {offsets = [1, 0, 0], sizes = [1, 5, 8], strides = [1, 1, 1]} : vector<4x5x8xf32> to vector<1x5x8xf32>
    %160 = vector.shape_cast %159 : vector<1x5x8xf32> to vector<5x8xf32>
    %c5_44 = arith.constant 5 : index
    %c8_45 = arith.constant 8 : index
    %161 = vector.load %arg16[%c5_44, %c8_45] : memref<15x32xf32, #tpu.memory_space<vmem>>, vector<5x8xf32>
    tpu.vector_store %arg16[%c5_44, %c8_45], %160 {strides = array<i32>} : memref<15x32xf32, #tpu.memory_space<vmem>>, vector<5x8xf32>,
    %162 = vector.extract_strided_slice %155 {offsets = [2, 0, 0], sizes = [1, 5, 8], strides = [1, 1, 1]} : vector<4x5x8xf32> to vector<1x5x8xf32>
    %163 = vector.shape_cast %162 : vector<1x5x8xf32> to vector<5x8xf32>
    %c5_46 = arith.constant 5 : index
    %c16_47 = arith.constant 16 : index
    %164 = vector.load %arg16[%c5_46, %c16_47] : memref<15x32xf32, #tpu.memory_space<vmem>>, vector<5x8xf32>
    tpu.vector_store %arg16[%c5_46, %c16_47], %163 {strides = array<i32>} : memref<15x32xf32, #tpu.memory_space<vmem>>, vector<5x8xf32>,
    %165 = vector.extract_strided_slice %155 {offsets = [3, 0, 0], sizes = [1, 5, 8], strides = [1, 1, 1]} : vector<4x5x8xf32> to vector<1x5x8xf32>
    %166 = vector.shape_cast %165 : vector<1x5x8xf32> to vector<5x8xf32>
    %c5_48 = arith.constant 5 : index
    %c24_49 = arith.constant 24 : index
    %167 = vector.load %arg16[%c5_48, %c24_49] : memref<15x32xf32, #tpu.memory_space<vmem>>, vector<5x8xf32>
    tpu.vector_store %arg16[%c5_48, %c24_49], %166 {strides = array<i32>} : memref<15x32xf32, #tpu.memory_space<vmem>>, vector<5x8xf32>,
    %168 = vector.extract_strided_slice %47 {offsets = [10, 0], sizes = [5, 8], strides = [1, 1]} : vector<15x32xf32> to vector<5x8xf32>
    %169 = vector.extract_strided_slice %47 {offsets = [10, 8], sizes = [5, 8], strides = [1, 1]} : vector<15x32xf32> to vector<5x8xf32>
    %170 = vector.extract_strided_slice %47 {offsets = [10, 16], sizes = [5, 8], strides = [1, 1]} : vector<15x32xf32> to vector<5x8xf32>
    %171 = vector.extract_strided_slice %47 {offsets = [10, 24], sizes = [5, 8], strides = [1, 1]} : vector<15x32xf32> to vector<5x8xf32>
    %172 = vector.shape_cast %168 : vector<5x8xf32> to vector<1x5x8xf32>
    %173 = vector.shape_cast %169 : vector<5x8xf32> to vector<1x5x8xf32>
    %174 = vector.shape_cast %170 : vector<5x8xf32> to vector<1x5x8xf32>
    %175 = vector.shape_cast %171 : vector<5x8xf32> to vector<1x5x8xf32>
    %176 = tpu.concatenate %172, %173, %174, %175 in 0 : vector<1x5x8xf32>, vector<1x5x8xf32>, vector<1x5x8xf32>, vector<1x5x8xf32> -> vector<4x5x8xf32>
    %177 = arith.truncf %176 : vector<4x5x8xf32> to vector<4x5x8xbf16>
    %178 = vector.extract_strided_slice %50 {offsets = [10, 0], sizes = [5, 8], strides = [1, 1]} : vector<15x32xf32> to vector<5x8xf32>
    %179 = vector.extract_strided_slice %50 {offsets = [10, 8], sizes = [5, 8], strides = [1, 1]} : vector<15x32xf32> to vector<5x8xf32>
    %180 = vector.extract_strided_slice %50 {offsets = [10, 16], sizes = [5, 8], strides = [1, 1]} : vector<15x32xf32> to vector<5x8xf32>
    %181 = vector.extract_strided_slice %50 {offsets = [10, 24], sizes = [5, 8], strides = [1, 1]} : vector<15x32xf32> to vector<5x8xf32>
    %182 = vector.shape_cast %178 : vector<5x8xf32> to vector<1x5x8xf32>
    %183 = vector.shape_cast %179 : vector<5x8xf32> to vector<1x5x8xf32>
    %184 = vector.shape_cast %180 : vector<5x8xf32> to vector<1x5x8xf32>
    %185 = vector.shape_cast %181 : vector<5x8xf32> to vector<1x5x8xf32>
    %186 = tpu.concatenate %182, %183, %184, %185 in 0 : vector<1x5x8xf32>, vector<1x5x8xf32>, vector<1x5x8xf32>, vector<1x5x8xf32> -> vector<4x5x8xf32>
    %187 = arith.truncf %186 : vector<4x5x8xf32> to vector<4x5x8xbf16>
    %188 = vector.extract_strided_slice %53 {offsets = [10, 0], sizes = [5, 8], strides = [1, 1]} : vector<15x32xf32> to vector<5x8xf32>
    %189 = vector.extract_strided_slice %53 {offsets = [10, 8], sizes = [5, 8], strides = [1, 1]} : vector<15x32xf32> to vector<5x8xf32>
    %190 = vector.extract_strided_slice %53 {offsets = [10, 16], sizes = [5, 8], strides = [1, 1]} : vector<15x32xf32> to vector<5x8xf32>
    %191 = vector.extract_strided_slice %53 {offsets = [10, 24], sizes = [5, 8], strides = [1, 1]} : vector<15x32xf32> to vector<5x8xf32>
    %192 = vector.shape_cast %188 : vector<5x8xf32> to vector<1x5x8xf32>
    %193 = vector.shape_cast %189 : vector<5x8xf32> to vector<1x5x8xf32>
    %194 = vector.shape_cast %190 : vector<5x8xf32> to vector<1x5x8xf32>
    %195 = vector.shape_cast %191 : vector<5x8xf32> to vector<1x5x8xf32>
    %196 = tpu.concatenate %192, %193, %194, %195 in 0 : vector<1x5x8xf32>, vector<1x5x8xf32>, vector<1x5x8xf32>, vector<1x5x8xf32> -> vector<4x5x8xf32>
    %197 = arith.truncf %196 : vector<4x5x8xf32> to vector<4x5x8xbf16>
    "tpu.trace_start"() <{level = 10 : i32, message = "hqd,hkd->hqk"}> : () -> ()
    %cst_50 = arith.constant dense<0.000000e+00> : vector<4x5x5xf32>
    %198 = tpu.matmul %177, %187, %cst_50 {dimension_numbers = #tpu.dot_dimension_numbers<[2], [2], [1], [1], [0, 0, 0, 1, 1, 1], [0], [0]>} : vector<4x5x8xbf16>, vector<4x5x8xbf16>, vector<4x5x5xf32> -> vector<4x5x5xf32>
    "tpu.trace_stop"() : () -> ()
    %cst_51 = arith.constant 0.353553385 : f32
    %199 = vector.broadcast %cst_51 : f32 to vector<4x5x5xf32>
    %200 = arith.mulf %198, %199 : vector<4x5x5xf32>
    %cst_52 = arith.constant dense<0xFF800000> : vector<4x5xf32>
    %201 = vector.multi_reduction <maximumf>, %200, %cst_52 [2] : vector<4x5x5xf32> to vector<4x5xf32>
    %202 = vector.shape_cast %201 : vector<4x5xf32> to vector<4x5x1xf32>
    %203 = vector.broadcast %202 : vector<4x5x1xf32> to vector<4x5x5xf32>
    %204 = arith.subf %200, %203 : vector<4x5x5xf32>
    %205 = math.exp %204 : vector<4x5x5xf32>
    %cst_53 = arith.constant dense<0.000000e+00> : vector<4x5xf32>
    %206 = vector.multi_reduction <add>, %205, %cst_53 [2] : vector<4x5x5xf32> to vector<4x5xf32>
    %207 = vector.shape_cast %206 : vector<4x5xf32> to vector<4x5x1xf32>
    %208 = tpu.reciprocal %207 {approx = true} : vector<4x5x1xf32> -> vector<4x5x1xf32>
    %209 = vector.broadcast %208 : vector<4x5x1xf32> to vector<4x5x5xf32>
    %210 = arith.mulf %205, %209 : vector<4x5x5xf32>
    %211 = arith.truncf %210 : vector<4x5x5xf32> to vector<4x5x5xbf16>
    "tpu.trace_start"() <{level = 10 : i32, message = "hqk,hkd->hqd"}> : () -> ()
    %cst_54 = arith.constant dense<0.000000e+00> : vector<4x5x8xf32>
    %212 = tpu.matmul %211, %197, %cst_54 {dimension_numbers = #tpu.dot_dimension_numbers<[2], [1], [1], [2], [0, 0, 0, 1, 1, 2], [0], [0]>} : vector<4x5x5xbf16>, vector<4x5x8xbf16>, vector<4x5x8xf32> -> vector<4x5x8xf32>
    "tpu.trace_stop"() : () -> ()
    %213 = vector.extract_strided_slice %212 {offsets = [0, 0, 0], sizes = [1, 5, 8], strides = [1, 1, 1]} : vector<4x5x8xf32> to vector<1x5x8xf32>
    %214 = vector.shape_cast %213 : vector<1x5x8xf32> to vector<5x8xf32>
    %c10 = arith.constant 10 : index
    %c0_55 = arith.constant 0 : index
    %215 = vector.load %arg16[%c10, %c0_55] : memref<15x32xf32, #tpu.memory_space<vmem>>, vector<5x8xf32>
    tpu.vector_store %arg16[%c10, %c0_55], %214 {strides = array<i32>} : memref<15x32xf32, #tpu.memory_space<vmem>>, vector<5x8xf32>,
    %216 = vector.extract_strided_slice %212 {offsets = [1, 0, 0], sizes = [1, 5, 8], strides = [1, 1, 1]} : vector<4x5x8xf32> to vector<1x5x8xf32>
    %217 = vector.shape_cast %216 : vector<1x5x8xf32> to vector<5x8xf32>
    %c10_56 = arith.constant 10 : index
    %c8_57 = arith.constant 8 : index
    %218 = vector.load %arg16[%c10_56, %c8_57] : memref<15x32xf32, #tpu.memory_space<vmem>>, vector<5x8xf32>
    tpu.vector_store %arg16[%c10_56, %c8_57], %217 {strides = array<i32>} : memref<15x32xf32, #tpu.memory_space<vmem>>, vector<5x8xf32>,
    %219 = vector.extract_strided_slice %212 {offsets = [2, 0, 0], sizes = [1, 5, 8], strides = [1, 1, 1]} : vector<4x5x8xf32> to vector<1x5x8xf32>
    %220 = vector.shape_cast %219 : vector<1x5x8xf32> to vector<5x8xf32>
    %c10_58 = arith.constant 10 : index
    %c16_59 = arith.constant 16 : index
    %221 = vector.load %arg16[%c10_58, %c16_59] : memref<15x32xf32, #tpu.memory_space<vmem>>, vector<5x8xf32>
    tpu.vector_store %arg16[%c10_58, %c16_59], %220 {strides = array<i32>} : memref<15x32xf32, #tpu.memory_space<vmem>>, vector<5x8xf32>,
    %222 = vector.extract_strided_slice %212 {offsets = [3, 0, 0], sizes = [1, 5, 8], strides = [1, 1, 1]} : vector<4x5x8xf32> to vector<1x5x8xf32>
    %223 = vector.shape_cast %222 : vector<1x5x8xf32> to vector<5x8xf32>
    %c10_60 = arith.constant 10 : index
    %c24_61 = arith.constant 24 : index
    %224 = vector.load %arg16[%c10_60, %c24_61] : memref<15x32xf32, #tpu.memory_space<vmem>>, vector<5x8xf32>
    tpu.vector_store %arg16[%c10_60, %c24_61], %223 {strides = array<i32>} : memref<15x32xf32, #tpu.memory_space<vmem>>, vector<5x8xf32>,
    %c0_62 = arith.constant 0 : index
    %c0_63 = arith.constant 0 : index
    %225 = vector.load %arg16[%c0_62, %c0_63] : memref<15x32xf32, #tpu.memory_space<vmem>>, vector<15x32xf32>
    %226 = arith.truncf %225 : vector<15x32xf32> to vector<15x32xbf16>
    %cst_64 = arith.constant dense<0.000000e+00> : vector<15x32xf32>
    %227 = tpu.matmul %226, %41, %cst_64 {dimension_numbers = #tpu.dot_dimension_numbers<[1], [0], [0], [1], [0, 0, 1, 1], [], []>} : vector<15x32xbf16>, vector<32x32xbf16>, vector<15x32xf32> -> vector<15x32xf32>
    %228 = vector.broadcast %42 : vector<1x32xf32> to vector<15x32xf32>
    %229 = arith.addf %227, %228 : vector<15x32xf32>
    %230 = arith.addf %10, %229 : vector<15x32xf32>
    %231 = vector.extract_strided_slice %12 {offsets = [6, 0], sizes = [1, 32], strides = [1, 1]} : vector<9x32xf32> to vector<1x32xf32>
    %232 = vector.extract_strided_slice %12 {offsets = [7, 0], sizes = [1, 32], strides = [1, 1]} : vector<9x32xf32> to vector<1x32xf32>
    %cst_65 = arith.constant dense<0.000000e+00> : vector<15xf32>
    %233 = vector.multi_reduction <add>, %230, %cst_65 [1] : vector<15x32xf32> to vector<15xf32>
    %234 = vector.shape_cast %233 : vector<15xf32> to vector<15x1xf32>
    %cst_66 = arith.constant 3.200000e+01 : f32
    %235 = vector.broadcast %cst_66 : f32 to vector<15x1xf32>
    %236 = arith.divf %234, %235 : vector<15x1xf32>
    %237 = vector.broadcast %236 : vector<15x1xf32> to vector<15x32xf32>
    %238 = arith.subf %230, %237 : vector<15x32xf32>
    %239 = arith.mulf %238, %238 : vector<15x32xf32>
    %cst_67 = arith.constant dense<0.000000e+00> : vector<15xf32>
    %240 = vector.multi_reduction <add>, %239, %cst_67 [1] : vector<15x32xf32> to vector<15xf32>
    %241 = vector.shape_cast %240 : vector<15xf32> to vector<15x1xf32>
    %cst_68 = arith.constant 3.200000e+01 : f32
    %242 = vector.broadcast %cst_68 : f32 to vector<15x1xf32>
    %243 = arith.divf %241, %242 : vector<15x1xf32>
    %cst_69 = arith.constant 9.99999996E-13 : f32
    %244 = vector.broadcast %cst_69 : f32 to vector<15x1xf32>
    %245 = arith.addf %243, %244 : vector<15x1xf32>
    %246 = math.rsqrt %245 : vector<15x1xf32>
    %247 = vector.broadcast %246 : vector<15x1xf32> to vector<15x32xf32>
    %248 = arith.mulf %238, %247 : vector<15x32xf32>
    %249 = vector.broadcast %231 : vector<1x32xf32> to vector<15x32xf32>
    %250 = arith.mulf %248, %249 : vector<15x32xf32>
    %251 = vector.broadcast %232 : vector<1x32xf32> to vector<15x32xf32>
    %252 = arith.addf %250, %251 : vector<15x32xf32>
    %253 = arith.truncf %252 : vector<15x32xf32> to vector<15x32xbf16>
    %c0_70 = arith.constant 0 : index
    %c0_71 = arith.constant 0 : index
    %c0_72 = arith.constant 0 : index
    %254 = vector.load %arg9[%c0_70, %c0_71, %c0_72] : memref<2x32x128xbf16, #tpu.memory_space<vmem>>, vector<1x32x128xbf16>
    %255 = vector.shape_cast %254 : vector<1x32x128xbf16> to vector<32x128xbf16>
    %cst_73 = arith.constant dense<0.000000e+00> : vector<15x128xf32>
    %256 = tpu.matmul %253, %255, %cst_73 {dimension_numbers = #tpu.dot_dimension_numbers<[1], [0], [0], [1], [0, 0, 1, 1], [], []>} : vector<15x32xbf16>, vector<32x128xbf16>, vector<15x128xf32> -> vector<15x128xf32>
    %257 = vector.extract_strided_slice %5 {offsets = [0, 0], sizes = [1, 128], strides = [1, 1]} : vector<3x128xf32> to vector<1x128xf32>
    %258 = vector.broadcast %257 : vector<1x128xf32> to vector<15x128xf32>
    %259 = arith.addf %256, %258 : vector<15x128xf32>
    %cst_74 = arith.constant 5.000000e-01 : f32
    %260 = vector.broadcast %cst_74 : f32 to vector<15x128xf32>
    %261 = arith.mulf %260, %259 : vector<15x128xf32>
    %cst_75 = arith.constant 0.707106769 : f32
    %262 = vector.broadcast %cst_75 : f32 to vector<15x128xf32>
    %263 = arith.mulf %259, %262 : vector<15x128xf32>
    %264 = math.erf %263 : vector<15x128xf32>
    %cst_76 = arith.constant 1.000000e+00 : f32
    %265 = vector.broadcast %cst_76 : f32 to vector<15x128xf32>
    %266 = arith.addf %265, %264 : vector<15x128xf32>
    %267 = arith.mulf %261, %266 : vector<15x128xf32>
    %268 = arith.truncf %267 : vector<15x128xf32> to vector<15x128xbf16>
    %c0_77 = arith.constant 0 : index
    %c0_78 = arith.constant 0 : index
    %c0_79 = arith.constant 0 : index
    %269 = vector.load %arg10[%c0_77, %c0_78, %c0_79] : memref<2x128x32xbf16, #tpu.memory_space<vmem>>, vector<1x128x32xbf16>
    %270 = vector.shape_cast %269 : vector<1x128x32xbf16> to vector<128x32xbf16>
    %cst_80 = arith.constant dense<0.000000e+00> : vector<15x32xf32>
    %271 = tpu.matmul %268, %270, %cst_80 {dimension_numbers = #tpu.dot_dimension_numbers<[1], [0], [0], [1], [0, 0, 1, 1], [], []>} : vector<15x128xbf16>, vector<128x32xbf16>, vector<15x32xf32> -> vector<15x32xf32>
    %272 = vector.extract_strided_slice %12 {offsets = [8, 0], sizes = [1, 32], strides = [1, 1]} : vector<9x32xf32> to vector<1x32xf32>
    %273 = vector.broadcast %272 : vector<1x32xf32> to vector<15x32xf32>
    %274 = arith.addf %271, %273 : vector<15x32xf32>
    %275 = arith.addf %230, %274 : vector<15x32xf32>
    %c1_81 = arith.constant 1 : index
    %c0_82 = arith.constant 0 : index
    %c0_83 = arith.constant 0 : index
    %276 = vector.load %arg4[%c1_81, %c0_82, %c0_83] : memref<2x9x32xf32, #tpu.memory_space<vmem>>, vector<1x9x32xf32>
    %277 = vector.shape_cast %276 : vector<1x9x32xf32> to vector<9x32xf32>
    %278 = vector.extract_strided_slice %277 {offsets = [0, 0], sizes = [1, 32], strides = [1, 1]} : vector<9x32xf32> to vector<1x32xf32>
    %279 = vector.extract_strided_slice %277 {offsets = [1, 0], sizes = [1, 32], strides = [1, 1]} : vector<9x32xf32> to vector<1x32xf32>
    %cst_84 = arith.constant dense<0.000000e+00> : vector<15xf32>
    %280 = vector.multi_reduction <add>, %275, %cst_84 [1] : vector<15x32xf32> to vector<15xf32>
    %281 = vector.shape_cast %280 : vector<15xf32> to vector<15x1xf32>
    %cst_85 = arith.constant 3.200000e+01 : f32
    %282 = vector.broadcast %cst_85 : f32 to vector<15x1xf32>
    %283 = arith.divf %281, %282 : vector<15x1xf32>
    %284 = vector.broadcast %283 : vector<15x1xf32> to vector<15x32xf32>
    %285 = arith.subf %275, %284 : vector<15x32xf32>
    %286 = arith.mulf %285, %285 : vector<15x32xf32>
    %cst_86 = arith.constant dense<0.000000e+00> : vector<15xf32>
    %287 = vector.multi_reduction <add>, %286, %cst_86 [1] : vector<15x32xf32> to vector<15xf32>
    %288 = vector.shape_cast %287 : vector<15xf32> to vector<15x1xf32>
    %cst_87 = arith.constant 3.200000e+01 : f32
    %289 = vector.broadcast %cst_87 : f32 to vector<15x1xf32>
    %290 = arith.divf %288, %289 : vector<15x1xf32>
    %cst_88 = arith.constant 9.99999996E-13 : f32
    %291 = vector.broadcast %cst_88 : f32 to vector<15x1xf32>
    %292 = arith.addf %290, %291 : vector<15x1xf32>
    %293 = math.rsqrt %292 : vector<15x1xf32>
    %294 = vector.broadcast %293 : vector<15x1xf32> to vector<15x32xf32>
    %295 = arith.mulf %285, %294 : vector<15x32xf32>
    %296 = vector.broadcast %278 : vector<1x32xf32> to vector<15x32xf32>
    %297 = arith.mulf %295, %296 : vector<15x32xf32>
    %298 = vector.broadcast %279 : vector<1x32xf32> to vector<15x32xf32>
    %299 = arith.addf %297, %298 : vector<15x32xf32>
    %c1_89 = arith.constant 1 : index
    %c0_90 = arith.constant 0 : index
    %c0_91 = arith.constant 0 : index
    %300 = vector.load %arg7[%c1_89, %c0_90, %c0_91] : memref<2x32x96xbf16, #tpu.memory_space<vmem>>, vector<1x32x96xbf16>
    %301 = vector.shape_cast %300 : vector<1x32x96xbf16> to vector<32x96xbf16>
    %302 = vector.extract_strided_slice %277 {offsets = [2, 0], sizes = [1, 32], strides = [1, 1]} : vector<9x32xf32> to vector<1x32xf32>
    %303 = vector.extract_strided_slice %277 {offsets = [3, 0], sizes = [1, 32], strides = [1, 1]} : vector<9x32xf32> to vector<1x32xf32>
    %304 = vector.extract_strided_slice %277 {offsets = [4, 0], sizes = [1, 32], strides = [1, 1]} : vector<9x32xf32> to vector<1x32xf32>
    %c1_92 = arith.constant 1 : index
    %c0_93 = arith.constant 0 : index
    %c0_94 = arith.constant 0 : index
    %305 = vector.load %arg8[%c1_92, %c0_93, %c0_94] : memref<2x32x32xbf16, #tpu.memory_space<vmem>>, vector<1x32x32xbf16>
    %306 = vector.shape_cast %305 : vector<1x32x32xbf16> to vector<32x32xbf16>
    %307 = vector.extract_strided_slice %277 {offsets = [5, 0], sizes = [1, 32], strides = [1, 1]} : vector<9x32xf32> to vector<1x32xf32>
    %308 = arith.truncf %299 : vector<15x32xf32> to vector<15x32xbf16>
    %cst_95 = arith.constant dense<0.000000e+00> : vector<15x96xf32>
    %309 = tpu.matmul %308, %301, %cst_95 {dimension_numbers = #tpu.dot_dimension_numbers<[1], [0], [0], [1], [0, 0, 1, 1], [], []>} : vector<15x32xbf16>, vector<32x96xbf16>, vector<15x96xf32> -> vector<15x96xf32>
    %310 = vector.extract_strided_slice %309 {offsets = [0, 0], sizes = [15, 32], strides = [1, 1]} : vector<15x96xf32> to vector<15x32xf32>
    %311 = vector.broadcast %302 : vector<1x32xf32> to vector<15x32xf32>
    %312 = arith.addf %310, %311 : vector<15x32xf32>
    %313 = vector.extract_strided_slice %309 {offsets = [0, 32], sizes = [15, 32], strides = [1, 1]} : vector<15x96xf32> to vector<15x32xf32>
    %314 = vector.broadcast %303 : vector<1x32xf32> to vector<15x32xf32>
    %315 = arith.addf %313, %314 : vector<15x32xf32>
    %316 = vector.extract_strided_slice %309 {offsets = [0, 64], sizes = [15, 32], strides = [1, 1]} : vector<15x96xf32> to vector<15x32xf32>
    %317 = vector.broadcast %304 : vector<1x32xf32> to vector<15x32xf32>
    %318 = arith.addf %316, %317 : vector<15x32xf32>
    %319 = vector.extract_strided_slice %312 {offsets = [0, 0], sizes = [5, 8], strides = [1, 1]} : vector<15x32xf32> to vector<5x8xf32>
    %320 = vector.extract_strided_slice %312 {offsets = [0, 8], sizes = [5, 8], strides = [1, 1]} : vector<15x32xf32> to vector<5x8xf32>
    %321 = vector.extract_strided_slice %312 {offsets = [0, 16], sizes = [5, 8], strides = [1, 1]} : vector<15x32xf32> to vector<5x8xf32>
    %322 = vector.extract_strided_slice %312 {offsets = [0, 24], sizes = [5, 8], strides = [1, 1]} : vector<15x32xf32> to vector<5x8xf32>
    %323 = vector.shape_cast %319 : vector<5x8xf32> to vector<1x5x8xf32>
    %324 = vector.shape_cast %320 : vector<5x8xf32> to vector<1x5x8xf32>
    %325 = vector.shape_cast %321 : vector<5x8xf32> to vector<1x5x8xf32>
    %326 = vector.shape_cast %322 : vector<5x8xf32> to vector<1x5x8xf32>
    %327 = tpu.concatenate %323, %324, %325, %326 in 0 : vector<1x5x8xf32>, vector<1x5x8xf32>, vector<1x5x8xf32>, vector<1x5x8xf32> -> vector<4x5x8xf32>
    %328 = arith.truncf %327 : vector<4x5x8xf32> to vector<4x5x8xbf16>
    %329 = vector.extract_strided_slice %315 {offsets = [0, 0], sizes = [5, 8], strides = [1, 1]} : vector<15x32xf32> to vector<5x8xf32>
    %330 = vector.extract_strided_slice %315 {offsets = [0, 8], sizes = [5, 8], strides = [1, 1]} : vector<15x32xf32> to vector<5x8xf32>
    %331 = vector.extract_strided_slice %315 {offsets = [0, 16], sizes = [5, 8], strides = [1, 1]} : vector<15x32xf32> to vector<5x8xf32>
    %332 = vector.extract_strided_slice %315 {offsets = [0, 24], sizes = [5, 8], strides = [1, 1]} : vector<15x32xf32> to vector<5x8xf32>
    %333 = vector.shape_cast %329 : vector<5x8xf32> to vector<1x5x8xf32>
    %334 = vector.shape_cast %330 : vector<5x8xf32> to vector<1x5x8xf32>
    %335 = vector.shape_cast %331 : vector<5x8xf32> to vector<1x5x8xf32>
    %336 = vector.shape_cast %332 : vector<5x8xf32> to vector<1x5x8xf32>
    %337 = tpu.concatenate %333, %334, %335, %336 in 0 : vector<1x5x8xf32>, vector<1x5x8xf32>, vector<1x5x8xf32>, vector<1x5x8xf32> -> vector<4x5x8xf32>
    %338 = arith.truncf %337 : vector<4x5x8xf32> to vector<4x5x8xbf16>
    %339 = vector.extract_strided_slice %318 {offsets = [0, 0], sizes = [5, 8], strides = [1, 1]} : vector<15x32xf32> to vector<5x8xf32>
    %340 = vector.extract_strided_slice %318 {offsets = [0, 8], sizes = [5, 8], strides = [1, 1]} : vector<15x32xf32> to vector<5x8xf32>
    %341 = vector.extract_strided_slice %318 {offsets = [0, 16], sizes = [5, 8], strides = [1, 1]} : vector<15x32xf32> to vector<5x8xf32>
    %342 = vector.extract_strided_slice %318 {offsets = [0, 24], sizes = [5, 8], strides = [1, 1]} : vector<15x32xf32> to vector<5x8xf32>
    %343 = vector.shape_cast %339 : vector<5x8xf32> to vector<1x5x8xf32>
    %344 = vector.shape_cast %340 : vector<5x8xf32> to vector<1x5x8xf32>
    %345 = vector.shape_cast %341 : vector<5x8xf32> to vector<1x5x8xf32>
    %346 = vector.shape_cast %342 : vector<5x8xf32> to vector<1x5x8xf32>
    %347 = tpu.concatenate %343, %344, %345, %346 in 0 : vector<1x5x8xf32>, vector<1x5x8xf32>, vector<1x5x8xf32>, vector<1x5x8xf32> -> vector<4x5x8xf32>
    %348 = arith.truncf %347 : vector<4x5x8xf32> to vector<4x5x8xbf16>
    "tpu.trace_start"() <{level = 10 : i32, message = "hqd,hkd->hqk"}> : () -> ()
    %cst_96 = arith.constant dense<0.000000e+00> : vector<4x5x5xf32>
    %349 = tpu.matmul %328, %338, %cst_96 {dimension_numbers = #tpu.dot_dimension_numbers<[2], [2], [1], [1], [0, 0, 0, 1, 1, 1], [0], [0]>} : vector<4x5x8xbf16>, vector<4x5x8xbf16>, vector<4x5x5xf32> -> vector<4x5x5xf32>
    "tpu.trace_stop"() : () -> ()
    %cst_97 = arith.constant 0.353553385 : f32
    %350 = vector.broadcast %cst_97 : f32 to vector<4x5x5xf32>
    %351 = arith.mulf %349, %350 : vector<4x5x5xf32>
    %cst_98 = arith.constant dense<0xFF800000> : vector<4x5xf32>
    %352 = vector.multi_reduction <maximumf>, %351, %cst_98 [2] : vector<4x5x5xf32> to vector<4x5xf32>
    %353 = vector.shape_cast %352 : vector<4x5xf32> to vector<4x5x1xf32>
    %354 = vector.broadcast %353 : vector<4x5x1xf32> to vector<4x5x5xf32>
    %355 = arith.subf %351, %354 : vector<4x5x5xf32>
    %356 = math.exp %355 : vector<4x5x5xf32>
    %cst_99 = arith.constant dense<0.000000e+00> : vector<4x5xf32>
    %357 = vector.multi_reduction <add>, %356, %cst_99 [2] : vector<4x5x5xf32> to vector<4x5xf32>
    %358 = vector.shape_cast %357 : vector<4x5xf32> to vector<4x5x1xf32>
    %359 = tpu.reciprocal %358 {approx = true} : vector<4x5x1xf32> -> vector<4x5x1xf32>
    %360 = vector.broadcast %359 : vector<4x5x1xf32> to vector<4x5x5xf32>
    %361 = arith.mulf %356, %360 : vector<4x5x5xf32>
    %362 = arith.truncf %361 : vector<4x5x5xf32> to vector<4x5x5xbf16>
    "tpu.trace_start"() <{level = 10 : i32, message = "hqk,hkd->hqd"}> : () -> ()
    %cst_100 = arith.constant dense<0.000000e+00> : vector<4x5x8xf32>
    %363 = tpu.matmul %362, %348, %cst_100 {dimension_numbers = #tpu.dot_dimension_numbers<[2], [1], [1], [2], [0, 0, 0, 1, 1, 2], [0], [0]>} : vector<4x5x5xbf16>, vector<4x5x8xbf16>, vector<4x5x8xf32> -> vector<4x5x8xf32>
    "tpu.trace_stop"() : () -> ()
    %364 = vector.extract_strided_slice %363 {offsets = [0, 0, 0], sizes = [1, 5, 8], strides = [1, 1, 1]} : vector<4x5x8xf32> to vector<1x5x8xf32>
    %365 = vector.shape_cast %364 : vector<1x5x8xf32> to vector<5x8xf32>
    %c0_101 = arith.constant 0 : index
    %c0_102 = arith.constant 0 : index
    %366 = vector.load %arg16[%c0_101, %c0_102] : memref<15x32xf32, #tpu.memory_space<vmem>>, vector<5x8xf32>
    tpu.vector_store %arg16[%c0_101, %c0_102], %365 {strides = array<i32>} : memref<15x32xf32, #tpu.memory_space<vmem>>, vector<5x8xf32>,
    %367 = vector.extract_strided_slice %363 {offsets = [1, 0, 0], sizes = [1, 5, 8], strides = [1, 1, 1]} : vector<4x5x8xf32> to vector<1x5x8xf32>
    %368 = vector.shape_cast %367 : vector<1x5x8xf32> to vector<5x8xf32>
    %c0_103 = arith.constant 0 : index
    %c8_104 = arith.constant 8 : index
    %369 = vector.load %arg16[%c0_103, %c8_104] : memref<15x32xf32, #tpu.memory_space<vmem>>, vector<5x8xf32>
    tpu.vector_store %arg16[%c0_103, %c8_104], %368 {strides = array<i32>} : memref<15x32xf32, #tpu.memory_space<vmem>>, vector<5x8xf32>,
    %370 = vector.extract_strided_slice %363 {offsets = [2, 0, 0], sizes = [1, 5, 8], strides = [1, 1, 1]} : vector<4x5x8xf32> to vector<1x5x8xf32>
    %371 = vector.shape_cast %370 : vector<1x5x8xf32> to vector<5x8xf32>
    %c0_105 = arith.constant 0 : index
    %c16_106 = arith.constant 16 : index
    %372 = vector.load %arg16[%c0_105, %c16_106] : memref<15x32xf32, #tpu.memory_space<vmem>>, vector<5x8xf32>
    tpu.vector_store %arg16[%c0_105, %c16_106], %371 {strides = array<i32>} : memref<15x32xf32, #tpu.memory_space<vmem>>, vector<5x8xf32>,
    %373 = vector.extract_strided_slice %363 {offsets = [3, 0, 0], sizes = [1, 5, 8], strides = [1, 1, 1]} : vector<4x5x8xf32> to vector<1x5x8xf32>
    %374 = vector.shape_cast %373 : vector<1x5x8xf32> to vector<5x8xf32>
    %c0_107 = arith.constant 0 : index
    %c24_108 = arith.constant 24 : index
    %375 = vector.load %arg16[%c0_107, %c24_108] : memref<15x32xf32, #tpu.memory_space<vmem>>, vector<5x8xf32>
    tpu.vector_store %arg16[%c0_107, %c24_108], %374 {strides = array<i32>} : memref<15x32xf32, #tpu.memory_space<vmem>>, vector<5x8xf32>,
    %376 = vector.extract_strided_slice %312 {offsets = [5, 0], sizes = [5, 8], strides = [1, 1]} : vector<15x32xf32> to vector<5x8xf32>
    %377 = vector.extract_strided_slice %312 {offsets = [5, 8], sizes = [5, 8], strides = [1, 1]} : vector<15x32xf32> to vector<5x8xf32>
    %378 = vector.extract_strided_slice %312 {offsets = [5, 16], sizes = [5, 8], strides = [1, 1]} : vector<15x32xf32> to vector<5x8xf32>
    %379 = vector.extract_strided_slice %312 {offsets = [5, 24], sizes = [5, 8], strides = [1, 1]} : vector<15x32xf32> to vector<5x8xf32>
    %380 = vector.shape_cast %376 : vector<5x8xf32> to vector<1x5x8xf32>
    %381 = vector.shape_cast %377 : vector<5x8xf32> to vector<1x5x8xf32>
    %382 = vector.shape_cast %378 : vector<5x8xf32> to vector<1x5x8xf32>
    %383 = vector.shape_cast %379 : vector<5x8xf32> to vector<1x5x8xf32>
    %384 = tpu.concatenate %380, %381, %382, %383 in 0 : vector<1x5x8xf32>, vector<1x5x8xf32>, vector<1x5x8xf32>, vector<1x5x8xf32> -> vector<4x5x8xf32>
    %385 = arith.truncf %384 : vector<4x5x8xf32> to vector<4x5x8xbf16>
    %386 = vector.extract_strided_slice %315 {offsets = [5, 0], sizes = [5, 8], strides = [1, 1]} : vector<15x32xf32> to vector<5x8xf32>
    %387 = vector.extract_strided_slice %315 {offsets = [5, 8], sizes = [5, 8], strides = [1, 1]} : vector<15x32xf32> to vector<5x8xf32>
    %388 = vector.extract_strided_slice %315 {offsets = [5, 16], sizes = [5, 8], strides = [1, 1]} : vector<15x32xf32> to vector<5x8xf32>
    %389 = vector.extract_strided_slice %315 {offsets = [5, 24], sizes = [5, 8], strides = [1, 1]} : vector<15x32xf32> to vector<5x8xf32>
    %390 = vector.shape_cast %386 : vector<5x8xf32> to vector<1x5x8xf32>
    %391 = vector.shape_cast %387 : vector<5x8xf32> to vector<1x5x8xf32>
    %392 = vector.shape_cast %388 : vector<5x8xf32> to vector<1x5x8xf32>
    %393 = vector.shape_cast %389 : vector<5x8xf32> to vector<1x5x8xf32>
    %394 = tpu.concatenate %390, %391, %392, %393 in 0 : vector<1x5x8xf32>, vector<1x5x8xf32>, vector<1x5x8xf32>, vector<1x5x8xf32> -> vector<4x5x8xf32>
    %395 = arith.truncf %394 : vector<4x5x8xf32> to vector<4x5x8xbf16>
    %396 = vector.extract_strided_slice %318 {offsets = [5, 0], sizes = [5, 8], strides = [1, 1]} : vector<15x32xf32> to vector<5x8xf32>
    %397 = vector.extract_strided_slice %318 {offsets = [5, 8], sizes = [5, 8], strides = [1, 1]} : vector<15x32xf32> to vector<5x8xf32>
    %398 = vector.extract_strided_slice %318 {offsets = [5, 16], sizes = [5, 8], strides = [1, 1]} : vector<15x32xf32> to vector<5x8xf32>
    %399 = vector.extract_strided_slice %318 {offsets = [5, 24], sizes = [5, 8], strides = [1, 1]} : vector<15x32xf32> to vector<5x8xf32>
    %400 = vector.shape_cast %396 : vector<5x8xf32> to vector<1x5x8xf32>
    %401 = vector.shape_cast %397 : vector<5x8xf32> to vector<1x5x8xf32>
    %402 = vector.shape_cast %398 : vector<5x8xf32> to vector<1x5x8xf32>
    %403 = vector.shape_cast %399 : vector<5x8xf32> to vector<1x5x8xf32>
    %404 = tpu.concatenate %400, %401, %402, %403 in 0 : vector<1x5x8xf32>, vector<1x5x8xf32>, vector<1x5x8xf32>, vector<1x5x8xf32> -> vector<4x5x8xf32>
    %405 = arith.truncf %404 : vector<4x5x8xf32> to vector<4x5x8xbf16>
    "tpu.trace_start"() <{level = 10 : i32, message = "hqd,hkd->hqk"}> : () -> ()
    %cst_109 = arith.constant dense<0.000000e+00> : vector<4x5x5xf32>
    %406 = tpu.matmul %385, %395, %cst_109 {dimension_numbers = #tpu.dot_dimension_numbers<[2], [2], [1], [1], [0, 0, 0, 1, 1, 1], [0], [0]>} : vector<4x5x8xbf16>, vector<4x5x8xbf16>, vector<4x5x5xf32> -> vector<4x5x5xf32>
    "tpu.trace_stop"() : () -> ()
    %cst_110 = arith.constant 0.353553385 : f32
    %407 = vector.broadcast %cst_110 : f32 to vector<4x5x5xf32>
    %408 = arith.mulf %406, %407 : vector<4x5x5xf32>
    %cst_111 = arith.constant dense<0xFF800000> : vector<4x5xf32>
    %409 = vector.multi_reduction <maximumf>, %408, %cst_111 [2] : vector<4x5x5xf32> to vector<4x5xf32>
    %410 = vector.shape_cast %409 : vector<4x5xf32> to vector<4x5x1xf32>
    %411 = vector.broadcast %410 : vector<4x5x1xf32> to vector<4x5x5xf32>
    %412 = arith.subf %408, %411 : vector<4x5x5xf32>
    %413 = math.exp %412 : vector<4x5x5xf32>
    %cst_112 = arith.constant dense<0.000000e+00> : vector<4x5xf32>
    %414 = vector.multi_reduction <add>, %413, %cst_112 [2] : vector<4x5x5xf32> to vector<4x5xf32>
    %415 = vector.shape_cast %414 : vector<4x5xf32> to vector<4x5x1xf32>
    %416 = tpu.reciprocal %415 {approx = true} : vector<4x5x1xf32> -> vector<4x5x1xf32>
    %417 = vector.broadcast %416 : vector<4x5x1xf32> to vector<4x5x5xf32>
    %418 = arith.mulf %413, %417 : vector<4x5x5xf32>
    %419 = arith.truncf %418 : vector<4x5x5xf32> to vector<4x5x5xbf16>
    "tpu.trace_start"() <{level = 10 : i32, message = "hqk,hkd->hqd"}> : () -> ()
    %cst_113 = arith.constant dense<0.000000e+00> : vector<4x5x8xf32>
    %420 = tpu.matmul %419, %405, %cst_113 {dimension_numbers = #tpu.dot_dimension_numbers<[2], [1], [1], [2], [0, 0, 0, 1, 1, 2], [0], [0]>} : vector<4x5x5xbf16>, vector<4x5x8xbf16>, vector<4x5x8xf32> -> vector<4x5x8xf32>
    "tpu.trace_stop"() : () -> ()
    %421 = vector.extract_strided_slice %420 {offsets = [0, 0, 0], sizes = [1, 5, 8], strides = [1, 1, 1]} : vector<4x5x8xf32> to vector<1x5x8xf32>
    %422 = vector.shape_cast %421 : vector<1x5x8xf32> to vector<5x8xf32>
    %c5_114 = arith.constant 5 : index
    %c0_115 = arith.constant 0 : index
    %423 = vector.load %arg16[%c5_114, %c0_115] : memref<15x32xf32, #tpu.memory_space<vmem>>, vector<5x8xf32>
    tpu.vector_store %arg16[%c5_114, %c0_115], %422 {strides = array<i32>} : memref<15x32xf32, #tpu.memory_space<vmem>>, vector<5x8xf32>,
    %424 = vector.extract_strided_slice %420 {offsets = [1, 0, 0], sizes = [1, 5, 8], strides = [1, 1, 1]} : vector<4x5x8xf32> to vector<1x5x8xf32>
    %425 = vector.shape_cast %424 : vector<1x5x8xf32> to vector<5x8xf32>
    %c5_116 = arith.constant 5 : index
    %c8_117 = arith.constant 8 : index
    %426 = vector.load %arg16[%c5_116, %c8_117] : memref<15x32xf32, #tpu.memory_space<vmem>>, vector<5x8xf32>
    tpu.vector_store %arg16[%c5_116, %c8_117], %425 {strides = array<i32>} : memref<15x32xf32, #tpu.memory_space<vmem>>, vector<5x8xf32>,
    %427 = vector.extract_strided_slice %420 {offsets = [2, 0, 0], sizes = [1, 5, 8], strides = [1, 1, 1]} : vector<4x5x8xf32> to vector<1x5x8xf32>
    %428 = vector.shape_cast %427 : vector<1x5x8xf32> to vector<5x8xf32>
    %c5_118 = arith.constant 5 : index
    %c16_119 = arith.constant 16 : index
    %429 = vector.load %arg16[%c5_118, %c16_119] : memref<15x32xf32, #tpu.memory_space<vmem>>, vector<5x8xf32>
    tpu.vector_store %arg16[%c5_118, %c16_119], %428 {strides = array<i32>} : memref<15x32xf32, #tpu.memory_space<vmem>>, vector<5x8xf32>,
    %430 = vector.extract_strided_slice %420 {offsets = [3, 0, 0], sizes = [1, 5, 8], strides = [1, 1, 1]} : vector<4x5x8xf32> to vector<1x5x8xf32>
    %431 = vector.shape_cast %430 : vector<1x5x8xf32> to vector<5x8xf32>
    %c5_120 = arith.constant 5 : index
    %c24_121 = arith.constant 24 : index
    %432 = vector.load %arg16[%c5_120, %c24_121] : memref<15x32xf32, #tpu.memory_space<vmem>>, vector<5x8xf32>
    tpu.vector_store %arg16[%c5_120, %c24_121], %431 {strides = array<i32>} : memref<15x32xf32, #tpu.memory_space<vmem>>, vector<5x8xf32>,
    %433 = vector.extract_strided_slice %312 {offsets = [10, 0], sizes = [5, 8], strides = [1, 1]} : vector<15x32xf32> to vector<5x8xf32>
    %434 = vector.extract_strided_slice %312 {offsets = [10, 8], sizes = [5, 8], strides = [1, 1]} : vector<15x32xf32> to vector<5x8xf32>
    %435 = vector.extract_strided_slice %312 {offsets = [10, 16], sizes = [5, 8], strides = [1, 1]} : vector<15x32xf32> to vector<5x8xf32>
    %436 = vector.extract_strided_slice %312 {offsets = [10, 24], sizes = [5, 8], strides = [1, 1]} : vector<15x32xf32> to vector<5x8xf32>
    %437 = vector.shape_cast %433 : vector<5x8xf32> to vector<1x5x8xf32>
    %438 = vector.shape_cast %434 : vector<5x8xf32> to vector<1x5x8xf32>
    %439 = vector.shape_cast %435 : vector<5x8xf32> to vector<1x5x8xf32>
    %440 = vector.shape_cast %436 : vector<5x8xf32> to vector<1x5x8xf32>
    %441 = tpu.concatenate %437, %438, %439, %440 in 0 : vector<1x5x8xf32>, vector<1x5x8xf32>, vector<1x5x8xf32>, vector<1x5x8xf32> -> vector<4x5x8xf32>
    %442 = arith.truncf %441 : vector<4x5x8xf32> to vector<4x5x8xbf16>
    %443 = vector.extract_strided_slice %315 {offsets = [10, 0], sizes = [5, 8], strides = [1, 1]} : vector<15x32xf32> to vector<5x8xf32>
    %444 = vector.extract_strided_slice %315 {offsets = [10, 8], sizes = [5, 8], strides = [1, 1]} : vector<15x32xf32> to vector<5x8xf32>
    %445 = vector.extract_strided_slice %315 {offsets = [10, 16], sizes = [5, 8], strides = [1, 1]} : vector<15x32xf32> to vector<5x8xf32>
    %446 = vector.extract_strided_slice %315 {offsets = [10, 24], sizes = [5, 8], strides = [1, 1]} : vector<15x32xf32> to vector<5x8xf32>
    %447 = vector.shape_cast %443 : vector<5x8xf32> to vector<1x5x8xf32>
    %448 = vector.shape_cast %444 : vector<5x8xf32> to vector<1x5x8xf32>
    %449 = vector.shape_cast %445 : vector<5x8xf32> to vector<1x5x8xf32>
    %450 = vector.shape_cast %446 : vector<5x8xf32> to vector<1x5x8xf32>
    %451 = tpu.concatenate %447, %448, %449, %450 in 0 : vector<1x5x8xf32>, vector<1x5x8xf32>, vector<1x5x8xf32>, vector<1x5x8xf32> -> vector<4x5x8xf32>
    %452 = arith.truncf %451 : vector<4x5x8xf32> to vector<4x5x8xbf16>
    %453 = vector.extract_strided_slice %318 {offsets = [10, 0], sizes = [5, 8], strides = [1, 1]} : vector<15x32xf32> to vector<5x8xf32>
    %454 = vector.extract_strided_slice %318 {offsets = [10, 8], sizes = [5, 8], strides = [1, 1]} : vector<15x32xf32> to vector<5x8xf32>
    %455 = vector.extract_strided_slice %318 {offsets = [10, 16], sizes = [5, 8], strides = [1, 1]} : vector<15x32xf32> to vector<5x8xf32>
    %456 = vector.extract_strided_slice %318 {offsets = [10, 24], sizes = [5, 8], strides = [1, 1]} : vector<15x32xf32> to vector<5x8xf32>
    %457 = vector.shape_cast %453 : vector<5x8xf32> to vector<1x5x8xf32>
    %458 = vector.shape_cast %454 : vector<5x8xf32> to vector<1x5x8xf32>
    %459 = vector.shape_cast %455 : vector<5x8xf32> to vector<1x5x8xf32>
    %460 = vector.shape_cast %456 : vector<5x8xf32> to vector<1x5x8xf32>
    %461 = tpu.concatenate %457, %458, %459, %460 in 0 : vector<1x5x8xf32>, vector<1x5x8xf32>, vector<1x5x8xf32>, vector<1x5x8xf32> -> vector<4x5x8xf32>
    %462 = arith.truncf %461 : vector<4x5x8xf32> to vector<4x5x8xbf16>
    "tpu.trace_start"() <{level = 10 : i32, message = "hqd,hkd->hqk"}> : () -> ()
    %cst_122 = arith.constant dense<0.000000e+00> : vector<4x5x5xf32>
    %463 = tpu.matmul %442, %452, %cst_122 {dimension_numbers = #tpu.dot_dimension_numbers<[2], [2], [1], [1], [0, 0, 0, 1, 1, 1], [0], [0]>} : vector<4x5x8xbf16>, vector<4x5x8xbf16>, vector<4x5x5xf32> -> vector<4x5x5xf32>
    "tpu.trace_stop"() : () -> ()
    %cst_123 = arith.constant 0.353553385 : f32
    %464 = vector.broadcast %cst_123 : f32 to vector<4x5x5xf32>
    %465 = arith.mulf %463, %464 : vector<4x5x5xf32>
    %cst_124 = arith.constant dense<0xFF800000> : vector<4x5xf32>
    %466 = vector.multi_reduction <maximumf>, %465, %cst_124 [2] : vector<4x5x5xf32> to vector<4x5xf32>
    %467 = vector.shape_cast %466 : vector<4x5xf32> to vector<4x5x1xf32>
    %468 = vector.broadcast %467 : vector<4x5x1xf32> to vector<4x5x5xf32>
    %469 = arith.subf %465, %468 : vector<4x5x5xf32>
    %470 = math.exp %469 : vector<4x5x5xf32>
    %cst_125 = arith.constant dense<0.000000e+00> : vector<4x5xf32>
    %471 = vector.multi_reduction <add>, %470, %cst_125 [2] : vector<4x5x5xf32> to vector<4x5xf32>
    %472 = vector.shape_cast %471 : vector<4x5xf32> to vector<4x5x1xf32>
    %473 = tpu.reciprocal %472 {approx = true} : vector<4x5x1xf32> -> vector<4x5x1xf32>
    %474 = vector.broadcast %473 : vector<4x5x1xf32> to vector<4x5x5xf32>
    %475 = arith.mulf %470, %474 : vector<4x5x5xf32>
    %476 = arith.truncf %475 : vector<4x5x5xf32> to vector<4x5x5xbf16>
    "tpu.trace_start"() <{level = 10 : i32, message = "hqk,hkd->hqd"}> : () -> ()
    %cst_126 = arith.constant dense<0.000000e+00> : vector<4x5x8xf32>
    %477 = tpu.matmul %476, %462, %cst_126 {dimension_numbers = #tpu.dot_dimension_numbers<[2], [1], [1], [2], [0, 0, 0, 1, 1, 2], [0], [0]>} : vector<4x5x5xbf16>, vector<4x5x8xbf16>, vector<4x5x8xf32> -> vector<4x5x8xf32>
    "tpu.trace_stop"() : () -> ()
    %478 = vector.extract_strided_slice %477 {offsets = [0, 0, 0], sizes = [1, 5, 8], strides = [1, 1, 1]} : vector<4x5x8xf32> to vector<1x5x8xf32>
    %479 = vector.shape_cast %478 : vector<1x5x8xf32> to vector<5x8xf32>
    %c10_127 = arith.constant 10 : index
    %c0_128 = arith.constant 0 : index
    %480 = vector.load %arg16[%c10_127, %c0_128] : memref<15x32xf32, #tpu.memory_space<vmem>>, vector<5x8xf32>
    tpu.vector_store %arg16[%c10_127, %c0_128], %479 {strides = array<i32>} : memref<15x32xf32, #tpu.memory_space<vmem>>, vector<5x8xf32>,
    %481 = vector.extract_strided_slice %477 {offsets = [1, 0, 0], sizes = [1, 5, 8], strides = [1, 1, 1]} : vector<4x5x8xf32> to vector<1x5x8xf32>
    %482 = vector.shape_cast %481 : vector<1x5x8xf32> to vector<5x8xf32>
    %c10_129 = arith.constant 10 : index
    %c8_130 = arith.constant 8 : index
    %483 = vector.load %arg16[%c10_129, %c8_130] : memref<15x32xf32, #tpu.memory_space<vmem>>, vector<5x8xf32>
    tpu.vector_store %arg16[%c10_129, %c8_130], %482 {strides = array<i32>} : memref<15x32xf32, #tpu.memory_space<vmem>>, vector<5x8xf32>,
    %484 = vector.extract_strided_slice %477 {offsets = [2, 0, 0], sizes = [1, 5, 8], strides = [1, 1, 1]} : vector<4x5x8xf32> to vector<1x5x8xf32>
    %485 = vector.shape_cast %484 : vector<1x5x8xf32> to vector<5x8xf32>
    %c10_131 = arith.constant 10 : index
    %c16_132 = arith.constant 16 : index
    %486 = vector.load %arg16[%c10_131, %c16_132] : memref<15x32xf32, #tpu.memory_space<vmem>>, vector<5x8xf32>
    tpu.vector_store %arg16[%c10_131, %c16_132], %485 {strides = array<i32>} : memref<15x32xf32, #tpu.memory_space<vmem>>, vector<5x8xf32>,
    %487 = vector.extract_strided_slice %477 {offsets = [3, 0, 0], sizes = [1, 5, 8], strides = [1, 1, 1]} : vector<4x5x8xf32> to vector<1x5x8xf32>
    %488 = vector.shape_cast %487 : vector<1x5x8xf32> to vector<5x8xf32>
    %c10_133 = arith.constant 10 : index
    %c24_134 = arith.constant 24 : index
    %489 = vector.load %arg16[%c10_133, %c24_134] : memref<15x32xf32, #tpu.memory_space<vmem>>, vector<5x8xf32>
    tpu.vector_store %arg16[%c10_133, %c24_134], %488 {strides = array<i32>} : memref<15x32xf32, #tpu.memory_space<vmem>>, vector<5x8xf32>,
    %c0_135 = arith.constant 0 : index
    %c0_136 = arith.constant 0 : index
    %490 = vector.load %arg16[%c0_135, %c0_136] : memref<15x32xf32, #tpu.memory_space<vmem>>, vector<15x32xf32>
    %491 = arith.truncf %490 : vector<15x32xf32> to vector<15x32xbf16>
    %cst_137 = arith.constant dense<0.000000e+00> : vector<15x32xf32>
    %492 = tpu.matmul %491, %306, %cst_137 {dimension_numbers = #tpu.dot_dimension_numbers<[1], [0], [0], [1], [0, 0, 1, 1], [], []>} : vector<15x32xbf16>, vector<32x32xbf16>, vector<15x32xf32> -> vector<15x32xf32>
    %493 = vector.broadcast %307 : vector<1x32xf32> to vector<15x32xf32>
    %494 = arith.addf %492, %493 : vector<15x32xf32>
    %495 = arith.addf %275, %494 : vector<15x32xf32>
    %496 = vector.extract_strided_slice %277 {offsets = [6, 0], sizes = [1, 32], strides = [1, 1]} : vector<9x32xf32> to vector<1x32xf32>
    %497 = vector.extract_strided_slice %277 {offsets = [7, 0], sizes = [1, 32], strides = [1, 1]} : vector<9x32xf32> to vector<1x32xf32>
    %cst_138 = arith.constant dense<0.000000e+00> : vector<15xf32>
    %498 = vector.multi_reduction <add>, %495, %cst_138 [1] : vector<15x32xf32> to vector<15xf32>
    %499 = vector.shape_cast %498 : vector<15xf32> to vector<15x1xf32>
    %cst_139 = arith.constant 3.200000e+01 : f32
    %500 = vector.broadcast %cst_139 : f32 to vector<15x1xf32>
    %501 = arith.divf %499, %500 : vector<15x1xf32>
    %502 = vector.broadcast %501 : vector<15x1xf32> to vector<15x32xf32>
    %503 = arith.subf %495, %502 : vector<15x32xf32>
    %504 = arith.mulf %503, %503 : vector<15x32xf32>
    %cst_140 = arith.constant dense<0.000000e+00> : vector<15xf32>
    %505 = vector.multi_reduction <add>, %504, %cst_140 [1] : vector<15x32xf32> to vector<15xf32>
    %506 = vector.shape_cast %505 : vector<15xf32> to vector<15x1xf32>
    %cst_141 = arith.constant 3.200000e+01 : f32
    %507 = vector.broadcast %cst_141 : f32 to vector<15x1xf32>
    %508 = arith.divf %506, %507 : vector<15x1xf32>
    %cst_142 = arith.constant 9.99999996E-13 : f32
    %509 = vector.broadcast %cst_142 : f32 to vector<15x1xf32>
    %510 = arith.addf %508, %509 : vector<15x1xf32>
    %511 = math.rsqrt %510 : vector<15x1xf32>
    %512 = vector.broadcast %511 : vector<15x1xf32> to vector<15x32xf32>
    %513 = arith.mulf %503, %512 : vector<15x32xf32>
    %514 = vector.broadcast %496 : vector<1x32xf32> to vector<15x32xf32>
    %515 = arith.mulf %513, %514 : vector<15x32xf32>
    %516 = vector.broadcast %497 : vector<1x32xf32> to vector<15x32xf32>
    %517 = arith.addf %515, %516 : vector<15x32xf32>
    %518 = arith.truncf %517 : vector<15x32xf32> to vector<15x32xbf16>
    %c1_143 = arith.constant 1 : index
    %c0_144 = arith.constant 0 : index
    %c0_145 = arith.constant 0 : index
    %519 = vector.load %arg9[%c1_143, %c0_144, %c0_145] : memref<2x32x128xbf16, #tpu.memory_space<vmem>>, vector<1x32x128xbf16>
    %520 = vector.shape_cast %519 : vector<1x32x128xbf16> to vector<32x128xbf16>
    %cst_146 = arith.constant dense<0.000000e+00> : vector<15x128xf32>
    %521 = tpu.matmul %518, %520, %cst_146 {dimension_numbers = #tpu.dot_dimension_numbers<[1], [0], [0], [1], [0, 0, 1, 1], [], []>} : vector<15x32xbf16>, vector<32x128xbf16>, vector<15x128xf32> -> vector<15x128xf32>
    %522 = vector.extract_strided_slice %5 {offsets = [1, 0], sizes = [1, 128], strides = [1, 1]} : vector<3x128xf32> to vector<1x128xf32>
    %523 = vector.broadcast %522 : vector<1x128xf32> to vector<15x128xf32>
    %524 = arith.addf %521, %523 : vector<15x128xf32>
    %cst_147 = arith.constant 5.000000e-01 : f32
    %525 = vector.broadcast %cst_147 : f32 to vector<15x128xf32>
    %526 = arith.mulf %525, %524 : vector<15x128xf32>
    %cst_148 = arith.constant 0.707106769 : f32
    %527 = vector.broadcast %cst_148 : f32 to vector<15x128xf32>
    %528 = arith.mulf %524, %527 : vector<15x128xf32>
    %529 = math.erf %528 : vector<15x128xf32>
    %cst_149 = arith.constant 1.000000e+00 : f32
    %530 = vector.broadcast %cst_149 : f32 to vector<15x128xf32>
    %531 = arith.addf %530, %529 : vector<15x128xf32>
    %532 = arith.mulf %526, %531 : vector<15x128xf32>
    %533 = arith.truncf %532 : vector<15x128xf32> to vector<15x128xbf16>
    %c1_150 = arith.constant 1 : index
    %c0_151 = arith.constant 0 : index
    %c0_152 = arith.constant 0 : index
    %534 = vector.load %arg10[%c1_150, %c0_151, %c0_152] : memref<2x128x32xbf16, #tpu.memory_space<vmem>>, vector<1x128x32xbf16>
    %535 = vector.shape_cast %534 : vector<1x128x32xbf16> to vector<128x32xbf16>
    %cst_153 = arith.constant dense<0.000000e+00> : vector<15x32xf32>
    %536 = tpu.matmul %533, %535, %cst_153 {dimension_numbers = #tpu.dot_dimension_numbers<[1], [0], [0], [1], [0, 0, 1, 1], [], []>} : vector<15x128xbf16>, vector<128x32xbf16>, vector<15x32xf32> -> vector<15x32xf32>
    %537 = vector.extract_strided_slice %277 {offsets = [8, 0], sizes = [1, 32], strides = [1, 1]} : vector<9x32xf32> to vector<1x32xf32>
    %538 = vector.broadcast %537 : vector<1x32xf32> to vector<15x32xf32>
    %539 = arith.addf %536, %538 : vector<15x32xf32>
    %540 = arith.addf %495, %539 : vector<15x32xf32>
    %541 = vector.extract_strided_slice %4 {offsets = [0, 0], sizes = [1, 32], strides = [1, 1]} : vector<11x32xf32> to vector<1x32xf32>
    %542 = vector.extract_strided_slice %4 {offsets = [1, 0], sizes = [1, 32], strides = [1, 1]} : vector<11x32xf32> to vector<1x32xf32>
    %cst_154 = arith.constant dense<0.000000e+00> : vector<15xf32>
    %543 = vector.multi_reduction <add>, %540, %cst_154 [1] : vector<15x32xf32> to vector<15xf32>
    %544 = vector.shape_cast %543 : vector<15xf32> to vector<15x1xf32>
    %cst_155 = arith.constant 3.200000e+01 : f32
    %545 = vector.broadcast %cst_155 : f32 to vector<15x1xf32>
    %546 = arith.divf %544, %545 : vector<15x1xf32>
    %547 = vector.broadcast %546 : vector<15x1xf32> to vector<15x32xf32>
    %548 = arith.subf %540, %547 : vector<15x32xf32>
    %549 = arith.mulf %548, %548 : vector<15x32xf32>
    %cst_156 = arith.constant dense<0.000000e+00> : vector<15xf32>
    %550 = vector.multi_reduction <add>, %549, %cst_156 [1] : vector<15x32xf32> to vector<15xf32>
    %551 = vector.shape_cast %550 : vector<15xf32> to vector<15x1xf32>
    %cst_157 = arith.constant 3.200000e+01 : f32
    %552 = vector.broadcast %cst_157 : f32 to vector<15x1xf32>
    %553 = arith.divf %551, %552 : vector<15x1xf32>
    %cst_158 = arith.constant 9.99999996E-13 : f32
    %554 = vector.broadcast %cst_158 : f32 to vector<15x1xf32>
    %555 = arith.addf %553, %554 : vector<15x1xf32>
    %556 = math.rsqrt %555 : vector<15x1xf32>
    %557 = vector.broadcast %556 : vector<15x1xf32> to vector<15x32xf32>
    %558 = arith.mulf %548, %557 : vector<15x32xf32>
    %559 = vector.broadcast %541 : vector<1x32xf32> to vector<15x32xf32>
    %560 = arith.mulf %558, %559 : vector<15x32xf32>
    %561 = vector.broadcast %542 : vector<1x32xf32> to vector<15x32xf32>
    %562 = arith.addf %560, %561 : vector<15x32xf32>
    %563 = arith.addf %562, %3 : vector<15x32xf32>
    %c0_159 = arith.constant 0 : index
    %c0_160 = arith.constant 0 : index
    %564 = vector.load %arg11[%c0_159, %c0_160] : memref<32x96xbf16, #tpu.memory_space<vmem>>, vector<32x96xbf16>
    %565 = vector.extract_strided_slice %4 {offsets = [2, 0], sizes = [1, 32], strides = [1, 1]} : vector<11x32xf32> to vector<1x32xf32>
    %566 = vector.extract_strided_slice %4 {offsets = [3, 0], sizes = [1, 32], strides = [1, 1]} : vector<11x32xf32> to vector<1x32xf32>
    %567 = vector.extract_strided_slice %4 {offsets = [4, 0], sizes = [1, 32], strides = [1, 1]} : vector<11x32xf32> to vector<1x32xf32>
    %c0_161 = arith.constant 0 : index
    %c0_162 = arith.constant 0 : index
    %568 = vector.load %arg12[%c0_161, %c0_162] : memref<32x32xbf16, #tpu.memory_space<vmem>>, vector<32x32xbf16>
    %569 = vector.extract_strided_slice %4 {offsets = [5, 0], sizes = [1, 32], strides = [1, 1]} : vector<11x32xf32> to vector<1x32xf32>
    %570 = arith.truncf %563 : vector<15x32xf32> to vector<15x32xbf16>
    %cst_163 = arith.constant dense<0.000000e+00> : vector<15x96xf32>
    %571 = tpu.matmul %570, %564, %cst_163 {dimension_numbers = #tpu.dot_dimension_numbers<[1], [0], [0], [1], [0, 0, 1, 1], [], []>} : vector<15x32xbf16>, vector<32x96xbf16>, vector<15x96xf32> -> vector<15x96xf32>
    %572 = vector.extract_strided_slice %571 {offsets = [0, 0], sizes = [15, 32], strides = [1, 1]} : vector<15x96xf32> to vector<15x32xf32>
    %573 = vector.broadcast %565 : vector<1x32xf32> to vector<15x32xf32>
    %574 = arith.addf %572, %573 : vector<15x32xf32>
    %575 = vector.extract_strided_slice %571 {offsets = [0, 32], sizes = [15, 32], strides = [1, 1]} : vector<15x96xf32> to vector<15x32xf32>
    %576 = vector.broadcast %566 : vector<1x32xf32> to vector<15x32xf32>
    %577 = arith.addf %575, %576 : vector<15x32xf32>
    %578 = vector.extract_strided_slice %571 {offsets = [0, 64], sizes = [15, 32], strides = [1, 1]} : vector<15x96xf32> to vector<15x32xf32>
    %579 = vector.broadcast %567 : vector<1x32xf32> to vector<15x32xf32>
    %580 = arith.addf %578, %579 : vector<15x32xf32>
    %581 = vector.extract_strided_slice %574 {offsets = [0, 0], sizes = [15, 8], strides = [1, 1]} : vector<15x32xf32> to vector<15x8xf32>
    %582 = vector.extract_strided_slice %574 {offsets = [0, 8], sizes = [15, 8], strides = [1, 1]} : vector<15x32xf32> to vector<15x8xf32>
    %583 = vector.extract_strided_slice %574 {offsets = [0, 16], sizes = [15, 8], strides = [1, 1]} : vector<15x32xf32> to vector<15x8xf32>
    %584 = vector.extract_strided_slice %574 {offsets = [0, 24], sizes = [15, 8], strides = [1, 1]} : vector<15x32xf32> to vector<15x8xf32>
    %585 = vector.shape_cast %581 : vector<15x8xf32> to vector<1x15x8xf32>
    %586 = vector.shape_cast %582 : vector<15x8xf32> to vector<1x15x8xf32>
    %587 = vector.shape_cast %583 : vector<15x8xf32> to vector<1x15x8xf32>
    %588 = vector.shape_cast %584 : vector<15x8xf32> to vector<1x15x8xf32>
    %589 = tpu.concatenate %585, %586, %587, %588 in 0 : vector<1x15x8xf32>, vector<1x15x8xf32>, vector<1x15x8xf32>, vector<1x15x8xf32> -> vector<4x15x8xf32>
    %590 = arith.truncf %589 : vector<4x15x8xf32> to vector<4x15x8xbf16>
    %591 = vector.extract_strided_slice %577 {offsets = [0, 0], sizes = [15, 8], strides = [1, 1]} : vector<15x32xf32> to vector<15x8xf32>
    %592 = vector.extract_strided_slice %577 {offsets = [0, 8], sizes = [15, 8], strides = [1, 1]} : vector<15x32xf32> to vector<15x8xf32>
    %593 = vector.extract_strided_slice %577 {offsets = [0, 16], sizes = [15, 8], strides = [1, 1]} : vector<15x32xf32> to vector<15x8xf32>
    %594 = vector.extract_strided_slice %577 {offsets = [0, 24], sizes = [15, 8], strides = [1, 1]} : vector<15x32xf32> to vector<15x8xf32>
    %595 = vector.shape_cast %591 : vector<15x8xf32> to vector<1x15x8xf32>
    %596 = vector.shape_cast %592 : vector<15x8xf32> to vector<1x15x8xf32>
    %597 = vector.shape_cast %593 : vector<15x8xf32> to vector<1x15x8xf32>
    %598 = vector.shape_cast %594 : vector<15x8xf32> to vector<1x15x8xf32>
    %599 = tpu.concatenate %595, %596, %597, %598 in 0 : vector<1x15x8xf32>, vector<1x15x8xf32>, vector<1x15x8xf32>, vector<1x15x8xf32> -> vector<4x15x8xf32>
    %600 = arith.truncf %599 : vector<4x15x8xf32> to vector<4x15x8xbf16>
    %601 = vector.extract_strided_slice %580 {offsets = [0, 0], sizes = [15, 8], strides = [1, 1]} : vector<15x32xf32> to vector<15x8xf32>
    %602 = vector.extract_strided_slice %580 {offsets = [0, 8], sizes = [15, 8], strides = [1, 1]} : vector<15x32xf32> to vector<15x8xf32>
    %603 = vector.extract_strided_slice %580 {offsets = [0, 16], sizes = [15, 8], strides = [1, 1]} : vector<15x32xf32> to vector<15x8xf32>
    %604 = vector.extract_strided_slice %580 {offsets = [0, 24], sizes = [15, 8], strides = [1, 1]} : vector<15x32xf32> to vector<15x8xf32>
    %605 = vector.shape_cast %601 : vector<15x8xf32> to vector<1x15x8xf32>
    %606 = vector.shape_cast %602 : vector<15x8xf32> to vector<1x15x8xf32>
    %607 = vector.shape_cast %603 : vector<15x8xf32> to vector<1x15x8xf32>
    %608 = vector.shape_cast %604 : vector<15x8xf32> to vector<1x15x8xf32>
    %609 = tpu.concatenate %605, %606, %607, %608 in 0 : vector<1x15x8xf32>, vector<1x15x8xf32>, vector<1x15x8xf32>, vector<1x15x8xf32> -> vector<4x15x8xf32>
    %610 = arith.truncf %609 : vector<4x15x8xf32> to vector<4x15x8xbf16>
    "tpu.trace_start"() <{level = 10 : i32, message = "hqd,hkd->hqk"}> : () -> ()
    %cst_164 = arith.constant dense<0.000000e+00> : vector<4x15x15xf32>
    %611 = tpu.matmul %590, %600, %cst_164 {dimension_numbers = #tpu.dot_dimension_numbers<[2], [2], [1], [1], [0, 0, 0, 1, 1, 1], [0], [0]>} : vector<4x15x8xbf16>, vector<4x15x8xbf16>, vector<4x15x15xf32> -> vector<4x15x15xf32>
    "tpu.trace_stop"() : () -> ()
    %cst_165 = arith.constant 0.353553385 : f32
    %612 = vector.broadcast %cst_165 : f32 to vector<4x15x15xf32>
    %613 = arith.mulf %611, %612 : vector<4x15x15xf32>
    %cst_166 = arith.constant dense<0xFF800000> : vector<4x15xf32>
    %614 = vector.multi_reduction <maximumf>, %613, %cst_166 [2] : vector<4x15x15xf32> to vector<4x15xf32>
    %615 = vector.shape_cast %614 : vector<4x15xf32> to vector<4x15x1xf32>
    %616 = vector.broadcast %615 : vector<4x15x1xf32> to vector<4x15x15xf32>
    %617 = arith.subf %613, %616 : vector<4x15x15xf32>
    %618 = math.exp %617 : vector<4x15x15xf32>
    %cst_167 = arith.constant dense<0.000000e+00> : vector<4x15xf32>
    %619 = vector.multi_reduction <add>, %618, %cst_167 [2] : vector<4x15x15xf32> to vector<4x15xf32>
    %620 = vector.shape_cast %619 : vector<4x15xf32> to vector<4x15x1xf32>
    %621 = tpu.reciprocal %620 {approx = true} : vector<4x15x1xf32> -> vector<4x15x1xf32>
    %622 = vector.broadcast %621 : vector<4x15x1xf32> to vector<4x15x15xf32>
    %623 = arith.mulf %618, %622 : vector<4x15x15xf32>
    %624 = arith.truncf %623 : vector<4x15x15xf32> to vector<4x15x15xbf16>
    "tpu.trace_start"() <{level = 10 : i32, message = "hqk,hkd->hqd"}> : () -> ()
    %cst_168 = arith.constant dense<0.000000e+00> : vector<4x15x8xf32>
    %625 = tpu.matmul %624, %610, %cst_168 {dimension_numbers = #tpu.dot_dimension_numbers<[2], [1], [1], [2], [0, 0, 0, 1, 1, 2], [0], [0]>} : vector<4x15x15xbf16>, vector<4x15x8xbf16>, vector<4x15x8xf32> -> vector<4x15x8xf32>
    "tpu.trace_stop"() : () -> ()
    %626 = vector.extract_strided_slice %625 {offsets = [0, 0, 0], sizes = [1, 15, 8], strides = [1, 1, 1]} : vector<4x15x8xf32> to vector<1x15x8xf32>
    %627 = vector.shape_cast %626 : vector<1x15x8xf32> to vector<15x8xf32>
    %c0_169 = arith.constant 0 : index
    %c0_170 = arith.constant 0 : index
    %628 = vector.load %arg16[%c0_169, %c0_170] : memref<15x32xf32, #tpu.memory_space<vmem>>, vector<15x8xf32>
    tpu.vector_store %arg16[%c0_169, %c0_170], %627 {strides = array<i32>} : memref<15x32xf32, #tpu.memory_space<vmem>>, vector<15x8xf32>,
    %629 = vector.extract_strided_slice %625 {offsets = [1, 0, 0], sizes = [1, 15, 8], strides = [1, 1, 1]} : vector<4x15x8xf32> to vector<1x15x8xf32>
    %630 = vector.shape_cast %629 : vector<1x15x8xf32> to vector<15x8xf32>
    %c0_171 = arith.constant 0 : index
    %c8_172 = arith.constant 8 : index
    %631 = vector.load %arg16[%c0_171, %c8_172] : memref<15x32xf32, #tpu.memory_space<vmem>>, vector<15x8xf32>
    tpu.vector_store %arg16[%c0_171, %c8_172], %630 {strides = array<i32>} : memref<15x32xf32, #tpu.memory_space<vmem>>, vector<15x8xf32>,
    %632 = vector.extract_strided_slice %625 {offsets = [2, 0, 0], sizes = [1, 15, 8], strides = [1, 1, 1]} : vector<4x15x8xf32> to vector<1x15x8xf32>
    %633 = vector.shape_cast %632 : vector<1x15x8xf32> to vector<15x8xf32>
    %c0_173 = arith.constant 0 : index
    %c16_174 = arith.constant 16 : index
    %634 = vector.load %arg16[%c0_173, %c16_174] : memref<15x32xf32, #tpu.memory_space<vmem>>, vector<15x8xf32>
    tpu.vector_store %arg16[%c0_173, %c16_174], %633 {strides = array<i32>} : memref<15x32xf32, #tpu.memory_space<vmem>>, vector<15x8xf32>,
    %635 = vector.extract_strided_slice %625 {offsets = [3, 0, 0], sizes = [1, 15, 8], strides = [1, 1, 1]} : vector<4x15x8xf32> to vector<1x15x8xf32>
    %636 = vector.shape_cast %635 : vector<1x15x8xf32> to vector<15x8xf32>
    %c0_175 = arith.constant 0 : index
    %c24_176 = arith.constant 24 : index
    %637 = vector.load %arg16[%c0_175, %c24_176] : memref<15x32xf32, #tpu.memory_space<vmem>>, vector<15x8xf32>
    tpu.vector_store %arg16[%c0_175, %c24_176], %636 {strides = array<i32>} : memref<15x32xf32, #tpu.memory_space<vmem>>, vector<15x8xf32>,
    %c0_177 = arith.constant 0 : index
    %c0_178 = arith.constant 0 : index
    %638 = vector.load %arg16[%c0_177, %c0_178] : memref<15x32xf32, #tpu.memory_space<vmem>>, vector<15x32xf32>
    %639 = arith.truncf %638 : vector<15x32xf32> to vector<15x32xbf16>
    %cst_179 = arith.constant dense<0.000000e+00> : vector<15x32xf32>
    %640 = tpu.matmul %639, %568, %cst_179 {dimension_numbers = #tpu.dot_dimension_numbers<[1], [0], [0], [1], [0, 0, 1, 1], [], []>} : vector<15x32xbf16>, vector<32x32xbf16>, vector<15x32xf32> -> vector<15x32xf32>
    %641 = vector.broadcast %569 : vector<1x32xf32> to vector<15x32xf32>
    %642 = arith.addf %640, %641 : vector<15x32xf32>
    %643 = arith.addf %563, %642 : vector<15x32xf32>
    %644 = vector.extract_strided_slice %4 {offsets = [6, 0], sizes = [1, 32], strides = [1, 1]} : vector<11x32xf32> to vector<1x32xf32>
    %645 = vector.extract_strided_slice %4 {offsets = [7, 0], sizes = [1, 32], strides = [1, 1]} : vector<11x32xf32> to vector<1x32xf32>
    %cst_180 = arith.constant dense<0.000000e+00> : vector<15xf32>
    %646 = vector.multi_reduction <add>, %643, %cst_180 [1] : vector<15x32xf32> to vector<15xf32>
    %647 = vector.shape_cast %646 : vector<15xf32> to vector<15x1xf32>
    %cst_181 = arith.constant 3.200000e+01 : f32
    %648 = vector.broadcast %cst_181 : f32 to vector<15x1xf32>
    %649 = arith.divf %647, %648 : vector<15x1xf32>
    %650 = vector.broadcast %649 : vector<15x1xf32> to vector<15x32xf32>
    %651 = arith.subf %643, %650 : vector<15x32xf32>
    %652 = arith.mulf %651, %651 : vector<15x32xf32>
    %cst_182 = arith.constant dense<0.000000e+00> : vector<15xf32>
    %653 = vector.multi_reduction <add>, %652, %cst_182 [1] : vector<15x32xf32> to vector<15xf32>
    %654 = vector.shape_cast %653 : vector<15xf32> to vector<15x1xf32>
    %cst_183 = arith.constant 3.200000e+01 : f32
    %655 = vector.broadcast %cst_183 : f32 to vector<15x1xf32>
    %656 = arith.divf %654, %655 : vector<15x1xf32>
    %cst_184 = arith.constant 9.99999996E-13 : f32
    %657 = vector.broadcast %cst_184 : f32 to vector<15x1xf32>
    %658 = arith.addf %656, %657 : vector<15x1xf32>
    %659 = math.rsqrt %658 : vector<15x1xf32>
    %660 = vector.broadcast %659 : vector<15x1xf32> to vector<15x32xf32>
    %661 = arith.mulf %651, %660 : vector<15x32xf32>
    %662 = vector.broadcast %644 : vector<1x32xf32> to vector<15x32xf32>
    %663 = arith.mulf %661, %662 : vector<15x32xf32>
    %664 = vector.broadcast %645 : vector<1x32xf32> to vector<15x32xf32>
    %665 = arith.addf %663, %664 : vector<15x32xf32>
    %666 = arith.truncf %665 : vector<15x32xf32> to vector<15x32xbf16>
    %c0_185 = arith.constant 0 : index
    %c0_186 = arith.constant 0 : index
    %667 = vector.load %arg13[%c0_185, %c0_186] : memref<32x128xbf16, #tpu.memory_space<vmem>>, vector<32x128xbf16>
    %cst_187 = arith.constant dense<0.000000e+00> : vector<15x128xf32>
    %668 = tpu.matmul %666, %667, %cst_187 {dimension_numbers = #tpu.dot_dimension_numbers<[1], [0], [0], [1], [0, 0, 1, 1], [], []>} : vector<15x32xbf16>, vector<32x128xbf16>, vector<15x128xf32> -> vector<15x128xf32>
    %669 = vector.extract_strided_slice %5 {offsets = [2, 0], sizes = [1, 128], strides = [1, 1]} : vector<3x128xf32> to vector<1x128xf32>
    %670 = vector.broadcast %669 : vector<1x128xf32> to vector<15x128xf32>
    %671 = arith.addf %668, %670 : vector<15x128xf32>
    %cst_188 = arith.constant 5.000000e-01 : f32
    %672 = vector.broadcast %cst_188 : f32 to vector<15x128xf32>
    %673 = arith.mulf %672, %671 : vector<15x128xf32>
    %cst_189 = arith.constant 0.707106769 : f32
    %674 = vector.broadcast %cst_189 : f32 to vector<15x128xf32>
    %675 = arith.mulf %671, %674 : vector<15x128xf32>
    %676 = math.erf %675 : vector<15x128xf32>
    %cst_190 = arith.constant 1.000000e+00 : f32
    %677 = vector.broadcast %cst_190 : f32 to vector<15x128xf32>
    %678 = arith.addf %677, %676 : vector<15x128xf32>
    %679 = arith.mulf %673, %678 : vector<15x128xf32>
    %680 = arith.truncf %679 : vector<15x128xf32> to vector<15x128xbf16>
    %c0_191 = arith.constant 0 : index
    %c0_192 = arith.constant 0 : index
    %681 = vector.load %arg14[%c0_191, %c0_192] : memref<128x32xbf16, #tpu.memory_space<vmem>>, vector<128x32xbf16>
    %cst_193 = arith.constant dense<0.000000e+00> : vector<15x32xf32>
    %682 = tpu.matmul %680, %681, %cst_193 {dimension_numbers = #tpu.dot_dimension_numbers<[1], [0], [0], [1], [0, 0, 1, 1], [], []>} : vector<15x128xbf16>, vector<128x32xbf16>, vector<15x32xf32> -> vector<15x32xf32>
    %683 = vector.extract_strided_slice %4 {offsets = [8, 0], sizes = [1, 32], strides = [1, 1]} : vector<11x32xf32> to vector<1x32xf32>
    %684 = vector.broadcast %683 : vector<1x32xf32> to vector<15x32xf32>
    %685 = arith.addf %682, %684 : vector<15x32xf32>
    %686 = arith.addf %665, %685 : vector<15x32xf32>
    %687 = vector.extract_strided_slice %4 {offsets = [9, 0], sizes = [1, 32], strides = [1, 1]} : vector<11x32xf32> to vector<1x32xf32>
    %688 = vector.extract_strided_slice %4 {offsets = [10, 0], sizes = [1, 32], strides = [1, 1]} : vector<11x32xf32> to vector<1x32xf32>
    %cst_194 = arith.constant dense<0.000000e+00> : vector<15xf32>
    %689 = vector.multi_reduction <add>, %686, %cst_194 [1] : vector<15x32xf32> to vector<15xf32>
    %690 = vector.shape_cast %689 : vector<15xf32> to vector<15x1xf32>
    %cst_195 = arith.constant 3.200000e+01 : f32
    %691 = vector.broadcast %cst_195 : f32 to vector<15x1xf32>
    %692 = arith.divf %690, %691 : vector<15x1xf32>
    %693 = vector.broadcast %692 : vector<15x1xf32> to vector<15x32xf32>
    %694 = arith.subf %686, %693 : vector<15x32xf32>
    %695 = arith.mulf %694, %694 : vector<15x32xf32>
    %cst_196 = arith.constant dense<0.000000e+00> : vector<15xf32>
    %696 = vector.multi_reduction <add>, %695, %cst_196 [1] : vector<15x32xf32> to vector<15xf32>
    %697 = vector.shape_cast %696 : vector<15xf32> to vector<15x1xf32>
    %cst_197 = arith.constant 3.200000e+01 : f32
    %698 = vector.broadcast %cst_197 : f32 to vector<15x1xf32>
    %699 = arith.divf %697, %698 : vector<15x1xf32>
    %cst_198 = arith.constant 9.99999996E-13 : f32
    %700 = vector.broadcast %cst_198 : f32 to vector<15x1xf32>
    %701 = arith.addf %699, %700 : vector<15x1xf32>
    %702 = math.rsqrt %701 : vector<15x1xf32>
    %703 = vector.broadcast %702 : vector<15x1xf32> to vector<15x32xf32>
    %704 = arith.mulf %694, %703 : vector<15x32xf32>
    %705 = vector.broadcast %687 : vector<1x32xf32> to vector<15x32xf32>
    %706 = arith.mulf %704, %705 : vector<15x32xf32>
    %707 = vector.broadcast %688 : vector<1x32xf32> to vector<15x32xf32>
    %708 = arith.addf %706, %707 : vector<15x32xf32>
    %c0_199 = arith.constant 0 : index
    %c0_200 = arith.constant 0 : index
    %c0_201 = arith.constant 0 : index
    %709 = vector.load %arg15[%c0_199, %c0_200, %c0_201] : memref<1x15x32xf32, #tpu.memory_space<vmem>>, vector<1x15x32xf32>
    %710 = vector.shape_cast %709 : vector<1x15x32xf32> to vector<15x32xf32>
    %711 = vector.shape_cast %708 : vector<15x32xf32> to vector<1x15x32xf32>
    tpu.vector_store %arg15[%c0_199, %c0_200, %c0_201], %711 {strides = array<i32>} : memref<1x15x32xf32, #tpu.memory_space<vmem>>, vector<1x15x32xf32>,
    return
  }
  func.func @transform_0(%arg0: i32) -> (i32, i32, i32) {
    %c0_i32 = arith.constant 0 : i32
    %c0_i32_0 = arith.constant 0 : i32
    %c0_i32_1 = arith.constant 0 : i32
    return %arg0, %c0_i32, %c0_i32_0 : i32, i32, i32
  }
  func.func @transform_1(%arg0: i32) -> (i32, i32, i32) {
    %c0_i32 = arith.constant 0 : i32
    %c0_i32_0 = arith.constant 0 : i32
    %c0_i32_1 = arith.constant 0 : i32
    %c0_i32_2 = arith.constant 0 : i32
    return %c0_i32, %c0_i32_0, %c0_i32_1 : i32, i32, i32
  }
  func.func @transform_2(%arg0: i32) -> (i32, i32) {
    %c0_i32 = arith.constant 0 : i32
    %c0_i32_0 = arith.constant 0 : i32
    %c0_i32_1 = arith.constant 0 : i32
    return %c0_i32, %c0_i32_0 : i32, i32
  }
  func.func @transform_3(%arg0: i32) -> (i32, i32, i32) {
    %c0_i32 = arith.constant 0 : i32
    %c0_i32_0 = arith.constant 0 : i32
    %c0_i32_1 = arith.constant 0 : i32
    %c0_i32_2 = arith.constant 0 : i32
    return %c0_i32, %c0_i32_0, %c0_i32_1 : i32, i32, i32
  }
  func.func @transform_4(%arg0: i32) -> (i32, i32) {
    %c0_i32 = arith.constant 0 : i32
    %c0_i32_0 = arith.constant 0 : i32
    %c0_i32_1 = arith.constant 0 : i32
    return %c0_i32, %c0_i32_0 : i32, i32
  }
  func.func @transform_5(%arg0: i32) -> (i32, i32) {
    %c0_i32 = arith.constant 0 : i32
    %c0_i32_0 = arith.constant 0 : i32
    %c0_i32_1 = arith.constant 0 : i32
    return %c0_i32, %c0_i32_0 : i32, i32
  }
  func.func @transform_6(%arg0: i32) -> (i32, i32, i32) {
    %c0_i32 = arith.constant 0 : i32
    %c0_i32_0 = arith.constant 0 : i32
    %c0_i32_1 = arith.constant 0 : i32
    %c0_i32_2 = arith.constant 0 : i32
    return %c0_i32, %c0_i32_0, %c0_i32_1 : i32, i32, i32
  }
  func.func @transform_7(%arg0: i32) -> (i32, i32, i32) {
    %c0_i32 = arith.constant 0 : i32
    %c0_i32_0 = arith.constant 0 : i32
    %c0_i32_1 = arith.constant 0 : i32
    %c0_i32_2 = arith.constant 0 : i32
    return %c0_i32, %c0_i32_0, %c0_i32_1 : i32, i32, i32
  }
  func.func @transform_8(%arg0: i32) -> (i32, i32, i32) {
    %c0_i32 = arith.constant 0 : i32
    %c0_i32_0 = arith.constant 0 : i32
    %c0_i32_1 = arith.constant 0 : i32
    %c0_i32_2 = arith.constant 0 : i32
    return %c0_i32, %c0_i32_0, %c0_i32_1 : i32, i32, i32
  }
  func.func @transform_9(%arg0: i32) -> (i32, i32, i32) {
    %c0_i32 = arith.constant 0 : i32
    %c0_i32_0 = arith.constant 0 : i32
    %c0_i32_1 = arith.constant 0 : i32
    %c0_i32_2 = arith.constant 0 : i32
    return %c0_i32, %c0_i32_0, %c0_i32_1 : i32, i32, i32
  }
  func.func @transform_10(%arg0: i32) -> (i32, i32) {
    %c0_i32 = arith.constant 0 : i32
    %c0_i32_0 = arith.constant 0 : i32
    %c0_i32_1 = arith.constant 0 : i32
    return %c0_i32, %c0_i32_0 : i32, i32
  }
  func.func @transform_11(%arg0: i32) -> (i32, i32) {
    %c0_i32 = arith.constant 0 : i32
    %c0_i32_0 = arith.constant 0 : i32
    %c0_i32_1 = arith.constant 0 : i32
    return %c0_i32, %c0_i32_0 : i32, i32
  }
  func.func @transform_12(%arg0: i32) -> (i32, i32) {
    %c0_i32 = arith.constant 0 : i32
    %c0_i32_0 = arith.constant 0 : i32
    %c0_i32_1 = arith.constant 0 : i32
    return %c0_i32, %c0_i32_0 : i32, i32
  }
  func.func @transform_13(%arg0: i32) -> (i32, i32) {
    %c0_i32 = arith.constant 0 : i32
    %c0_i32_0 = arith.constant 0 : i32
    %c0_i32_1 = arith.constant 0 : i32
    return %c0_i32, %c0_i32_0 : i32, i32
  }
  func.func @transform_14(%arg0: i32) -> (i32, i32, i32) {
    %c0_i32 = arith.constant 0 : i32
    %c0_i32_0 = arith.constant 0 : i32
    %c0_i32_1 = arith.constant 0 : i32
    return %arg0, %c0_i32, %c0_i32_0 : i32, i32, i32
  }
}

</mosaic_0001>

<llo_original>
// kernel: _lambda_.1
$region0: #{_lambda_.1}
  #allocation0 [shape = 'u32[]', space=smem, size = 0x4, offset = 0x4, fixed_abs, tag = 'smem constant byte address 0x4 - core index']
  #allocation1 [shape = 'u32[144,128]{1,0:T(1,128)}', space=vmem, size = 0x12000, scoped, tag = 'internal scratch']
  #allocation2 [shape = 'f32[15,32]{1,0:T(8,128)}', space=vmem, size = 0x2000, scoped, tag = 'scratch operand']
  %s0 = inlined_call_operand.vmem [shape: bf16[2,15,192], index: 0, kind: input, shape index: {}]
  %s1 = inlined_call_operand.vmem [shape: f32[2,15,32], index: 1, kind: input, shape index: {}]
  %s2 = inlined_call_operand.vmem [shape: f32[11,32], index: 2, kind: input, shape index: {}]
  %s3 = inlined_call_operand.vmem [shape: f32[2,9,32], index: 3, kind: input, shape index: {}]
  %s4 = inlined_call_operand.vmem [shape: f32[3,128], index: 4, kind: input, shape index: {}]
  %s5 = inlined_call_operand.vmem [shape: bf16[192,32], index: 5, kind: input, shape index: {}]
  %s6 = inlined_call_operand.vmem [shape: bf16[2,32,96], index: 6, kind: input, shape index: {}]
  %s7 = inlined_call_operand.vmem [shape: bf16[2,32,32], index: 7, kind: input, shape index: {}]
  %s8 = inlined_call_operand.vmem [shape: bf16[2,32,128], index: 8, kind: input, shape index: {}]
  %s9 = inlined_call_operand.vmem [shape: bf16[2,128,32], index: 9, kind: input, shape index: {}]
  %s10 = inlined_call_operand.vmem [shape: bf16[32,96], index: 10, kind: input, shape index: {}]
  %s11 = inlined_call_operand.vmem [shape: bf16[32,32], index: 11, kind: input, shape index: {}]
  %s12 = inlined_call_operand.vmem [shape: bf16[32,128], index: 12, kind: input, shape index: {}]
  %s13 = inlined_call_operand.vmem [shape: bf16[128,32], index: 13, kind: input, shape index: {}]
  %s14 = inlined_call_operand.vmem [shape: f32[2,15,32], index: 14, kind: output, shape index: {}]
  %s15 = sld [smem:[#allocation0]]
  $region89: #{_lambda_.1} parent=0
    _
  %s17 = ssub.s32 1, %s15
  %s18 = scalar_select 0, %s17, %s15
  loop: start=0, step=1, limit=4
  $region2: #{_lambda_.1} parent=0 // loop_pre_header
    _
  $region3: #{_lambda_.1} parent=0 // loop_header
    %s20 = sphi 0, %s24
    %p21 = scmp.ge.s32.totalorder %s20, 4
    %s30 = sphi 0, %s32
    %s33 = sphi 0, %s30
    %s34 = sphi 0, %s33
    %s50 = sphi 0, %s34
    %s54 = sphi 0, %s54
    %s56 = sphi 0, %s54
    %s57 = sphi 0, %s56
    %s71 = sphi 0, %s57
    %s75 = sphi 0, %s75
    %s77 = sphi 0, %s75
    %s78 = sphi 0, %s77
    %s92 = sphi 0, %s78
    %s96 = sphi 0, %s96
    %s98 = sphi 0, %s96
    %s99 = sphi 0, %s98
    %s113 = sphi 0, %s99
    %s117 = sphi 0, %s117
    %s119 = sphi 0, %s117
    %s120 = sphi 0, %s119
    %s134 = sphi 0, %s120
    %s138 = sphi 0, %s138
    %s140 = sphi 0, %s138
    %s141 = sphi 0, %s140
    %s155 = sphi 0, %s141
    %s159 = sphi 0, %s159
    %s161 = sphi 0, %s159
    %s162 = sphi 0, %s161
    %s176 = sphi 0, %s162
    %s180 = sphi 0, %s180
    %s182 = sphi 0, %s180
    %s183 = sphi 0, %s182
    %s197 = sphi 0, %s183
    %s201 = sphi 0, %s201
    %s203 = sphi 0, %s201
    %s204 = sphi 0, %s203
    %s218 = sphi 0, %s204
    %s222 = sphi 0, %s222
    %s224 = sphi 0, %s222
    %s225 = sphi 0, %s224
    %s239 = sphi 0, %s225
    %s243 = sphi 0, %s243
    %s245 = sphi 0, %s243
    %s246 = sphi 0, %s245
    %s260 = sphi 0, %s246
    %s264 = sphi 0, %s264
    %s266 = sphi 0, %s264
    %s267 = sphi 0, %s266
    %s281 = sphi 0, %s267
    %s285 = sphi 0, %s285
    %s287 = sphi 0, %s285
    %s288 = sphi 0, %s287
    %s302 = sphi 0, %s288
    %s306 = sphi 0, %s306
    %s308 = sphi 0, %s306
    %s309 = sphi 0, %s308
    %s323 = sphi 0, %s309
    %s329 = sphi 0, %s331
    %s332 = sphi 0, %s329
    %s333 = sphi 0, %s332
    %s349 = sphi 0, %s333
  $region4: #{_lambda_.1} parent=0 // loop_header_branch
    %23 = sbr.rel (%p21) target = $region8
  $region5: #{_lambda_.1} parent=0 // loop_body
    %s25 = ssub.s32 %s20, 1
    %s26 = ssub.s32 %s20, 2
    %s27 = sadd.s32 %s20, 1
    %s28 = ssub.s32 %s20, %s27
    %p29 = scmp.eq.s32.totalorder %s28, 0
    %s31 = sadd.s32 %s30, 1
    %s32 = scalar_select %p29, %s30, %s31
    %p35 = pneg %p29
    %p36 = scmp.eq.s32.totalorder %s20, 1
    %p37 = por %p35, %p36
    %p38 = scmp.ne.s32.totalorder %s30, %s33
    %p39 = scmp.eq.s32.totalorder %s20, 0
    %p40 = por %p38, %p39
    %p41 = scmp.ne.s32.totalorder %s30, %s33
    %p42 = scmp.eq.s32.totalorder %s25, 1
    %p43 = por %p41, %p42
    %p44 = scmp.ne.s32.totalorder %s33, %s34
    %p45 = scmp.eq.s32.totalorder %s25, 0
    %p46 = por %p44, %p45
    %p47 = scmp.ne.s32.totalorder %s33, %s34
    %p48 = scmp.eq.s32.totalorder %s26, 1
    %p49 = por %p47, %p48
    %p51 = scmp.ne.s32.totalorder %s34, %s50
    %p52 = scmp.eq.s32.totalorder %s26, 0
    %p53 = por %p51, %p52
    %s55 = sadd.s32 %s54, 1
    %p58 = scmp.eq.s32.totalorder %s20, 1
    %p59 = scmp.ne.s32.totalorder %s54, %s56
    %p60 = scmp.eq.s32.totalorder %s20, 0
    %p61 = por %p59, %p60
    %p62 = scmp.ne.s32.totalorder %s54, %s56
    %p63 = scmp.eq.s32.totalorder %s25, 1
    %p64 = por %p62, %p63
    %p65 = scmp.ne.s32.totalorder %s56, %s57
    %p66 = scmp.eq.s32.totalorder %s25, 0
    %p67 = por %p65, %p66
    %p68 = scmp.ne.s32.totalorder %s56, %s57
    %p69 = scmp.eq.s32.totalorder %s26, 1
    %p70 = por %p68, %p69
    %p72 = scmp.ne.s32.totalorder %s57, %s71
    %p73 = scmp.eq.s32.totalorder %s26, 0
    %p74 = por %p72, %p73
    %s76 = sadd.s32 %s75, 1
    %p79 = scmp.eq.s32.totalorder %s20, 1
    %p80 = scmp.ne.s32.totalorder %s75, %s77
    %p81 = scmp.eq.s32.totalorder %s20, 0
    %p82 = por %p80, %p81
    %p83 = scmp.ne.s32.totalorder %s75, %s77
    %p84 = scmp.eq.s32.totalorder %s25, 1
    %p85 = por %p83, %p84
    %p86 = scmp.ne.s32.totalorder %s77, %s78
    %p87 = scmp.eq.s32.totalorder %s25, 0
    %p88 = por %p86, %p87
    %p89 = scmp.ne.s32.totalorder %s77, %s78
    %p90 = scmp.eq.s32.totalorder %s26, 1
    %p91 = por %p89, %p90
    %p93 = scmp.ne.s32.totalorder %s78, %s92
    %p94 = scmp.eq.s32.totalorder %s26, 0
    %p95 = por %p93, %p94
    %s97 = sadd.s32 %s96, 1
    %p100 = scmp.eq.s32.totalorder %s20, 1
    %p101 = scmp.ne.s32.totalorder %s96, %s98
    %p102 = scmp.eq.s32.totalorder %s20, 0
    %p103 = por %p101, %p102
    %p104 = scmp.ne.s32.totalorder %s96, %s98
    %p105 = scmp.eq.s32.totalorder %s25, 1
    %p106 = por %p104, %p105
    %p107 = scmp.ne.s32.totalorder %s98, %s99
    %p108 = scmp.eq.s32.totalorder %s25, 0
    %p109 = por %p107, %p108
    %p110 = scmp.ne.s32.totalorder %s98, %s99
    %p111 = scmp.eq.s32.totalorder %s26, 1
    %p112 = por %p110, %p111
    %p114 = scmp.ne.s32.totalorder %s99, %s113
    %p115 = scmp.eq.s32.totalorder %s26, 0
    %p116 = por %p114, %p115
    %s118 = sadd.s32 %s117, 1
    %p121 = scmp.eq.s32.totalorder %s20, 1
    %p122 = scmp.ne.s32.totalorder %s117, %s119
    %p123 = scmp.eq.s32.totalorder %s20, 0
    %p124 = por %p122, %p123
    %p125 = scmp.ne.s32.totalorder %s117, %s119
    %p126 = scmp.eq.s32.totalorder %s25, 1
    %p127 = por %p125, %p126
    %p128 = scmp.ne.s32.totalorder %s119, %s120
    %p129 = scmp.eq.s32.totalorder %s25, 0
    %p130 = por %p128, %p129
    %p131 = scmp.ne.s32.totalorder %s119, %s120
    %p132 = scmp.eq.s32.totalorder %s26, 1
    %p133 = por %p131, %p132
    %p135 = scmp.ne.s32.totalorder %s120, %s134
    %p136 = scmp.eq.s32.totalorder %s26, 0
    %p137 = por %p135, %p136
    %s139 = sadd.s32 %s138, 1
    %p142 = scmp.eq.s32.totalorder %s20, 1
    %p143 = scmp.ne.s32.totalorder %s138, %s140
    %p144 = scmp.eq.s32.totalorder %s20, 0
    %p145 = por %p143, %p144
    %p146 = scmp.ne.s32.totalorder %s138, %s140
    %p147 = scmp.eq.s32.totalorder %s25, 1
    %p148 = por %p146, %p147
    %p149 = scmp.ne.s32.totalorder %s140, %s141
    %p150 = scmp.eq.s32.totalorder %s25, 0
    %p151 = por %p149, %p150
    %p152 = scmp.ne.s32.totalorder %s140, %s141
    %p153 = scmp.eq.s32.totalorder %s26, 1
    %p154 = por %p152, %p153
    %p156 = scmp.ne.s32.totalorder %s141, %s155
    %p157 = scmp.eq.s32.totalorder %s26, 0
    %p158 = por %p156, %p157
    %s160 = sadd.s32 %s159, 1
    %p163 = scmp.eq.s32.totalorder %s20, 1
    %p164 = scmp.ne.s32.totalorder %s159, %s161
    %p165 = scmp.eq.s32.totalorder %s20, 0
    %p166 = por %p164, %p165
    %p167 = scmp.ne.s32.totalorder %s159, %s161
    %p168 = scmp.eq.s32.totalorder %s25, 1
    %p169 = por %p167, %p168
    %p170 = scmp.ne.s32.totalorder %s161, %s162
    %p171 = scmp.eq.s32.totalorder %s25, 0
    %p172 = por %p170, %p171
    %p173 = scmp.ne.s32.totalorder %s161, %s162
    %p174 = scmp.eq.s32.totalorder %s26, 1
    %p175 = por %p173, %p174
    %p177 = scmp.ne.s32.totalorder %s162, %s176
    %p178 = scmp.eq.s32.totalorder %s26, 0
    %p179 = por %p177, %p178
    %s181 = sadd.s32 %s180, 1
    %p184 = scmp.eq.s32.totalorder %s20, 1
    %p185 = scmp.ne.s32.totalorder %s180, %s182
    %p186 = scmp.eq.s32.totalorder %s20, 0
    %p187 = por %p185, %p186
    %p188 = scmp.ne.s32.totalorder %s180, %s182
    %p189 = scmp.eq.s32.totalorder %s25, 1
    %p190 = por %p188, %p189
    %p191 = scmp.ne.s32.totalorder %s182, %s183
    %p192 = scmp.eq.s32.totalorder %s25, 0
    %p193 = por %p191, %p192
    %p194 = scmp.ne.s32.totalorder %s182, %s183
    %p195 = scmp.eq.s32.totalorder %s26, 1
    %p196 = por %p194, %p195
    %p198 = scmp.ne.s32.totalorder %s183, %s197
    %p199 = scmp.eq.s32.totalorder %s26, 0
    %p200 = por %p198, %p199
    %s202 = sadd.s32 %s201, 1
    %p205 = scmp.eq.s32.totalorder %s20, 1
    %p206 = scmp.ne.s32.totalorder %s201, %s203
    %p207 = scmp.eq.s32.totalorder %s20, 0
    %p208 = por %p206, %p207
    %p209 = scmp.ne.s32.totalorder %s201, %s203
    %p210 = scmp.eq.s32.totalorder %s25, 1
    %p211 = por %p209, %p210
    %p212 = scmp.ne.s32.totalorder %s203, %s204
    %p213 = scmp.eq.s32.totalorder %s25, 0
    %p214 = por %p212, %p213
    %p215 = scmp.ne.s32.totalorder %s203, %s204
    %p216 = scmp.eq.s32.totalorder %s26, 1
    %p217 = por %p215, %p216
    %p219 = scmp.ne.s32.totalorder %s204, %s218
    %p220 = scmp.eq.s32.totalorder %s26, 0
    %p221 = por %p219, %p220
    %s223 = sadd.s32 %s222, 1
    %p226 = scmp.eq.s32.totalorder %s20, 1
    %p227 = scmp.ne.s32.totalorder %s222, %s224
    %p228 = scmp.eq.s32.totalorder %s20, 0
    %p229 = por %p227, %p228
    %p230 = scmp.ne.s32.totalorder %s222, %s224
    %p231 = scmp.eq.s32.totalorder %s25, 1
    %p232 = por %p230, %p231
    %p233 = scmp.ne.s32.totalorder %s224, %s225
    %p234 = scmp.eq.s32.totalorder %s25, 0
    %p235 = por %p233, %p234
    %p236 = scmp.ne.s32.totalorder %s224, %s225
    %p237 = scmp.eq.s32.totalorder %s26, 1
    %p238 = por %p236, %p237
    %p240 = scmp.ne.s32.totalorder %s225, %s239
    %p241 = scmp.eq.s32.totalorder %s26, 0
    %p242 = por %p240, %p241
    %s244 = sadd.s32 %s243, 1
    %p247 = scmp.eq.s32.totalorder %s20, 1
    %p248 = scmp.ne.s32.totalorder %s243, %s245
    %p249 = scmp.eq.s32.totalorder %s20, 0
    %p250 = por %p248, %p249
    %p251 = scmp.ne.s32.totalorder %s243, %s245
    %p252 = scmp.eq.s32.totalorder %s25, 1
    %p253 = por %p251, %p252
    %p254 = scmp.ne.s32.totalorder %s245, %s246
    %p255 = scmp.eq.s32.totalorder %s25, 0
    %p256 = por %p254, %p255
    %p257 = scmp.ne.s32.totalorder %s245, %s246
    %p258 = scmp.eq.s32.totalorder %s26, 1
    %p259 = por %p257, %p258
    %p261 = scmp.ne.s32.totalorder %s246, %s260
    %p262 = scmp.eq.s32.totalorder %s26, 0
    %p263 = por %p261, %p262
    %s265 = sadd.s32 %s264, 1
    %p268 = scmp.eq.s32.totalorder %s20, 1
    %p269 = scmp.ne.s32.totalorder %s264, %s266
    %p270 = scmp.eq.s32.totalorder %s20, 0
    %p271 = por %p269, %p270
    %p272 = scmp.ne.s32.totalorder %s264, %s266
    %p273 = scmp.eq.s32.totalorder %s25, 1
    %p274 = por %p272, %p273
    %p275 = scmp.ne.s32.totalorder %s266, %s267
    %p276 = scmp.eq.s32.totalorder %s25, 0
    %p277 = por %p275, %p276
    %p278 = scmp.ne.s32.totalorder %s266, %s267
    %p279 = scmp.eq.s32.totalorder %s26, 1
    %p280 = por %p278, %p279
    %p282 = scmp.ne.s32.totalorder %s267, %s281
    %p283 = scmp.eq.s32.totalorder %s26, 0
    %p284 = por %p282, %p283
    %s286 = sadd.s32 %s285, 1
    %p289 = scmp.eq.s32.totalorder %s20, 1
    %p290 = scmp.ne.s32.totalorder %s285, %s287
    %p291 = scmp.eq.s32.totalorder %s20, 0
    %p292 = por %p290, %p291
    %p293 = scmp.ne.s32.totalorder %s285, %s287
    %p294 = scmp.eq.s32.totalorder %s25, 1
    %p295 = por %p293, %p294
    %p296 = scmp.ne.s32.totalorder %s287, %s288
    %p297 = scmp.eq.s32.totalorder %s25, 0
    %p298 = por %p296, %p297
    %p299 = scmp.ne.s32.totalorder %s287, %s288
    %p300 = scmp.eq.s32.totalorder %s26, 1
    %p301 = por %p299, %p300
    %p303 = scmp.ne.s32.totalorder %s288, %s302
    %p304 = scmp.eq.s32.totalorder %s26, 0
    %p305 = por %p303, %p304
    %s307 = sadd.s32 %s306, 1
    %p310 = scmp.eq.s32.totalorder %s20, 1
    %p311 = scmp.ne.s32.totalorder %s306, %s308
    %p312 = scmp.eq.s32.totalorder %s20, 0
    %p313 = por %p311, %p312
    %p314 = scmp.ne.s32.totalorder %s306, %s308
    %p315 = scmp.eq.s32.totalorder %s25, 1
    %p316 = por %p314, %p315
    %p317 = scmp.ne.s32.totalorder %s308, %s309
    %p318 = scmp.eq.s32.totalorder %s25, 0
    %p319 = por %p317, %p318
    %p320 = scmp.ne.s32.totalorder %s308, %s309
    %p321 = scmp.eq.s32.totalorder %s26, 1
    %p322 = por %p320, %p321
    %p324 = scmp.ne.s32.totalorder %s309, %s323
    %p325 = scmp.eq.s32.totalorder %s26, 0
    %p326 = por %p324, %p325
    %s327 = ssub.s32 %s20, %s27
    %p328 = scmp.eq.s32.totalorder %s327, 0
    %s330 = sadd.s32 %s329, 1
    %s331 = scalar_select %p328, %s329, %s330
    %p334 = pneg %p328
    %p335 = scmp.eq.s32.totalorder %s20, 1
    %p336 = por %p334, %p335
    %p337 = scmp.ne.s32.totalorder %s329, %s332
    %p338 = scmp.eq.s32.totalorder %s20, 0
    %p339 = por %p337, %p338
    %p340 = scmp.ne.s32.totalorder %s329, %s332
    %p341 = scmp.eq.s32.totalorder %s25, 1
    %p342 = por %p340, %p341
    %p343 = scmp.ne.s32.totalorder %s332, %s333
    %p344 = scmp.eq.s32.totalorder %s25, 0
    %p345 = por %p343, %p344
    %p346 = scmp.ne.s32.totalorder %s332, %s333
    %p347 = scmp.eq.s32.totalorder %s26, 1
    %p348 = por %p346, %p347
    %p350 = scmp.ne.s32.totalorder %s333, %s349
    %p351 = scmp.eq.s32.totalorder %s26, 0
    %p352 = por %p350, %p351
    %p353 = scmp.le.s32.totalorder 1, %s20
    %p354 = scmp.lt.s32.totalorder %s20, 3
    %p355 = pnand %p353, %p354
    %p356 = pneg %p355
    // Predicated region
    $region9: #{_lambda_.1} parent=5 // pred_check
      _
    $region10: #{_lambda_.1} parent=5 // pred_check_branch
      %358 = sbr.rel (%p355) target = $region12
    $region11: #{_lambda_.1} parent=5 // pred_region
      %s359 = ssub.s32 %s20, 1
      // Predicated region
      $region13: #{_lambda_.1} parent=11 // pred_check
        %p360 = pneg %p67
      $region14: #{_lambda_.1} parent=11 // pred_check_branch
        %362 = sbr.rel (%p360) target = $region16
      $region15: #{_lambda_.1} parent=11 // pred_region
        _
      $region16: #{_lambda_.1} parent=11 // pred_fallthru
        _
      // Predicated region
      $region17: #{_lambda_.1} parent=11 // pred_check
        %p363 = pneg %p88
      $region18: #{_lambda_.1} parent=11 // pred_check_branch
        %365 = sbr.rel (%p363) target = $region20
      $region19: #{_lambda_.1} parent=11 // pred_region
        _
      $region20: #{_lambda_.1} parent=11 // pred_fallthru
        _
      // Predicated region
      $region21: #{_lambda_.1} parent=11 // pred_check
        %p366 = pneg %p109
      $region22: #{_lambda_.1} parent=11 // pred_check_branch
        %368 = sbr.rel (%p366) target = $region24
      $region23: #{_lambda_.1} parent=11 // pred_region
        _
      $region24: #{_lambda_.1} parent=11 // pred_fallthru
        _
      // Predicated region
      $region25: #{_lambda_.1} parent=11 // pred_check
        %p369 = pneg %p130
      $region26: #{_lambda_.1} parent=11 // pred_check_branch
        %371 = sbr.rel (%p369) target = $region28
      $region27: #{_lambda_.1} parent=11 // pred_region
        _
      $region28: #{_lambda_.1} parent=11 // pred_fallthru
        _
      // Predicated region
      $region29: #{_lambda_.1} parent=11 // pred_check
        %p372 = pneg %p151
      $region30: #{_lambda_.1} parent=11 // pred_check_branch
        %374 = sbr.rel (%p372) target = $region32
      $region31: #{_lambda_.1} parent=11 // pred_region
        _
      $region32: #{_lambda_.1} parent=11 // pred_fallthru
        _
      // Predicated region
      $region33: #{_lambda_.1} parent=11 // pred_check
        %p375 = pneg %p172
      $region34: #{_lambda_.1} parent=11 // pred_check_branch
        %377 = sbr.rel (%p375) target = $region36
      $region35: #{_lambda_.1} parent=11 // pred_region
        _
      $region36: #{_lambda_.1} parent=11 // pred_fallthru
        _
      // Predicated region
      $region37: #{_lambda_.1} parent=11 // pred_check
        %p378 = pneg %p193
      $region38: #{_lambda_.1} parent=11 // pred_check_branch
        %380 = sbr.rel (%p378) target = $region40
      $region39: #{_lambda_.1} parent=11 // pred_region
        _
      $region40: #{_lambda_.1} parent=11 // pred_fallthru
        _
      // Predicated region
      $region41: #{_lambda_.1} parent=11 // pred_check
        %p381 = pneg %p214
      $region42: #{_lambda_.1} parent=11 // pred_check_branch
        %383 = sbr.rel (%p381) target = $region44
      $region43: #{_lambda_.1} parent=11 // pred_region
        _
      $region44: #{_lambda_.1} parent=11 // pred_fallthru
        _
      // Predicated region
      $region45: #{_lambda_.1} parent=11 // pred_check
        %p384 = pneg %p235
      $region46: #{_lambda_.1} parent=11 // pred_check_branch
        %386 = sbr.rel (%p384) target = $region48
      $region47: #{_lambda_.1} parent=11 // pred_region
        _
      $region48: #{_lambda_.1} parent=11 // pred_fallthru
        _
      // Predicated region
      $region49: #{_lambda_.1} parent=11 // pred_check
        %p387 = pneg %p256
      $region50: #{_lambda_.1} parent=11 // pred_check_branch
        %389 = sbr.rel (%p387) target = $region52
      $region51: #{_lambda_.1} parent=11 // pred_region
        _
      $region52: #{_lambda_.1} parent=11 // pred_fallthru
        _
      // Predicated region
      $region53: #{_lambda_.1} parent=11 // pred_check
        %p390 = pneg %p277
      $region54: #{_lambda_.1} parent=11 // pred_check_branch
        %392 = sbr.rel (%p390) target = $region56
      $region55: #{_lambda_.1} parent=11 // pred_region
        _
      $region56: #{_lambda_.1} parent=11 // pred_fallthru
        _
      // Predicated region
      $region57: #{_lambda_.1} parent=11 // pred_check
        %p393 = pneg %p298
      $region58: #{_lambda_.1} parent=11 // pred_check_branch
        %395 = sbr.rel (%p393) target = $region60
      $region59: #{_lambda_.1} parent=11 // pred_region
        _
      $region60: #{_lambda_.1} parent=11 // pred_fallthru
        _
      // Predicated region
      $region61: #{_lambda_.1} parent=11 // pred_check
        %p396 = pneg %p319
      $region62: #{_lambda_.1} parent=11 // pred_check_branch
        %398 = sbr.rel (%p396) target = $region64
      $region63: #{_lambda_.1} parent=11 // pred_region
        _
      $region64: #{_lambda_.1} parent=11 // pred_fallthru
        _
    $region12: #{_lambda_.1} parent=5 // pred_fallthru
      _
    %p399 = scmp.lt.s32.totalorder %s20, 2
    // Predicated region
    $region65: #{_lambda_.1} parent=5 // pred_check
      %p400 = pneg %p399
    $region66: #{_lambda_.1} parent=5 // pred_check_branch
      %402 = sbr.rel (%p400) target = $region68
    $region67: #{_lambda_.1} parent=5 // pred_region
      // Predicated region
      $region69: #{_lambda_.1} parent=67 // pred_check
        %p403 = pneg %p40
      $region70: #{_lambda_.1} parent=67 // pred_check_branch
        %405 = sbr.rel (%p403) target = $region72
      $region71: #{_lambda_.1} parent=67 // pred_region
        %p406 = scmp.lt.s32.totalorder %s20, 1
        %s407 = scalar_select %p406, %s20, 1
        %s408 = smul.addr %s407, 4
        %s409 = smul.addr %s408, 4
        %s410 = scalar_lea.vmem %s0, %s409
      $region72: #{_lambda_.1} parent=67 // pred_fallthru
        _
    $region68: #{_lambda_.1} parent=5 // pred_fallthru
      _
    %p411 = scmp.le.s32.totalorder 1, %s20
    %p412 = scmp.lt.s32.totalorder %s20, 3
    %p413 = pnand %p411, %p412
    %p414 = pneg %p413
    // Predicated region
    $region73: #{_lambda_.1} parent=5 // pred_check
      _
    $region74: #{_lambda_.1} parent=5 // pred_check_branch
      %416 = sbr.rel (%p413) target = $region76
    $region75: #{_lambda_.1} parent=5 // pred_region
      %s417 = ssub.s32 %s20, 1
      %p418 = scmp.lt.s32.totalorder %s25, 1
      %s419 = scalar_select %p418, %s25, 1
      %s420 = smul.addr %s419, 4
      %s421 = smul.addr %s420, 4
      %s422 = scalar_lea.vmem %s0, %s421
      %p423 = pneg %p46
      %p424 = pneg %p43
      %p425 = pneg %p67
      %p426 = pneg %p64
      %p427 = pneg %p88
      %p428 = pneg %p85
      %p429 = pneg %p109
      %p430 = pneg %p106
      %p431 = pneg %p130
      %p432 = pneg %p127
      %p433 = pneg %p151
      %p434 = pneg %p148
      %p435 = pneg %p172
      %p436 = pneg %p169
      %p437 = pneg %p193
      %p438 = pneg %p190
      %p439 = pneg %p214
      %p440 = pneg %p211
      %p441 = pneg %p235
      %p442 = pneg %p232
      %p443 = pneg %p256
      %p444 = pneg %p253
      %p445 = pneg %p277
      %p446 = pneg %p274
      %p447 = pneg %p298
      %p448 = pneg %p295
      %p449 = pneg %p319
      %p450 = pneg %p316
      %p451 = pneg %p345
      %p452 = pneg %p342
      %p453 = scmp.lt.s32.totalorder %s25, 1
      %s454 = scalar_select %p453, %s25, 1
      %s455 = smul.addr %s454, 2
      %s456 = smul.addr %s455, 8
      %s457 = scalar_lea.vmem %s14, %s456
      %p458 = scmp.lt.s32.totalorder %s25, 1
      %s459 = scalar_select %p458, %s25, 1
      %s460 = smul.addr %s459, 4
      %s461 = smul.addr %s460, 4
      %s462 = scalar_lea.vmem %s0, %s461
      %p463 = scmp.lt.s32.totalorder %s25, 1
      %s464 = scalar_select %p463, %s25, 1
      %s465 = smul.addr %s464, 2
      %s466 = smul.addr %s465, 8
      %s467 = scalar_lea.vmem %s14, %s466
      %v469 = vld [vmem:[%s1] sm:$0xff]
      %v470 = vld [vmem:[%s1 + $0x8] sm:$0x7f]
      %s471 = scalar_lea.vmem %s1, 16
      %v472 = vld [vmem:[%s471] sm:$0xff]
      %v473 = vld [vmem:[%s471 + $0x8] sm:$0x7f]
      %v474 = vld [vmem:[%s2] sm:$0xff]
      %v475 = vld [vmem:[%s2 + $0x8] sm:$0x7]
      %v476 = vld [vmem:[%s4] sm:$0x7]
      %v477 = vld [vmem:[%s462] sm:$0xff]
      %v478 = vld [vmem:[%s462 + $0x8] sm:$0xff]
      %v479 = vld [vmem:[%s5] sm:$0xf]
      %v480 = vld [vmem:[%s5 + $0x4] sm:$0xf]
      %v481 = vld [vmem:[%s5 + $0x8] sm:$0xf]
      %v482 = vld [vmem:[%s5 + $0xc] sm:$0xf]
      %v483 = vld [vmem:[%s5 + $0x10] sm:$0xf]
      %v484 = vld [vmem:[%s5 + $0x14] sm:$0xf]
      %v485 = vld [vmem:[%s5 + $0x18] sm:$0xf]
      %v486 = vld [vmem:[%s5 + $0x1c] sm:$0xf]
      %v487 = vld [vmem:[%s5 + $0x20] sm:$0xf]
      %v488 = vld [vmem:[%s5 + $0x24] sm:$0xf]
      %v489 = vld [vmem:[%s5 + $0x28] sm:$0xf]
      %v490 = vld [vmem:[%s5 + $0x2c] sm:$0xf]
      %v491 = vld [vmem:[%s5 + $0x30] sm:$0xf]
      %v492 = vld [vmem:[%s5 + $0x34] sm:$0xf]
      %v493 = vld [vmem:[%s5 + $0x38] sm:$0xf]
      %v494 = vld [vmem:[%s5 + $0x3c] sm:$0xf]
      %v495 = vld [vmem:[%s5 + $0x40] sm:$0xf]
      %v496 = vld [vmem:[%s5 + $0x44] sm:$0xf]
      %v497 = vld [vmem:[%s5 + $0x48] sm:$0xf]
      %v498 = vld [vmem:[%s5 + $0x4c] sm:$0xf]
      %v499 = vld [vmem:[%s5 + $0x50] sm:$0xf]
      %v500 = vld [vmem:[%s5 + $0x54] sm:$0xf]
      %v501 = vld [vmem:[%s5 + $0x58] sm:$0xf]
      %v502 = vld [vmem:[%s5 + $0x5c] sm:$0xf]
      %v505 = vunpack.c.l.b16 %v477
      %v506 = vunpack.c.h.b16 %v477
      %v507 = vunpack.c.l.b16 %v478
      %v508 = vunpack.c.h.b16 %v478
      %v509 = vpack.c.b16 %v507, %v505
      %v510 = vpack.c.b16 %v508, %v506
      %v536 = vunpack.c.l.b16 %v479
      %v537 = vunpack.c.l.b16 %v480
      %v538 = vunpack.c.l.b16 %v481
      %v539 = vunpack.c.l.b16 %v482
      %v540 = vunpack.c.l.b16 %v483
      %v541 = vunpack.c.l.b16 %v484
      %v542 = vunpack.c.l.b16 %v485
      %v543 = vunpack.c.l.b16 %v486
      %v544 = vunpack.c.l.b16 %v487
      %v545 = vunpack.c.l.b16 %v488
      %v546 = vunpack.c.l.b16 %v489
      %v547 = vunpack.c.l.b16 %v490
      %v548 = vunpack.c.l.b16 %v491
      %v549 = vunpack.c.l.b16 %v492
      %v550 = vunpack.c.l.b16 %v493
      %v551 = vunpack.c.l.b16 %v494
      %v552 = vunpack.c.l.b16 %v495
      %v553 = vunpack.c.l.b16 %v496
      %v554 = vunpack.c.l.b16 %v497
      %v555 = vunpack.c.l.b16 %v498
      %v556 = vunpack.c.l.b16 %v499
      %v557 = vunpack.c.l.b16 %v500
      %v558 = vunpack.c.l.b16 %v501
      %v559 = vunpack.c.l.b16 %v502
      %v560 = vpack.c.b16 %v537, %v536
      %v561 = vpack.c.b16 %v539, %v538
      %v562 = vpack.c.b16 %v541, %v540
      %v563 = vpack.c.b16 %v543, %v542
      %v564 = vpack.c.b16 %v545, %v544
      %v565 = vpack.c.b16 %v547, %v546
      %v566 = vpack.c.b16 %v549, %v548
      %v567 = vpack.c.b16 %v551, %v550
      %v568 = vpack.c.b16 %v553, %v552
      %v569 = vpack.c.b16 %v555, %v554
      %v570 = vpack.c.b16 %v557, %v556
      %v571 = vpack.c.b16 %v559, %v558
      %vm584 = vcmask 523264
      %v586 = vsel %vm584, %v510, 0
      %588 = vmatprep.subr.bf16.mxu0 0
      %589 = vmatpush1.bf16.msra.mxu0 %v567
      %590 = vmatprep.subr.bf16.mxu0 0
      %591 = vmatpush1.bf16.msra.mxu0 %v566
      %592 = vmatprep.subr.bf16.mxu0 0
      %593 = vmatpush1.bf16.msra.mxu0 %v565
      %594 = vmatprep.subr.bf16.mxu0 0
      %595 = vmatpush1.bf16.msra.mxu0 %v564
      %596 = vmatprep.subr.bf16.mxu0 0
      %597 = vmatpush1.bf16.msra.mxu0 %v563
      %598 = vmatprep.subr.bf16.mxu0 0
      %599 = vmatpush1.bf16.msra.mxu0 %v562
      %600 = vmatprep.subr.bf16.mxu0 0
      %601 = vmatpush1.bf16.msra.mxu0 %v561
      %602 = vmatprep.subr.bf16.mxu0 0
      %603 = vmatpush1.bf16.msra.mxu0 %v560
      %604 = vmatprep.subr.bf16.mxu0 0
      %605 = vmatpush2.bf16.msra.mxu0 0
      %606 = vmatprep.subr.bf16.mxu0 0
      %607 = vmatpush2.bf16.msra.mxu0 0
      %608 = vmatprep.subr.bf16.mxu0 0
      %609 = vmatpush2.bf16.msra.mxu0 0
      %610 = vmatprep.subr.bf16.mxu0 0
      %611 = vmatpush2.bf16.msra.mxu0 0
      %612 = vmatprep.subr.bf16.mxu0 0
      %613 = vmatpush2.bf16.msra.mxu0 %v571
      %614 = vmatprep.subr.bf16.mxu0 0
      %615 = vmatpush2.bf16.msra.mxu0 %v570
      %616 = vmatprep.subr.bf16.mxu0 0
      %617 = vmatpush2.bf16.msra.mxu0 %v569
      %618 = vmatprep.subr.bf16.mxu0 0
      %619 = vmatpush2.bf16.msra.mxu0 %v568
      %620 = vmatprep.mubr.bf16.mxu0 %v586
      %621 = vmatmul.mubr.bf16.gmra.mxu0 %v509
      %v622 = vpop.f32.mrf.mxu0
      %v623 = vadd.f32 %v469, %v622
      %v624 = vpop.f32.mrf.mxu0
      %v625 = vpop.f32.mrf.mxu0
      %v626 = vadd.f32 %v470, %v625
      %v627 = vpop.f32.mrf.mxu0
      %628 = vdwg.mxu0
      %v629 = vld [vmem:[%s3] sm:$0xff]
      %v630 = vld [vmem:[%s3 + $0x8] sm:$0x1]
      %vm631 = vcmask 261120
      %v632 = vsel %vm631, %v623, 0.0
      %633 = vadd.xlane.f32.xlu0 %v632
      %v634 = vpop.xlane.xlu0 %633
      %vm635 = vcmask 260096
      %v636 = vsel %vm635, %v626, 0.0
      %637 = vadd.xlane.f32.xlu0 %v636
      %v638 = vpop.xlane.xlu0 %637
      %v639 = vrcp.pop 32.0
      %v640 = vmul.f32 %v634, %v639
      %v641 = vmul.f32 %v638, %v639
      %v642 = vsub.f32 %v623, %v640
      %v643 = vsub.f32 %v626, %v641
      %v644 = vmul.f32 %v642, %v642
      %v645 = vmul.f32 %v643, %v643
      %v646 = vsel %vm631, %v644, 0.0
      %647 = vadd.xlane.f32.xlu0 %v646
      %v648 = vpop.xlane.xlu0 %647
      %v649 = vsel %vm635, %v645, 0.0
      %650 = vadd.xlane.f32.xlu0 %v649
      %v651 = vpop.xlane.xlu0 %650
      %v652 = vmul.f32 %v648, %v639
      %v653 = vmul.f32 %v651, %v639
      %v654 = vadd.f32 %v652, 1e-12
      %v655 = vadd.f32 %v653, 1e-12
      %v656 = vrsqrt.pop %v654
      %v657 = vrsqrt.pop %v655
      %v658 = vmul.f32 %v642, %v656
      %v659 = vmul.f32 %v643, %v657
      %v660 = vlaneseq
      %v661 = vshrl.u32 %v660, 7
      %v662 = vsub.s32 0, %v661
      %v663 = vrot.slane %v629, %v662
      %v664 = vmul.f32 %v658, %v663
      %v665 = vmul.f32 %v659, %v663
      %v666 = vlaneseq
      %v667 = vshrl.u32 %v666, 7
      %v668 = vsub.s32 1, %v667
      %v669 = vrot.slane %v629, %v668
      %v670 = vadd.f32 %v664, %v669
      %v671 = vadd.f32 %v665, %v669
      %v672 = vld [vmem:[%s6] sm:$0xf]
      %v673 = vld [vmem:[%s6 + $0x4] sm:$0xf]
      %v674 = vld [vmem:[%s6 + $0x8] sm:$0xf]
      %v675 = vld [vmem:[%s6 + $0xc] sm:$0xf]
      %v676 = vld [vmem:[%s7] sm:$0xf]
      %v677 = vld [vmem:[%s7 + $0x4] sm:$0xf]
      %v678 = vld [vmem:[%s7 + $0x8] sm:$0xf]
      %v679 = vld [vmem:[%s7 + $0xc] sm:$0xf]
      %v680 = vpack.c.bf16 %v671, %v670
      %v685 = vunpack.c.l.b16 %v672
      %v686 = vunpack.c.l.b16 %v673
      %v687 = vunpack.c.l.b16 %v674
      %v688 = vunpack.c.l.b16 %v675
      %v689 = vpack.c.b16 %v686, %v685
      %v690 = vpack.c.b16 %v688, %v687
      %v694 = vsel %vm631, %v680, 0
      %696 = vmatprep.subr.bf16.mxu0 0
      %697 = vmatpush1.bf16.msra.mxu0 0
      %698 = vmatprep.subr.bf16.mxu0 0
      %699 = vmatpush1.bf16.msra.mxu0 0
      %700 = vmatprep.subr.bf16.mxu0 0
      %701 = vmatpush1.bf16.msra.mxu0 0
      %702 = vmatprep.subr.bf16.mxu0 0
      %703 = vmatpush1.bf16.msra.mxu0 0
      %704 = vmatprep.subr.bf16.mxu0 0
      %705 = vmatpush1.bf16.msra.mxu0 0
      %706 = vmatprep.subr.bf16.mxu0 0
      %707 = vmatpush1.bf16.msra.mxu0 0
      %708 = vmatprep.subr.bf16.mxu0 0
      %709 = vmatpush1.bf16.msra.mxu0 %v690
      %710 = vmatprep.subr.bf16.mxu0 0
      %711 = vmatpush1.bf16.msra.mxu0 %v689
      %712 = vmatprep.subr.bf16.mxu0 0
      %713 = vmatpush2.bf16.msra.mxu0 0
      %714 = vmatprep.subr.bf16.mxu0 0
      %715 = vmatpush2.bf16.msra.mxu0 0
      %716 = vmatprep.subr.bf16.mxu0 0
      %717 = vmatpush2.bf16.msra.mxu0 0
      %718 = vmatprep.subr.bf16.mxu0 0
      %719 = vmatpush2.bf16.msra.mxu0 0
      %720 = vmatprep.subr.bf16.mxu0 0
      %721 = vmatpush2.bf16.msra.mxu0 0
      %722 = vmatprep.subr.bf16.mxu0 0
      %723 = vmatpush2.bf16.msra.mxu0 0
      %724 = vmatprep.subr.bf16.mxu0 0
      %725 = vmatpush2.bf16.msra.mxu0 0
      %726 = vmatprep.subr.bf16.mxu0 0
      %727 = vmatpush2.bf16.msra.mxu0 0
      %728 = vmatprep.mubr.bf16.mxu0 0
      %729 = vmatmul.mubr.bf16.gmra.mxu0 %v694
      %v730 = vpop.f32.mrf.mxu0
      %v731 = vadd.f32 0.0, %v730
      %v732 = vpop.f32.mrf.mxu0
      %v733 = vpop.f32.mrf.mxu0
      %v734 = vadd.f32 0.0, %v733
      %v735 = vpop.f32.mrf.mxu0
      %736 = vdwg.mxu0
      %v737 = vlaneseq
      %v738 = vshrl.u32 %v737, 7
      %v739 = vsub.s32 2, %v738
      %v740 = vrot.slane %v629, %v739
      %v741 = vadd.f32 %v731, %v740
      %v742 = vadd.f32 %v734, %v740
      %v743 = vlaneseq
      %v744 = vshrl.u32 %v743, 7
      %v745 = vsub.s32 3, %v744
      %v746 = vrot.slane %v629, %v745
      %748 = vrot.lane.b32.xlu0 %v746, 32
      %v749 = vpop.permute.xlu0 %748
      %v751 = vadd.f32 %v731, %v749
      %v752 = vadd.f32 %v734, %v749
      %v753 = vlaneseq
      %v754 = vshrl.u32 %v753, 7
      %v755 = vsub.s32 4, %v754
      %v756 = vrot.slane %v629, %v755
      %758 = vrot.lane.b32.xlu0 %v756, 64
      %v759 = vpop.permute.xlu0 %758
      %v761 = vadd.f32 %v731, %v759
      %v762 = vadd.f32 %v734, %v759
      %764 = vrot.lane.b32.xlu0 %v741, 120
      %v765 = vpop.permute.xlu0 %764
      %767 = vrot.lane.b32.xlu0 %v741, 112
      %v768 = vpop.permute.xlu0 %767
      %770 = vrot.lane.b32.xlu0 %v741, 104
      %v771 = vpop.permute.xlu0 %770
      %v773 = vpack.c.bf16 %v741, %v741
      %v774 = vpack.c.bf16 %v765, %v765
      %v775 = vpack.c.bf16 %v768, %v768
      %v776 = vpack.c.bf16 %v771, %v771
      %778 = vrot.lane.b32.xlu0 %v751, 120
      %v779 = vpop.permute.xlu0 %778
      %781 = vrot.lane.b32.xlu0 %v751, 112
      %v782 = vpop.permute.xlu0 %781
      %784 = vrot.lane.b32.xlu0 %v751, 104
      %v785 = vpop.permute.xlu0 %784
      %v787 = vpack.c.bf16 %v751, %v751
      %v788 = vpack.c.bf16 %v779, %v779
      %v789 = vpack.c.bf16 %v782, %v782
      %v790 = vpack.c.bf16 %v785, %v785
      %792 = vrot.lane.b32.xlu0 %v761, 120
      %v793 = vpop.permute.xlu0 %792
      %795 = vrot.lane.b32.xlu0 %v761, 112
      %v796 = vpop.permute.xlu0 %795
      %798 = vrot.lane.b32.xlu0 %v761, 104
      %v799 = vpop.permute.xlu0 %798
      %v801 = vpack.c.bf16 %v761, %v761
      %v802 = vpack.c.bf16 %v793, %v793
      %v803 = vpack.c.bf16 %v796, %v796
      %v804 = vpack.c.bf16 %v799, %v799
      %806 = vrot.lane.b32.xlu0 %v787, 96
      %v807 = vpop.permute.xlu0 %806
      %vm808 = vcmask 64512
      %v810 = vsel %vm808, %v773, 0
      %v813 = vsel %vm808, %v807, 0
      %815 = vmatprep.subr.bf16.mxu0 0
      %816 = vmatpush1.bf16.xpose.msra.mxu0 0
      %817 = vmatprep.subr.bf16.mxu0 0
      %818 = vmatpush1.bf16.xpose.msra.mxu0 0
      %819 = vmatprep.subr.bf16.mxu0 0
      %820 = vmatpush1.bf16.xpose.msra.mxu0 0
      %821 = vmatprep.subr.bf16.mxu0 0
      %822 = vmatpush1.bf16.xpose.msra.mxu0 0
      %823 = vmatprep.subr.bf16.mxu0 0
      %824 = vmatpush1.bf16.xpose.msra.mxu0 0
      %825 = vmatprep.subr.bf16.mxu0 0
      %826 = vmatpush1.bf16.xpose.msra.mxu0 0
      %827 = vmatprep.subr.bf16.mxu0 0
      %828 = vmatpush1.bf16.xpose.msra.mxu0 0
      %829 = vmatprep.subr.bf16.mxu0 0
      %830 = vmatpush1.bf16.xpose.msra.mxu0 %v813
      %831 = vmatprep.subr.bf16.mxu0 0
      %832 = vmatpush2.bf16.xpose.msra.mxu0 0
      %833 = vmatprep.subr.bf16.mxu0 0
      %834 = vmatpush2.bf16.xpose.msra.mxu0 0
      %835 = vmatprep.subr.bf16.mxu0 0
      %836 = vmatpush2.bf16.xpose.msra.mxu0 0
      %837 = vmatprep.subr.bf16.mxu0 0
      %838 = vmatpush2.bf16.xpose.msra.mxu0 0
      %839 = vmatprep.subr.bf16.mxu0 0
      %840 = vmatpush2.bf16.xpose.msra.mxu0 0
      %841 = vmatprep.subr.bf16.mxu0 0
      %842 = vmatpush2.bf16.xpose.msra.mxu0 0
      %843 = vmatprep.subr.bf16.mxu0 0
      %844 = vmatpush2.bf16.xpose.msra.mxu0 0
      %845 = vmatprep.subr.bf16.mxu0 0
      %846 = vmatpush2.bf16.xpose.msra.mxu0 0
      %847 = vmatprep.mubr.bf16.mxu0 0
      %848 = vmatmul.mubr.bf16.gmra.mxu0 %v810
      %v849 = vpop.f32.mrf.mxu0
      %v850 = vadd.f32 0.0, %v849
      %v851 = vpop.f32.mrf.mxu0
      %v852 = vpop.f32.mrf.mxu0
      %v853 = vpop.f32.mrf.mxu0
      %854 = vdwg.mxu0
      %856 = vrot.lane.b32.xlu0 %v788, 96
      %v857 = vpop.permute.xlu0 %856
      %v859 = vsel %vm808, %v774, 0
      %v862 = vsel %vm808, %v857, 0
      %864 = vmatprep.subr.bf16.mxu0 0
      %865 = vmatpush1.bf16.xpose.msra.mxu0 0
      %866 = vmatprep.subr.bf16.mxu0 0
      %867 = vmatpush1.bf16.xpose.msra.mxu0 0
      %868 = vmatprep.subr.bf16.mxu0 0
      %869 = vmatpush1.bf16.xpose.msra.mxu0 0
      %870 = vmatprep.subr.bf16.mxu0 0
      %871 = vmatpush1.bf16.xpose.msra.mxu0 0
      %872 = vmatprep.subr.bf16.mxu0 0
      %873 = vmatpush1.bf16.xpose.msra.mxu0 0
      %874 = vmatprep.subr.bf16.mxu0 0
      %875 = vmatpush1.bf16.xpose.msra.mxu0 0
      %876 = vmatprep.subr.bf16.mxu0 0
      %877 = vmatpush1.bf16.xpose.msra.mxu0 0
      %878 = vmatprep.subr.bf16.mxu0 0
      %879 = vmatpush1.bf16.xpose.msra.mxu0 %v862
      %880 = vmatprep.subr.bf16.mxu0 0
      %881 = vmatpush2.bf16.xpose.msra.mxu0 0
      %882 = vmatprep.subr.bf16.mxu0 0
      %883 = vmatpush2.bf16.xpose.msra.mxu0 0
      %884 = vmatprep.subr.bf16.mxu0 0
      %885 = vmatpush2.bf16.xpose.msra.mxu0 0
      %886 = vmatprep.subr.bf16.mxu0 0
      %887 = vmatpush2.bf16.xpose.msra.mxu0 0
      %888 = vmatprep.subr.bf16.mxu0 0
      %889 = vmatpush2.bf16.xpose.msra.mxu0 0
      %890 = vmatprep.subr.bf16.mxu0 0
      %891 = vmatpush2.bf16.xpose.msra.mxu0 0
      %892 = vmatprep.subr.bf16.mxu0 0
      %893 = vmatpush2.bf16.xpose.msra.mxu0 0
      %894 = vmatprep.subr.bf16.mxu0 0
      %895 = vmatpush2.bf16.xpose.msra.mxu0 0
      %896 = vmatprep.mubr.bf16.mxu0 0
      %897 = vmatmul.mubr.bf16.gmra.mxu0 %v859
      %v898 = vpop.f32.mrf.mxu0
      %v899 = vadd.f32 0.0, %v898
      %v900 = vpop.f32.mrf.mxu0
      %v901 = vpop.f32.mrf.mxu0
      %v902 = vpop.f32.mrf.mxu0
      %903 = vdwg.mxu0
      %905 = vrot.lane.b32.xlu0 %v789, 96
      %v906 = vpop.permute.xlu0 %905
      %v908 = vsel %vm808, %v775, 0
      %v911 = vsel %vm808, %v906, 0
      %913 = vmatprep.subr.bf16.mxu0 0
      %914 = vmatpush1.bf16.xpose.msra.mxu0 0
      %915 = vmatprep.subr.bf16.mxu0 0
      %916 = vmatpush1.bf16.xpose.msra.mxu0 0
      %917 = vmatprep.subr.bf16.mxu0 0
      %918 = vmatpush1.bf16.xpose.msra.mxu0 0
      %919 = vmatprep.subr.bf16.mxu0 0
      %920 = vmatpush1.bf16.xpose.msra.mxu0 0
      %921 = vmatprep.subr.bf16.mxu0 0
      %922 = vmatpush1.bf16.xpose.msra.mxu0 0
      %923 = vmatprep.subr.bf16.mxu0 0
      %924 = vmatpush1.bf16.xpose.msra.mxu0 0
      %925 = vmatprep.subr.bf16.mxu0 0
      %926 = vmatpush1.bf16.xpose.msra.mxu0 0
      %927 = vmatprep.subr.bf16.mxu0 0
      %928 = vmatpush1.bf16.xpose.msra.mxu0 %v911
      %929 = vmatprep.subr.bf16.mxu0 0
      %930 = vmatpush2.bf16.xpose.msra.mxu0 0
      %931 = vmatprep.subr.bf16.mxu0 0
      %932 = vmatpush2.bf16.xpose.msra.mxu0 0
      %933 = vmatprep.subr.bf16.mxu0 0
      %934 = vmatpush2.bf16.xpose.msra.mxu0 0
      %935 = vmatprep.subr.bf16.mxu0 0
      %936 = vmatpush2.bf16.xpose.msra.mxu0 0
      %937 = vmatprep.subr.bf16.mxu0 0
      %938 = vmatpush2.bf16.xpose.msra.mxu0 0
      %939 = vmatprep.subr.bf16.mxu0 0
      %940 = vmatpush2.bf16.xpose.msra.mxu0 0
      %941 = vmatprep.subr.bf16.mxu0 0
      %942 = vmatpush2.bf16.xpose.msra.mxu0 0
      %943 = vmatprep.subr.bf16.mxu0 0
      %944 = vmatpush2.bf16.xpose.msra.mxu0 0
      %945 = vmatprep.mubr.bf16.mxu0 0
      %946 = vmatmul.mubr.bf16.gmra.mxu0 %v908
      %v947 = vpop.f32.mrf.mxu0
      %v948 = vadd.f32 0.0, %v947
      %v949 = vpop.f32.mrf.mxu0
      %v950 = vpop.f32.mrf.mxu0
      %v951 = vpop.f32.mrf.mxu0
      %952 = vdwg.mxu0
      %954 = vrot.lane.b32.xlu0 %v790, 96
      %v955 = vpop.permute.xlu0 %954
      %v957 = vsel %vm808, %v776, 0
      %v960 = vsel %vm808, %v955, 0
      %962 = vmatprep.subr.bf16.mxu0 0
      %963 = vmatpush1.bf16.xpose.msra.mxu0 0
      %964 = vmatprep.subr.bf16.mxu0 0
      %965 = vmatpush1.bf16.xpose.msra.mxu0 0
      %966 = vmatprep.subr.bf16.mxu0 0
      %967 = vmatpush1.bf16.xpose.msra.mxu0 0
      %968 = vmatprep.subr.bf16.mxu0 0
      %969 = vmatpush1.bf16.xpose.msra.mxu0 0
      %970 = vmatprep.subr.bf16.mxu0 0
      %971 = vmatpush1.bf16.xpose.msra.mxu0 0
      %972 = vmatprep.subr.bf16.mxu0 0
      %973 = vmatpush1.bf16.xpose.msra.mxu0 0
      %974 = vmatprep.subr.bf16.mxu0 0
      %975 = vmatpush1.bf16.xpose.msra.mxu0 0
      %976 = vmatprep.subr.bf16.mxu0 0
      %977 = vmatpush1.bf16.xpose.msra.mxu0 %v960
      %978 = vmatprep.subr.bf16.mxu0 0
      %979 = vmatpush2.bf16.xpose.msra.mxu0 0
      %980 = vmatprep.subr.bf16.mxu0 0
      %981 = vmatpush2.bf16.xpose.msra.mxu0 0
      %982 = vmatprep.subr.bf16.mxu0 0
      %983 = vmatpush2.bf16.xpose.msra.mxu0 0
      %984 = vmatprep.subr.bf16.mxu0 0
      %985 = vmatpush2.bf16.xpose.msra.mxu0 0
      %986 = vmatprep.subr.bf16.mxu0 0
      %987 = vmatpush2.bf16.xpose.msra.mxu0 0
      %988 = vmatprep.subr.bf16.mxu0 0
      %989 = vmatpush2.bf16.xpose.msra.mxu0 0
      %990 = vmatprep.subr.bf16.mxu0 0
      %991 = vmatpush2.bf16.xpose.msra.mxu0 0
      %992 = vmatprep.subr.bf16.mxu0 0
      %993 = vmatpush2.bf16.xpose.msra.mxu0 0
      %994 = vmatprep.mubr.bf16.mxu0 0
      %995 = vmatmul.mubr.bf16.gmra.mxu0 %v957
      %v996 = vpop.f32.mrf.mxu0
      %v997 = vadd.f32 0.0, %v996
      %v998 = vpop.f32.mrf.mxu0
      %v999 = vpop.f32.mrf.mxu0
      %v1000 = vpop.f32.mrf.mxu0
      %1001 = vdwg.mxu0
      %v1002 = vmul.f32 %v850, 0.35355338
      %v1003 = vmul.f32 %v899, 0.35355338
      %v1004 = vmul.f32 %v948, 0.35355338
      %v1005 = vmul.f32 %v997, 0.35355338
      %vm1006 = vcmask 36864
      %v1007 = vsel %vm1006, %v1002, -inf
      %1008 = vmax.xlane.f32.xlu0 %v1007
      %v1009 = vpop.xlane.xlu0 %1008
      %v1010 = vsel %vm1006, %v1003, -inf
      %1011 = vmax.xlane.f32.xlu0 %v1010
      %v1012 = vpop.xlane.xlu0 %1011
      %v1013 = vsel %vm1006, %v1004, -inf
      %1014 = vmax.xlane.f32.xlu0 %v1013
      %v1015 = vpop.xlane.xlu0 %1014
      %v1016 = vsel %vm1006, %v1005, -inf
      %1017 = vmax.xlane.f32.xlu0 %v1016
      %v1018 = vpop.xlane.xlu0 %1017
      %v1019 = vsub.f32 %v1002, %v1009
      %v1020 = vsub.f32 %v1003, %v1012
      %v1021 = vsub.f32 %v1004, %v1015
      %v1022 = vsub.f32 %v1005, %v1018
      %v1023 = vmul.f32 %v1019, 1.442695
      %v1024 = vpow.pop %v1023
      %v1025 = vmul.f32 %v1020, 1.442695
      %v1026 = vpow.pop %v1025
      %v1027 = vmul.f32 %v1021, 1.442695
      %v1028 = vpow.pop %v1027
      %v1029 = vmul.f32 %v1022, 1.442695
      %v1030 = vpow.pop %v1029
      %v1031 = vsel %vm1006, %v1024, 0.0
      %1032 = vadd.xlane.f32.xlu0 %v1031
      %v1033 = vpop.xlane.xlu0 %1032
      %v1034 = vsel %vm1006, %v1026, 0.0
      %1035 = vadd.xlane.f32.xlu0 %v1034
      %v1036 = vpop.xlane.xlu0 %1035
      %v1037 = vsel %vm1006, %v1028, 0.0
      %1038 = vadd.xlane.f32.xlu0 %v1037
      %v1039 = vpop.xlane.xlu0 %1038
      %v1040 = vsel %vm1006, %v1030, 0.0
      %1041 = vadd.xlane.f32.xlu0 %v1040
      %v1042 = vpop.xlane.xlu0 %1041
      %v1043 = vrcp.pop %v1033
      %v1044 = vrcp.pop %v1036
      %v1045 = vrcp.pop %v1039
      %v1046 = vrcp.pop %v1042
      %v1047 = vmul.f32 %v1024, %v1043
      %v1048 = vmul.f32 %v1026, %v1044
      %v1049 = vmul.f32 %v1028, %v1045
      %v1050 = vmul.f32 %v1030, %v1046
      %v1051 = vpack.c.bf16 %v1047, %v1047
      %v1052 = vpack.c.bf16 %v1048, %v1048
      %v1053 = vpack.c.bf16 %v1049, %v1049
      %v1054 = vpack.c.bf16 %v1050, %v1050
      %1056 = vrot.lane.b32.xlu0 %v801, 64
      %v1057 = vpop.permute.xlu0 %1056
      %vm1058 = vcmask 39936
      %v1060 = vsel %vm1058, %v1051, 0
      %vm1062 = vcmask 1041408
      %vm1063 = vcmask 1042432
      %v1064 = vsel %vm1062, 4294967295, 65535
      %v1065 = vsel %vm1063, %v1064, 0
      %v1067 = vand.u32 %v1057, %v1065
      %1069 = vmatprep.subr.bf16.mxu0 0
      %1070 = vmatpush1.bf16.msra.mxu0 0
      %1071 = vmatprep.subr.bf16.mxu0 0
      %1072 = vmatpush1.bf16.msra.mxu0 0
      %1073 = vmatprep.subr.bf16.mxu0 0
      %1074 = vmatpush1.bf16.msra.mxu0 0
      %1075 = vmatprep.subr.bf16.mxu0 0
      %1076 = vmatpush1.bf16.msra.mxu0 0
      %1077 = vmatprep.subr.bf16.mxu0 0
      %1078 = vmatpush1.bf16.msra.mxu0 0
      %1079 = vmatprep.subr.bf16.mxu0 0
      %1080 = vmatpush1.bf16.msra.mxu0 0
      %1081 = vmatprep.subr.bf16.mxu0 0
      %1082 = vmatpush1.bf16.msra.mxu0 0
      %1083 = vmatprep.subr.bf16.mxu0 0
      %1084 = vmatpush1.bf16.msra.mxu0 %v1067
      %1085 = vmatprep.subr.bf16.mxu0 0
      %1086 = vmatpush2.bf16.msra.mxu0 0
      %1087 = vmatprep.subr.bf16.mxu0 0
      %1088 = vmatpush2.bf16.msra.mxu0 0
      %1089 = vmatprep.subr.bf16.mxu0 0
      %1090 = vmatpush2.bf16.msra.mxu0 0
      %1091 = vmatprep.subr.bf16.mxu0 0
      %1092 = vmatpush2.bf16.msra.mxu0 0
      %1093 = vmatprep.subr.bf16.mxu0 0
      %1094 = vmatpush2.bf16.msra.mxu0 0
      %1095 = vmatprep.subr.bf16.mxu0 0
      %1096 = vmatpush2.bf16.msra.mxu0 0
      %1097 = vmatprep.subr.bf16.mxu0 0
      %1098 = vmatpush2.bf16.msra.mxu0 0
      %1099 = vmatprep.subr.bf16.mxu0 0
      %1100 = vmatpush2.bf16.msra.mxu0 0
      %1101 = vmatprep.mubr.bf16.mxu0 0
      %1102 = vmatmul.mubr.bf16.gmra.mxu0 %v1060
      %v1103 = vpop.f32.mrf.mxu0
      %v1104 = vadd.f32 0.0, %v1103
      %v1105 = vpop.f32.mrf.mxu0
      %v1106 = vpop.f32.mrf.mxu0
      %v1107 = vpop.f32.mrf.mxu0
      %1108 = vdwg.mxu0
      %1110 = vrot.lane.b32.xlu0 %v802, 64
      %v1111 = vpop.permute.xlu0 %1110
      %v1113 = vsel %vm1058, %v1052, 0
      %v1116 = vand.u32 %v1111, %v1065
      %1118 = vmatprep.subr.bf16.mxu0 0
      %1119 = vmatpush1.bf16.msra.mxu0 0
      %1120 = vmatprep.subr.bf16.mxu0 0
      %1121 = vmatpush1.bf16.msra.mxu0 0
      %1122 = vmatprep.subr.bf16.mxu0 0
      %1123 = vmatpush1.bf16.msra.mxu0 0
      %1124 = vmatprep.subr.bf16.mxu0 0
      %1125 = vmatpush1.bf16.msra.mxu0 0
      %1126 = vmatprep.subr.bf16.mxu0 0
      %1127 = vmatpush1.bf16.msra.mxu0 0
      %1128 = vmatprep.subr.bf16.mxu0 0
      %1129 = vmatpush1.bf16.msra.mxu0 0
      %1130 = vmatprep.subr.bf16.mxu0 0
      %1131 = vmatpush1.bf16.msra.mxu0 0
      %1132 = vmatprep.subr.bf16.mxu0 0
      %1133 = vmatpush1.bf16.msra.mxu0 %v1116
      %1134 = vmatprep.subr.bf16.mxu0 0
      %1135 = vmatpush2.bf16.msra.mxu0 0
      %1136 = vmatprep.subr.bf16.mxu0 0
      %1137 = vmatpush2.bf16.msra.mxu0 0
      %1138 = vmatprep.subr.bf16.mxu0 0
      %1139 = vmatpush2.bf16.msra.mxu0 0
      %1140 = vmatprep.subr.bf16.mxu0 0
      %1141 = vmatpush2.bf16.msra.mxu0 0
      %1142 = vmatprep.subr.bf16.mxu0 0
      %1143 = vmatpush2.bf16.msra.mxu0 0
      %1144 = vmatprep.subr.bf16.mxu0 0
      %1145 = vmatpush2.bf16.msra.mxu0 0
      %1146 = vmatprep.subr.bf16.mxu0 0
      %1147 = vmatpush2.bf16.msra.mxu0 0
      %1148 = vmatprep.subr.bf16.mxu0 0
      %1149 = vmatpush2.bf16.msra.mxu0 0
      %1150 = vmatprep.mubr.bf16.mxu0 0
      %1151 = vmatmul.mubr.bf16.gmra.mxu0 %v1113
      %v1152 = vpop.f32.mrf.mxu0
      %v1153 = vadd.f32 0.0, %v1152
      %v1154 = vpop.f32.mrf.mxu0
      %v1155 = vpop.f32.mrf.mxu0
      %v1156 = vpop.f32.mrf.mxu0
      %1157 = vdwg.mxu0
      %1159 = vrot.lane.b32.xlu0 %v803, 64
      %v1160 = vpop.permute.xlu0 %1159
      %v1162 = vsel %vm1058, %v1053, 0
      %v1165 = vand.u32 %v1160, %v1065
      %1167 = vmatprep.subr.bf16.mxu0 0
      %1168 = vmatpush1.bf16.msra.mxu0 0
      %1169 = vmatprep.subr.bf16.mxu0 0
      %1170 = vmatpush1.bf16.msra.mxu0 0
      %1171 = vmatprep.subr.bf16.mxu0 0
      %1172 = vmatpush1.bf16.msra.mxu0 0
      %1173 = vmatprep.subr.bf16.mxu0 0
      %1174 = vmatpush1.bf16.msra.mxu0 0
      %1175 = vmatprep.subr.bf16.mxu0 0
      %1176 = vmatpush1.bf16.msra.mxu0 0
      %1177 = vmatprep.subr.bf16.mxu0 0
      %1178 = vmatpush1.bf16.msra.mxu0 0
      %1179 = vmatprep.subr.bf16.mxu0 0
      %1180 = vmatpush1.bf16.msra.mxu0 0
      %1181 = vmatprep.subr.bf16.mxu0 0
      %1182 = vmatpush1.bf16.msra.mxu0 %v1165
      %1183 = vmatprep.subr.bf16.mxu0 0
      %1184 = vmatpush2.bf16.msra.mxu0 0
      %1185 = vmatprep.subr.bf16.mxu0 0
      %1186 = vmatpush2.bf16.msra.mxu0 0
      %1187 = vmatprep.subr.bf16.mxu0 0
      %1188 = vmatpush2.bf16.msra.mxu0 0
      %1189 = vmatprep.subr.bf16.mxu0 0
      %1190 = vmatpush2.bf16.msra.mxu0 0
      %1191 = vmatprep.subr.bf16.mxu0 0
      %1192 = vmatpush2.bf16.msra.mxu0 0
      %1193 = vmatprep.subr.bf16.mxu0 0
      %1194 = vmatpush2.bf16.msra.mxu0 0
      %1195 = vmatprep.subr.bf16.mxu0 0
      %1196 = vmatpush2.bf16.msra.mxu0 0
      %1197 = vmatprep.subr.bf16.mxu0 0
      %1198 = vmatpush2.bf16.msra.mxu0 0
      %1199 = vmatprep.mubr.bf16.mxu0 0
      %1200 = vmatmul.mubr.bf16.gmra.mxu0 %v1162
      %v1201 = vpop.f32.mrf.mxu0
      %v1202 = vadd.f32 0.0, %v1201
      %v1203 = vpop.f32.mrf.mxu0
      %v1204 = vpop.f32.mrf.mxu0
      %v1205 = vpop.f32.mrf.mxu0
      %1206 = vdwg.mxu0
      %1208 = vrot.lane.b32.xlu0 %v804, 64
      %v1209 = vpop.permute.xlu0 %1208
      %v1211 = vsel %vm1058, %v1054, 0
      %v1214 = vand.u32 %v1209, %v1065
      %1216 = vmatprep.subr.bf16.mxu0 0
      %1217 = vmatpush1.bf16.msra.mxu0 0
      %1218 = vmatprep.subr.bf16.mxu0 0
      %1219 = vmatpush1.bf16.msra.mxu0 0
      %1220 = vmatprep.subr.bf16.mxu0 0
      %1221 = vmatpush1.bf16.msra.mxu0 0
      %1222 = vmatprep.subr.bf16.mxu0 0
      %1223 = vmatpush1.bf16.msra.mxu0 0
      %1224 = vmatprep.subr.bf16.mxu0 0
      %1225 = vmatpush1.bf16.msra.mxu0 0
      %1226 = vmatprep.subr.bf16.mxu0 0
      %1227 = vmatpush1.bf16.msra.mxu0 0
      %1228 = vmatprep.subr.bf16.mxu0 0
      %1229 = vmatpush1.bf16.msra.mxu0 0
      %1230 = vmatprep.subr.bf16.mxu0 0
      %1231 = vmatpush1.bf16.msra.mxu0 %v1214
      %1232 = vmatprep.subr.bf16.mxu0 0
      %1233 = vmatpush2.bf16.msra.mxu0 0
      %1234 = vmatprep.subr.bf16.mxu0 0
      %1235 = vmatpush2.bf16.msra.mxu0 0
      %1236 = vmatprep.subr.bf16.mxu0 0
      %1237 = vmatpush2.bf16.msra.mxu0 0
      %1238 = vmatprep.subr.bf16.mxu0 0
      %1239 = vmatpush2.bf16.msra.mxu0 0
      %1240 = vmatprep.subr.bf16.mxu0 0
      %1241 = vmatpush2.bf16.msra.mxu0 0
      %1242 = vmatprep.subr.bf16.mxu0 0
      %1243 = vmatpush2.bf16.msra.mxu0 0
      %1244 = vmatprep.subr.bf16.mxu0 0
      %1245 = vmatpush2.bf16.msra.mxu0 0
      %1246 = vmatprep.subr.bf16.mxu0 0
      %1247 = vmatpush2.bf16.msra.mxu0 0
      %1248 = vmatprep.mubr.bf16.mxu0 0
      %1249 = vmatmul.mubr.bf16.gmra.mxu0 %v1211
      %v1250 = vpop.f32.mrf.mxu0
      %v1251 = vadd.f32 0.0, %v1250
      %v1252 = vpop.f32.mrf.mxu0
      %v1253 = vpop.f32.mrf.mxu0
      %v1254 = vpop.f32.mrf.mxu0
      %1255 = vdwg.mxu0
      %vm1256 = vcmask 61440
      %1257 = vst.msk [vmem:[#allocation2] sm:$0x1f] %vm1256, %v1104
      %1259 = vrot.lane.b32.xlu0 %v1153, 8
      %v1260 = vpop.permute.xlu0 %1259
      %vm1262 = vcmask 127040
      %1263 = vst.msk [vmem:[#allocation2] sm:$0x1f] %vm1262, %v1260
      %1265 = vrot.lane.b32.xlu0 %v1202, 16
      %v1266 = vpop.permute.xlu0 %1265
      %vm1268 = vcmask 192640
      %1269 = vst.msk [vmem:[#allocation2] sm:$0x1f] %vm1268, %v1266
      %1271 = vrot.lane.b32.xlu0 %v1251, 24
      %v1272 = vpop.permute.xlu0 %1271
      %vm1274 = vcmask 258240
      %1275 = vst.msk [vmem:[#allocation2] sm:$0x1f] %vm1274, %v1272
      %1277 = vrot.lane.b32.xlu0 %v742, 120
      %v1278 = vpop.permute.xlu0 %1277
      %1280 = vrot.lane.b32.xlu0 %v742, 112
      %v1281 = vpop.permute.xlu0 %1280
      %1283 = vrot.lane.b32.xlu0 %v742, 104
      %v1284 = vpop.permute.xlu0 %1283
      %v1286 = vpack.c.bf16 %v742, %v741
      %v1287 = vpack.c.bf16 %v1278, %v765
      %v1288 = vpack.c.bf16 %v1281, %v768
      %v1289 = vpack.c.bf16 %v1284, %v771
      %1291 = vrot.lane.b32.xlu0 %v752, 120
      %v1292 = vpop.permute.xlu0 %1291
      %1294 = vrot.lane.b32.xlu0 %v752, 112
      %v1295 = vpop.permute.xlu0 %1294
      %1297 = vrot.lane.b32.xlu0 %v752, 104
      %v1298 = vpop.permute.xlu0 %1297
      %v1300 = vpack.c.bf16 %v752, %v751
      %v1301 = vpack.c.bf16 %v1292, %v779
      %v1302 = vpack.c.bf16 %v1295, %v782
      %v1303 = vpack.c.bf16 %v1298, %v785
      %1305 = vrot.lane.b32.xlu0 %v762, 120
      %v1306 = vpop.permute.xlu0 %1305
      %1308 = vrot.lane.b32.xlu0 %v762, 112
      %v1309 = vpop.permute.xlu0 %1308
      %1311 = vrot.lane.b32.xlu0 %v762, 104
      %v1312 = vpop.permute.xlu0 %1311
      %v1314 = vpack.c.bf16 %v762, %v761
      %v1315 = vpack.c.bf16 %v1306, %v793
      %v1316 = vpack.c.bf16 %v1309, %v796
      %v1317 = vpack.c.bf16 %v1312, %v799
      %v1319 = vshrl.u32 %v1286, 16
      %v1321 = vrot.slane %v1319, 2
      %v1322 = vshll.u32 %v1286, 16
      %v1324 = vrot.slane %v1322, 3
      %v1325 = vor.u32 %v1321, %v1324
      %v1327 = vshrl.u32 %v1300, 16
      %v1329 = vrot.slane %v1327, 2
      %v1330 = vshll.u32 %v1300, 16
      %v1332 = vrot.slane %v1330, 3
      %v1333 = vor.u32 %v1329, %v1332
      %1334 = vrot.lane.b32.xlu0 %v1333, 96
      %v1335 = vpop.permute.xlu0 %1334
      %v1337 = vsel %vm808, %v1325, 0
      %v1340 = vsel %vm808, %v1335, 0
      %1342 = vmatprep.subr.bf16.mxu0 0
      %1343 = vmatpush1.bf16.xpose.msra.mxu0 0
      %1344 = vmatprep.subr.bf16.mxu0 0
      %1345 = vmatpush1.bf16.xpose.msra.mxu0 0
      %1346 = vmatprep.subr.bf16.mxu0 0
      %1347 = vmatpush1.bf16.xpose.msra.mxu0 0
      %1348 = vmatprep.subr.bf16.mxu0 0
      %1349 = vmatpush1.bf16.xpose.msra.mxu0 0
      %1350 = vmatprep.subr.bf16.mxu0 0
      %1351 = vmatpush1.bf16.xpose.msra.mxu0 0
      %1352 = vmatprep.subr.bf16.mxu0 0
      %1353 = vmatpush1.bf16.xpose.msra.mxu0 0
      %1354 = vmatprep.subr.bf16.mxu0 0
      %1355 = vmatpush1.bf16.xpose.msra.mxu0 0
      %1356 = vmatprep.subr.bf16.mxu0 0
      %1357 = vmatpush1.bf16.xpose.msra.mxu0 %v1340
      %1358 = vmatprep.subr.bf16.mxu0 0
      %1359 = vmatpush2.bf16.xpose.msra.mxu0 0
      %1360 = vmatprep.subr.bf16.mxu0 0
      %1361 = vmatpush2.bf16.xpose.msra.mxu0 0
      %1362 = vmatprep.subr.bf16.mxu0 0
      %1363 = vmatpush2.bf16.xpose.msra.mxu0 0
      %1364 = vmatprep.subr.bf16.mxu0 0
      %1365 = vmatpush2.bf16.xpose.msra.mxu0 0
      %1366 = vmatprep.subr.bf16.mxu0 0
      %1367 = vmatpush2.bf16.xpose.msra.mxu0 0
      %1368 = vmatprep.subr.bf16.mxu0 0
      %1369 = vmatpush2.bf16.xpose.msra.mxu0 0
      %1370 = vmatprep.subr.bf16.mxu0 0
      %1371 = vmatpush2.bf16.xpose.msra.mxu0 0
      %1372 = vmatprep.subr.bf16.mxu0 0
      %1373 = vmatpush2.bf16.xpose.msra.mxu0 0
      %1374 = vmatprep.mubr.bf16.mxu0 0
      %1375 = vmatmul.mubr.bf16.gmra.mxu0 %v1337
      %v1376 = vpop.f32.mrf.mxu0
      %v1377 = vadd.f32 0.0, %v1376
      %v1378 = vpop.f32.mrf.mxu0
      %v1379 = vpop.f32.mrf.mxu0
      %v1380 = vpop.f32.mrf.mxu0
      %1381 = vdwg.mxu0
      %v1383 = vshrl.u32 %v1287, 16
      %v1385 = vrot.slane %v1383, 2
      %v1386 = vshll.u32 %v1287, 16
      %v1388 = vrot.slane %v1386, 3
      %v1389 = vor.u32 %v1385, %v1388
      %v1391 = vshrl.u32 %v1301, 16
      %v1393 = vrot.slane %v1391, 2
      %v1394 = vshll.u32 %v1301, 16
      %v1396 = vrot.slane %v1394, 3
      %v1397 = vor.u32 %v1393, %v1396
      %1398 = vrot.lane.b32.xlu0 %v1397, 96
      %v1399 = vpop.permute.xlu0 %1398
      %v1401 = vsel %vm808, %v1389, 0
      %v1404 = vsel %vm808, %v1399, 0
      %1406 = vmatprep.subr.bf16.mxu0 0
      %1407 = vmatpush1.bf16.xpose.msra.mxu0 0
      %1408 = vmatprep.subr.bf16.mxu0 0
      %1409 = vmatpush1.bf16.xpose.msra.mxu0 0
      %1410 = vmatprep.subr.bf16.mxu0 0
      %1411 = vmatpush1.bf16.xpose.msra.mxu0 0
      %1412 = vmatprep.subr.bf16.mxu0 0
      %1413 = vmatpush1.bf16.xpose.msra.mxu0 0
      %1414 = vmatprep.subr.bf16.mxu0 0
      %1415 = vmatpush1.bf16.xpose.msra.mxu0 0
      %1416 = vmatprep.subr.bf16.mxu0 0
      %1417 = vmatpush1.bf16.xpose.msra.mxu0 0
      %1418 = vmatprep.subr.bf16.mxu0 0
      %1419 = vmatpush1.bf16.xpose.msra.mxu0 0
      %1420 = vmatprep.subr.bf16.mxu0 0
      %1421 = vmatpush1.bf16.xpose.msra.mxu0 %v1404
      %1422 = vmatprep.subr.bf16.mxu0 0
      %1423 = vmatpush2.bf16.xpose.msra.mxu0 0
      %1424 = vmatprep.subr.bf16.mxu0 0
      %1425 = vmatpush2.bf16.xpose.msra.mxu0 0
      %1426 = vmatprep.subr.bf16.mxu0 0
      %1427 = vmatpush2.bf16.xpose.msra.mxu0 0
      %1428 = vmatprep.subr.bf16.mxu0 0
      %1429 = vmatpush2.bf16.xpose.msra.mxu0 0
      %1430 = vmatprep.subr.bf16.mxu0 0
      %1431 = vmatpush2.bf16.xpose.msra.mxu0 0
      %1432 = vmatprep.subr.bf16.mxu0 0
      %1433 = vmatpush2.bf16.xpose.msra.mxu0 0
      %1434 = vmatprep.subr.bf16.mxu0 0
      %1435 = vmatpush2.bf16.xpose.msra.mxu0 0
      %1436 = vmatprep.subr.bf16.mxu0 0
      %1437 = vmatpush2.bf16.xpose.msra.mxu0 0
      %1438 = vmatprep.mubr.bf16.mxu0 0
      %1439 = vmatmul.mubr.bf16.gmra.mxu0 %v1401
      %v1440 = vpop.f32.mrf.mxu0
      %v1441 = vadd.f32 0.0, %v1440
      %v1442 = vpop.f32.mrf.mxu0
      %v1443 = vpop.f32.mrf.mxu0
      %v1444 = vpop.f32.mrf.mxu0
      %1445 = vdwg.mxu0
      %v1447 = vshrl.u32 %v1288, 16
      %v1449 = vrot.slane %v1447, 2
      %v1450 = vshll.u32 %v1288, 16
      %v1452 = vrot.slane %v1450, 3
      %v1453 = vor.u32 %v1449, %v1452
      %v1455 = vshrl.u32 %v1302, 16
      %v1457 = vrot.slane %v1455, 2
      %v1458 = vshll.u32 %v1302, 16
      %v1460 = vrot.slane %v1458, 3
      %v1461 = vor.u32 %v1457, %v1460
      %1462 = vrot.lane.b32.xlu0 %v1461, 96
      %v1463 = vpop.permute.xlu0 %1462
      %v1465 = vsel %vm808, %v1453, 0
      %v1468 = vsel %vm808, %v1463, 0
      %1470 = vmatprep.subr.bf16.mxu0 0
      %1471 = vmatpush1.bf16.xpose.msra.mxu0 0
      %1472 = vmatprep.subr.bf16.mxu0 0
      %1473 = vmatpush1.bf16.xpose.msra.mxu0 0
      %1474 = vmatprep.subr.bf16.mxu0 0
      %1475 = vmatpush1.bf16.xpose.msra.mxu0 0
      %1476 = vmatprep.subr.bf16.mxu0 0
      %1477 = vmatpush1.bf16.xpose.msra.mxu0 0
      %1478 = vmatprep.subr.bf16.mxu0 0
      %1479 = vmatpush1.bf16.xpose.msra.mxu0 0
      %1480 = vmatprep.subr.bf16.mxu0 0
      %1481 = vmatpush1.bf16.xpose.msra.mxu0 0
      %1482 = vmatprep.subr.bf16.mxu0 0
      %1483 = vmatpush1.bf16.xpose.msra.mxu0 0
      %1484 = vmatprep.subr.bf16.mxu0 0
      %1485 = vmatpush1.bf16.xpose.msra.mxu0 %v1468
      %1486 = vmatprep.subr.bf16.mxu0 0
      %1487 = vmatpush2.bf16.xpose.msra.mxu0 0
      %1488 = vmatprep.subr.bf16.mxu0 0
      %1489 = vmatpush2.bf16.xpose.msra.mxu0 0
      %1490 = vmatprep.subr.bf16.mxu0 0
      %1491 = vmatpush2.bf16.xpose.msra.mxu0 0
      %1492 = vmatprep.subr.bf16.mxu0 0
      %1493 = vmatpush2.bf16.xpose.msra.mxu0 0
      %1494 = vmatprep.subr.bf16.mxu0 0
      %1495 = vmatpush2.bf16.xpose.msra.mxu0 0
      %1496 = vmatprep.subr.bf16.mxu0 0
      %1497 = vmatpush2.bf16.xpose.msra.mxu0 0
      %1498 = vmatprep.subr.bf16.mxu0 0
      %1499 = vmatpush2.bf16.xpose.msra.mxu0 0
      %1500 = vmatprep.subr.bf16.mxu0 0
      %1501 = vmatpush2.bf16.xpose.msra.mxu0 0
      %1502 = vmatprep.mubr.bf16.mxu0 0
      %1503 = vmatmul.mubr.bf16.gmra.mxu0 %v1465
      %v1504 = vpop.f32.mrf.mxu0
      %v1505 = vadd.f32 0.0, %v1504
      %v1506 = vpop.f32.mrf.mxu0
      %v1507 = vpop.f32.mrf.mxu0
      %v1508 = vpop.f32.mrf.mxu0
      %1509 = vdwg.mxu0
      %v1511 = vshrl.u32 %v1289, 16
      %v1513 = vrot.slane %v1511, 2
      %v1514 = vshll.u32 %v1289, 16
      %v1516 = vrot.slane %v1514, 3
      %v1517 = vor.u32 %v1513, %v1516
      %v1519 = vshrl.u32 %v1303, 16
      %v1521 = vrot.slane %v1519, 2
      %v1522 = vshll.u32 %v1303, 16
      %v1524 = vrot.slane %v1522, 3
      %v1525 = vor.u32 %v1521, %v1524
      %1526 = vrot.lane.b32.xlu0 %v1525, 96
      %v1527 = vpop.permute.xlu0 %1526
      %v1529 = vsel %vm808, %v1517, 0
      %v1532 = vsel %vm808, %v1527, 0
      %1534 = vmatprep.subr.bf16.mxu0 0
      %1535 = vmatpush1.bf16.xpose.msra.mxu0 0
      %1536 = vmatprep.subr.bf16.mxu0 0
      %1537 = vmatpush1.bf16.xpose.msra.mxu0 0
      %1538 = vmatprep.subr.bf16.mxu0 0
      %1539 = vmatpush1.bf16.xpose.msra.mxu0 0
      %1540 = vmatprep.subr.bf16.mxu0 0
      %1541 = vmatpush1.bf16.xpose.msra.mxu0 0
      %1542 = vmatprep.subr.bf16.mxu0 0
      %1543 = vmatpush1.bf16.xpose.msra.mxu0 0
      %1544 = vmatprep.subr.bf16.mxu0 0
      %1545 = vmatpush1.bf16.xpose.msra.mxu0 0
      %1546 = vmatprep.subr.bf16.mxu0 0
      %1547 = vmatpush1.bf16.xpose.msra.mxu0 0
      %1548 = vmatprep.subr.bf16.mxu0 0
      %1549 = vmatpush1.bf16.xpose.msra.mxu0 %v1532
      %1550 = vmatprep.subr.bf16.mxu0 0
      %1551 = vmatpush2.bf16.xpose.msra.mxu0 0
      %1552 = vmatprep.subr.bf16.mxu0 0
      %1553 = vmatpush2.bf16.xpose.msra.mxu0 0
      %1554 = vmatprep.subr.bf16.mxu0 0
      %1555 = vmatpush2.bf16.xpose.msra.mxu0 0
      %1556 = vmatprep.subr.bf16.mxu0 0
      %1557 = vmatpush2.bf16.xpose.msra.mxu0 0
      %1558 = vmatprep.subr.bf16.mxu0 0
      %1559 = vmatpush2.bf16.xpose.msra.mxu0 0
      %1560 = vmatprep.subr.bf16.mxu0 0
      %1561 = vmatpush2.bf16.xpose.msra.mxu0 0
      %1562 = vmatprep.subr.bf16.mxu0 0
      %1563 = vmatpush2.bf16.xpose.msra.mxu0 0
      %1564 = vmatprep.subr.bf16.mxu0 0
      %1565 = vmatpush2.bf16.xpose.msra.mxu0 0
      %1566 = vmatprep.mubr.bf16.mxu0 0
      %1567 = vmatmul.mubr.bf16.gmra.mxu0 %v1529
      %v1568 = vpop.f32.mrf.mxu0
      %v1569 = vadd.f32 0.0, %v1568
      %v1570 = vpop.f32.mrf.mxu0
      %v1571 = vpop.f32.mrf.mxu0
      %v1572 = vpop.f32.mrf.mxu0
      %1573 = vdwg.mxu0
      %v1574 = vmul.f32 %v1377, 0.35355338
      %v1575 = vmul.f32 %v1441, 0.35355338
      %v1576 = vmul.f32 %v1505, 0.35355338
      %v1577 = vmul.f32 %v1569, 0.35355338
      %v1578 = vsel %vm1006, %v1574, -inf
      %1579 = vmax.xlane.f32.xlu0 %v1578
      %v1580 = vpop.xlane.xlu0 %1579
      %v1581 = vsel %vm1006, %v1575, -inf
      %1582 = vmax.xlane.f32.xlu0 %v1581
      %v1583 = vpop.xlane.xlu0 %1582
      %v1584 = vsel %vm1006, %v1576, -inf
      %1585 = vmax.xlane.f32.xlu0 %v1584
      %v1586 = vpop.xlane.xlu0 %1585
      %v1587 = vsel %vm1006, %v1577, -inf
      %1588 = vmax.xlane.f32.xlu0 %v1587
      %v1589 = vpop.xlane.xlu0 %1588
      %v1590 = vsub.f32 %v1574, %v1580
      %v1591 = vsub.f32 %v1575, %v1583
      %v1592 = vsub.f32 %v1576, %v1586
      %v1593 = vsub.f32 %v1577, %v1589
      %v1594 = vmul.f32 %v1590, 1.442695
      %v1595 = vpow.pop %v1594
      %v1596 = vmul.f32 %v1591, 1.442695
      %v1597 = vpow.pop %v1596
      %v1598 = vmul.f32 %v1592, 1.442695
      %v1599 = vpow.pop %v1598
      %v1600 = vmul.f32 %v1593, 1.442695
      %v1601 = vpow.pop %v1600
      %v1602 = vsel %vm1006, %v1595, 0.0
      %1603 = vadd.xlane.f32.xlu0 %v1602
      %v1604 = vpop.xlane.xlu0 %1603
      %v1605 = vsel %vm1006, %v1597, 0.0
      %1606 = vadd.xlane.f32.xlu0 %v1605
      %v1607 = vpop.xlane.xlu0 %1606
      %v1608 = vsel %vm1006, %v1599, 0.0
      %1609 = vadd.xlane.f32.xlu0 %v1608
      %v1610 = vpop.xlane.xlu0 %1609
      %v1611 = vsel %vm1006, %v1601, 0.0
      %1612 = vadd.xlane.f32.xlu0 %v1611
      %v1613 = vpop.xlane.xlu0 %1612
      %v1614 = vrcp.pop %v1604
      %v1615 = vrcp.pop %v1607
      %v1616 = vrcp.pop %v1610
      %v1617 = vrcp.pop %v1613
      %v1618 = vmul.f32 %v1595, %v1614
      %v1619 = vmul.f32 %v1597, %v1615
      %v1620 = vmul.f32 %v1599, %v1616
      %v1621 = vmul.f32 %v1601, %v1617
      %v1622 = vpack.c.bf16 %v1618, %v1618
      %v1623 = vpack.c.bf16 %v1619, %v1619
      %v1624 = vpack.c.bf16 %v1620, %v1620
      %v1625 = vpack.c.bf16 %v1621, %v1621
      %v1627 = vshrl.u32 %v1314, 16
      %v1629 = vrot.slane %v1627, 2
      %v1630 = vshll.u32 %v1314, 16
      %v1632 = vrot.slane %v1630, 3
      %v1633 = vor.u32 %v1629, %v1632
      %1634 = vrot.lane.b32.xlu0 %v1633, 64
      %v1635 = vpop.permute.xlu0 %1634
      %v1637 = vsel %vm1058, %v1622, 0
      %v1640 = vand.u32 %v1635, %v1065
      %1642 = vmatprep.subr.bf16.mxu0 0
      %1643 = vmatpush1.bf16.msra.mxu0 0
      %1644 = vmatprep.subr.bf16.mxu0 0
      %1645 = vmatpush1.bf16.msra.mxu0 0
      %1646 = vmatprep.subr.bf16.mxu0 0
      %1647 = vmatpush1.bf16.msra.mxu0 0
      %1648 = vmatprep.subr.bf16.mxu0 0
      %1649 = vmatpush1.bf16.msra.mxu0 0
      %1650 = vmatprep.subr.bf16.mxu0 0
      %1651 = vmatpush1.bf16.msra.mxu0 0
      %1652 = vmatprep.subr.bf16.mxu0 0
      %1653 = vmatpush1.bf16.msra.mxu0 0
      %1654 = vmatprep.subr.bf16.mxu0 0
      %1655 = vmatpush1.bf16.msra.mxu0 0
      %1656 = vmatprep.subr.bf16.mxu0 0
      %1657 = vmatpush1.bf16.msra.mxu0 %v1640
      %1658 = vmatprep.subr.bf16.mxu0 0
      %1659 = vmatpush2.bf16.msra.mxu0 0
      %1660 = vmatprep.subr.bf16.mxu0 0
      %1661 = vmatpush2.bf16.msra.mxu0 0
      %1662 = vmatprep.subr.bf16.mxu0 0
      %1663 = vmatpush2.bf16.msra.mxu0 0
      %1664 = vmatprep.subr.bf16.mxu0 0
      %1665 = vmatpush2.bf16.msra.mxu0 0
      %1666 = vmatprep.subr.bf16.mxu0 0
      %1667 = vmatpush2.bf16.msra.mxu0 0
      %1668 = vmatprep.subr.bf16.mxu0 0
      %1669 = vmatpush2.bf16.msra.mxu0 0
      %1670 = vmatprep.subr.bf16.mxu0 0
      %1671 = vmatpush2.bf16.msra.mxu0 0
      %1672 = vmatprep.subr.bf16.mxu0 0
      %1673 = vmatpush2.bf16.msra.mxu0 0
      %1674 = vmatprep.mubr.bf16.mxu0 0
      %1675 = vmatmul.mubr.bf16.gmra.mxu0 %v1637
      %v1676 = vpop.f32.mrf.mxu0
      %v1677 = vadd.f32 0.0, %v1676
      %v1678 = vpop.f32.mrf.mxu0
      %v1679 = vpop.f32.mrf.mxu0
      %v1680 = vpop.f32.mrf.mxu0
      %1681 = vdwg.mxu0
      %v1683 = vshrl.u32 %v1315, 16
      %v1685 = vrot.slane %v1683, 2
      %v1686 = vshll.u32 %v1315, 16
      %v1688 = vrot.slane %v1686, 3
      %v1689 = vor.u32 %v1685, %v1688
      %1690 = vrot.lane.b32.xlu0 %v1689, 64
      %v1691 = vpop.permute.xlu0 %1690
      %v1693 = vsel %vm1058, %v1623, 0
      %v1696 = vand.u32 %v1691, %v1065
      %1698 = vmatprep.subr.bf16.mxu0 0
      %1699 = vmatpush1.bf16.msra.mxu0 0
      %1700 = vmatprep.subr.bf16.mxu0 0
      %1701 = vmatpush1.bf16.msra.mxu0 0
      %1702 = vmatprep.subr.bf16.mxu0 0
      %1703 = vmatpush1.bf16.msra.mxu0 0
      %1704 = vmatprep.subr.bf16.mxu0 0
      %1705 = vmatpush1.bf16.msra.mxu0 0
      %1706 = vmatprep.subr.bf16.mxu0 0
      %1707 = vmatpush1.bf16.msra.mxu0 0
      %1708 = vmatprep.subr.bf16.mxu0 0
      %1709 = vmatpush1.bf16.msra.mxu0 0
      %1710 = vmatprep.subr.bf16.mxu0 0
      %1711 = vmatpush1.bf16.msra.mxu0 0
      %1712 = vmatprep.subr.bf16.mxu0 0
      %1713 = vmatpush1.bf16.msra.mxu0 %v1696
      %1714 = vmatprep.subr.bf16.mxu0 0
      %1715 = vmatpush2.bf16.msra.mxu0 0
      %1716 = vmatprep.subr.bf16.mxu0 0
      %1717 = vmatpush2.bf16.msra.mxu0 0
      %1718 = vmatprep.subr.bf16.mxu0 0
      %1719 = vmatpush2.bf16.msra.mxu0 0
      %1720 = vmatprep.subr.bf16.mxu0 0
      %1721 = vmatpush2.bf16.msra.mxu0 0
      %1722 = vmatprep.subr.bf16.mxu0 0
      %1723 = vmatpush2.bf16.msra.mxu0 0
      %1724 = vmatprep.subr.bf16.mxu0 0
      %1725 = vmatpush2.bf16.msra.mxu0 0
      %1726 = vmatprep.subr.bf16.mxu0 0
      %1727 = vmatpush2.bf16.msra.mxu0 0
      %1728 = vmatprep.subr.bf16.mxu0 0
      %1729 = vmatpush2.bf16.msra.mxu0 0
      %1730 = vmatprep.mubr.bf16.mxu0 0
      %1731 = vmatmul.mubr.bf16.gmra.mxu0 %v1693
      %v1732 = vpop.f32.mrf.mxu0
      %v1733 = vadd.f32 0.0, %v1732
      %v1734 = vpop.f32.mrf.mxu0
      %v1735 = vpop.f32.mrf.mxu0
      %v1736 = vpop.f32.mrf.mxu0
      %1737 = vdwg.mxu0
      %v1739 = vshrl.u32 %v1316, 16
      %v1741 = vrot.slane %v1739, 2
      %v1742 = vshll.u32 %v1316, 16
      %v1744 = vrot.slane %v1742, 3
      %v1745 = vor.u32 %v1741, %v1744
      %1746 = vrot.lane.b32.xlu0 %v1745, 64
      %v1747 = vpop.permute.xlu0 %1746
      %v1749 = vsel %vm1058, %v1624, 0
      %v1752 = vand.u32 %v1747, %v1065
      %1754 = vmatprep.subr.bf16.mxu0 0
      %1755 = vmatpush1.bf16.msra.mxu0 0
      %1756 = vmatprep.subr.bf16.mxu0 0
      %1757 = vmatpush1.bf16.msra.mxu0 0
      %1758 = vmatprep.subr.bf16.mxu0 0
      %1759 = vmatpush1.bf16.msra.mxu0 0
      %1760 = vmatprep.subr.bf16.mxu0 0
      %1761 = vmatpush1.bf16.msra.mxu0 0
      %1762 = vmatprep.subr.bf16.mxu0 0
      %1763 = vmatpush1.bf16.msra.mxu0 0
      %1764 = vmatprep.subr.bf16.mxu0 0
      %1765 = vmatpush1.bf16.msra.mxu0 0
      %1766 = vmatprep.subr.bf16.mxu0 0
      %1767 = vmatpush1.bf16.msra.mxu0 0
      %1768 = vmatprep.subr.bf16.mxu0 0
      %1769 = vmatpush1.bf16.msra.mxu0 %v1752
      %1770 = vmatprep.subr.bf16.mxu0 0
      %1771 = vmatpush2.bf16.msra.mxu0 0
      %1772 = vmatprep.subr.bf16.mxu0 0
      %1773 = vmatpush2.bf16.msra.mxu0 0
      %1774 = vmatprep.subr.bf16.mxu0 0
      %1775 = vmatpush2.bf16.msra.mxu0 0
      %1776 = vmatprep.subr.bf16.mxu0 0
      %1777 = vmatpush2.bf16.msra.mxu0 0
      %1778 = vmatprep.subr.bf16.mxu0 0
      %1779 = vmatpush2.bf16.msra.mxu0 0
      %1780 = vmatprep.subr.bf16.mxu0 0
      %1781 = vmatpush2.bf16.msra.mxu0 0
      %1782 = vmatprep.subr.bf16.mxu0 0
      %1783 = vmatpush2.bf16.msra.mxu0 0
      %1784 = vmatprep.subr.bf16.mxu0 0
      %1785 = vmatpush2.bf16.msra.mxu0 0
      %1786 = vmatprep.mubr.bf16.mxu0 0
      %1787 = vmatmul.mubr.bf16.gmra.mxu0 %v1749
      %v1788 = vpop.f32.mrf.mxu0
      %v1789 = vadd.f32 0.0, %v1788
      %v1790 = vpop.f32.mrf.mxu0
      %v1791 = vpop.f32.mrf.mxu0
      %v1792 = vpop.f32.mrf.mxu0
      %1793 = vdwg.mxu0
      %v1795 = vshrl.u32 %v1317, 16
      %v1797 = vrot.slane %v1795, 2
      %v1798 = vshll.u32 %v1317, 16
      %v1800 = vrot.slane %v1798, 3
      %v1801 = vor.u32 %v1797, %v1800
      %1802 = vrot.lane.b32.xlu0 %v1801, 64
      %v1803 = vpop.permute.xlu0 %1802
      %v1805 = vsel %vm1058, %v1625, 0
      %v1808 = vand.u32 %v1803, %v1065
      %1810 = vmatprep.subr.bf16.mxu0 0
      %1811 = vmatpush1.bf16.msra.mxu0 0
      %1812 = vmatprep.subr.bf16.mxu0 0
      %1813 = vmatpush1.bf16.msra.mxu0 0
      %1814 = vmatprep.subr.bf16.mxu0 0
      %1815 = vmatpush1.bf16.msra.mxu0 0
      %1816 = vmatprep.subr.bf16.mxu0 0
      %1817 = vmatpush1.bf16.msra.mxu0 0
      %1818 = vmatprep.subr.bf16.mxu0 0
      %1819 = vmatpush1.bf16.msra.mxu0 0
      %1820 = vmatprep.subr.bf16.mxu0 0
      %1821 = vmatpush1.bf16.msra.mxu0 0
      %1822 = vmatprep.subr.bf16.mxu0 0
      %1823 = vmatpush1.bf16.msra.mxu0 0
      %1824 = vmatprep.subr.bf16.mxu0 0
      %1825 = vmatpush1.bf16.msra.mxu0 %v1808
      %1826 = vmatprep.subr.bf16.mxu0 0
      %1827 = vmatpush2.bf16.msra.mxu0 0
      %1828 = vmatprep.subr.bf16.mxu0 0
      %1829 = vmatpush2.bf16.msra.mxu0 0
      %1830 = vmatprep.subr.bf16.mxu0 0
      %1831 = vmatpush2.bf16.msra.mxu0 0
      %1832 = vmatprep.subr.bf16.mxu0 0
      %1833 = vmatpush2.bf16.msra.mxu0 0
      %1834 = vmatprep.subr.bf16.mxu0 0
      %1835 = vmatpush2.bf16.msra.mxu0 0
      %1836 = vmatprep.subr.bf16.mxu0 0
      %1837 = vmatpush2.bf16.msra.mxu0 0
      %1838 = vmatprep.subr.bf16.mxu0 0
      %1839 = vmatpush2.bf16.msra.mxu0 0
      %1840 = vmatprep.subr.bf16.mxu0 0
      %1841 = vmatpush2.bf16.msra.mxu0 0
      %1842 = vmatprep.mubr.bf16.mxu0 0
      %1843 = vmatmul.mubr.bf16.gmra.mxu0 %v1805
      %v1844 = vpop.f32.mrf.mxu0
      %v1845 = vadd.f32 0.0, %v1844
      %v1846 = vpop.f32.mrf.mxu0
      %v1847 = vpop.f32.mrf.mxu0
      %v1848 = vpop.f32.mrf.mxu0
      %1849 = vdwg.mxu0
      %1850 = vst.msk [vmem:[#allocation2 + $0x5] sm:$0x1f] %vm1256, %v1677
      %1852 = vrot.lane.b32.xlu0 %v1733, 8
      %v1853 = vpop.permute.xlu0 %1852
      %1855 = vst.msk [vmem:[#allocation2 + $0x5] sm:$0x1f] %vm1262, %v1853
      %1857 = vrot.lane.b32.xlu0 %v1789, 16
      %v1858 = vpop.permute.xlu0 %1857
      %1860 = vst.msk [vmem:[#allocation2 + $0x5] sm:$0x1f] %vm1268, %v1858
      %1862 = vrot.lane.b32.xlu0 %v1845, 24
      %v1863 = vpop.permute.xlu0 %1862
      %1865 = vst.msk [vmem:[#allocation2 + $0x5] sm:$0x1f] %vm1274, %v1863
      %v1866 = vpack.c.bf16 %v742, %v742
      %v1867 = vpack.c.bf16 %v1278, %v1278
      %v1868 = vpack.c.bf16 %v1281, %v1281
      %v1869 = vpack.c.bf16 %v1284, %v1284
      %v1870 = vpack.c.bf16 %v752, %v752
      %v1871 = vpack.c.bf16 %v1292, %v1292
      %v1872 = vpack.c.bf16 %v1295, %v1295
      %v1873 = vpack.c.bf16 %v1298, %v1298
      %v1874 = vpack.c.bf16 %v762, %v762
      %v1875 = vpack.c.bf16 %v1306, %v1306
      %v1876 = vpack.c.bf16 %v1309, %v1309
      %v1877 = vpack.c.bf16 %v1312, %v1312
      %v1879 = vrot.slane %v1866, 1
      %v1881 = vrot.slane %v1870, 1
      %1882 = vrot.lane.b32.xlu0 %v1881, 96
      %v1883 = vpop.permute.xlu0 %1882
      %v1885 = vsel %vm808, %v1879, 0
      %v1888 = vsel %vm808, %v1883, 0
      %1890 = vmatprep.subr.bf16.mxu0 0
      %1891 = vmatpush1.bf16.xpose.msra.mxu0 0
      %1892 = vmatprep.subr.bf16.mxu0 0
      %1893 = vmatpush1.bf16.xpose.msra.mxu0 0
      %1894 = vmatprep.subr.bf16.mxu0 0
      %1895 = vmatpush1.bf16.xpose.msra.mxu0 0
      %1896 = vmatprep.subr.bf16.mxu0 0
      %1897 = vmatpush1.bf16.xpose.msra.mxu0 0
      %1898 = vmatprep.subr.bf16.mxu0 0
      %1899 = vmatpush1.bf16.xpose.msra.mxu0 0
      %1900 = vmatprep.subr.bf16.mxu0 0
      %1901 = vmatpush1.bf16.xpose.msra.mxu0 0
      %1902 = vmatprep.subr.bf16.mxu0 0
      %1903 = vmatpush1.bf16.xpose.msra.mxu0 0
      %1904 = vmatprep.subr.bf16.mxu0 0
      %1905 = vmatpush1.bf16.xpose.msra.mxu0 %v1888
      %1906 = vmatprep.subr.bf16.mxu0 0
      %1907 = vmatpush2.bf16.xpose.msra.mxu0 0
      %1908 = vmatprep.subr.bf16.mxu0 0
      %1909 = vmatpush2.bf16.xpose.msra.mxu0 0
      %1910 = vmatprep.subr.bf16.mxu0 0
      %1911 = vmatpush2.bf16.xpose.msra.mxu0 0
      %1912 = vmatprep.subr.bf16.mxu0 0
      %1913 = vmatpush2.bf16.xpose.msra.mxu0 0
      %1914 = vmatprep.subr.bf16.mxu0 0
      %1915 = vmatpush2.bf16.xpose.msra.mxu0 0
      %1916 = vmatprep.subr.bf16.mxu0 0
      %1917 = vmatpush2.bf16.xpose.msra.mxu0 0
      %1918 = vmatprep.subr.bf16.mxu0 0
      %1919 = vmatpush2.bf16.xpose.msra.mxu0 0
      %1920 = vmatprep.subr.bf16.mxu0 0
      %1921 = vmatpush2.bf16.xpose.msra.mxu0 0
      %1922 = vmatprep.mubr.bf16.mxu0 0
      %1923 = vmatmul.mubr.bf16.gmra.mxu0 %v1885
      %v1924 = vpop.f32.mrf.mxu0
      %v1925 = vadd.f32 0.0, %v1924
      %v1926 = vpop.f32.mrf.mxu0
      %v1927 = vpop.f32.mrf.mxu0
      %v1928 = vpop.f32.mrf.mxu0
      %1929 = vdwg.mxu0
      %v1931 = vrot.slane %v1867, 1
      %v1933 = vrot.slane %v1871, 1
      %1934 = vrot.lane.b32.xlu0 %v1933, 96
      %v1935 = vpop.permute.xlu0 %1934
      %v1937 = vsel %vm808, %v1931, 0
      %v1940 = vsel %vm808, %v1935, 0
      %1942 = vmatprep.subr.bf16.mxu0 0
      %1943 = vmatpush1.bf16.xpose.msra.mxu0 0
      %1944 = vmatprep.subr.bf16.mxu0 0
      %1945 = vmatpush1.bf16.xpose.msra.mxu0 0
      %1946 = vmatprep.subr.bf16.mxu0 0
      %1947 = vmatpush1.bf16.xpose.msra.mxu0 0
      %1948 = vmatprep.subr.bf16.mxu0 0
      %1949 = vmatpush1.bf16.xpose.msra.mxu0 0
      %1950 = vmatprep.subr.bf16.mxu0 0
      %1951 = vmatpush1.bf16.xpose.msra.mxu0 0
      %1952 = vmatprep.subr.bf16.mxu0 0
      %1953 = vmatpush1.bf16.xpose.msra.mxu0 0
      %1954 = vmatprep.subr.bf16.mxu0 0
      %1955 = vmatpush1.bf16.xpose.msra.mxu0 0
      %1956 = vmatprep.subr.bf16.mxu0 0
      %1957 = vmatpush1.bf16.xpose.msra.mxu0 %v1940
      %1958 = vmatprep.subr.bf16.mxu0 0
      %1959 = vmatpush2.bf16.xpose.msra.mxu0 0
      %1960 = vmatprep.subr.bf16.mxu0 0
      %1961 = vmatpush2.bf16.xpose.msra.mxu0 0
      %1962 = vmatprep.subr.bf16.mxu0 0
      %1963 = vmatpush2.bf16.xpose.msra.mxu0 0
      %1964 = vmatprep.subr.bf16.mxu0 0
      %1965 = vmatpush2.bf16.xpose.msra.mxu0 0
      %1966 = vmatprep.subr.bf16.mxu0 0
      %1967 = vmatpush2.bf16.xpose.msra.mxu0 0
      %1968 = vmatprep.subr.bf16.mxu0 0
      %1969 = vmatpush2.bf16.xpose.msra.mxu0 0
      %1970 = vmatprep.subr.bf16.mxu0 0
      %1971 = vmatpush2.bf16.xpose.msra.mxu0 0
      %1972 = vmatprep.subr.bf16.mxu0 0
      %1973 = vmatpush2.bf16.xpose.msra.mxu0 0
      %1974 = vmatprep.mubr.bf16.mxu0 0
      %1975 = vmatmul.mubr.bf16.gmra.mxu0 %v1937
      %v1976 = vpop.f32.mrf.mxu0
      %v1977 = vadd.f32 0.0, %v1976
      %v1978 = vpop.f32.mrf.mxu0
      %v1979 = vpop.f32.mrf.mxu0
      %v1980 = vpop.f32.mrf.mxu0
      %1981 = vdwg.mxu0
      %v1983 = vrot.slane %v1868, 1
      %v1985 = vrot.slane %v1872, 1
      %1986 = vrot.lane.b32.xlu0 %v1985, 96
      %v1987 = vpop.permute.xlu0 %1986
      %v1989 = vsel %vm808, %v1983, 0
      %v1992 = vsel %vm808, %v1987, 0
      %1994 = vmatprep.subr.bf16.mxu0 0
      %1995 = vmatpush1.bf16.xpose.msra.mxu0 0
      %1996 = vmatprep.subr.bf16.mxu0 0
      %1997 = vmatpush1.bf16.xpose.msra.mxu0 0
      %1998 = vmatprep.subr.bf16.mxu0 0
      %1999 = vmatpush1.bf16.xpose.msra.mxu0 0
      %2000 = vmatprep.subr.bf16.mxu0 0
      %2001 = vmatpush1.bf16.xpose.msra.mxu0 0
      %2002 = vmatprep.subr.bf16.mxu0 0
      %2003 = vmatpush1.bf16.xpose.msra.mxu0 0
      %2004 = vmatprep.subr.bf16.mxu0 0
      %2005 = vmatpush1.bf16.xpose.msra.mxu0 0
      %2006 = vmatprep.subr.bf16.mxu0 0
      %2007 = vmatpush1.bf16.xpose.msra.mxu0 0
      %2008 = vmatprep.subr.bf16.mxu0 0
      %2009 = vmatpush1.bf16.xpose.msra.mxu0 %v1992
      %2010 = vmatprep.subr.bf16.mxu0 0
      %2011 = vmatpush2.bf16.xpose.msra.mxu0 0
      %2012 = vmatprep.subr.bf16.mxu0 0
      %2013 = vmatpush2.bf16.xpose.msra.mxu0 0
      %2014 = vmatprep.subr.bf16.mxu0 0
      %2015 = vmatpush2.bf16.xpose.msra.mxu0 0
      %2016 = vmatprep.subr.bf16.mxu0 0
      %2017 = vmatpush2.bf16.xpose.msra.mxu0 0
      %2018 = vmatprep.subr.bf16.mxu0 0
      %2019 = vmatpush2.bf16.xpose.msra.mxu0 0
      %2020 = vmatprep.subr.bf16.mxu0 0
      %2021 = vmatpush2.bf16.xpose.msra.mxu0 0
      %2022 = vmatprep.subr.bf16.mxu0 0
      %2023 = vmatpush2.bf16.xpose.msra.mxu0 0
      %2024 = vmatprep.subr.bf16.mxu0 0
      %2025 = vmatpush2.bf16.xpose.msra.mxu0 0
      %2026 = vmatprep.mubr.bf16.mxu0 0
      %2027 = vmatmul.mubr.bf16.gmra.mxu0 %v1989
      %v2028 = vpop.f32.mrf.mxu0
      %v2029 = vadd.f32 0.0, %v2028
      %v2030 = vpop.f32.mrf.mxu0
      %v2031 = vpop.f32.mrf.mxu0
      %v2032 = vpop.f32.mrf.mxu0
      %2033 = vdwg.mxu0
      %v2035 = vrot.slane %v1869, 1
      %v2037 = vrot.slane %v1873, 1
      %2038 = vrot.lane.b32.xlu0 %v2037, 96
      %v2039 = vpop.permute.xlu0 %2038
      %v2041 = vsel %vm808, %v2035, 0
      %v2044 = vsel %vm808, %v2039, 0
      %2046 = vmatprep.subr.bf16.mxu0 0
      %2047 = vmatpush1.bf16.xpose.msra.mxu0 0
      %2048 = vmatprep.subr.bf16.mxu0 0
      %2049 = vmatpush1.bf16.xpose.msra.mxu0 0
      %2050 = vmatprep.subr.bf16.mxu0 0
      %2051 = vmatpush1.bf16.xpose.msra.mxu0 0
      %2052 = vmatprep.subr.bf16.mxu0 0
      %2053 = vmatpush1.bf16.xpose.msra.mxu0 0
      %2054 = vmatprep.subr.bf16.mxu0 0
      %2055 = vmatpush1.bf16.xpose.msra.mxu0 0
      %2056 = vmatprep.subr.bf16.mxu0 0
      %2057 = vmatpush1.bf16.xpose.msra.mxu0 0
      %2058 = vmatprep.subr.bf16.mxu0 0
      %2059 = vmatpush1.bf16.xpose.msra.mxu0 0
      %2060 = vmatprep.subr.bf16.mxu0 0
      %2061 = vmatpush1.bf16.xpose.msra.mxu0 %v2044
      %2062 = vmatprep.subr.bf16.mxu0 0
      %2063 = vmatpush2.bf16.xpose.msra.mxu0 0
      %2064 = vmatprep.subr.bf16.mxu0 0
      %2065 = vmatpush2.bf16.xpose.msra.mxu0 0
      %2066 = vmatprep.subr.bf16.mxu0 0
      %2067 = vmatpush2.bf16.xpose.msra.mxu0 0
      %2068 = vmatprep.subr.bf16.mxu0 0
      %2069 = vmatpush2.bf16.xpose.msra.mxu0 0
      %2070 = vmatprep.subr.bf16.mxu0 0
      %2071 = vmatpush2.bf16.xpose.msra.mxu0 0
      %2072 = vmatprep.subr.bf16.mxu0 0
      %2073 = vmatpush2.bf16.xpose.msra.mxu0 0
      %2074 = vmatprep.subr.bf16.mxu0 0
      %2075 = vmatpush2.bf16.xpose.msra.mxu0 0
      %2076 = vmatprep.subr.bf16.mxu0 0
      %2077 = vmatpush2.bf16.xpose.msra.mxu0 0
      %2078 = vmatprep.mubr.bf16.mxu0 0
      %2079 = vmatmul.mubr.bf16.gmra.mxu0 %v2041
      %v2080 = vpop.f32.mrf.mxu0
      %v2081 = vadd.f32 0.0, %v2080
      %v2082 = vpop.f32.mrf.mxu0
      %v2083 = vpop.f32.mrf.mxu0
      %v2084 = vpop.f32.mrf.mxu0
      %2085 = vdwg.mxu0
      %v2086 = vmul.f32 %v1925, 0.35355338
      %v2087 = vmul.f32 %v1977, 0.35355338
      %v2088 = vmul.f32 %v2029, 0.35355338
      %v2089 = vmul.f32 %v2081, 0.35355338
      %v2090 = vsel %vm1006, %v2086, -inf
      %2091 = vmax.xlane.f32.xlu0 %v2090
      %v2092 = vpop.xlane.xlu0 %2091
      %v2093 = vsel %vm1006, %v2087, -inf
      %2094 = vmax.xlane.f32.xlu0 %v2093
      %v2095 = vpop.xlane.xlu0 %2094
      %v2096 = vsel %vm1006, %v2088, -inf
      %2097 = vmax.xlane.f32.xlu0 %v2096
      %v2098 = vpop.xlane.xlu0 %2097
      %v2099 = vsel %vm1006, %v2089, -inf
      %2100 = vmax.xlane.f32.xlu0 %v2099
      %v2101 = vpop.xlane.xlu0 %2100
      %v2102 = vsub.f32 %v2086, %v2092
      %v2103 = vsub.f32 %v2087, %v2095
      %v2104 = vsub.f32 %v2088, %v2098
      %v2105 = vsub.f32 %v2089, %v2101
      %v2106 = vmul.f32 %v2102, 1.442695
      %v2107 = vpow.pop %v2106
      %v2108 = vmul.f32 %v2103, 1.442695
      %v2109 = vpow.pop %v2108
      %v2110 = vmul.f32 %v2104, 1.442695
      %v2111 = vpow.pop %v2110
      %v2112 = vmul.f32 %v2105, 1.442695
      %v2113 = vpow.pop %v2112
      %v2114 = vsel %vm1006, %v2107, 0.0
      %2115 = vadd.xlane.f32.xlu0 %v2114
      %v2116 = vpop.xlane.xlu0 %2115
      %v2117 = vsel %vm1006, %v2109, 0.0
      %2118 = vadd.xlane.f32.xlu0 %v2117
      %v2119 = vpop.xlane.xlu0 %2118
      %v2120 = vsel %vm1006, %v2111, 0.0
      %2121 = vadd.xlane.f32.xlu0 %v2120
      %v2122 = vpop.xlane.xlu0 %2121
      %v2123 = vsel %vm1006, %v2113, 0.0
      %2124 = vadd.xlane.f32.xlu0 %v2123
      %v2125 = vpop.xlane.xlu0 %2124
      %v2126 = vrcp.pop %v2116
      %v2127 = vrcp.pop %v2119
      %v2128 = vrcp.pop %v2122
      %v2129 = vrcp.pop %v2125
      %v2130 = vmul.f32 %v2107, %v2126
      %v2131 = vmul.f32 %v2109, %v2127
      %v2132 = vmul.f32 %v2111, %v2128
      %v2133 = vmul.f32 %v2113, %v2129
      %v2134 = vpack.c.bf16 %v2130, %v2130
      %v2135 = vpack.c.bf16 %v2131, %v2131
      %v2136 = vpack.c.bf16 %v2132, %v2132
      %v2137 = vpack.c.bf16 %v2133, %v2133
      %v2139 = vrot.slane %v1874, 1
      %2140 = vrot.lane.b32.xlu0 %v2139, 64
      %v2141 = vpop.permute.xlu0 %2140
      %v2143 = vsel %vm1058, %v2134, 0
      %v2146 = vand.u32 %v2141, %v1065
      %2148 = vmatprep.subr.bf16.mxu0 0
      %2149 = vmatpush1.bf16.msra.mxu0 0
      %2150 = vmatprep.subr.bf16.mxu0 0
      %2151 = vmatpush1.bf16.msra.mxu0 0
      %2152 = vmatprep.subr.bf16.mxu0 0
      %2153 = vmatpush1.bf16.msra.mxu0 0
      %2154 = vmatprep.subr.bf16.mxu0 0
      %2155 = vmatpush1.bf16.msra.mxu0 0
      %2156 = vmatprep.subr.bf16.mxu0 0
      %2157 = vmatpush1.bf16.msra.mxu0 0
      %2158 = vmatprep.subr.bf16.mxu0 0
      %2159 = vmatpush1.bf16.msra.mxu0 0
      %2160 = vmatprep.subr.bf16.mxu0 0
      %2161 = vmatpush1.bf16.msra.mxu0 0
      %2162 = vmatprep.subr.bf16.mxu0 0
      %2163 = vmatpush1.bf16.msra.mxu0 %v2146
      %2164 = vmatprep.subr.bf16.mxu0 0
      %2165 = vmatpush2.bf16.msra.mxu0 0
      %2166 = vmatprep.subr.bf16.mxu0 0
      %2167 = vmatpush2.bf16.msra.mxu0 0
      %2168 = vmatprep.subr.bf16.mxu0 0
      %2169 = vmatpush2.bf16.msra.mxu0 0
      %2170 = vmatprep.subr.bf16.mxu0 0
      %2171 = vmatpush2.bf16.msra.mxu0 0
      %2172 = vmatprep.subr.bf16.mxu0 0
      %2173 = vmatpush2.bf16.msra.mxu0 0
      %2174 = vmatprep.subr.bf16.mxu0 0
      %2175 = vmatpush2.bf16.msra.mxu0 0
      %2176 = vmatprep.subr.bf16.mxu0 0
      %2177 = vmatpush2.bf16.msra.mxu0 0
      %2178 = vmatprep.subr.bf16.mxu0 0
      %2179 = vmatpush2.bf16.msra.mxu0 0
      %2180 = vmatprep.mubr.bf16.mxu0 0
      %2181 = vmatmul.mubr.bf16.gmra.mxu0 %v2143
      %v2182 = vpop.f32.mrf.mxu0
      %v2183 = vadd.f32 0.0, %v2182
      %v2184 = vpop.f32.mrf.mxu0
      %v2185 = vpop.f32.mrf.mxu0
      %v2186 = vpop.f32.mrf.mxu0
      %2187 = vdwg.mxu0
      %v2189 = vrot.slane %v1875, 1
      %2190 = vrot.lane.b32.xlu0 %v2189, 64
      %v2191 = vpop.permute.xlu0 %2190
      %v2193 = vsel %vm1058, %v2135, 0
      %v2196 = vand.u32 %v2191, %v1065
      %2198 = vmatprep.subr.bf16.mxu0 0
      %2199 = vmatpush1.bf16.msra.mxu0 0
      %2200 = vmatprep.subr.bf16.mxu0 0
      %2201 = vmatpush1.bf16.msra.mxu0 0
      %2202 = vmatprep.subr.bf16.mxu0 0
      %2203 = vmatpush1.bf16.msra.mxu0 0
      %2204 = vmatprep.subr.bf16.mxu0 0
      %2205 = vmatpush1.bf16.msra.mxu0 0
      %2206 = vmatprep.subr.bf16.mxu0 0
      %2207 = vmatpush1.bf16.msra.mxu0 0
      %2208 = vmatprep.subr.bf16.mxu0 0
      %2209 = vmatpush1.bf16.msra.mxu0 0
      %2210 = vmatprep.subr.bf16.mxu0 0
      %2211 = vmatpush1.bf16.msra.mxu0 0
      %2212 = vmatprep.subr.bf16.mxu0 0
      %2213 = vmatpush1.bf16.msra.mxu0 %v2196
      %2214 = vmatprep.subr.bf16.mxu0 0
      %2215 = vmatpush2.bf16.msra.mxu0 0
      %2216 = vmatprep.subr.bf16.mxu0 0
      %2217 = vmatpush2.bf16.msra.mxu0 0
      %2218 = vmatprep.subr.bf16.mxu0 0
      %2219 = vmatpush2.bf16.msra.mxu0 0
      %2220 = vmatprep.subr.bf16.mxu0 0
      %2221 = vmatpush2.bf16.msra.mxu0 0
      %2222 = vmatprep.subr.bf16.mxu0 0
      %2223 = vmatpush2.bf16.msra.mxu0 0
      %2224 = vmatprep.subr.bf16.mxu0 0
      %2225 = vmatpush2.bf16.msra.mxu0 0
      %2226 = vmatprep.subr.bf16.mxu0 0
      %2227 = vmatpush2.bf16.msra.mxu0 0
      %2228 = vmatprep.subr.bf16.mxu0 0
      %2229 = vmatpush2.bf16.msra.mxu0 0
      %2230 = vmatprep.mubr.bf16.mxu0 0
      %2231 = vmatmul.mubr.bf16.gmra.mxu0 %v2193
      %v2232 = vpop.f32.mrf.mxu0
      %v2233 = vadd.f32 0.0, %v2232
      %v2234 = vpop.f32.mrf.mxu0
      %v2235 = vpop.f32.mrf.mxu0
      %v2236 = vpop.f32.mrf.mxu0
      %2237 = vdwg.mxu0
      %v2239 = vrot.slane %v1876, 1
      %2240 = vrot.lane.b32.xlu0 %v2239, 64
      %v2241 = vpop.permute.xlu0 %2240
      %v2243 = vsel %vm1058, %v2136, 0
      %v2246 = vand.u32 %v2241, %v1065
      %2248 = vmatprep.subr.bf16.mxu0 0
      %2249 = vmatpush1.bf16.msra.mxu0 0
      %2250 = vmatprep.subr.bf16.mxu0 0
      %2251 = vmatpush1.bf16.msra.mxu0 0
      %2252 = vmatprep.subr.bf16.mxu0 0
      %2253 = vmatpush1.bf16.msra.mxu0 0
      %2254 = vmatprep.subr.bf16.mxu0 0
      %2255 = vmatpush1.bf16.msra.mxu0 0
      %2256 = vmatprep.subr.bf16.mxu0 0
      %2257 = vmatpush1.bf16.msra.mxu0 0
      %2258 = vmatprep.subr.bf16.mxu0 0
      %2259 = vmatpush1.bf16.msra.mxu0 0
      %2260 = vmatprep.subr.bf16.mxu0 0
      %2261 = vmatpush1.bf16.msra.mxu0 0
      %2262 = vmatprep.subr.bf16.mxu0 0
      %2263 = vmatpush1.bf16.msra.mxu0 %v2246
      %2264 = vmatprep.subr.bf16.mxu0 0
      %2265 = vmatpush2.bf16.msra.mxu0 0
      %2266 = vmatprep.subr.bf16.mxu0 0
      %2267 = vmatpush2.bf16.msra.mxu0 0
      %2268 = vmatprep.subr.bf16.mxu0 0
      %2269 = vmatpush2.bf16.msra.mxu0 0
      %2270 = vmatprep.subr.bf16.mxu0 0
      %2271 = vmatpush2.bf16.msra.mxu0 0
      %2272 = vmatprep.subr.bf16.mxu0 0
      %2273 = vmatpush2.bf16.msra.mxu0 0
      %2274 = vmatprep.subr.bf16.mxu0 0
      %2275 = vmatpush2.bf16.msra.mxu0 0
      %2276 = vmatprep.subr.bf16.mxu0 0
      %2277 = vmatpush2.bf16.msra.mxu0 0
      %2278 = vmatprep.subr.bf16.mxu0 0
      %2279 = vmatpush2.bf16.msra.mxu0 0
      %2280 = vmatprep.mubr.bf16.mxu0 0
      %2281 = vmatmul.mubr.bf16.gmra.mxu0 %v2243
      %v2282 = vpop.f32.mrf.mxu0
      %v2283 = vadd.f32 0.0, %v2282
      %v2284 = vpop.f32.mrf.mxu0
      %v2285 = vpop.f32.mrf.mxu0
      %v2286 = vpop.f32.mrf.mxu0
      %2287 = vdwg.mxu0
      %v2289 = vrot.slane %v1877, 1
      %2290 = vrot.lane.b32.xlu0 %v2289, 64
      %v2291 = vpop.permute.xlu0 %2290
      %v2293 = vsel %vm1058, %v2137, 0
      %v2296 = vand.u32 %v2291, %v1065
      %2298 = vmatprep.subr.bf16.mxu0 0
      %2299 = vmatpush1.bf16.msra.mxu0 0
      %2300 = vmatprep.subr.bf16.mxu0 0
      %2301 = vmatpush1.bf16.msra.mxu0 0
      %2302 = vmatprep.subr.bf16.mxu0 0
      %2303 = vmatpush1.bf16.msra.mxu0 0
      %2304 = vmatprep.subr.bf16.mxu0 0
      %2305 = vmatpush1.bf16.msra.mxu0 0
      %2306 = vmatprep.subr.bf16.mxu0 0
      %2307 = vmatpush1.bf16.msra.mxu0 0
      %2308 = vmatprep.subr.bf16.mxu0 0
      %2309 = vmatpush1.bf16.msra.mxu0 0
      %2310 = vmatprep.subr.bf16.mxu0 0
      %2311 = vmatpush1.bf16.msra.mxu0 0
      %2312 = vmatprep.subr.bf16.mxu0 0
      %2313 = vmatpush1.bf16.msra.mxu0 %v2296
      %2314 = vmatprep.subr.bf16.mxu0 0
      %2315 = vmatpush2.bf16.msra.mxu0 0
      %2316 = vmatprep.subr.bf16.mxu0 0
      %2317 = vmatpush2.bf16.msra.mxu0 0
      %2318 = vmatprep.subr.bf16.mxu0 0
      %2319 = vmatpush2.bf16.msra.mxu0 0
      %2320 = vmatprep.subr.bf16.mxu0 0
      %2321 = vmatpush2.bf16.msra.mxu0 0
      %2322 = vmatprep.subr.bf16.mxu0 0
      %2323 = vmatpush2.bf16.msra.mxu0 0
      %2324 = vmatprep.subr.bf16.mxu0 0
      %2325 = vmatpush2.bf16.msra.mxu0 0
      %2326 = vmatprep.subr.bf16.mxu0 0
      %2327 = vmatpush2.bf16.msra.mxu0 0
      %2328 = vmatprep.subr.bf16.mxu0 0
      %2329 = vmatpush2.bf16.msra.mxu0 0
      %2330 = vmatprep.mubr.bf16.mxu0 0
      %2331 = vmatmul.mubr.bf16.gmra.mxu0 %v2293
      %v2332 = vpop.f32.mrf.mxu0
      %v2333 = vadd.f32 0.0, %v2332
      %v2334 = vpop.f32.mrf.mxu0
      %v2335 = vpop.f32.mrf.mxu0
      %v2336 = vpop.f32.mrf.mxu0
      %2337 = vdwg.mxu0
      %2338 = vst.msk [vmem:[#allocation2 + $0xa] sm:$0x1f] %vm1256, %v2183
      %2340 = vrot.lane.b32.xlu0 %v2233, 8
      %v2341 = vpop.permute.xlu0 %2340
      %2343 = vst.msk [vmem:[#allocation2 + $0xa] sm:$0x1f] %vm1262, %v2341
      %2345 = vrot.lane.b32.xlu0 %v2283, 16
      %v2346 = vpop.permute.xlu0 %2345
      %2348 = vst.msk [vmem:[#allocation2 + $0xa] sm:$0x1f] %vm1268, %v2346
      %2350 = vrot.lane.b32.xlu0 %v2333, 24
      %v2351 = vpop.permute.xlu0 %2350
      %2353 = vst.msk [vmem:[#allocation2 + $0xa] sm:$0x1f] %vm1274, %v2351
      %v2354 = vld [vmem:[#allocation2] sm:$0xff]
      %v2355 = vld [vmem:[#allocation2 + $0x8] sm:$0x7f]
      %v2356 = vpack.c.bf16 %v2355, %v2354
      %v2357 = vlaneseq
      %v2358 = vshrl.u32 %v2357, 7
      %v2359 = vsub.s32 5, %v2358
      %v2360 = vrot.slane %v629, %v2359
      %v2365 = vunpack.c.l.b16 %v676
      %v2366 = vunpack.c.l.b16 %v677
      %v2367 = vunpack.c.l.b16 %v678
      %v2368 = vunpack.c.l.b16 %v679
      %v2369 = vpack.c.b16 %v2366, %v2365
      %v2370 = vpack.c.b16 %v2368, %v2367
      %v2374 = vsel %vm631, %v2356, 0
      %2376 = vmatprep.subr.bf16.mxu0 0
      %2377 = vmatpush1.bf16.msra.mxu0 0
      %2378 = vmatprep.subr.bf16.mxu0 0
      %2379 = vmatpush1.bf16.msra.mxu0 0
      %2380 = vmatprep.subr.bf16.mxu0 0
      %2381 = vmatpush1.bf16.msra.mxu0 0
      %2382 = vmatprep.subr.bf16.mxu0 0
      %2383 = vmatpush1.bf16.msra.mxu0 0
      %2384 = vmatprep.subr.bf16.mxu0 0
      %2385 = vmatpush1.bf16.msra.mxu0 0
      %2386 = vmatprep.subr.bf16.mxu0 0
      %2387 = vmatpush1.bf16.msra.mxu0 0
      %2388 = vmatprep.subr.bf16.mxu0 0
      %2389 = vmatpush1.bf16.msra.mxu0 %v2370
      %2390 = vmatprep.subr.bf16.mxu0 0
      %2391 = vmatpush1.bf16.msra.mxu0 %v2369
      %2392 = vmatprep.subr.bf16.mxu0 0
      %2393 = vmatpush2.bf16.msra.mxu0 0
      %2394 = vmatprep.subr.bf16.mxu0 0
      %2395 = vmatpush2.bf16.msra.mxu0 0
      %2396 = vmatprep.subr.bf16.mxu0 0
      %2397 = vmatpush2.bf16.msra.mxu0 0
      %2398 = vmatprep.subr.bf16.mxu0 0
      %2399 = vmatpush2.bf16.msra.mxu0 0
      %2400 = vmatprep.subr.bf16.mxu0 0
      %2401 = vmatpush2.bf16.msra.mxu0 0
      %2402 = vmatprep.subr.bf16.mxu0 0
      %2403 = vmatpush2.bf16.msra.mxu0 0
      %2404 = vmatprep.subr.bf16.mxu0 0
      %2405 = vmatpush2.bf16.msra.mxu0 0
      %2406 = vmatprep.subr.bf16.mxu0 0
      %2407 = vmatpush2.bf16.msra.mxu0 0
      %2408 = vmatprep.mubr.bf16.mxu0 0
      %2409 = vmatmul.mubr.bf16.gmra.mxu0 %v2374
      %v2410 = vpop.f32.mrf.mxu0
      %v2411 = vadd.f32 %v2360, %v2410
      %v2412 = vpop.f32.mrf.mxu0
      %v2413 = vpop.f32.mrf.mxu0
      %v2414 = vadd.f32 %v2360, %v2413
      %v2415 = vpop.f32.mrf.mxu0
      %2416 = vdwg.mxu0
      %v2417 = vadd.f32 %v623, %v2411
      %v2418 = vadd.f32 %v626, %v2414
      %v2419 = vsel %vm631, %v2417, 0.0
      %2420 = vadd.xlane.f32.xlu0 %v2419
      %v2421 = vpop.xlane.xlu0 %2420
      %v2422 = vsel %vm635, %v2418, 0.0
      %2423 = vadd.xlane.f32.xlu0 %v2422
      %v2424 = vpop.xlane.xlu0 %2423
      %v2425 = vmul.f32 %v2421, %v639
      %v2426 = vmul.f32 %v2424, %v639
      %v2427 = vsub.f32 %v2417, %v2425
      %v2428 = vsub.f32 %v2418, %v2426
      %v2429 = vmul.f32 %v2427, %v2427
      %v2430 = vmul.f32 %v2428, %v2428
      %v2431 = vsel %vm631, %v2429, 0.0
      %2432 = vadd.xlane.f32.xlu0 %v2431
      %v2433 = vpop.xlane.xlu0 %2432
      %v2434 = vsel %vm635, %v2430, 0.0
      %2435 = vadd.xlane.f32.xlu0 %v2434
      %v2436 = vpop.xlane.xlu0 %2435
      %v2437 = vmul.f32 %v2433, %v639
      %v2438 = vmul.f32 %v2436, %v639
      %v2439 = vadd.f32 %v2437, 1e-12
      %v2440 = vadd.f32 %v2438, 1e-12
      %v2441 = vrsqrt.pop %v2439
      %v2442 = vrsqrt.pop %v2440
      %v2443 = vmul.f32 %v2427, %v2441
      %v2444 = vmul.f32 %v2428, %v2442
      %v2445 = vlaneseq
      %v2446 = vshrl.u32 %v2445, 7
      %v2447 = vsub.s32 6, %v2446
      %v2448 = vrot.slane %v629, %v2447
      %v2449 = vmul.f32 %v2443, %v2448
      %v2450 = vmul.f32 %v2444, %v2448
      %v2451 = vlaneseq
      %v2452 = vshrl.u32 %v2451, 7
      %v2453 = vsub.s32 7, %v2452
      %v2454 = vrot.slane %v629, %v2453
      %v2455 = vadd.f32 %v2449, %v2454
      %v2456 = vadd.f32 %v2450, %v2454
      %v2457 = vpack.c.bf16 %v2456, %v2455
      %v2458 = vld [vmem:[%s8] sm:$0xf]
      %v2459 = vld [vmem:[%s8 + $0x4] sm:$0xf]
      %v2460 = vld [vmem:[%s8 + $0x8] sm:$0xf]
      %v2461 = vld [vmem:[%s8 + $0xc] sm:$0xf]
      %v2462 = vlaneseq
      %v2463 = vshrl.u32 %v2462, 7
      %v2464 = vsub.s32 0, %v2463
      %v2465 = vrot.slane %v476, %v2464
      %v2470 = vunpack.c.l.b16 %v2458
      %v2471 = vunpack.c.l.b16 %v2459
      %v2472 = vunpack.c.l.b16 %v2460
      %v2473 = vunpack.c.l.b16 %v2461
      %v2474 = vpack.c.b16 %v2471, %v2470
      %v2475 = vpack.c.b16 %v2473, %v2472
      %v2479 = vsel %vm631, %v2457, 0
      %2481 = vmatprep.subr.bf16.mxu0 0
      %2482 = vmatpush1.bf16.msra.mxu0 0
      %2483 = vmatprep.subr.bf16.mxu0 0
      %2484 = vmatpush1.bf16.msra.mxu0 0
      %2485 = vmatprep.subr.bf16.mxu0 0
      %2486 = vmatpush1.bf16.msra.mxu0 0
      %2487 = vmatprep.subr.bf16.mxu0 0
      %2488 = vmatpush1.bf16.msra.mxu0 0
      %2489 = vmatprep.subr.bf16.mxu0 0
      %2490 = vmatpush1.bf16.msra.mxu0 0
      %2491 = vmatprep.subr.bf16.mxu0 0
      %2492 = vmatpush1.bf16.msra.mxu0 0
      %2493 = vmatprep.subr.bf16.mxu0 0
      %2494 = vmatpush1.bf16.msra.mxu0 %v2475
      %2495 = vmatprep.subr.bf16.mxu0 0
      %2496 = vmatpush1.bf16.msra.mxu0 %v2474
      %2497 = vmatprep.subr.bf16.mxu0 0
      %2498 = vmatpush2.bf16.msra.mxu0 0
      %2499 = vmatprep.subr.bf16.mxu0 0
      %2500 = vmatpush2.bf16.msra.mxu0 0
      %2501 = vmatprep.subr.bf16.mxu0 0
      %2502 = vmatpush2.bf16.msra.mxu0 0
      %2503 = vmatprep.subr.bf16.mxu0 0
      %2504 = vmatpush2.bf16.msra.mxu0 0
      %2505 = vmatprep.subr.bf16.mxu0 0
      %2506 = vmatpush2.bf16.msra.mxu0 0
      %2507 = vmatprep.subr.bf16.mxu0 0
      %2508 = vmatpush2.bf16.msra.mxu0 0
      %2509 = vmatprep.subr.bf16.mxu0 0
      %2510 = vmatpush2.bf16.msra.mxu0 0
      %2511 = vmatprep.subr.bf16.mxu0 0
      %2512 = vmatpush2.bf16.msra.mxu0 0
      %2513 = vmatprep.mubr.bf16.mxu0 0
      %2514 = vmatmul.mubr.bf16.gmra.mxu0 %v2479
      %v2515 = vpop.f32.mrf.mxu0
      %v2516 = vadd.f32 %v2465, %v2515
      %v2517 = vpop.f32.mrf.mxu0
      %v2518 = vpop.f32.mrf.mxu0
      %v2519 = vadd.f32 %v2465, %v2518
      %v2520 = vpop.f32.mrf.mxu0
      %2521 = vdwg.mxu0
      %v2522 = vmul.f32 %v2516, 0.5
      %v2523 = vmul.f32 %v2519, 0.5
      %v2524 = vmul.f32 %v2516, 0.70710677
      %v2525 = vmul.f32 %v2519, 0.70710677
      %v2526 = verf.f32.pop %v2524
      %v2527 = verf.f32.pop %v2525
      %v2528 = vadd.f32 %v2526, 1.0
      %v2529 = vadd.f32 %v2527, 1.0
      %v2530 = vmul.f32 %v2522, %v2528
      %v2531 = vmul.f32 %v2523, %v2529
      %v2532 = vpack.c.bf16 %v2531, %v2530
      %v2533 = vld [vmem:[%s9] sm:$0xf]
      %v2534 = vld [vmem:[%s9 + $0x4] sm:$0xf]
      %v2535 = vld [vmem:[%s9 + $0x8] sm:$0xf]
      %v2536 = vld [vmem:[%s9 + $0xc] sm:$0xf]
      %v2537 = vld [vmem:[%s9 + $0x10] sm:$0xf]
      %v2538 = vld [vmem:[%s9 + $0x14] sm:$0xf]
      %v2539 = vld [vmem:[%s9 + $0x18] sm:$0xf]
      %v2540 = vld [vmem:[%s9 + $0x1c] sm:$0xf]
      %v2541 = vld [vmem:[%s9 + $0x20] sm:$0xf]
      %v2542 = vld [vmem:[%s9 + $0x24] sm:$0xf]
      %v2543 = vld [vmem:[%s9 + $0x28] sm:$0xf]
      %v2544 = vld [vmem:[%s9 + $0x2c] sm:$0xf]
      %v2545 = vld [vmem:[%s9 + $0x30] sm:$0xf]
      %v2546 = vld [vmem:[%s9 + $0x34] sm:$0xf]
      %v2547 = vld [vmem:[%s9 + $0x38] sm:$0xf]
      %v2548 = vld [vmem:[%s9 + $0x3c] sm:$0xf]
      %v2549 = vlaneseq
      %v2550 = vshrl.u32 %v2549, 7
      %v2551 = vsub.s32 0, %v2550
      %v2552 = vrot.slane %v630, %v2551
      %v2569 = vunpack.c.l.b16 %v2533
      %v2570 = vunpack.c.l.b16 %v2534
      %v2571 = vunpack.c.l.b16 %v2535
      %v2572 = vunpack.c.l.b16 %v2536
      %v2573 = vunpack.c.l.b16 %v2537
      %v2574 = vunpack.c.l.b16 %v2538
      %v2575 = vunpack.c.l.b16 %v2539
      %v2576 = vunpack.c.l.b16 %v2540
      %v2577 = vunpack.c.l.b16 %v2541
      %v2578 = vunpack.c.l.b16 %v2542
      %v2579 = vunpack.c.l.b16 %v2543
      %v2580 = vunpack.c.l.b16 %v2544
      %v2581 = vunpack.c.l.b16 %v2545
      %v2582 = vunpack.c.l.b16 %v2546
      %v2583 = vunpack.c.l.b16 %v2547
      %v2584 = vunpack.c.l.b16 %v2548
      %v2585 = vpack.c.b16 %v2570, %v2569
      %v2586 = vpack.c.b16 %v2572, %v2571
      %v2587 = vpack.c.b16 %v2574, %v2573
      %v2588 = vpack.c.b16 %v2576, %v2575
      %v2589 = vpack.c.b16 %v2578, %v2577
      %v2590 = vpack.c.b16 %v2580, %v2579
      %v2591 = vpack.c.b16 %v2582, %v2581
      %v2592 = vpack.c.b16 %v2584, %v2583
      %2601 = vmatprep.subr.bf16.mxu0 0
      %2602 = vmatpush1.bf16.msra.mxu0 %v2592
      %2603 = vmatprep.subr.bf16.mxu0 0
      %2604 = vmatpush1.bf16.msra.mxu0 %v2591
      %2605 = vmatprep.subr.bf16.mxu0 0
      %2606 = vmatpush1.bf16.msra.mxu0 %v2590
      %2607 = vmatprep.subr.bf16.mxu0 0
      %2608 = vmatpush1.bf16.msra.mxu0 %v2589
      %2609 = vmatprep.subr.bf16.mxu0 0
      %2610 = vmatpush1.bf16.msra.mxu0 %v2588
      %2611 = vmatprep.subr.bf16.mxu0 0
      %2612 = vmatpush1.bf16.msra.mxu0 %v2587
      %2613 = vmatprep.subr.bf16.mxu0 0
      %2614 = vmatpush1.bf16.msra.mxu0 %v2586
      %2615 = vmatprep.subr.bf16.mxu0 0
      %2616 = vmatpush1.bf16.msra.mxu0 %v2585
      %2617 = vmatprep.subr.bf16.mxu0 0
      %2618 = vmatpush2.bf16.msra.mxu0 0
      %2619 = vmatprep.subr.bf16.mxu0 0
      %2620 = vmatpush2.bf16.msra.mxu0 0
      %2621 = vmatprep.subr.bf16.mxu0 0
      %2622 = vmatpush2.bf16.msra.mxu0 0
      %2623 = vmatprep.subr.bf16.mxu0 0
      %2624 = vmatpush2.bf16.msra.mxu0 0
      %2625 = vmatprep.subr.bf16.mxu0 0
      %2626 = vmatpush2.bf16.msra.mxu0 0
      %2627 = vmatprep.subr.bf16.mxu0 0
      %2628 = vmatpush2.bf16.msra.mxu0 0
      %2629 = vmatprep.subr.bf16.mxu0 0
      %2630 = vmatpush2.bf16.msra.mxu0 0
      %2631 = vmatprep.subr.bf16.mxu0 0
      %2632 = vmatpush2.bf16.msra.mxu0 0
      %2633 = vmatprep.mubr.bf16.mxu0 0
      %2634 = vmatmul.mubr.bf16.gmra.mxu0 %v2532
      %v2635 = vpop.f32.mrf.mxu0
      %v2636 = vadd.f32 %v2552, %v2635
      %v2637 = vpop.f32.mrf.mxu0
      %v2638 = vpop.f32.mrf.mxu0
      %v2639 = vadd.f32 %v2552, %v2638
      %v2640 = vpop.f32.mrf.mxu0
      %2641 = vdwg.mxu0
      %v2642 = vadd.f32 %v2417, %v2636
      %v2643 = vadd.f32 %v2418, %v2639
      %s2644 = scalar_lea.vmem %s3, 16
      %v2645 = vld [vmem:[%s2644] sm:$0xff]
      %v2646 = vld [vmem:[%s2644 + $0x8] sm:$0x1]
      %v2647 = vsel %vm631, %v2642, 0.0
      %2648 = vadd.xlane.f32.xlu0 %v2647
      %v2649 = vpop.xlane.xlu0 %2648
      %v2650 = vsel %vm635, %v2643, 0.0
      %2651 = vadd.xlane.f32.xlu0 %v2650
      %v2652 = vpop.xlane.xlu0 %2651
      %v2653 = vmul.f32 %v2649, %v639
      %v2654 = vmul.f32 %v2652, %v639
      %v2655 = vsub.f32 %v2642, %v2653
      %v2656 = vsub.f32 %v2643, %v2654
      %v2657 = vmul.f32 %v2655, %v2655
      %v2658 = vmul.f32 %v2656, %v2656
      %v2659 = vsel %vm631, %v2657, 0.0
      %2660 = vadd.xlane.f32.xlu0 %v2659
      %v2661 = vpop.xlane.xlu0 %2660
      %v2662 = vsel %vm635, %v2658, 0.0
      %2663 = vadd.xlane.f32.xlu0 %v2662
      %v2664 = vpop.xlane.xlu0 %2663
      %v2665 = vmul.f32 %v2661, %v639
      %v2666 = vmul.f32 %v2664, %v639
      %v2667 = vadd.f32 %v2665, 1e-12
      %v2668 = vadd.f32 %v2666, 1e-12
      %v2669 = vrsqrt.pop %v2667
      %v2670 = vrsqrt.pop %v2668
      %v2671 = vmul.f32 %v2655, %v2669
      %v2672 = vmul.f32 %v2656, %v2670
      %v2673 = vlaneseq
      %v2674 = vshrl.u32 %v2673, 7
      %v2675 = vsub.s32 0, %v2674
      %v2676 = vrot.slane %v2645, %v2675
      %v2677 = vmul.f32 %v2671, %v2676
      %v2678 = vmul.f32 %v2672, %v2676
      %v2679 = vlaneseq
      %v2680 = vshrl.u32 %v2679, 7
      %v2681 = vsub.s32 1, %v2680
      %v2682 = vrot.slane %v2645, %v2681
      %v2683 = vadd.f32 %v2677, %v2682
      %v2684 = vadd.f32 %v2678, %v2682
      %s2685 = scalar_lea.vmem %s6, 16
      %v2686 = vld [vmem:[%s2685] sm:$0xf]
      %v2687 = vld [vmem:[%s2685 + $0x4] sm:$0xf]
      %v2688 = vld [vmem:[%s2685 + $0x8] sm:$0xf]
      %v2689 = vld [vmem:[%s2685 + $0xc] sm:$0xf]
      %s2690 = scalar_lea.vmem %s7, 16
      %v2691 = vld [vmem:[%s2690] sm:$0xf]
      %v2692 = vld [vmem:[%s2690 + $0x4] sm:$0xf]
      %v2693 = vld [vmem:[%s2690 + $0x8] sm:$0xf]
      %v2694 = vld [vmem:[%s2690 + $0xc] sm:$0xf]
      %v2695 = vpack.c.bf16 %v2684, %v2683
      %v2700 = vunpack.c.l.b16 %v2686
      %v2701 = vunpack.c.l.b16 %v2687
      %v2702 = vunpack.c.l.b16 %v2688
      %v2703 = vunpack.c.l.b16 %v2689
      %v2704 = vpack.c.b16 %v2701, %v2700
      %v2705 = vpack.c.b16 %v2703, %v2702
      %v2709 = vsel %vm631, %v2695, 0
      %2711 = vmatprep.subr.bf16.mxu0 0
      %2712 = vmatpush1.bf16.msra.mxu0 0
      %2713 = vmatprep.subr.bf16.mxu0 0
      %2714 = vmatpush1.bf16.msra.mxu0 0
      %2715 = vmatprep.subr.bf16.mxu0 0
      %2716 = vmatpush1.bf16.msra.mxu0 0
      %2717 = vmatprep.subr.bf16.mxu0 0
      %2718 = vmatpush1.bf16.msra.mxu0 0
      %2719 = vmatprep.subr.bf16.mxu0 0
      %2720 = vmatpush1.bf16.msra.mxu0 0
      %2721 = vmatprep.subr.bf16.mxu0 0
      %2722 = vmatpush1.bf16.msra.mxu0 0
      %2723 = vmatprep.subr.bf16.mxu0 0
      %2724 = vmatpush1.bf16.msra.mxu0 %v2705
      %2725 = vmatprep.subr.bf16.mxu0 0
      %2726 = vmatpush1.bf16.msra.mxu0 %v2704
      %2727 = vmatprep.subr.bf16.mxu0 0
      %2728 = vmatpush2.bf16.msra.mxu0 0
      %2729 = vmatprep.subr.bf16.mxu0 0
      %2730 = vmatpush2.bf16.msra.mxu0 0
      %2731 = vmatprep.subr.bf16.mxu0 0
      %2732 = vmatpush2.bf16.msra.mxu0 0
      %2733 = vmatprep.subr.bf16.mxu0 0
      %2734 = vmatpush2.bf16.msra.mxu0 0
      %2735 = vmatprep.subr.bf16.mxu0 0
      %2736 = vmatpush2.bf16.msra.mxu0 0
      %2737 = vmatprep.subr.bf16.mxu0 0
      %2738 = vmatpush2.bf16.msra.mxu0 0
      %2739 = vmatprep.subr.bf16.mxu0 0
      %2740 = vmatpush2.bf16.msra.mxu0 0
      %2741 = vmatprep.subr.bf16.mxu0 0
      %2742 = vmatpush2.bf16.msra.mxu0 0
      %2743 = vmatprep.mubr.bf16.mxu0 0
      %2744 = vmatmul.mubr.bf16.gmra.mxu0 %v2709
      %v2745 = vpop.f32.mrf.mxu0
      %v2746 = vadd.f32 0.0, %v2745
      %v2747 = vpop.f32.mrf.mxu0
      %v2748 = vpop.f32.mrf.mxu0
      %v2749 = vadd.f32 0.0, %v2748
      %v2750 = vpop.f32.mrf.mxu0
      %2751 = vdwg.mxu0
      %v2752 = vlaneseq
      %v2753 = vshrl.u32 %v2752, 7
      %v2754 = vsub.s32 2, %v2753
      %v2755 = vrot.slane %v2645, %v2754
      %v2756 = vadd.f32 %v2746, %v2755
      %v2757 = vadd.f32 %v2749, %v2755
      %v2758 = vlaneseq
      %v2759 = vshrl.u32 %v2758, 7
      %v2760 = vsub.s32 3, %v2759
      %v2761 = vrot.slane %v2645, %v2760
      %2763 = vrot.lane.b32.xlu0 %v2761, 32
      %v2764 = vpop.permute.xlu0 %2763
      %v2766 = vadd.f32 %v2746, %v2764
      %v2767 = vadd.f32 %v2749, %v2764
      %v2768 = vlaneseq
      %v2769 = vshrl.u32 %v2768, 7
      %v2770 = vsub.s32 4, %v2769
      %v2771 = vrot.slane %v2645, %v2770
      %2773 = vrot.lane.b32.xlu0 %v2771, 64
      %v2774 = vpop.permute.xlu0 %2773
      %v2776 = vadd.f32 %v2746, %v2774
      %v2777 = vadd.f32 %v2749, %v2774
      %2779 = vrot.lane.b32.xlu0 %v2756, 120
      %v2780 = vpop.permute.xlu0 %2779
      %2782 = vrot.lane.b32.xlu0 %v2756, 112
      %v2783 = vpop.permute.xlu0 %2782
      %2785 = vrot.lane.b32.xlu0 %v2756, 104
      %v2786 = vpop.permute.xlu0 %2785
      %v2788 = vpack.c.bf16 %v2756, %v2756
      %v2789 = vpack.c.bf16 %v2780, %v2780
      %v2790 = vpack.c.bf16 %v2783, %v2783
      %v2791 = vpack.c.bf16 %v2786, %v2786
      %2793 = vrot.lane.b32.xlu0 %v2766, 120
      %v2794 = vpop.permute.xlu0 %2793
      %2796 = vrot.lane.b32.xlu0 %v2766, 112
      %v2797 = vpop.permute.xlu0 %2796
      %2799 = vrot.lane.b32.xlu0 %v2766, 104
      %v2800 = vpop.permute.xlu0 %2799
      %v2802 = vpack.c.bf16 %v2766, %v2766
      %v2803 = vpack.c.bf16 %v2794, %v2794
      %v2804 = vpack.c.bf16 %v2797, %v2797
      %v2805 = vpack.c.bf16 %v2800, %v2800
      %2807 = vrot.lane.b32.xlu0 %v2776, 120
      %v2808 = vpop.permute.xlu0 %2807
      %2810 = vrot.lane.b32.xlu0 %v2776, 112
      %v2811 = vpop.permute.xlu0 %2810
      %2813 = vrot.lane.b32.xlu0 %v2776, 104
      %v2814 = vpop.permute.xlu0 %2813
      %v2816 = vpack.c.bf16 %v2776, %v2776
      %v2817 = vpack.c.bf16 %v2808, %v2808
      %v2818 = vpack.c.bf16 %v2811, %v2811
      %v2819 = vpack.c.bf16 %v2814, %v2814
      %2821 = vrot.lane.b32.xlu0 %v2802, 96
      %v2822 = vpop.permute.xlu0 %2821
      %v2824 = vsel %vm808, %v2788, 0
      %v2827 = vsel %vm808, %v2822, 0
      %2829 = vmatprep.subr.bf16.mxu0 0
      %2830 = vmatpush1.bf16.xpose.msra.mxu0 0
      %2831 = vmatprep.subr.bf16.mxu0 0
      %2832 = vmatpush1.bf16.xpose.msra.mxu0 0
      %2833 = vmatprep.subr.bf16.mxu0 0
      %2834 = vmatpush1.bf16.xpose.msra.mxu0 0
      %2835 = vmatprep.subr.bf16.mxu0 0
      %2836 = vmatpush1.bf16.xpose.msra.mxu0 0
      %2837 = vmatprep.subr.bf16.mxu0 0
      %2838 = vmatpush1.bf16.xpose.msra.mxu0 0
      %2839 = vmatprep.subr.bf16.mxu0 0
      %2840 = vmatpush1.bf16.xpose.msra.mxu0 0
      %2841 = vmatprep.subr.bf16.mxu0 0
      %2842 = vmatpush1.bf16.xpose.msra.mxu0 0
      %2843 = vmatprep.subr.bf16.mxu0 0
      %2844 = vmatpush1.bf16.xpose.msra.mxu0 %v2827
      %2845 = vmatprep.subr.bf16.mxu0 0
      %2846 = vmatpush2.bf16.xpose.msra.mxu0 0
      %2847 = vmatprep.subr.bf16.mxu0 0
      %2848 = vmatpush2.bf16.xpose.msra.mxu0 0
      %2849 = vmatprep.subr.bf16.mxu0 0
      %2850 = vmatpush2.bf16.xpose.msra.mxu0 0
      %2851 = vmatprep.subr.bf16.mxu0 0
      %2852 = vmatpush2.bf16.xpose.msra.mxu0 0
      %2853 = vmatprep.subr.bf16.mxu0 0
      %2854 = vmatpush2.bf16.xpose.msra.mxu0 0
      %2855 = vmatprep.subr.bf16.mxu0 0
      %2856 = vmatpush2.bf16.xpose.msra.mxu0 0
      %2857 = vmatprep.subr.bf16.mxu0 0
      %2858 = vmatpush2.bf16.xpose.msra.mxu0 0
      %2859 = vmatprep.subr.bf16.mxu0 0
      %2860 = vmatpush2.bf16.xpose.msra.mxu0 0
      %2861 = vmatprep.mubr.bf16.mxu0 0
      %2862 = vmatmul.mubr.bf16.gmra.mxu0 %v2824
      %v2863 = vpop.f32.mrf.mxu0
      %v2864 = vadd.f32 0.0, %v2863
      %v2865 = vpop.f32.mrf.mxu0
      %v2866 = vpop.f32.mrf.mxu0
      %v2867 = vpop.f32.mrf.mxu0
      %2868 = vdwg.mxu0
      %2870 = vrot.lane.b32.xlu0 %v2803, 96
      %v2871 = vpop.permute.xlu0 %2870
      %v2873 = vsel %vm808, %v2789, 0
      %v2876 = vsel %vm808, %v2871, 0
      %2878 = vmatprep.subr.bf16.mxu0 0
      %2879 = vmatpush1.bf16.xpose.msra.mxu0 0
      %2880 = vmatprep.subr.bf16.mxu0 0
      %2881 = vmatpush1.bf16.xpose.msra.mxu0 0
      %2882 = vmatprep.subr.bf16.mxu0 0
      %2883 = vmatpush1.bf16.xpose.msra.mxu0 0
      %2884 = vmatprep.subr.bf16.mxu0 0
      %2885 = vmatpush1.bf16.xpose.msra.mxu0 0
      %2886 = vmatprep.subr.bf16.mxu0 0
      %2887 = vmatpush1.bf16.xpose.msra.mxu0 0
      %2888 = vmatprep.subr.bf16.mxu0 0
      %2889 = vmatpush1.bf16.xpose.msra.mxu0 0
      %2890 = vmatprep.subr.bf16.mxu0 0
      %2891 = vmatpush1.bf16.xpose.msra.mxu0 0
      %2892 = vmatprep.subr.bf16.mxu0 0
      %2893 = vmatpush1.bf16.xpose.msra.mxu0 %v2876
      %2894 = vmatprep.subr.bf16.mxu0 0
      %2895 = vmatpush2.bf16.xpose.msra.mxu0 0
      %2896 = vmatprep.subr.bf16.mxu0 0
      %2897 = vmatpush2.bf16.xpose.msra.mxu0 0
      %2898 = vmatprep.subr.bf16.mxu0 0
      %2899 = vmatpush2.bf16.xpose.msra.mxu0 0
      %2900 = vmatprep.subr.bf16.mxu0 0
      %2901 = vmatpush2.bf16.xpose.msra.mxu0 0
      %2902 = vmatprep.subr.bf16.mxu0 0
      %2903 = vmatpush2.bf16.xpose.msra.mxu0 0
      %2904 = vmatprep.subr.bf16.mxu0 0
      %2905 = vmatpush2.bf16.xpose.msra.mxu0 0
      %2906 = vmatprep.subr.bf16.mxu0 0
      %2907 = vmatpush2.bf16.xpose.msra.mxu0 0
      %2908 = vmatprep.subr.bf16.mxu0 0
      %2909 = vmatpush2.bf16.xpose.msra.mxu0 0
      %2910 = vmatprep.mubr.bf16.mxu0 0
      %2911 = vmatmul.mubr.bf16.gmra.mxu0 %v2873
      %v2912 = vpop.f32.mrf.mxu0
      %v2913 = vadd.f32 0.0, %v2912
      %v2914 = vpop.f32.mrf.mxu0
      %v2915 = vpop.f32.mrf.mxu0
      %v2916 = vpop.f32.mrf.mxu0
      %2917 = vdwg.mxu0
      %2919 = vrot.lane.b32.xlu0 %v2804, 96
      %v2920 = vpop.permute.xlu0 %2919
      %v2922 = vsel %vm808, %v2790, 0
      %v2925 = vsel %vm808, %v2920, 0
      %2927 = vmatprep.subr.bf16.mxu0 0
      %2928 = vmatpush1.bf16.xpose.msra.mxu0 0
      %2929 = vmatprep.subr.bf16.mxu0 0
      %2930 = vmatpush1.bf16.xpose.msra.mxu0 0
      %2931 = vmatprep.subr.bf16.mxu0 0
      %2932 = vmatpush1.bf16.xpose.msra.mxu0 0
      %2933 = vmatprep.subr.bf16.mxu0 0
      %2934 = vmatpush1.bf16.xpose.msra.mxu0 0
      %2935 = vmatprep.subr.bf16.mxu0 0
      %2936 = vmatpush1.bf16.xpose.msra.mxu0 0
      %2937 = vmatprep.subr.bf16.mxu0 0
      %2938 = vmatpush1.bf16.xpose.msra.mxu0 0
      %2939 = vmatprep.subr.bf16.mxu0 0
      %2940 = vmatpush1.bf16.xpose.msra.mxu0 0
      %2941 = vmatprep.subr.bf16.mxu0 0
      %2942 = vmatpush1.bf16.xpose.msra.mxu0 %v2925
      %2943 = vmatprep.subr.bf16.mxu0 0
      %2944 = vmatpush2.bf16.xpose.msra.mxu0 0
      %2945 = vmatprep.subr.bf16.mxu0 0
      %2946 = vmatpush2.bf16.xpose.msra.mxu0 0
      %2947 = vmatprep.subr.bf16.mxu0 0
      %2948 = vmatpush2.bf16.xpose.msra.mxu0 0
      %2949 = vmatprep.subr.bf16.mxu0 0
      %2950 = vmatpush2.bf16.xpose.msra.mxu0 0
      %2951 = vmatprep.subr.bf16.mxu0 0
      %2952 = vmatpush2.bf16.xpose.msra.mxu0 0
      %2953 = vmatprep.subr.bf16.mxu0 0
      %2954 = vmatpush2.bf16.xpose.msra.mxu0 0
      %2955 = vmatprep.subr.bf16.mxu0 0
      %2956 = vmatpush2.bf16.xpose.msra.mxu0 0
      %2957 = vmatprep.subr.bf16.mxu0 0
      %2958 = vmatpush2.bf16.xpose.msra.mxu0 0
      %2959 = vmatprep.mubr.bf16.mxu0 0
      %2960 = vmatmul.mubr.bf16.gmra.mxu0 %v2922
      %v2961 = vpop.f32.mrf.mxu0
      %v2962 = vadd.f32 0.0, %v2961
      %v2963 = vpop.f32.mrf.mxu0
      %v2964 = vpop.f32.mrf.mxu0
      %v2965 = vpop.f32.mrf.mxu0
      %2966 = vdwg.mxu0
      %2968 = vrot.lane.b32.xlu0 %v2805, 96
      %v2969 = vpop.permute.xlu0 %2968
      %v2971 = vsel %vm808, %v2791, 0
      %v2974 = vsel %vm808, %v2969, 0
      %2976 = vmatprep.subr.bf16.mxu0 0
      %2977 = vmatpush1.bf16.xpose.msra.mxu0 0
      %2978 = vmatprep.subr.bf16.mxu0 0
      %2979 = vmatpush1.bf16.xpose.msra.mxu0 0
      %2980 = vmatprep.subr.bf16.mxu0 0
      %2981 = vmatpush1.bf16.xpose.msra.mxu0 0
      %2982 = vmatprep.subr.bf16.mxu0 0
      %2983 = vmatpush1.bf16.xpose.msra.mxu0 0
      %2984 = vmatprep.subr.bf16.mxu0 0
      %2985 = vmatpush1.bf16.xpose.msra.mxu0 0
      %2986 = vmatprep.subr.bf16.mxu0 0
      %2987 = vmatpush1.bf16.xpose.msra.mxu0 0
      %2988 = vmatprep.subr.bf16.mxu0 0
      %2989 = vmatpush1.bf16.xpose.msra.mxu0 0
      %2990 = vmatprep.subr.bf16.mxu0 0
      %2991 = vmatpush1.bf16.xpose.msra.mxu0 %v2974
      %2992 = vmatprep.subr.bf16.mxu0 0
      %2993 = vmatpush2.bf16.xpose.msra.mxu0 0
      %2994 = vmatprep.subr.bf16.mxu0 0
      %2995 = vmatpush2.bf16.xpose.msra.mxu0 0
      %2996 = vmatprep.subr.bf16.mxu0 0
      %2997 = vmatpush2.bf16.xpose.msra.mxu0 0
      %2998 = vmatprep.subr.bf16.mxu0 0
      %2999 = vmatpush2.bf16.xpose.msra.mxu0 0
      %3000 = vmatprep.subr.bf16.mxu0 0
      %3001 = vmatpush2.bf16.xpose.msra.mxu0 0
      %3002 = vmatprep.subr.bf16.mxu0 0
      %3003 = vmatpush2.bf16.xpose.msra.mxu0 0
      %3004 = vmatprep.subr.bf16.mxu0 0
      %3005 = vmatpush2.bf16.xpose.msra.mxu0 0
      %3006 = vmatprep.subr.bf16.mxu0 0
      %3007 = vmatpush2.bf16.xpose.msra.mxu0 0
      %3008 = vmatprep.mubr.bf16.mxu0 0
      %3009 = vmatmul.mubr.bf16.gmra.mxu0 %v2971
      %v3010 = vpop.f32.mrf.mxu0
      %v3011 = vadd.f32 0.0, %v3010
      %v3012 = vpop.f32.mrf.mxu0
      %v3013 = vpop.f32.mrf.mxu0
      %v3014 = vpop.f32.mrf.mxu0
      %3015 = vdwg.mxu0
      %v3016 = vmul.f32 %v2864, 0.35355338
      %v3017 = vmul.f32 %v2913, 0.35355338
      %v3018 = vmul.f32 %v2962, 0.35355338
      %v3019 = vmul.f32 %v3011, 0.35355338
      %v3020 = vsel %vm1006, %v3016, -inf
      %3021 = vmax.xlane.f32.xlu0 %v3020
      %v3022 = vpop.xlane.xlu0 %3021
      %v3023 = vsel %vm1006, %v3017, -inf
      %3024 = vmax.xlane.f32.xlu0 %v3023
      %v3025 = vpop.xlane.xlu0 %3024
      %v3026 = vsel %vm1006, %v3018, -inf
      %3027 = vmax.xlane.f32.xlu0 %v3026
      %v3028 = vpop.xlane.xlu0 %3027
      %v3029 = vsel %vm1006, %v3019, -inf
      %3030 = vmax.xlane.f32.xlu0 %v3029
      %v3031 = vpop.xlane.xlu0 %3030
      %v3032 = vsub.f32 %v3016, %v3022
      %v3033 = vsub.f32 %v3017, %v3025
      %v3034 = vsub.f32 %v3018, %v3028
      %v3035 = vsub.f32 %v3019, %v3031
      %v3036 = vmul.f32 %v3032, 1.442695
      %v3037 = vpow.pop %v3036
      %v3038 = vmul.f32 %v3033, 1.442695
      %v3039 = vpow.pop %v3038
      %v3040 = vmul.f32 %v3034, 1.442695
      %v3041 = vpow.pop %v3040
      %v3042 = vmul.f32 %v3035, 1.442695
      %v3043 = vpow.pop %v3042
      %v3044 = vsel %vm1006, %v3037, 0.0
      %3045 = vadd.xlane.f32.xlu0 %v3044
      %v3046 = vpop.xlane.xlu0 %3045
      %v3047 = vsel %vm1006, %v3039, 0.0
      %3048 = vadd.xlane.f32.xlu0 %v3047
      %v3049 = vpop.xlane.xlu0 %3048
      %v3050 = vsel %vm1006, %v3041, 0.0
      %3051 = vadd.xlane.f32.xlu0 %v3050
      %v3052 = vpop.xlane.xlu0 %3051
      %v3053 = vsel %vm1006, %v3043, 0.0
      %3054 = vadd.xlane.f32.xlu0 %v3053
      %v3055 = vpop.xlane.xlu0 %3054
      %v3056 = vrcp.pop %v3046
      %v3057 = vrcp.pop %v3049
      %v3058 = vrcp.pop %v3052
      %v3059 = vrcp.pop %v3055
      %v3060 = vmul.f32 %v3037, %v3056
      %v3061 = vmul.f32 %v3039, %v3057
      %v3062 = vmul.f32 %v3041, %v3058
      %v3063 = vmul.f32 %v3043, %v3059
      %v3064 = vpack.c.bf16 %v3060, %v3060
      %v3065 = vpack.c.bf16 %v3061, %v3061
      %v3066 = vpack.c.bf16 %v3062, %v3062
      %v3067 = vpack.c.bf16 %v3063, %v3063
      %3069 = vrot.lane.b32.xlu0 %v2816, 64
      %v3070 = vpop.permute.xlu0 %3069
      %v3072 = vsel %vm1058, %v3064, 0
      %v3075 = vand.u32 %v3070, %v1065
      %3077 = vmatprep.subr.bf16.mxu0 0
      %3078 = vmatpush1.bf16.msra.mxu0 0
      %3079 = vmatprep.subr.bf16.mxu0 0
      %3080 = vmatpush1.bf16.msra.mxu0 0
      %3081 = vmatprep.subr.bf16.mxu0 0
      %3082 = vmatpush1.bf16.msra.mxu0 0
      %3083 = vmatprep.subr.bf16.mxu0 0
      %3084 = vmatpush1.bf16.msra.mxu0 0
      %3085 = vmatprep.subr.bf16.mxu0 0
      %3086 = vmatpush1.bf16.msra.mxu0 0
      %3087 = vmatprep.subr.bf16.mxu0 0
      %3088 = vmatpush1.bf16.msra.mxu0 0
      %3089 = vmatprep.subr.bf16.mxu0 0
      %3090 = vmatpush1.bf16.msra.mxu0 0
      %3091 = vmatprep.subr.bf16.mxu0 0
      %3092 = vmatpush1.bf16.msra.mxu0 %v3075
      %3093 = vmatprep.subr.bf16.mxu0 0
      %3094 = vmatpush2.bf16.msra.mxu0 0
      %3095 = vmatprep.subr.bf16.mxu0 0
      %3096 = vmatpush2.bf16.msra.mxu0 0
      %3097 = vmatprep.subr.bf16.mxu0 0
      %3098 = vmatpush2.bf16.msra.mxu0 0
      %3099 = vmatprep.subr.bf16.mxu0 0
      %3100 = vmatpush2.bf16.msra.mxu0 0
      %3101 = vmatprep.subr.bf16.mxu0 0
      %3102 = vmatpush2.bf16.msra.mxu0 0
      %3103 = vmatprep.subr.bf16.mxu0 0
      %3104 = vmatpush2.bf16.msra.mxu0 0
      %3105 = vmatprep.subr.bf16.mxu0 0
      %3106 = vmatpush2.bf16.msra.mxu0 0
      %3107 = vmatprep.subr.bf16.mxu0 0
      %3108 = vmatpush2.bf16.msra.mxu0 0
      %3109 = vmatprep.mubr.bf16.mxu0 0
      %3110 = vmatmul.mubr.bf16.gmra.mxu0 %v3072
      %v3111 = vpop.f32.mrf.mxu0
      %v3112 = vadd.f32 0.0, %v3111
      %v3113 = vpop.f32.mrf.mxu0
      %v3114 = vpop.f32.mrf.mxu0
      %v3115 = vpop.f32.mrf.mxu0
      %3116 = vdwg.mxu0
      %3118 = vrot.lane.b32.xlu0 %v2817, 64
      %v3119 = vpop.permute.xlu0 %3118
      %v3121 = vsel %vm1058, %v3065, 0
      %v3124 = vand.u32 %v3119, %v1065
      %3126 = vmatprep.subr.bf16.mxu0 0
      %3127 = vmatpush1.bf16.msra.mxu0 0
      %3128 = vmatprep.subr.bf16.mxu0 0
      %3129 = vmatpush1.bf16.msra.mxu0 0
      %3130 = vmatprep.subr.bf16.mxu0 0
      %3131 = vmatpush1.bf16.msra.mxu0 0
      %3132 = vmatprep.subr.bf16.mxu0 0
      %3133 = vmatpush1.bf16.msra.mxu0 0
      %3134 = vmatprep.subr.bf16.mxu0 0
      %3135 = vmatpush1.bf16.msra.mxu0 0
      %3136 = vmatprep.subr.bf16.mxu0 0
      %3137 = vmatpush1.bf16.msra.mxu0 0
      %3138 = vmatprep.subr.bf16.mxu0 0
      %3139 = vmatpush1.bf16.msra.mxu0 0
      %3140 = vmatprep.subr.bf16.mxu0 0
      %3141 = vmatpush1.bf16.msra.mxu0 %v3124
      %3142 = vmatprep.subr.bf16.mxu0 0
      %3143 = vmatpush2.bf16.msra.mxu0 0
      %3144 = vmatprep.subr.bf16.mxu0 0
      %3145 = vmatpush2.bf16.msra.mxu0 0
      %3146 = vmatprep.subr.bf16.mxu0 0
      %3147 = vmatpush2.bf16.msra.mxu0 0
      %3148 = vmatprep.subr.bf16.mxu0 0
      %3149 = vmatpush2.bf16.msra.mxu0 0
      %3150 = vmatprep.subr.bf16.mxu0 0
      %3151 = vmatpush2.bf16.msra.mxu0 0
      %3152 = vmatprep.subr.bf16.mxu0 0
      %3153 = vmatpush2.bf16.msra.mxu0 0
      %3154 = vmatprep.subr.bf16.mxu0 0
      %3155 = vmatpush2.bf16.msra.mxu0 0
      %3156 = vmatprep.subr.bf16.mxu0 0
      %3157 = vmatpush2.bf16.msra.mxu0 0
      %3158 = vmatprep.mubr.bf16.mxu0 0
      %3159 = vmatmul.mubr.bf16.gmra.mxu0 %v3121
      %v3160 = vpop.f32.mrf.mxu0
      %v3161 = vadd.f32 0.0, %v3160
      %v3162 = vpop.f32.mrf.mxu0
      %v3163 = vpop.f32.mrf.mxu0
      %v3164 = vpop.f32.mrf.mxu0
      %3165 = vdwg.mxu0
      %3167 = vrot.lane.b32.xlu0 %v2818, 64
      %v3168 = vpop.permute.xlu0 %3167
      %v3170 = vsel %vm1058, %v3066, 0
      %v3173 = vand.u32 %v3168, %v1065
      %3175 = vmatprep.subr.bf16.mxu0 0
      %3176 = vmatpush1.bf16.msra.mxu0 0
      %3177 = vmatprep.subr.bf16.mxu0 0
      %3178 = vmatpush1.bf16.msra.mxu0 0
      %3179 = vmatprep.subr.bf16.mxu0 0
      %3180 = vmatpush1.bf16.msra.mxu0 0
      %3181 = vmatprep.subr.bf16.mxu0 0
      %3182 = vmatpush1.bf16.msra.mxu0 0
      %3183 = vmatprep.subr.bf16.mxu0 0
      %3184 = vmatpush1.bf16.msra.mxu0 0
      %3185 = vmatprep.subr.bf16.mxu0 0
      %3186 = vmatpush1.bf16.msra.mxu0 0
      %3187 = vmatprep.subr.bf16.mxu0 0
      %3188 = vmatpush1.bf16.msra.mxu0 0
      %3189 = vmatprep.subr.bf16.mxu0 0
      %3190 = vmatpush1.bf16.msra.mxu0 %v3173
      %3191 = vmatprep.subr.bf16.mxu0 0
      %3192 = vmatpush2.bf16.msra.mxu0 0
      %3193 = vmatprep.subr.bf16.mxu0 0
      %3194 = vmatpush2.bf16.msra.mxu0 0
      %3195 = vmatprep.subr.bf16.mxu0 0
      %3196 = vmatpush2.bf16.msra.mxu0 0
      %3197 = vmatprep.subr.bf16.mxu0 0
      %3198 = vmatpush2.bf16.msra.mxu0 0
      %3199 = vmatprep.subr.bf16.mxu0 0
      %3200 = vmatpush2.bf16.msra.mxu0 0
      %3201 = vmatprep.subr.bf16.mxu0 0
      %3202 = vmatpush2.bf16.msra.mxu0 0
      %3203 = vmatprep.subr.bf16.mxu0 0
      %3204 = vmatpush2.bf16.msra.mxu0 0
      %3205 = vmatprep.subr.bf16.mxu0 0
      %3206 = vmatpush2.bf16.msra.mxu0 0
      %3207 = vmatprep.mubr.bf16.mxu0 0
      %3208 = vmatmul.mubr.bf16.gmra.mxu0 %v3170
      %v3209 = vpop.f32.mrf.mxu0
      %v3210 = vadd.f32 0.0, %v3209
      %v3211 = vpop.f32.mrf.mxu0
      %v3212 = vpop.f32.mrf.mxu0
      %v3213 = vpop.f32.mrf.mxu0
      %3214 = vdwg.mxu0
      %3216 = vrot.lane.b32.xlu0 %v2819, 64
      %v3217 = vpop.permute.xlu0 %3216
      %v3219 = vsel %vm1058, %v3067, 0
      %v3222 = vand.u32 %v3217, %v1065
      %3224 = vmatprep.subr.bf16.mxu0 0
      %3225 = vmatpush1.bf16.msra.mxu0 0
      %3226 = vmatprep.subr.bf16.mxu0 0
      %3227 = vmatpush1.bf16.msra.mxu0 0
      %3228 = vmatprep.subr.bf16.mxu0 0
      %3229 = vmatpush1.bf16.msra.mxu0 0
      %3230 = vmatprep.subr.bf16.mxu0 0
      %3231 = vmatpush1.bf16.msra.mxu0 0
      %3232 = vmatprep.subr.bf16.mxu0 0
      %3233 = vmatpush1.bf16.msra.mxu0 0
      %3234 = vmatprep.subr.bf16.mxu0 0
      %3235 = vmatpush1.bf16.msra.mxu0 0
      %3236 = vmatprep.subr.bf16.mxu0 0
      %3237 = vmatpush1.bf16.msra.mxu0 0
      %3238 = vmatprep.subr.bf16.mxu0 0
      %3239 = vmatpush1.bf16.msra.mxu0 %v3222
      %3240 = vmatprep.subr.bf16.mxu0 0
      %3241 = vmatpush2.bf16.msra.mxu0 0
      %3242 = vmatprep.subr.bf16.mxu0 0
      %3243 = vmatpush2.bf16.msra.mxu0 0
      %3244 = vmatprep.subr.bf16.mxu0 0
      %3245 = vmatpush2.bf16.msra.mxu0 0
      %3246 = vmatprep.subr.bf16.mxu0 0
      %3247 = vmatpush2.bf16.msra.mxu0 0
      %3248 = vmatprep.subr.bf16.mxu0 0
      %3249 = vmatpush2.bf16.msra.mxu0 0
      %3250 = vmatprep.subr.bf16.mxu0 0
      %3251 = vmatpush2.bf16.msra.mxu0 0
      %3252 = vmatprep.subr.bf16.mxu0 0
      %3253 = vmatpush2.bf16.msra.mxu0 0
      %3254 = vmatprep.subr.bf16.mxu0 0
      %3255 = vmatpush2.bf16.msra.mxu0 0
      %3256 = vmatprep.mubr.bf16.mxu0 0
      %3257 = vmatmul.mubr.bf16.gmra.mxu0 %v3219
      %v3258 = vpop.f32.mrf.mxu0
      %v3259 = vadd.f32 0.0, %v3258
      %v3260 = vpop.f32.mrf.mxu0
      %v3261 = vpop.f32.mrf.mxu0
      %v3262 = vpop.f32.mrf.mxu0
      %3263 = vdwg.mxu0
      %3264 = vst.msk [vmem:[#allocation2] sm:$0x1f] %vm1256, %v3112
      %3266 = vrot.lane.b32.xlu0 %v3161, 8
      %v3267 = vpop.permute.xlu0 %3266
      %3269 = vst.msk [vmem:[#allocation2] sm:$0x1f] %vm1262, %v3267
      %3271 = vrot.lane.b32.xlu0 %v3210, 16
      %v3272 = vpop.permute.xlu0 %3271
      %3274 = vst.msk [vmem:[#allocation2] sm:$0x1f] %vm1268, %v3272
      %3276 = vrot.lane.b32.xlu0 %v3259, 24
      %v3277 = vpop.permute.xlu0 %3276
      %3279 = vst.msk [vmem:[#allocation2] sm:$0x1f] %vm1274, %v3277
      %3281 = vrot.lane.b32.xlu0 %v2757, 120
      %v3282 = vpop.permute.xlu0 %3281
      %3284 = vrot.lane.b32.xlu0 %v2757, 112
      %v3285 = vpop.permute.xlu0 %3284
      %3287 = vrot.lane.b32.xlu0 %v2757, 104
      %v3288 = vpop.permute.xlu0 %3287
      %v3290 = vpack.c.bf16 %v2757, %v2756
      %v3291 = vpack.c.bf16 %v3282, %v2780
      %v3292 = vpack.c.bf16 %v3285, %v2783
      %v3293 = vpack.c.bf16 %v3288, %v2786
      %3295 = vrot.lane.b32.xlu0 %v2767, 120
      %v3296 = vpop.permute.xlu0 %3295
      %3298 = vrot.lane.b32.xlu0 %v2767, 112
      %v3299 = vpop.permute.xlu0 %3298
      %3301 = vrot.lane.b32.xlu0 %v2767, 104
      %v3302 = vpop.permute.xlu0 %3301
      %v3304 = vpack.c.bf16 %v2767, %v2766
      %v3305 = vpack.c.bf16 %v3296, %v2794
      %v3306 = vpack.c.bf16 %v3299, %v2797
      %v3307 = vpack.c.bf16 %v3302, %v2800
      %3309 = vrot.lane.b32.xlu0 %v2777, 120
      %v3310 = vpop.permute.xlu0 %3309
      %3312 = vrot.lane.b32.xlu0 %v2777, 112
      %v3313 = vpop.permute.xlu0 %3312
      %3315 = vrot.lane.b32.xlu0 %v2777, 104
      %v3316 = vpop.permute.xlu0 %3315
      %v3318 = vpack.c.bf16 %v2777, %v2776
      %v3319 = vpack.c.bf16 %v3310, %v2808
      %v3320 = vpack.c.bf16 %v3313, %v2811
      %v3321 = vpack.c.bf16 %v3316, %v2814
      %v3323 = vshrl.u32 %v3290, 16
      %v3325 = vrot.slane %v3323, 2
      %v3326 = vshll.u32 %v3290, 16
      %v3328 = vrot.slane %v3326, 3
      %v3329 = vor.u32 %v3325, %v3328
      %v3331 = vshrl.u32 %v3304, 16
      %v3333 = vrot.slane %v3331, 2
      %v3334 = vshll.u32 %v3304, 16
      %v3336 = vrot.slane %v3334, 3
      %v3337 = vor.u32 %v3333, %v3336
      %3338 = vrot.lane.b32.xlu0 %v3337, 96
      %v3339 = vpop.permute.xlu0 %3338
      %v3341 = vsel %vm808, %v3329, 0
      %v3344 = vsel %vm808, %v3339, 0
      %3346 = vmatprep.subr.bf16.mxu0 0
      %3347 = vmatpush1.bf16.xpose.msra.mxu0 0
      %3348 = vmatprep.subr.bf16.mxu0 0
      %3349 = vmatpush1.bf16.xpose.msra.mxu0 0
      %3350 = vmatprep.subr.bf16.mxu0 0
      %3351 = vmatpush1.bf16.xpose.msra.mxu0 0
      %3352 = vmatprep.subr.bf16.mxu0 0
      %3353 = vmatpush1.bf16.xpose.msra.mxu0 0
      %3354 = vmatprep.subr.bf16.mxu0 0
      %3355 = vmatpush1.bf16.xpose.msra.mxu0 0
      %3356 = vmatprep.subr.bf16.mxu0 0
      %3357 = vmatpush1.bf16.xpose.msra.mxu0 0
      %3358 = vmatprep.subr.bf16.mxu0 0
      %3359 = vmatpush1.bf16.xpose.msra.mxu0 0
      %3360 = vmatprep.subr.bf16.mxu0 0
      %3361 = vmatpush1.bf16.xpose.msra.mxu0 %v3344
      %3362 = vmatprep.subr.bf16.mxu0 0
      %3363 = vmatpush2.bf16.xpose.msra.mxu0 0
      %3364 = vmatprep.subr.bf16.mxu0 0
      %3365 = vmatpush2.bf16.xpose.msra.mxu0 0
      %3366 = vmatprep.subr.bf16.mxu0 0
      %3367 = vmatpush2.bf16.xpose.msra.mxu0 0
      %3368 = vmatprep.subr.bf16.mxu0 0
      %3369 = vmatpush2.bf16.xpose.msra.mxu0 0
      %3370 = vmatprep.subr.bf16.mxu0 0
      %3371 = vmatpush2.bf16.xpose.msra.mxu0 0
      %3372 = vmatprep.subr.bf16.mxu0 0
      %3373 = vmatpush2.bf16.xpose.msra.mxu0 0
      %3374 = vmatprep.subr.bf16.mxu0 0
      %3375 = vmatpush2.bf16.xpose.msra.mxu0 0
      %3376 = vmatprep.subr.bf16.mxu0 0
      %3377 = vmatpush2.bf16.xpose.msra.mxu0 0
      %3378 = vmatprep.mubr.bf16.mxu0 0
      %3379 = vmatmul.mubr.bf16.gmra.mxu0 %v3341
      %v3380 = vpop.f32.mrf.mxu0
      %v3381 = vadd.f32 0.0, %v3380
      %v3382 = vpop.f32.mrf.mxu0
      %v3383 = vpop.f32.mrf.mxu0
      %v3384 = vpop.f32.mrf.mxu0
      %3385 = vdwg.mxu0
      %v3387 = vshrl.u32 %v3291, 16
      %v3389 = vrot.slane %v3387, 2
      %v3390 = vshll.u32 %v3291, 16
      %v3392 = vrot.slane %v3390, 3
      %v3393 = vor.u32 %v3389, %v3392
      %v3395 = vshrl.u32 %v3305, 16
      %v3397 = vrot.slane %v3395, 2
      %v3398 = vshll.u32 %v3305, 16
      %v3400 = vrot.slane %v3398, 3
      %v3401 = vor.u32 %v3397, %v3400
      %3402 = vrot.lane.b32.xlu0 %v3401, 96
      %v3403 = vpop.permute.xlu0 %3402
      %v3405 = vsel %vm808, %v3393, 0
      %v3408 = vsel %vm808, %v3403, 0
      %3410 = vmatprep.subr.bf16.mxu0 0
      %3411 = vmatpush1.bf16.xpose.msra.mxu0 0
      %3412 = vmatprep.subr.bf16.mxu0 0
      %3413 = vmatpush1.bf16.xpose.msra.mxu0 0
      %3414 = vmatprep.subr.bf16.mxu0 0
      %3415 = vmatpush1.bf16.xpose.msra.mxu0 0
      %3416 = vmatprep.subr.bf16.mxu0 0
      %3417 = vmatpush1.bf16.xpose.msra.mxu0 0
      %3418 = vmatprep.subr.bf16.mxu0 0
      %3419 = vmatpush1.bf16.xpose.msra.mxu0 0
      %3420 = vmatprep.subr.bf16.mxu0 0
      %3421 = vmatpush1.bf16.xpose.msra.mxu0 0
      %3422 = vmatprep.subr.bf16.mxu0 0
      %3423 = vmatpush1.bf16.xpose.msra.mxu0 0
      %3424 = vmatprep.subr.bf16.mxu0 0
      %3425 = vmatpush1.bf16.xpose.msra.mxu0 %v3408
      %3426 = vmatprep.subr.bf16.mxu0 0
      %3427 = vmatpush2.bf16.xpose.msra.mxu0 0
      %3428 = vmatprep.subr.bf16.mxu0 0
      %3429 = vmatpush2.bf16.xpose.msra.mxu0 0
      %3430 = vmatprep.subr.bf16.mxu0 0
      %3431 = vmatpush2.bf16.xpose.msra.mxu0 0
      %3432 = vmatprep.subr.bf16.mxu0 0
      %3433 = vmatpush2.bf16.xpose.msra.mxu0 0
      %3434 = vmatprep.subr.bf16.mxu0 0
      %3435 = vmatpush2.bf16.xpose.msra.mxu0 0
      %3436 = vmatprep.subr.bf16.mxu0 0
      %3437 = vmatpush2.bf16.xpose.msra.mxu0 0
      %3438 = vmatprep.subr.bf16.mxu0 0
      %3439 = vmatpush2.bf16.xpose.msra.mxu0 0
      %3440 = vmatprep.subr.bf16.mxu0 0
      %3441 = vmatpush2.bf16.xpose.msra.mxu0 0
      %3442 = vmatprep.mubr.bf16.mxu0 0
      %3443 = vmatmul.mubr.bf16.gmra.mxu0 %v3405
      %v3444 = vpop.f32.mrf.mxu0
      %v3445 = vadd.f32 0.0, %v3444
      %v3446 = vpop.f32.mrf.mxu0
      %v3447 = vpop.f32.mrf.mxu0
      %v3448 = vpop.f32.mrf.mxu0
      %3449 = vdwg.mxu0
      %v3451 = vshrl.u32 %v3292, 16
      %v3453 = vrot.slane %v3451, 2
      %v3454 = vshll.u32 %v3292, 16
      %v3456 = vrot.slane %v3454, 3
      %v3457 = vor.u32 %v3453, %v3456
      %v3459 = vshrl.u32 %v3306, 16
      %v3461 = vrot.slane %v3459, 2
      %v3462 = vshll.u32 %v3306, 16
      %v3464 = vrot.slane %v3462, 3
      %v3465 = vor.u32 %v3461, %v3464
      %3466 = vrot.lane.b32.xlu0 %v3465, 96
      %v3467 = vpop.permute.xlu0 %3466
      %v3469 = vsel %vm808, %v3457, 0
      %v3472 = vsel %vm808, %v3467, 0
      %3474 = vmatprep.subr.bf16.mxu0 0
      %3475 = vmatpush1.bf16.xpose.msra.mxu0 0
      %3476 = vmatprep.subr.bf16.mxu0 0
      %3477 = vmatpush1.bf16.xpose.msra.mxu0 0
      %3478 = vmatprep.subr.bf16.mxu0 0
      %3479 = vmatpush1.bf16.xpose.msra.mxu0 0
      %3480 = vmatprep.subr.bf16.mxu0 0
      %3481 = vmatpush1.bf16.xpose.msra.mxu0 0
      %3482 = vmatprep.subr.bf16.mxu0 0
      %3483 = vmatpush1.bf16.xpose.msra.mxu0 0
      %3484 = vmatprep.subr.bf16.mxu0 0
      %3485 = vmatpush1.bf16.xpose.msra.mxu0 0
      %3486 = vmatprep.subr.bf16.mxu0 0
      %3487 = vmatpush1.bf16.xpose.msra.mxu0 0
      %3488 = vmatprep.subr.bf16.mxu0 0
      %3489 = vmatpush1.bf16.xpose.msra.mxu0 %v3472
      %3490 = vmatprep.subr.bf16.mxu0 0
      %3491 = vmatpush2.bf16.xpose.msra.mxu0 0
      %3492 = vmatprep.subr.bf16.mxu0 0
      %3493 = vmatpush2.bf16.xpose.msra.mxu0 0
      %3494 = vmatprep.subr.bf16.mxu0 0
      %3495 = vmatpush2.bf16.xpose.msra.mxu0 0
      %3496 = vmatprep.subr.bf16.mxu0 0
      %3497 = vmatpush2.bf16.xpose.msra.mxu0 0
      %3498 = vmatprep.subr.bf16.mxu0 0
      %3499 = vmatpush2.bf16.xpose.msra.mxu0 0
      %3500 = vmatprep.subr.bf16.mxu0 0
      %3501 = vmatpush2.bf16.xpose.msra.mxu0 0
      %3502 = vmatprep.subr.bf16.mxu0 0
      %3503 = vmatpush2.bf16.xpose.msra.mxu0 0
      %3504 = vmatprep.subr.bf16.mxu0 0
      %3505 = vmatpush2.bf16.xpose.msra.mxu0 0
      %3506 = vmatprep.mubr.bf16.mxu0 0
      %3507 = vmatmul.mubr.bf16.gmra.mxu0 %v3469
      %v3508 = vpop.f32.mrf.mxu0
      %v3509 = vadd.f32 0.0, %v3508
      %v3510 = vpop.f32.mrf.mxu0
      %v3511 = vpop.f32.mrf.mxu0
      %v3512 = vpop.f32.mrf.mxu0
      %3513 = vdwg.mxu0
      %v3515 = vshrl.u32 %v3293, 16
      %v3517 = vrot.slane %v3515, 2
      %v3518 = vshll.u32 %v3293, 16
      %v3520 = vrot.slane %v3518, 3
      %v3521 = vor.u32 %v3517, %v3520
      %v3523 = vshrl.u32 %v3307, 16
      %v3525 = vrot.slane %v3523, 2
      %v3526 = vshll.u32 %v3307, 16
      %v3528 = vrot.slane %v3526, 3
      %v3529 = vor.u32 %v3525, %v3528
      %3530 = vrot.lane.b32.xlu0 %v3529, 96
      %v3531 = vpop.permute.xlu0 %3530
      %v3533 = vsel %vm808, %v3521, 0
      %v3536 = vsel %vm808, %v3531, 0
      %3538 = vmatprep.subr.bf16.mxu0 0
      %3539 = vmatpush1.bf16.xpose.msra.mxu0 0
      %3540 = vmatprep.subr.bf16.mxu0 0
      %3541 = vmatpush1.bf16.xpose.msra.mxu0 0
      %3542 = vmatprep.subr.bf16.mxu0 0
      %3543 = vmatpush1.bf16.xpose.msra.mxu0 0
      %3544 = vmatprep.subr.bf16.mxu0 0
      %3545 = vmatpush1.bf16.xpose.msra.mxu0 0
      %3546 = vmatprep.subr.bf16.mxu0 0
      %3547 = vmatpush1.bf16.xpose.msra.mxu0 0
      %3548 = vmatprep.subr.bf16.mxu0 0
      %3549 = vmatpush1.bf16.xpose.msra.mxu0 0
      %3550 = vmatprep.subr.bf16.mxu0 0
      %3551 = vmatpush1.bf16.xpose.msra.mxu0 0
      %3552 = vmatprep.subr.bf16.mxu0 0
      %3553 = vmatpush1.bf16.xpose.msra.mxu0 %v3536
      %3554 = vmatprep.subr.bf16.mxu0 0
      %3555 = vmatpush2.bf16.xpose.msra.mxu0 0
      %3556 = vmatprep.subr.bf16.mxu0 0
      %3557 = vmatpush2.bf16.xpose.msra.mxu0 0
      %3558 = vmatprep.subr.bf16.mxu0 0
      %3559 = vmatpush2.bf16.xpose.msra.mxu0 0
      %3560 = vmatprep.subr.bf16.mxu0 0
      %3561 = vmatpush2.bf16.xpose.msra.mxu0 0
      %3562 = vmatprep.subr.bf16.mxu0 0
      %3563 = vmatpush2.bf16.xpose.msra.mxu0 0
      %3564 = vmatprep.subr.bf16.mxu0 0
      %3565 = vmatpush2.bf16.xpose.msra.mxu0 0
      %3566 = vmatprep.subr.bf16.mxu0 0
      %3567 = vmatpush2.bf16.xpose.msra.mxu0 0
      %3568 = vmatprep.subr.bf16.mxu0 0
      %3569 = vmatpush2.bf16.xpose.msra.mxu0 0
      %3570 = vmatprep.mubr.bf16.mxu0 0
      %3571 = vmatmul.mubr.bf16.gmra.mxu0 %v3533
      %v3572 = vpop.f32.mrf.mxu0
      %v3573 = vadd.f32 0.0, %v3572
      %v3574 = vpop.f32.mrf.mxu0
      %v3575 = vpop.f32.mrf.mxu0
      %v3576 = vpop.f32.mrf.mxu0
      %3577 = vdwg.mxu0
      %v3578 = vmul.f32 %v3381, 0.35355338
      %v3579 = vmul.f32 %v3445, 0.35355338
      %v3580 = vmul.f32 %v3509, 0.35355338
      %v3581 = vmul.f32 %v3573, 0.35355338
      %v3582 = vsel %vm1006, %v3578, -inf
      %3583 = vmax.xlane.f32.xlu0 %v3582
      %v3584 = vpop.xlane.xlu0 %3583
      %v3585 = vsel %vm1006, %v3579, -inf
      %3586 = vmax.xlane.f32.xlu0 %v3585
      %v3587 = vpop.xlane.xlu0 %3586
      %v3588 = vsel %vm1006, %v3580, -inf
      %3589 = vmax.xlane.f32.xlu0 %v3588
      %v3590 = vpop.xlane.xlu0 %3589
      %v3591 = vsel %vm1006, %v3581, -inf
      %3592 = vmax.xlane.f32.xlu0 %v3591
      %v3593 = vpop.xlane.xlu0 %3592
      %v3594 = vsub.f32 %v3578, %v3584
      %v3595 = vsub.f32 %v3579, %v3587
      %v3596 = vsub.f32 %v3580, %v3590
      %v3597 = vsub.f32 %v3581, %v3593
      %v3598 = vmul.f32 %v3594, 1.442695
      %v3599 = vpow.pop %v3598
      %v3600 = vmul.f32 %v3595, 1.442695
      %v3601 = vpow.pop %v3600
      %v3602 = vmul.f32 %v3596, 1.442695
      %v3603 = vpow.pop %v3602
      %v3604 = vmul.f32 %v3597, 1.442695
      %v3605 = vpow.pop %v3604
      %v3606 = vsel %vm1006, %v3599, 0.0
      %3607 = vadd.xlane.f32.xlu0 %v3606
      %v3608 = vpop.xlane.xlu0 %3607
      %v3609 = vsel %vm1006, %v3601, 0.0
      %3610 = vadd.xlane.f32.xlu0 %v3609
      %v3611 = vpop.xlane.xlu0 %3610
      %v3612 = vsel %vm1006, %v3603, 0.0
      %3613 = vadd.xlane.f32.xlu0 %v3612
      %v3614 = vpop.xlane.xlu0 %3613
      %v3615 = vsel %vm1006, %v3605, 0.0
      %3616 = vadd.xlane.f32.xlu0 %v3615
      %v3617 = vpop.xlane.xlu0 %3616
      %v3618 = vrcp.pop %v3608
      %v3619 = vrcp.pop %v3611
      %v3620 = vrcp.pop %v3614
      %v3621 = vrcp.pop %v3617
      %v3622 = vmul.f32 %v3599, %v3618
      %v3623 = vmul.f32 %v3601, %v3619
      %v3624 = vmul.f32 %v3603, %v3620
      %v3625 = vmul.f32 %v3605, %v3621
      %v3626 = vpack.c.bf16 %v3622, %v3622
      %v3627 = vpack.c.bf16 %v3623, %v3623
      %v3628 = vpack.c.bf16 %v3624, %v3624
      %v3629 = vpack.c.bf16 %v3625, %v3625
      %v3631 = vshrl.u32 %v3318, 16
      %v3633 = vrot.slane %v3631, 2
      %v3634 = vshll.u32 %v3318, 16
      %v3636 = vrot.slane %v3634, 3
      %v3637 = vor.u32 %v3633, %v3636
      %3638 = vrot.lane.b32.xlu0 %v3637, 64
      %v3639 = vpop.permute.xlu0 %3638
      %v3641 = vsel %vm1058, %v3626, 0
      %v3644 = vand.u32 %v3639, %v1065
      %3646 = vmatprep.subr.bf16.mxu0 0
      %3647 = vmatpush1.bf16.msra.mxu0 0
      %3648 = vmatprep.subr.bf16.mxu0 0
      %3649 = vmatpush1.bf16.msra.mxu0 0
      %3650 = vmatprep.subr.bf16.mxu0 0
      %3651 = vmatpush1.bf16.msra.mxu0 0
      %3652 = vmatprep.subr.bf16.mxu0 0
      %3653 = vmatpush1.bf16.msra.mxu0 0
      %3654 = vmatprep.subr.bf16.mxu0 0
      %3655 = vmatpush1.bf16.msra.mxu0 0
      %3656 = vmatprep.subr.bf16.mxu0 0
      %3657 = vmatpush1.bf16.msra.mxu0 0
      %3658 = vmatprep.subr.bf16.mxu0 0
      %3659 = vmatpush1.bf16.msra.mxu0 0
      %3660 = vmatprep.subr.bf16.mxu0 0
      %3661 = vmatpush1.bf16.msra.mxu0 %v3644
      %3662 = vmatprep.subr.bf16.mxu0 0
      %3663 = vmatpush2.bf16.msra.mxu0 0
      %3664 = vmatprep.subr.bf16.mxu0 0
      %3665 = vmatpush2.bf16.msra.mxu0 0
      %3666 = vmatprep.subr.bf16.mxu0 0
      %3667 = vmatpush2.bf16.msra.mxu0 0
      %3668 = vmatprep.subr.bf16.mxu0 0
      %3669 = vmatpush2.bf16.msra.mxu0 0
      %3670 = vmatprep.subr.bf16.mxu0 0
      %3671 = vmatpush2.bf16.msra.mxu0 0
      %3672 = vmatprep.subr.bf16.mxu0 0
      %3673 = vmatpush2.bf16.msra.mxu0 0
      %3674 = vmatprep.subr.bf16.mxu0 0
      %3675 = vmatpush2.bf16.msra.mxu0 0
      %3676 = vmatprep.subr.bf16.mxu0 0
      %3677 = vmatpush2.bf16.msra.mxu0 0
      %3678 = vmatprep.mubr.bf16.mxu0 0
      %3679 = vmatmul.mubr.bf16.gmra.mxu0 %v3641
      %v3680 = vpop.f32.mrf.mxu0
      %v3681 = vadd.f32 0.0, %v3680
      %v3682 = vpop.f32.mrf.mxu0
      %v3683 = vpop.f32.mrf.mxu0
      %v3684 = vpop.f32.mrf.mxu0
      %3685 = vdwg.mxu0
      %v3687 = vshrl.u32 %v3319, 16
      %v3689 = vrot.slane %v3687, 2
      %v3690 = vshll.u32 %v3319, 16
      %v3692 = vrot.slane %v3690, 3
      %v3693 = vor.u32 %v3689, %v3692
      %3694 = vrot.lane.b32.xlu0 %v3693, 64
      %v3695 = vpop.permute.xlu0 %3694
      %v3697 = vsel %vm1058, %v3627, 0
      %v3700 = vand.u32 %v3695, %v1065
      %3702 = vmatprep.subr.bf16.mxu0 0
      %3703 = vmatpush1.bf16.msra.mxu0 0
      %3704 = vmatprep.subr.bf16.mxu0 0
      %3705 = vmatpush1.bf16.msra.mxu0 0
      %3706 = vmatprep.subr.bf16.mxu0 0
      %3707 = vmatpush1.bf16.msra.mxu0 0
      %3708 = vmatprep.subr.bf16.mxu0 0
      %3709 = vmatpush1.bf16.msra.mxu0 0
      %3710 = vmatprep.subr.bf16.mxu0 0
      %3711 = vmatpush1.bf16.msra.mxu0 0
      %3712 = vmatprep.subr.bf16.mxu0 0
      %3713 = vmatpush1.bf16.msra.mxu0 0
      %3714 = vmatprep.subr.bf16.mxu0 0
      %3715 = vmatpush1.bf16.msra.mxu0 0
      %3716 = vmatprep.subr.bf16.mxu0 0
      %3717 = vmatpush1.bf16.msra.mxu0 %v3700
      %3718 = vmatprep.subr.bf16.mxu0 0
      %3719 = vmatpush2.bf16.msra.mxu0 0
      %3720 = vmatprep.subr.bf16.mxu0 0
      %3721 = vmatpush2.bf16.msra.mxu0 0
      %3722 = vmatprep.subr.bf16.mxu0 0
      %3723 = vmatpush2.bf16.msra.mxu0 0
      %3724 = vmatprep.subr.bf16.mxu0 0
      %3725 = vmatpush2.bf16.msra.mxu0 0
      %3726 = vmatprep.subr.bf16.mxu0 0
      %3727 = vmatpush2.bf16.msra.mxu0 0
      %3728 = vmatprep.subr.bf16.mxu0 0
      %3729 = vmatpush2.bf16.msra.mxu0 0
      %3730 = vmatprep.subr.bf16.mxu0 0
      %3731 = vmatpush2.bf16.msra.mxu0 0
      %3732 = vmatprep.subr.bf16.mxu0 0
      %3733 = vmatpush2.bf16.msra.mxu0 0
      %3734 = vmatprep.mubr.bf16.mxu0 0
      %3735 = vmatmul.mubr.bf16.gmra.mxu0 %v3697
      %v3736 = vpop.f32.mrf.mxu0
      %v3737 = vadd.f32 0.0, %v3736
      %v3738 = vpop.f32.mrf.mxu0
      %v3739 = vpop.f32.mrf.mxu0
      %v3740 = vpop.f32.mrf.mxu0
      %3741 = vdwg.mxu0
      %v3743 = vshrl.u32 %v3320, 16
      %v3745 = vrot.slane %v3743, 2
      %v3746 = vshll.u32 %v3320, 16
      %v3748 = vrot.slane %v3746, 3
      %v3749 = vor.u32 %v3745, %v3748
      %3750 = vrot.lane.b32.xlu0 %v3749, 64
      %v3751 = vpop.permute.xlu0 %3750
      %v3753 = vsel %vm1058, %v3628, 0
      %v3756 = vand.u32 %v3751, %v1065
      %3758 = vmatprep.subr.bf16.mxu0 0
      %3759 = vmatpush1.bf16.msra.mxu0 0
      %3760 = vmatprep.subr.bf16.mxu0 0
      %3761 = vmatpush1.bf16.msra.mxu0 0
      %3762 = vmatprep.subr.bf16.mxu0 0
      %3763 = vmatpush1.bf16.msra.mxu0 0
      %3764 = vmatprep.subr.bf16.mxu0 0
      %3765 = vmatpush1.bf16.msra.mxu0 0
      %3766 = vmatprep.subr.bf16.mxu0 0
      %3767 = vmatpush1.bf16.msra.mxu0 0
      %3768 = vmatprep.subr.bf16.mxu0 0
      %3769 = vmatpush1.bf16.msra.mxu0 0
      %3770 = vmatprep.subr.bf16.mxu0 0
      %3771 = vmatpush1.bf16.msra.mxu0 0
      %3772 = vmatprep.subr.bf16.mxu0 0
      %3773 = vmatpush1.bf16.msra.mxu0 %v3756
      %3774 = vmatprep.subr.bf16.mxu0 0
      %3775 = vmatpush2.bf16.msra.mxu0 0
      %3776 = vmatprep.subr.bf16.mxu0 0
      %3777 = vmatpush2.bf16.msra.mxu0 0
      %3778 = vmatprep.subr.bf16.mxu0 0
      %3779 = vmatpush2.bf16.msra.mxu0 0
      %3780 = vmatprep.subr.bf16.mxu0 0
      %3781 = vmatpush2.bf16.msra.mxu0 0
      %3782 = vmatprep.subr.bf16.mxu0 0
      %3783 = vmatpush2.bf16.msra.mxu0 0
      %3784 = vmatprep.subr.bf16.mxu0 0
      %3785 = vmatpush2.bf16.msra.mxu0 0
      %3786 = vmatprep.subr.bf16.mxu0 0
      %3787 = vmatpush2.bf16.msra.mxu0 0
      %3788 = vmatprep.subr.bf16.mxu0 0
      %3789 = vmatpush2.bf16.msra.mxu0 0
      %3790 = vmatprep.mubr.bf16.mxu0 0
      %3791 = vmatmul.mubr.bf16.gmra.mxu0 %v3753
      %v3792 = vpop.f32.mrf.mxu0
      %v3793 = vadd.f32 0.0, %v3792
      %v3794 = vpop.f32.mrf.mxu0
      %v3795 = vpop.f32.mrf.mxu0
      %v3796 = vpop.f32.mrf.mxu0
      %3797 = vdwg.mxu0
      %v3799 = vshrl.u32 %v3321, 16
      %v3801 = vrot.slane %v3799, 2
      %v3802 = vshll.u32 %v3321, 16
      %v3804 = vrot.slane %v3802, 3
      %v3805 = vor.u32 %v3801, %v3804
      %3806 = vrot.lane.b32.xlu0 %v3805, 64
      %v3807 = vpop.permute.xlu0 %3806
      %v3809 = vsel %vm1058, %v3629, 0
      %v3812 = vand.u32 %v3807, %v1065
      %3814 = vmatprep.subr.bf16.mxu0 0
      %3815 = vmatpush1.bf16.msra.mxu0 0
      %3816 = vmatprep.subr.bf16.mxu0 0
      %3817 = vmatpush1.bf16.msra.mxu0 0
      %3818 = vmatprep.subr.bf16.mxu0 0
      %3819 = vmatpush1.bf16.msra.mxu0 0
      %3820 = vmatprep.subr.bf16.mxu0 0
      %3821 = vmatpush1.bf16.msra.mxu0 0
      %3822 = vmatprep.subr.bf16.mxu0 0
      %3823 = vmatpush1.bf16.msra.mxu0 0
      %3824 = vmatprep.subr.bf16.mxu0 0
      %3825 = vmatpush1.bf16.msra.mxu0 0
      %3826 = vmatprep.subr.bf16.mxu0 0
      %3827 = vmatpush1.bf16.msra.mxu0 0
      %3828 = vmatprep.subr.bf16.mxu0 0
      %3829 = vmatpush1.bf16.msra.mxu0 %v3812
      %3830 = vmatprep.subr.bf16.mxu0 0
      %3831 = vmatpush2.bf16.msra.mxu0 0
      %3832 = vmatprep.subr.bf16.mxu0 0
      %3833 = vmatpush2.bf16.msra.mxu0 0
      %3834 = vmatprep.subr.bf16.mxu0 0
      %3835 = vmatpush2.bf16.msra.mxu0 0
      %3836 = vmatprep.subr.bf16.mxu0 0
      %3837 = vmatpush2.bf16.msra.mxu0 0
      %3838 = vmatprep.subr.bf16.mxu0 0
      %3839 = vmatpush2.bf16.msra.mxu0 0
      %3840 = vmatprep.subr.bf16.mxu0 0
      %3841 = vmatpush2.bf16.msra.mxu0 0
      %3842 = vmatprep.subr.bf16.mxu0 0
      %3843 = vmatpush2.bf16.msra.mxu0 0
      %3844 = vmatprep.subr.bf16.mxu0 0
      %3845 = vmatpush2.bf16.msra.mxu0 0
      %3846 = vmatprep.mubr.bf16.mxu0 0
      %3847 = vmatmul.mubr.bf16.gmra.mxu0 %v3809
      %v3848 = vpop.f32.mrf.mxu0
      %v3849 = vadd.f32 0.0, %v3848
      %v3850 = vpop.f32.mrf.mxu0
      %v3851 = vpop.f32.mrf.mxu0
      %v3852 = vpop.f32.mrf.mxu0
      %3853 = vdwg.mxu0
      %3854 = vst.msk [vmem:[#allocation2 + $0x5] sm:$0x1f] %vm1256, %v3681
      %3856 = vrot.lane.b32.xlu0 %v3737, 8
      %v3857 = vpop.permute.xlu0 %3856
      %3859 = vst.msk [vmem:[#allocation2 + $0x5] sm:$0x1f] %vm1262, %v3857
      %3861 = vrot.lane.b32.xlu0 %v3793, 16
      %v3862 = vpop.permute.xlu0 %3861
      %3864 = vst.msk [vmem:[#allocation2 + $0x5] sm:$0x1f] %vm1268, %v3862
      %3866 = vrot.lane.b32.xlu0 %v3849, 24
      %v3867 = vpop.permute.xlu0 %3866
      %3869 = vst.msk [vmem:[#allocation2 + $0x5] sm:$0x1f] %vm1274, %v3867
      %v3870 = vpack.c.bf16 %v2757, %v2757
      %v3871 = vpack.c.bf16 %v3282, %v3282
      %v3872 = vpack.c.bf16 %v3285, %v3285
      %v3873 = vpack.c.bf16 %v3288, %v3288
      %v3874 = vpack.c.bf16 %v2767, %v2767
      %v3875 = vpack.c.bf16 %v3296, %v3296
      %v3876 = vpack.c.bf16 %v3299, %v3299
      %v3877 = vpack.c.bf16 %v3302, %v3302
      %v3878 = vpack.c.bf16 %v2777, %v2777
      %v3879 = vpack.c.bf16 %v3310, %v3310
      %v3880 = vpack.c.bf16 %v3313, %v3313
      %v3881 = vpack.c.bf16 %v3316, %v3316
      %v3883 = vrot.slane %v3870, 1
      %v3885 = vrot.slane %v3874, 1
      %3886 = vrot.lane.b32.xlu0 %v3885, 96
      %v3887 = vpop.permute.xlu0 %3886
      %v3889 = vsel %vm808, %v3883, 0
      %v3892 = vsel %vm808, %v3887, 0
      %3894 = vmatprep.subr.bf16.mxu0 0
      %3895 = vmatpush1.bf16.xpose.msra.mxu0 0
      %3896 = vmatprep.subr.bf16.mxu0 0
      %3897 = vmatpush1.bf16.xpose.msra.mxu0 0
      %3898 = vmatprep.subr.bf16.mxu0 0
      %3899 = vmatpush1.bf16.xpose.msra.mxu0 0
      %3900 = vmatprep.subr.bf16.mxu0 0
      %3901 = vmatpush1.bf16.xpose.msra.mxu0 0
      %3902 = vmatprep.subr.bf16.mxu0 0
      %3903 = vmatpush1.bf16.xpose.msra.mxu0 0
      %3904 = vmatprep.subr.bf16.mxu0 0
      %3905 = vmatpush1.bf16.xpose.msra.mxu0 0
      %3906 = vmatprep.subr.bf16.mxu0 0
      %3907 = vmatpush1.bf16.xpose.msra.mxu0 0
      %3908 = vmatprep.subr.bf16.mxu0 0
      %3909 = vmatpush1.bf16.xpose.msra.mxu0 %v3892
      %3910 = vmatprep.subr.bf16.mxu0 0
      %3911 = vmatpush2.bf16.xpose.msra.mxu0 0
      %3912 = vmatprep.subr.bf16.mxu0 0
      %3913 = vmatpush2.bf16.xpose.msra.mxu0 0
      %3914 = vmatprep.subr.bf16.mxu0 0
      %3915 = vmatpush2.bf16.xpose.msra.mxu0 0
      %3916 = vmatprep.subr.bf16.mxu0 0
      %3917 = vmatpush2.bf16.xpose.msra.mxu0 0
      %3918 = vmatprep.subr.bf16.mxu0 0
      %3919 = vmatpush2.bf16.xpose.msra.mxu0 0
      %3920 = vmatprep.subr.bf16.mxu0 0
      %3921 = vmatpush2.bf16.xpose.msra.mxu0 0
      %3922 = vmatprep.subr.bf16.mxu0 0
      %3923 = vmatpush2.bf16.xpose.msra.mxu0 0
      %3924 = vmatprep.subr.bf16.mxu0 0
      %3925 = vmatpush2.bf16.xpose.msra.mxu0 0
      %3926 = vmatprep.mubr.bf16.mxu0 0
      %3927 = vmatmul.mubr.bf16.gmra.mxu0 %v3889
      %v3928 = vpop.f32.mrf.mxu0
      %v3929 = vadd.f32 0.0, %v3928
      %v3930 = vpop.f32.mrf.mxu0
      %v3931 = vpop.f32.mrf.mxu0
      %v3932 = vpop.f32.mrf.mxu0
      %3933 = vdwg.mxu0
      %v3935 = vrot.slane %v3871, 1
      %v3937 = vrot.slane %v3875, 1
      %3938 = vrot.lane.b32.xlu0 %v3937, 96
      %v3939 = vpop.permute.xlu0 %3938
      %v3941 = vsel %vm808, %v3935, 0
      %v3944 = vsel %vm808, %v3939, 0
      %3946 = vmatprep.subr.bf16.mxu0 0
      %3947 = vmatpush1.bf16.xpose.msra.mxu0 0
      %3948 = vmatprep.subr.bf16.mxu0 0
      %3949 = vmatpush1.bf16.xpose.msra.mxu0 0
      %3950 = vmatprep.subr.bf16.mxu0 0
      %3951 = vmatpush1.bf16.xpose.msra.mxu0 0
      %3952 = vmatprep.subr.bf16.mxu0 0
      %3953 = vmatpush1.bf16.xpose.msra.mxu0 0
      %3954 = vmatprep.subr.bf16.mxu0 0
      %3955 = vmatpush1.bf16.xpose.msra.mxu0 0
      %3956 = vmatprep.subr.bf16.mxu0 0
      %3957 = vmatpush1.bf16.xpose.msra.mxu0 0
      %3958 = vmatprep.subr.bf16.mxu0 0
      %3959 = vmatpush1.bf16.xpose.msra.mxu0 0
      %3960 = vmatprep.subr.bf16.mxu0 0
      %3961 = vmatpush1.bf16.xpose.msra.mxu0 %v3944
      %3962 = vmatprep.subr.bf16.mxu0 0
      %3963 = vmatpush2.bf16.xpose.msra.mxu0 0
      %3964 = vmatprep.subr.bf16.mxu0 0
      %3965 = vmatpush2.bf16.xpose.msra.mxu0 0
      %3966 = vmatprep.subr.bf16.mxu0 0
      %3967 = vmatpush2.bf16.xpose.msra.mxu0 0
      %3968 = vmatprep.subr.bf16.mxu0 0
      %3969 = vmatpush2.bf16.xpose.msra.mxu0 0
      %3970 = vmatprep.subr.bf16.mxu0 0
      %3971 = vmatpush2.bf16.xpose.msra.mxu0 0
      %3972 = vmatprep.subr.bf16.mxu0 0
      %3973 = vmatpush2.bf16.xpose.msra.mxu0 0
      %3974 = vmatprep.subr.bf16.mxu0 0
      %3975 = vmatpush2.bf16.xpose.msra.mxu0 0
      %3976 = vmatprep.subr.bf16.mxu0 0
      %3977 = vmatpush2.bf16.xpose.msra.mxu0 0
      %3978 = vmatprep.mubr.bf16.mxu0 0
      %3979 = vmatmul.mubr.bf16.gmra.mxu0 %v3941
      %v3980 = vpop.f32.mrf.mxu0
      %v3981 = vadd.f32 0.0, %v3980
      %v3982 = vpop.f32.mrf.mxu0
      %v3983 = vpop.f32.mrf.mxu0
      %v3984 = vpop.f32.mrf.mxu0
      %3985 = vdwg.mxu0
      %v3987 = vrot.slane %v3872, 1
      %v3989 = vrot.slane %v3876, 1
      %3990 = vrot.lane.b32.xlu0 %v3989, 96
      %v3991 = vpop.permute.xlu0 %3990
      %v3993 = vsel %vm808, %v3987, 0
      %v3996 = vsel %vm808, %v3991, 0
      %3998 = vmatprep.subr.bf16.mxu0 0
      %3999 = vmatpush1.bf16.xpose.msra.mxu0 0
      %4000 = vmatprep.subr.bf16.mxu0 0
      %4001 = vmatpush1.bf16.xpose.msra.mxu0 0
      %4002 = vmatprep.subr.bf16.mxu0 0
      %4003 = vmatpush1.bf16.xpose.msra.mxu0 0
      %4004 = vmatprep.subr.bf16.mxu0 0
      %4005 = vmatpush1.bf16.xpose.msra.mxu0 0
      %4006 = vmatprep.subr.bf16.mxu0 0
      %4007 = vmatpush1.bf16.xpose.msra.mxu0 0
      %4008 = vmatprep.subr.bf16.mxu0 0
      %4009 = vmatpush1.bf16.xpose.msra.mxu0 0
      %4010 = vmatprep.subr.bf16.mxu0 0
      %4011 = vmatpush1.bf16.xpose.msra.mxu0 0
      %4012 = vmatprep.subr.bf16.mxu0 0
      %4013 = vmatpush1.bf16.xpose.msra.mxu0 %v3996
      %4014 = vmatprep.subr.bf16.mxu0 0
      %4015 = vmatpush2.bf16.xpose.msra.mxu0 0
      %4016 = vmatprep.subr.bf16.mxu0 0
      %4017 = vmatpush2.bf16.xpose.msra.mxu0 0
      %4018 = vmatprep.subr.bf16.mxu0 0
      %4019 = vmatpush2.bf16.xpose.msra.mxu0 0
      %4020 = vmatprep.subr.bf16.mxu0 0
      %4021 = vmatpush2.bf16.xpose.msra.mxu0 0
      %4022 = vmatprep.subr.bf16.mxu0 0
      %4023 = vmatpush2.bf16.xpose.msra.mxu0 0
      %4024 = vmatprep.subr.bf16.mxu0 0
      %4025 = vmatpush2.bf16.xpose.msra.mxu0 0
      %4026 = vmatprep.subr.bf16.mxu0 0
      %4027 = vmatpush2.bf16.xpose.msra.mxu0 0
      %4028 = vmatprep.subr.bf16.mxu0 0
      %4029 = vmatpush2.bf16.xpose.msra.mxu0 0
      %4030 = vmatprep.mubr.bf16.mxu0 0
      %4031 = vmatmul.mubr.bf16.gmra.mxu0 %v3993
      %v4032 = vpop.f32.mrf.mxu0
      %v4033 = vadd.f32 0.0, %v4032
      %v4034 = vpop.f32.mrf.mxu0
      %v4035 = vpop.f32.mrf.mxu0
      %v4036 = vpop.f32.mrf.mxu0
      %4037 = vdwg.mxu0
      %v4039 = vrot.slane %v3873, 1
      %v4041 = vrot.slane %v3877, 1
      %4042 = vrot.lane.b32.xlu0 %v4041, 96
      %v4043 = vpop.permute.xlu0 %4042
      %v4045 = vsel %vm808, %v4039, 0
      %v4048 = vsel %vm808, %v4043, 0
      %4050 = vmatprep.subr.bf16.mxu0 0
      %4051 = vmatpush1.bf16.xpose.msra.mxu0 0
      %4052 = vmatprep.subr.bf16.mxu0 0
      %4053 = vmatpush1.bf16.xpose.msra.mxu0 0
      %4054 = vmatprep.subr.bf16.mxu0 0
      %4055 = vmatpush1.bf16.xpose.msra.mxu0 0
      %4056 = vmatprep.subr.bf16.mxu0 0
      %4057 = vmatpush1.bf16.xpose.msra.mxu0 0
      %4058 = vmatprep.subr.bf16.mxu0 0
      %4059 = vmatpush1.bf16.xpose.msra.mxu0 0
      %4060 = vmatprep.subr.bf16.mxu0 0
      %4061 = vmatpush1.bf16.xpose.msra.mxu0 0
      %4062 = vmatprep.subr.bf16.mxu0 0
      %4063 = vmatpush1.bf16.xpose.msra.mxu0 0
      %4064 = vmatprep.subr.bf16.mxu0 0
      %4065 = vmatpush1.bf16.xpose.msra.mxu0 %v4048
      %4066 = vmatprep.subr.bf16.mxu0 0
      %4067 = vmatpush2.bf16.xpose.msra.mxu0 0
      %4068 = vmatprep.subr.bf16.mxu0 0
      %4069 = vmatpush2.bf16.xpose.msra.mxu0 0
      %4070 = vmatprep.subr.bf16.mxu0 0
      %4071 = vmatpush2.bf16.xpose.msra.mxu0 0
      %4072 = vmatprep.subr.bf16.mxu0 0
      %4073 = vmatpush2.bf16.xpose.msra.mxu0 0
      %4074 = vmatprep.subr.bf16.mxu0 0
      %4075 = vmatpush2.bf16.xpose.msra.mxu0 0
      %4076 = vmatprep.subr.bf16.mxu0 0
      %4077 = vmatpush2.bf16.xpose.msra.mxu0 0
      %4078 = vmatprep.subr.bf16.mxu0 0
      %4079 = vmatpush2.bf16.xpose.msra.mxu0 0
      %4080 = vmatprep.subr.bf16.mxu0 0
      %4081 = vmatpush2.bf16.xpose.msra.mxu0 0
      %4082 = vmatprep.mubr.bf16.mxu0 0
      %4083 = vmatmul.mubr.bf16.gmra.mxu0 %v4045
      %v4084 = vpop.f32.mrf.mxu0
      %v4085 = vadd.f32 0.0, %v4084
      %v4086 = vpop.f32.mrf.mxu0
      %v4087 = vpop.f32.mrf.mxu0
      %v4088 = vpop.f32.mrf.mxu0
      %4089 = vdwg.mxu0
      %v4090 = vmul.f32 %v3929, 0.35355338
      %v4091 = vmul.f32 %v3981, 0.35355338
      %v4092 = vmul.f32 %v4033, 0.35355338
      %v4093 = vmul.f32 %v4085, 0.35355338
      %v4094 = vsel %vm1006, %v4090, -inf
      %4095 = vmax.xlane.f32.xlu0 %v4094
      %v4096 = vpop.xlane.xlu0 %4095
      %v4097 = vsel %vm1006, %v4091, -inf
      %4098 = vmax.xlane.f32.xlu0 %v4097
      %v4099 = vpop.xlane.xlu0 %4098
      %v4100 = vsel %vm1006, %v4092, -inf
      %4101 = vmax.xlane.f32.xlu0 %v4100
      %v4102 = vpop.xlane.xlu0 %4101
      %v4103 = vsel %vm1006, %v4093, -inf
      %4104 = vmax.xlane.f32.xlu0 %v4103
      %v4105 = vpop.xlane.xlu0 %4104
      %v4106 = vsub.f32 %v4090, %v4096
      %v4107 = vsub.f32 %v4091, %v4099
      %v4108 = vsub.f32 %v4092, %v4102
      %v4109 = vsub.f32 %v4093, %v4105
      %v4110 = vmul.f32 %v4106, 1.442695
      %v4111 = vpow.pop %v4110
      %v4112 = vmul.f32 %v4107, 1.442695
      %v4113 = vpow.pop %v4112
      %v4114 = vmul.f32 %v4108, 1.442695
      %v4115 = vpow.pop %v4114
      %v4116 = vmul.f32 %v4109, 1.442695
      %v4117 = vpow.pop %v4116
      %v4118 = vsel %vm1006, %v4111, 0.0
      %4119 = vadd.xlane.f32.xlu0 %v4118
      %v4120 = vpop.xlane.xlu0 %4119
      %v4121 = vsel %vm1006, %v4113, 0.0
      %4122 = vadd.xlane.f32.xlu0 %v4121
      %v4123 = vpop.xlane.xlu0 %4122
      %v4124 = vsel %vm1006, %v4115, 0.0
      %4125 = vadd.xlane.f32.xlu0 %v4124
      %v4126 = vpop.xlane.xlu0 %4125
      %v4127 = vsel %vm1006, %v4117, 0.0
      %4128 = vadd.xlane.f32.xlu0 %v4127
      %v4129 = vpop.xlane.xlu0 %4128
      %v4130 = vrcp.pop %v4120
      %v4131 = vrcp.pop %v4123
      %v4132 = vrcp.pop %v4126
      %v4133 = vrcp.pop %v4129
      %v4134 = vmul.f32 %v4111, %v4130
      %v4135 = vmul.f32 %v4113, %v4131
      %v4136 = vmul.f32 %v4115, %v4132
      %v4137 = vmul.f32 %v4117, %v4133
      %v4138 = vpack.c.bf16 %v4134, %v4134
      %v4139 = vpack.c.bf16 %v4135, %v4135
      %v4140 = vpack.c.bf16 %v4136, %v4136
      %v4141 = vpack.c.bf16 %v4137, %v4137
      %v4143 = vrot.slane %v3878, 1
      %4144 = vrot.lane.b32.xlu0 %v4143, 64
      %v4145 = vpop.permute.xlu0 %4144
      %v4147 = vsel %vm1058, %v4138, 0
      %v4150 = vand.u32 %v4145, %v1065
      %4152 = vmatprep.subr.bf16.mxu0 0
      %4153 = vmatpush1.bf16.msra.mxu0 0
      %4154 = vmatprep.subr.bf16.mxu0 0
      %4155 = vmatpush1.bf16.msra.mxu0 0
      %4156 = vmatprep.subr.bf16.mxu0 0
      %4157 = vmatpush1.bf16.msra.mxu0 0
      %4158 = vmatprep.subr.bf16.mxu0 0
      %4159 = vmatpush1.bf16.msra.mxu0 0
      %4160 = vmatprep.subr.bf16.mxu0 0
      %4161 = vmatpush1.bf16.msra.mxu0 0
      %4162 = vmatprep.subr.bf16.mxu0 0
      %4163 = vmatpush1.bf16.msra.mxu0 0
      %4164 = vmatprep.subr.bf16.mxu0 0
      %4165 = vmatpush1.bf16.msra.mxu0 0
      %4166 = vmatprep.subr.bf16.mxu0 0
      %4167 = vmatpush1.bf16.msra.mxu0 %v4150
      %4168 = vmatprep.subr.bf16.mxu0 0
      %4169 = vmatpush2.bf16.msra.mxu0 0
      %4170 = vmatprep.subr.bf16.mxu0 0
      %4171 = vmatpush2.bf16.msra.mxu0 0
      %4172 = vmatprep.subr.bf16.mxu0 0
      %4173 = vmatpush2.bf16.msra.mxu0 0
      %4174 = vmatprep.subr.bf16.mxu0 0
      %4175 = vmatpush2.bf16.msra.mxu0 0
      %4176 = vmatprep.subr.bf16.mxu0 0
      %4177 = vmatpush2.bf16.msra.mxu0 0
      %4178 = vmatprep.subr.bf16.mxu0 0
      %4179 = vmatpush2.bf16.msra.mxu0 0
      %4180 = vmatprep.subr.bf16.mxu0 0
      %4181 = vmatpush2.bf16.msra.mxu0 0
      %4182 = vmatprep.subr.bf16.mxu0 0
      %4183 = vmatpush2.bf16.msra.mxu0 0
      %4184 = vmatprep.mubr.bf16.mxu0 0
      %4185 = vmatmul.mubr.bf16.gmra.mxu0 %v4147
      %v4186 = vpop.f32.mrf.mxu0
      %v4187 = vadd.f32 0.0, %v4186
      %v4188 = vpop.f32.mrf.mxu0
      %v4189 = vpop.f32.mrf.mxu0
      %v4190 = vpop.f32.mrf.mxu0
      %4191 = vdwg.mxu0
      %v4193 = vrot.slane %v3879, 1
      %4194 = vrot.lane.b32.xlu0 %v4193, 64
      %v4195 = vpop.permute.xlu0 %4194
      %v4197 = vsel %vm1058, %v4139, 0
      %v4200 = vand.u32 %v4195, %v1065
      %4202 = vmatprep.subr.bf16.mxu0 0
      %4203 = vmatpush1.bf16.msra.mxu0 0
      %4204 = vmatprep.subr.bf16.mxu0 0
      %4205 = vmatpush1.bf16.msra.mxu0 0
      %4206 = vmatprep.subr.bf16.mxu0 0
      %4207 = vmatpush1.bf16.msra.mxu0 0
      %4208 = vmatprep.subr.bf16.mxu0 0
      %4209 = vmatpush1.bf16.msra.mxu0 0
      %4210 = vmatprep.subr.bf16.mxu0 0
      %4211 = vmatpush1.bf16.msra.mxu0 0
      %4212 = vmatprep.subr.bf16.mxu0 0
      %4213 = vmatpush1.bf16.msra.mxu0 0
      %4214 = vmatprep.subr.bf16.mxu0 0
      %4215 = vmatpush1.bf16.msra.mxu0 0
      %4216 = vmatprep.subr.bf16.mxu0 0
      %4217 = vmatpush1.bf16.msra.mxu0 %v4200
      %4218 = vmatprep.subr.bf16.mxu0 0
      %4219 = vmatpush2.bf16.msra.mxu0 0
      %4220 = vmatprep.subr.bf16.mxu0 0
      %4221 = vmatpush2.bf16.msra.mxu0 0
      %4222 = vmatprep.subr.bf16.mxu0 0
      %4223 = vmatpush2.bf16.msra.mxu0 0
      %4224 = vmatprep.subr.bf16.mxu0 0
      %4225 = vmatpush2.bf16.msra.mxu0 0
      %4226 = vmatprep.subr.bf16.mxu0 0
      %4227 = vmatpush2.bf16.msra.mxu0 0
      %4228 = vmatprep.subr.bf16.mxu0 0
      %4229 = vmatpush2.bf16.msra.mxu0 0
      %4230 = vmatprep.subr.bf16.mxu0 0
      %4231 = vmatpush2.bf16.msra.mxu0 0
      %4232 = vmatprep.subr.bf16.mxu0 0
      %4233 = vmatpush2.bf16.msra.mxu0 0
      %4234 = vmatprep.mubr.bf16.mxu0 0
      %4235 = vmatmul.mubr.bf16.gmra.mxu0 %v4197
      %v4236 = vpop.f32.mrf.mxu0
      %v4237 = vadd.f32 0.0, %v4236
      %v4238 = vpop.f32.mrf.mxu0
      %v4239 = vpop.f32.mrf.mxu0
      %v4240 = vpop.f32.mrf.mxu0
      %4241 = vdwg.mxu0
      %v4243 = vrot.slane %v3880, 1
      %4244 = vrot.lane.b32.xlu0 %v4243, 64
      %v4245 = vpop.permute.xlu0 %4244
      %v4247 = vsel %vm1058, %v4140, 0
      %v4250 = vand.u32 %v4245, %v1065
      %4252 = vmatprep.subr.bf16.mxu0 0
      %4253 = vmatpush1.bf16.msra.mxu0 0
      %4254 = vmatprep.subr.bf16.mxu0 0
      %4255 = vmatpush1.bf16.msra.mxu0 0
      %4256 = vmatprep.subr.bf16.mxu0 0
      %4257 = vmatpush1.bf16.msra.mxu0 0
      %4258 = vmatprep.subr.bf16.mxu0 0
      %4259 = vmatpush1.bf16.msra.mxu0 0
      %4260 = vmatprep.subr.bf16.mxu0 0
      %4261 = vmatpush1.bf16.msra.mxu0 0
      %4262 = vmatprep.subr.bf16.mxu0 0
      %4263 = vmatpush1.bf16.msra.mxu0 0
      %4264 = vmatprep.subr.bf16.mxu0 0
      %4265 = vmatpush1.bf16.msra.mxu0 0
      %4266 = vmatprep.subr.bf16.mxu0 0
      %4267 = vmatpush1.bf16.msra.mxu0 %v4250
      %4268 = vmatprep.subr.bf16.mxu0 0
      %4269 = vmatpush2.bf16.msra.mxu0 0
      %4270 = vmatprep.subr.bf16.mxu0 0
      %4271 = vmatpush2.bf16.msra.mxu0 0
      %4272 = vmatprep.subr.bf16.mxu0 0
      %4273 = vmatpush2.bf16.msra.mxu0 0
      %4274 = vmatprep.subr.bf16.mxu0 0
      %4275 = vmatpush2.bf16.msra.mxu0 0
      %4276 = vmatprep.subr.bf16.mxu0 0
      %4277 = vmatpush2.bf16.msra.mxu0 0
      %4278 = vmatprep.subr.bf16.mxu0 0
      %4279 = vmatpush2.bf16.msra.mxu0 0
      %4280 = vmatprep.subr.bf16.mxu0 0
      %4281 = vmatpush2.bf16.msra.mxu0 0
      %4282 = vmatprep.subr.bf16.mxu0 0
      %4283 = vmatpush2.bf16.msra.mxu0 0
      %4284 = vmatprep.mubr.bf16.mxu0 0
      %4285 = vmatmul.mubr.bf16.gmra.mxu0 %v4247
      %v4286 = vpop.f32.mrf.mxu0
      %v4287 = vadd.f32 0.0, %v4286
      %v4288 = vpop.f32.mrf.mxu0
      %v4289 = vpop.f32.mrf.mxu0
      %v4290 = vpop.f32.mrf.mxu0
      %4291 = vdwg.mxu0
      %v4293 = vrot.slane %v3881, 1
      %4294 = vrot.lane.b32.xlu0 %v4293, 64
      %v4295 = vpop.permute.xlu0 %4294
      %v4297 = vsel %vm1058, %v4141, 0
      %v4300 = vand.u32 %v4295, %v1065
      %4302 = vmatprep.subr.bf16.mxu0 0
      %4303 = vmatpush1.bf16.msra.mxu0 0
      %4304 = vmatprep.subr.bf16.mxu0 0
      %4305 = vmatpush1.bf16.msra.mxu0 0
      %4306 = vmatprep.subr.bf16.mxu0 0
      %4307 = vmatpush1.bf16.msra.mxu0 0
      %4308 = vmatprep.subr.bf16.mxu0 0
      %4309 = vmatpush1.bf16.msra.mxu0 0
      %4310 = vmatprep.subr.bf16.mxu0 0
      %4311 = vmatpush1.bf16.msra.mxu0 0
      %4312 = vmatprep.subr.bf16.mxu0 0
      %4313 = vmatpush1.bf16.msra.mxu0 0
      %4314 = vmatprep.subr.bf16.mxu0 0
      %4315 = vmatpush1.bf16.msra.mxu0 0
      %4316 = vmatprep.subr.bf16.mxu0 0
      %4317 = vmatpush1.bf16.msra.mxu0 %v4300
      %4318 = vmatprep.subr.bf16.mxu0 0
      %4319 = vmatpush2.bf16.msra.mxu0 0
      %4320 = vmatprep.subr.bf16.mxu0 0
      %4321 = vmatpush2.bf16.msra.mxu0 0
      %4322 = vmatprep.subr.bf16.mxu0 0
      %4323 = vmatpush2.bf16.msra.mxu0 0
      %4324 = vmatprep.subr.bf16.mxu0 0
      %4325 = vmatpush2.bf16.msra.mxu0 0
      %4326 = vmatprep.subr.bf16.mxu0 0
      %4327 = vmatpush2.bf16.msra.mxu0 0
      %4328 = vmatprep.subr.bf16.mxu0 0
      %4329 = vmatpush2.bf16.msra.mxu0 0
      %4330 = vmatprep.subr.bf16.mxu0 0
      %4331 = vmatpush2.bf16.msra.mxu0 0
      %4332 = vmatprep.subr.bf16.mxu0 0
      %4333 = vmatpush2.bf16.msra.mxu0 0
      %4334 = vmatprep.mubr.bf16.mxu0 0
      %4335 = vmatmul.mubr.bf16.gmra.mxu0 %v4297
      %v4336 = vpop.f32.mrf.mxu0
      %v4337 = vadd.f32 0.0, %v4336
      %v4338 = vpop.f32.mrf.mxu0
      %v4339 = vpop.f32.mrf.mxu0
      %v4340 = vpop.f32.mrf.mxu0
      %4341 = vdwg.mxu0
      %4342 = vst.msk [vmem:[#allocation2 + $0xa] sm:$0x1f] %vm1256, %v4187
      %4344 = vrot.lane.b32.xlu0 %v4237, 8
      %v4345 = vpop.permute.xlu0 %4344
      %4347 = vst.msk [vmem:[#allocation2 + $0xa] sm:$0x1f] %vm1262, %v4345
      %4349 = vrot.lane.b32.xlu0 %v4287, 16
      %v4350 = vpop.permute.xlu0 %4349
      %4352 = vst.msk [vmem:[#allocation2 + $0xa] sm:$0x1f] %vm1268, %v4350
      %4354 = vrot.lane.b32.xlu0 %v4337, 24
      %v4355 = vpop.permute.xlu0 %4354
      %4357 = vst.msk [vmem:[#allocation2 + $0xa] sm:$0x1f] %vm1274, %v4355
      %v4358 = vld [vmem:[#allocation2] sm:$0xff]
      %v4359 = vld [vmem:[#allocation2 + $0x8] sm:$0x7f]
      %v4360 = vpack.c.bf16 %v4359, %v4358
      %v4361 = vlaneseq
      %v4362 = vshrl.u32 %v4361, 7
      %v4363 = vsub.s32 5, %v4362
      %v4364 = vrot.slane %v2645, %v4363
      %v4369 = vunpack.c.l.b16 %v2691
      %v4370 = vunpack.c.l.b16 %v2692
      %v4371 = vunpack.c.l.b16 %v2693
      %v4372 = vunpack.c.l.b16 %v2694
      %v4373 = vpack.c.b16 %v4370, %v4369
      %v4374 = vpack.c.b16 %v4372, %v4371
      %v4378 = vsel %vm631, %v4360, 0
      %4380 = vmatprep.subr.bf16.mxu0 0
      %4381 = vmatpush1.bf16.msra.mxu0 0
      %4382 = vmatprep.subr.bf16.mxu0 0
      %4383 = vmatpush1.bf16.msra.mxu0 0
      %4384 = vmatprep.subr.bf16.mxu0 0
      %4385 = vmatpush1.bf16.msra.mxu0 0
      %4386 = vmatprep.subr.bf16.mxu0 0
      %4387 = vmatpush1.bf16.msra.mxu0 0
      %4388 = vmatprep.subr.bf16.mxu0 0
      %4389 = vmatpush1.bf16.msra.mxu0 0
      %4390 = vmatprep.subr.bf16.mxu0 0
      %4391 = vmatpush1.bf16.msra.mxu0 0
      %4392 = vmatprep.subr.bf16.mxu0 0
      %4393 = vmatpush1.bf16.msra.mxu0 %v4374
      %4394 = vmatprep.subr.bf16.mxu0 0
      %4395 = vmatpush1.bf16.msra.mxu0 %v4373
      %4396 = vmatprep.subr.bf16.mxu0 0
      %4397 = vmatpush2.bf16.msra.mxu0 0
      %4398 = vmatprep.subr.bf16.mxu0 0
      %4399 = vmatpush2.bf16.msra.mxu0 0
      %4400 = vmatprep.subr.bf16.mxu0 0
      %4401 = vmatpush2.bf16.msra.mxu0 0
      %4402 = vmatprep.subr.bf16.mxu0 0
      %4403 = vmatpush2.bf16.msra.mxu0 0
      %4404 = vmatprep.subr.bf16.mxu0 0
      %4405 = vmatpush2.bf16.msra.mxu0 0
      %4406 = vmatprep.subr.bf16.mxu0 0
      %4407 = vmatpush2.bf16.msra.mxu0 0
      %4408 = vmatprep.subr.bf16.mxu0 0
      %4409 = vmatpush2.bf16.msra.mxu0 0
      %4410 = vmatprep.subr.bf16.mxu0 0
      %4411 = vmatpush2.bf16.msra.mxu0 0
      %4412 = vmatprep.mubr.bf16.mxu0 0
      %4413 = vmatmul.mubr.bf16.gmra.mxu0 %v4378
      %v4414 = vpop.f32.mrf.mxu0
      %v4415 = vadd.f32 %v4364, %v4414
      %v4416 = vpop.f32.mrf.mxu0
      %v4417 = vpop.f32.mrf.mxu0
      %v4418 = vadd.f32 %v4364, %v4417
      %v4419 = vpop.f32.mrf.mxu0
      %4420 = vdwg.mxu0
      %v4421 = vadd.f32 %v2642, %v4415
      %v4422 = vadd.f32 %v2643, %v4418
      %v4423 = vsel %vm631, %v4421, 0.0
      %4424 = vadd.xlane.f32.xlu0 %v4423
      %v4425 = vpop.xlane.xlu0 %4424
      %v4426 = vsel %vm635, %v4422, 0.0
      %4427 = vadd.xlane.f32.xlu0 %v4426
      %v4428 = vpop.xlane.xlu0 %4427
      %v4429 = vmul.f32 %v4425, %v639
      %v4430 = vmul.f32 %v4428, %v639
      %v4431 = vsub.f32 %v4421, %v4429
      %v4432 = vsub.f32 %v4422, %v4430
      %v4433 = vmul.f32 %v4431, %v4431
      %v4434 = vmul.f32 %v4432, %v4432
      %v4435 = vsel %vm631, %v4433, 0.0
      %4436 = vadd.xlane.f32.xlu0 %v4435
      %v4437 = vpop.xlane.xlu0 %4436
      %v4438 = vsel %vm635, %v4434, 0.0
      %4439 = vadd.xlane.f32.xlu0 %v4438
      %v4440 = vpop.xlane.xlu0 %4439
      %v4441 = vmul.f32 %v4437, %v639
      %v4442 = vmul.f32 %v4440, %v639
      %v4443 = vadd.f32 %v4441, 1e-12
      %v4444 = vadd.f32 %v4442, 1e-12
      %v4445 = vrsqrt.pop %v4443
      %v4446 = vrsqrt.pop %v4444
      %v4447 = vmul.f32 %v4431, %v4445
      %v4448 = vmul.f32 %v4432, %v4446
      %v4449 = vlaneseq
      %v4450 = vshrl.u32 %v4449, 7
      %v4451 = vsub.s32 6, %v4450
      %v4452 = vrot.slane %v2645, %v4451
      %v4453 = vmul.f32 %v4447, %v4452
      %v4454 = vmul.f32 %v4448, %v4452
      %v4455 = vlaneseq
      %v4456 = vshrl.u32 %v4455, 7
      %v4457 = vsub.s32 7, %v4456
      %v4458 = vrot.slane %v2645, %v4457
      %v4459 = vadd.f32 %v4453, %v4458
      %v4460 = vadd.f32 %v4454, %v4458
      %v4461 = vpack.c.bf16 %v4460, %v4459
      %s4462 = scalar_lea.vmem %s8, 16
      %v4463 = vld [vmem:[%s4462] sm:$0xf]
      %v4464 = vld [vmem:[%s4462 + $0x4] sm:$0xf]
      %v4465 = vld [vmem:[%s4462 + $0x8] sm:$0xf]
      %v4466 = vld [vmem:[%s4462 + $0xc] sm:$0xf]
      %v4467 = vlaneseq
      %v4468 = vshrl.u32 %v4467, 7
      %v4469 = vsub.s32 1, %v4468
      %v4470 = vrot.slane %v476, %v4469
      %v4475 = vunpack.c.l.b16 %v4463
      %v4476 = vunpack.c.l.b16 %v4464
      %v4477 = vunpack.c.l.b16 %v4465
      %v4478 = vunpack.c.l.b16 %v4466
      %v4479 = vpack.c.b16 %v4476, %v4475
      %v4480 = vpack.c.b16 %v4478, %v4477
      %v4484 = vsel %vm631, %v4461, 0
      %4486 = vmatprep.subr.bf16.mxu0 0
      %4487 = vmatpush1.bf16.msra.mxu0 0
      %4488 = vmatprep.subr.bf16.mxu0 0
      %4489 = vmatpush1.bf16.msra.mxu0 0
      %4490 = vmatprep.subr.bf16.mxu0 0
      %4491 = vmatpush1.bf16.msra.mxu0 0
      %4492 = vmatprep.subr.bf16.mxu0 0
      %4493 = vmatpush1.bf16.msra.mxu0 0
      %4494 = vmatprep.subr.bf16.mxu0 0
      %4495 = vmatpush1.bf16.msra.mxu0 0
      %4496 = vmatprep.subr.bf16.mxu0 0
      %4497 = vmatpush1.bf16.msra.mxu0 0
      %4498 = vmatprep.subr.bf16.mxu0 0
      %4499 = vmatpush1.bf16.msra.mxu0 %v4480
      %4500 = vmatprep.subr.bf16.mxu0 0
      %4501 = vmatpush1.bf16.msra.mxu0 %v4479
      %4502 = vmatprep.subr.bf16.mxu0 0
      %4503 = vmatpush2.bf16.msra.mxu0 0
      %4504 = vmatprep.subr.bf16.mxu0 0
      %4505 = vmatpush2.bf16.msra.mxu0 0
      %4506 = vmatprep.subr.bf16.mxu0 0
      %4507 = vmatpush2.bf16.msra.mxu0 0
      %4508 = vmatprep.subr.bf16.mxu0 0
      %4509 = vmatpush2.bf16.msra.mxu0 0
      %4510 = vmatprep.subr.bf16.mxu0 0
      %4511 = vmatpush2.bf16.msra.mxu0 0
      %4512 = vmatprep.subr.bf16.mxu0 0
      %4513 = vmatpush2.bf16.msra.mxu0 0
      %4514 = vmatprep.subr.bf16.mxu0 0
      %4515 = vmatpush2.bf16.msra.mxu0 0
      %4516 = vmatprep.subr.bf16.mxu0 0
      %4517 = vmatpush2.bf16.msra.mxu0 0
      %4518 = vmatprep.mubr.bf16.mxu0 0
      %4519 = vmatmul.mubr.bf16.gmra.mxu0 %v4484
      %v4520 = vpop.f32.mrf.mxu0
      %v4521 = vadd.f32 %v4470, %v4520
      %v4522 = vpop.f32.mrf.mxu0
      %v4523 = vpop.f32.mrf.mxu0
      %v4524 = vadd.f32 %v4470, %v4523
      %v4525 = vpop.f32.mrf.mxu0
      %4526 = vdwg.mxu0
      %v4527 = vmul.f32 %v4521, 0.5
      %v4528 = vmul.f32 %v4524, 0.5
      %v4529 = vmul.f32 %v4521, 0.70710677
      %v4530 = vmul.f32 %v4524, 0.70710677
      %v4531 = verf.f32.pop %v4529
      %v4532 = verf.f32.pop %v4530
      %v4533 = vadd.f32 %v4531, 1.0
      %v4534 = vadd.f32 %v4532, 1.0
      %v4535 = vmul.f32 %v4527, %v4533
      %v4536 = vmul.f32 %v4528, %v4534
      %v4537 = vpack.c.bf16 %v4536, %v4535
      %s4538 = scalar_lea.vmem %s9, 64
      %v4539 = vld [vmem:[%s4538] sm:$0xf]
      %v4540 = vld [vmem:[%s4538 + $0x4] sm:$0xf]
      %v4541 = vld [vmem:[%s4538 + $0x8] sm:$0xf]
      %v4542 = vld [vmem:[%s4538 + $0xc] sm:$0xf]
      %v4543 = vld [vmem:[%s4538 + $0x10] sm:$0xf]
      %v4544 = vld [vmem:[%s4538 + $0x14] sm:$0xf]
      %v4545 = vld [vmem:[%s4538 + $0x18] sm:$0xf]
      %v4546 = vld [vmem:[%s4538 + $0x1c] sm:$0xf]
      %v4547 = vld [vmem:[%s4538 + $0x20] sm:$0xf]
      %v4548 = vld [vmem:[%s4538 + $0x24] sm:$0xf]
      %v4549 = vld [vmem:[%s4538 + $0x28] sm:$0xf]
      %v4550 = vld [vmem:[%s4538 + $0x2c] sm:$0xf]
      %v4551 = vld [vmem:[%s4538 + $0x30] sm:$0xf]
      %v4552 = vld [vmem:[%s4538 + $0x34] sm:$0xf]
      %v4553 = vld [vmem:[%s4538 + $0x38] sm:$0xf]
      %v4554 = vld [vmem:[%s4538 + $0x3c] sm:$0xf]
      %v4555 = vlaneseq
      %v4556 = vshrl.u32 %v4555, 7
      %v4557 = vsub.s32 0, %v4556
      %v4558 = vrot.slane %v2646, %v4557
      %v4575 = vunpack.c.l.b16 %v4539
      %v4576 = vunpack.c.l.b16 %v4540
      %v4577 = vunpack.c.l.b16 %v4541
      %v4578 = vunpack.c.l.b16 %v4542
      %v4579 = vunpack.c.l.b16 %v4543
      %v4580 = vunpack.c.l.b16 %v4544
      %v4581 = vunpack.c.l.b16 %v4545
      %v4582 = vunpack.c.l.b16 %v4546
      %v4583 = vunpack.c.l.b16 %v4547
      %v4584 = vunpack.c.l.b16 %v4548
      %v4585 = vunpack.c.l.b16 %v4549
      %v4586 = vunpack.c.l.b16 %v4550
      %v4587 = vunpack.c.l.b16 %v4551
      %v4588 = vunpack.c.l.b16 %v4552
      %v4589 = vunpack.c.l.b16 %v4553
      %v4590 = vunpack.c.l.b16 %v4554
      %v4591 = vpack.c.b16 %v4576, %v4575
      %v4592 = vpack.c.b16 %v4578, %v4577
      %v4593 = vpack.c.b16 %v4580, %v4579
      %v4594 = vpack.c.b16 %v4582, %v4581
      %v4595 = vpack.c.b16 %v4584, %v4583
      %v4596 = vpack.c.b16 %v4586, %v4585
      %v4597 = vpack.c.b16 %v4588, %v4587
      %v4598 = vpack.c.b16 %v4590, %v4589
      %4607 = vmatprep.subr.bf16.mxu0 0
      %4608 = vmatpush1.bf16.msra.mxu0 %v4598
      %4609 = vmatprep.subr.bf16.mxu0 0
      %4610 = vmatpush1.bf16.msra.mxu0 %v4597
      %4611 = vmatprep.subr.bf16.mxu0 0
      %4612 = vmatpush1.bf16.msra.mxu0 %v4596
      %4613 = vmatprep.subr.bf16.mxu0 0
      %4614 = vmatpush1.bf16.msra.mxu0 %v4595
      %4615 = vmatprep.subr.bf16.mxu0 0
      %4616 = vmatpush1.bf16.msra.mxu0 %v4594
      %4617 = vmatprep.subr.bf16.mxu0 0
      %4618 = vmatpush1.bf16.msra.mxu0 %v4593
      %4619 = vmatprep.subr.bf16.mxu0 0
      %4620 = vmatpush1.bf16.msra.mxu0 %v4592
      %4621 = vmatprep.subr.bf16.mxu0 0
      %4622 = vmatpush1.bf16.msra.mxu0 %v4591
      %4623 = vmatprep.subr.bf16.mxu0 0
      %4624 = vmatpush2.bf16.msra.mxu0 0
      %4625 = vmatprep.subr.bf16.mxu0 0
      %4626 = vmatpush2.bf16.msra.mxu0 0
      %4627 = vmatprep.subr.bf16.mxu0 0
      %4628 = vmatpush2.bf16.msra.mxu0 0
      %4629 = vmatprep.subr.bf16.mxu0 0
      %4630 = vmatpush2.bf16.msra.mxu0 0
      %4631 = vmatprep.subr.bf16.mxu0 0
      %4632 = vmatpush2.bf16.msra.mxu0 0
      %4633 = vmatprep.subr.bf16.mxu0 0
      %4634 = vmatpush2.bf16.msra.mxu0 0
      %4635 = vmatprep.subr.bf16.mxu0 0
      %4636 = vmatpush2.bf16.msra.mxu0 0
      %4637 = vmatprep.subr.bf16.mxu0 0
      %4638 = vmatpush2.bf16.msra.mxu0 0
      %4639 = vmatprep.mubr.bf16.mxu0 0
      %4640 = vmatmul.mubr.bf16.gmra.mxu0 %v4537
      %v4641 = vpop.f32.mrf.mxu0
      %v4642 = vadd.f32 %v4558, %v4641
      %v4643 = vpop.f32.mrf.mxu0
      %v4644 = vpop.f32.mrf.mxu0
      %v4645 = vadd.f32 %v4558, %v4644
      %v4646 = vpop.f32.mrf.mxu0
      %4647 = vdwg.mxu0
      %v4648 = vadd.f32 %v4421, %v4642
      %v4649 = vadd.f32 %v4422, %v4645
      %v4650 = vsel %vm631, %v4648, 0.0
      %4651 = vadd.xlane.f32.xlu0 %v4650
      %v4652 = vpop.xlane.xlu0 %4651
      %v4653 = vsel %vm635, %v4649, 0.0
      %4654 = vadd.xlane.f32.xlu0 %v4653
      %v4655 = vpop.xlane.xlu0 %4654
      %v4656 = vmul.f32 %v4652, %v639
      %v4657 = vmul.f32 %v4655, %v639
      %v4658 = vsub.f32 %v4648, %v4656
      %v4659 = vsub.f32 %v4649, %v4657
      %v4660 = vmul.f32 %v4658, %v4658
      %v4661 = vmul.f32 %v4659, %v4659
      %v4662 = vsel %vm631, %v4660, 0.0
      %4663 = vadd.xlane.f32.xlu0 %v4662
      %v4664 = vpop.xlane.xlu0 %4663
      %v4665 = vsel %vm635, %v4661, 0.0
      %4666 = vadd.xlane.f32.xlu0 %v4665
      %v4667 = vpop.xlane.xlu0 %4666
      %v4668 = vmul.f32 %v4664, %v639
      %v4669 = vmul.f32 %v4667, %v639
      %v4670 = vadd.f32 %v4668, 1e-12
      %v4671 = vadd.f32 %v4669, 1e-12
      %v4672 = vrsqrt.pop %v4670
      %v4673 = vrsqrt.pop %v4671
      %v4674 = vmul.f32 %v4658, %v4672
      %v4675 = vmul.f32 %v4659, %v4673
      %v4676 = vlaneseq
      %v4677 = vshrl.u32 %v4676, 7
      %v4678 = vsub.s32 0, %v4677
      %v4679 = vrot.slane %v474, %v4678
      %v4680 = vmul.f32 %v4674, %v4679
      %v4681 = vmul.f32 %v4675, %v4679
      %v4682 = vlaneseq
      %v4683 = vshrl.u32 %v4682, 7
      %v4684 = vsub.s32 1, %v4683
      %v4685 = vrot.slane %v474, %v4684
      %v4686 = vadd.f32 %v4680, %v4685
      %v4687 = vadd.f32 %v4681, %v4685
      %v4688 = vadd.f32 %v4686, %v472
      %v4689 = vadd.f32 %v4687, %v473
      %v4690 = vld [vmem:[%s10] sm:$0xf]
      %v4691 = vld [vmem:[%s10 + $0x4] sm:$0xf]
      %v4692 = vld [vmem:[%s10 + $0x8] sm:$0xf]
      %v4693 = vld [vmem:[%s10 + $0xc] sm:$0xf]
      %v4694 = vld [vmem:[%s11] sm:$0xf]
      %v4695 = vld [vmem:[%s11 + $0x4] sm:$0xf]
      %v4696 = vld [vmem:[%s11 + $0x8] sm:$0xf]
      %v4697 = vld [vmem:[%s11 + $0xc] sm:$0xf]
      %v4698 = vpack.c.bf16 %v4689, %v4688
      %v4703 = vunpack.c.l.b16 %v4690
      %v4704 = vunpack.c.l.b16 %v4691
      %v4705 = vunpack.c.l.b16 %v4692
      %v4706 = vunpack.c.l.b16 %v4693
      %v4707 = vpack.c.b16 %v4704, %v4703
      %v4708 = vpack.c.b16 %v4706, %v4705
      %v4712 = vsel %vm631, %v4698, 0
      %4714 = vmatprep.subr.bf16.mxu0 0
      %4715 = vmatpush1.bf16.msra.mxu0 0
      %4716 = vmatprep.subr.bf16.mxu0 0
      %4717 = vmatpush1.bf16.msra.mxu0 0
      %4718 = vmatprep.subr.bf16.mxu0 0
      %4719 = vmatpush1.bf16.msra.mxu0 0
      %4720 = vmatprep.subr.bf16.mxu0 0
      %4721 = vmatpush1.bf16.msra.mxu0 0
      %4722 = vmatprep.subr.bf16.mxu0 0
      %4723 = vmatpush1.bf16.msra.mxu0 0
      %4724 = vmatprep.subr.bf16.mxu0 0
      %4725 = vmatpush1.bf16.msra.mxu0 0
      %4726 = vmatprep.subr.bf16.mxu0 0
      %4727 = vmatpush1.bf16.msra.mxu0 %v4708
      %4728 = vmatprep.subr.bf16.mxu0 0
      %4729 = vmatpush1.bf16.msra.mxu0 %v4707
      %4730 = vmatprep.subr.bf16.mxu0 0
      %4731 = vmatpush2.bf16.msra.mxu0 0
      %4732 = vmatprep.subr.bf16.mxu0 0
      %4733 = vmatpush2.bf16.msra.mxu0 0
      %4734 = vmatprep.subr.bf16.mxu0 0
      %4735 = vmatpush2.bf16.msra.mxu0 0
      %4736 = vmatprep.subr.bf16.mxu0 0
      %4737 = vmatpush2.bf16.msra.mxu0 0
      %4738 = vmatprep.subr.bf16.mxu0 0
      %4739 = vmatpush2.bf16.msra.mxu0 0
      %4740 = vmatprep.subr.bf16.mxu0 0
      %4741 = vmatpush2.bf16.msra.mxu0 0
      %4742 = vmatprep.subr.bf16.mxu0 0
      %4743 = vmatpush2.bf16.msra.mxu0 0
      %4744 = vmatprep.subr.bf16.mxu0 0
      %4745 = vmatpush2.bf16.msra.mxu0 0
      %4746 = vmatprep.mubr.bf16.mxu0 0
      %4747 = vmatmul.mubr.bf16.gmra.mxu0 %v4712
      %v4748 = vpop.f32.mrf.mxu0
      %v4749 = vadd.f32 0.0, %v4748
      %v4750 = vpop.f32.mrf.mxu0
      %v4751 = vpop.f32.mrf.mxu0
      %v4752 = vadd.f32 0.0, %v4751
      %v4753 = vpop.f32.mrf.mxu0
      %4754 = vdwg.mxu0
      %v4755 = vlaneseq
      %v4756 = vshrl.u32 %v4755, 7
      %v4757 = vsub.s32 2, %v4756
      %v4758 = vrot.slane %v474, %v4757
      %v4759 = vadd.f32 %v4749, %v4758
      %v4760 = vadd.f32 %v4752, %v4758
      %v4761 = vlaneseq
      %v4762 = vshrl.u32 %v4761, 7
      %v4763 = vsub.s32 3, %v4762
      %v4764 = vrot.slane %v474, %v4763
      %4766 = vrot.lane.b32.xlu0 %v4764, 32
      %v4767 = vpop.permute.xlu0 %4766
      %v4769 = vadd.f32 %v4749, %v4767
      %v4770 = vadd.f32 %v4752, %v4767
      %v4771 = vlaneseq
      %v4772 = vshrl.u32 %v4771, 7
      %v4773 = vsub.s32 4, %v4772
      %v4774 = vrot.slane %v474, %v4773
      %4776 = vrot.lane.b32.xlu0 %v4774, 64
      %v4777 = vpop.permute.xlu0 %4776
      %v4779 = vadd.f32 %v4749, %v4777
      %v4780 = vadd.f32 %v4752, %v4777
      %4783 = vrot.lane.b32.xlu0 %v4759, 120
      %v4784 = vpop.permute.xlu0 %4783
      %4785 = vrot.lane.b32.xlu0 %v4760, 120
      %v4786 = vpop.permute.xlu0 %4785
      %4789 = vrot.lane.b32.xlu0 %v4759, 112
      %v4790 = vpop.permute.xlu0 %4789
      %4791 = vrot.lane.b32.xlu0 %v4760, 112
      %v4792 = vpop.permute.xlu0 %4791
      %4795 = vrot.lane.b32.xlu0 %v4759, 104
      %v4796 = vpop.permute.xlu0 %4795
      %4797 = vrot.lane.b32.xlu0 %v4760, 104
      %v4798 = vpop.permute.xlu0 %4797
      %v4801 = vpack.c.bf16 %v4760, %v4759
      %v4802 = vpack.c.bf16 %v4786, %v4784
      %v4803 = vpack.c.bf16 %v4792, %v4790
      %v4804 = vpack.c.bf16 %v4798, %v4796
      %4807 = vrot.lane.b32.xlu0 %v4769, 120
      %v4808 = vpop.permute.xlu0 %4807
      %4809 = vrot.lane.b32.xlu0 %v4770, 120
      %v4810 = vpop.permute.xlu0 %4809
      %4813 = vrot.lane.b32.xlu0 %v4769, 112
      %v4814 = vpop.permute.xlu0 %4813
      %4815 = vrot.lane.b32.xlu0 %v4770, 112
      %v4816 = vpop.permute.xlu0 %4815
      %4819 = vrot.lane.b32.xlu0 %v4769, 104
      %v4820 = vpop.permute.xlu0 %4819
      %4821 = vrot.lane.b32.xlu0 %v4770, 104
      %v4822 = vpop.permute.xlu0 %4821
      %v4825 = vpack.c.bf16 %v4770, %v4769
      %v4826 = vpack.c.bf16 %v4810, %v4808
      %v4827 = vpack.c.bf16 %v4816, %v4814
      %v4828 = vpack.c.bf16 %v4822, %v4820
      %4831 = vrot.lane.b32.xlu0 %v4779, 120
      %v4832 = vpop.permute.xlu0 %4831
      %4833 = vrot.lane.b32.xlu0 %v4780, 120
      %v4834 = vpop.permute.xlu0 %4833
      %4837 = vrot.lane.b32.xlu0 %v4779, 112
      %v4838 = vpop.permute.xlu0 %4837
      %4839 = vrot.lane.b32.xlu0 %v4780, 112
      %v4840 = vpop.permute.xlu0 %4839
      %4843 = vrot.lane.b32.xlu0 %v4779, 104
      %v4844 = vpop.permute.xlu0 %4843
      %4845 = vrot.lane.b32.xlu0 %v4780, 104
      %v4846 = vpop.permute.xlu0 %4845
      %v4849 = vpack.c.bf16 %v4780, %v4779
      %v4850 = vpack.c.bf16 %v4834, %v4832
      %v4851 = vpack.c.bf16 %v4840, %v4838
      %v4852 = vpack.c.bf16 %v4846, %v4844
      %4854 = vrot.lane.b32.xlu0 %v4825, 96
      %v4855 = vpop.permute.xlu0 %4854
      %v4857 = vsel %vm808, %v4801, 0
      %v4860 = vsel %vm808, %v4855, 0
      %4862 = vmatprep.subr.bf16.mxu0 0
      %4863 = vmatpush1.bf16.xpose.msra.mxu0 0
      %4864 = vmatprep.subr.bf16.mxu0 0
      %4865 = vmatpush1.bf16.xpose.msra.mxu0 0
      %4866 = vmatprep.subr.bf16.mxu0 0
      %4867 = vmatpush1.bf16.xpose.msra.mxu0 0
      %4868 = vmatprep.subr.bf16.mxu0 0
      %4869 = vmatpush1.bf16.xpose.msra.mxu0 0
      %4870 = vmatprep.subr.bf16.mxu0 0
      %4871 = vmatpush1.bf16.xpose.msra.mxu0 0
      %4872 = vmatprep.subr.bf16.mxu0 0
      %4873 = vmatpush1.bf16.xpose.msra.mxu0 0
      %4874 = vmatprep.subr.bf16.mxu0 0
      %4875 = vmatpush1.bf16.xpose.msra.mxu0 0
      %4876 = vmatprep.subr.bf16.mxu0 0
      %4877 = vmatpush1.bf16.xpose.msra.mxu0 %v4860
      %4878 = vmatprep.subr.bf16.mxu0 0
      %4879 = vmatpush2.bf16.xpose.msra.mxu0 0
      %4880 = vmatprep.subr.bf16.mxu0 0
      %4881 = vmatpush2.bf16.xpose.msra.mxu0 0
      %4882 = vmatprep.subr.bf16.mxu0 0
      %4883 = vmatpush2.bf16.xpose.msra.mxu0 0
      %4884 = vmatprep.subr.bf16.mxu0 0
      %4885 = vmatpush2.bf16.xpose.msra.mxu0 0
      %4886 = vmatprep.subr.bf16.mxu0 0
      %4887 = vmatpush2.bf16.xpose.msra.mxu0 0
      %4888 = vmatprep.subr.bf16.mxu0 0
      %4889 = vmatpush2.bf16.xpose.msra.mxu0 0
      %4890 = vmatprep.subr.bf16.mxu0 0
      %4891 = vmatpush2.bf16.xpose.msra.mxu0 0
      %4892 = vmatprep.subr.bf16.mxu0 0
      %4893 = vmatpush2.bf16.xpose.msra.mxu0 0
      %4894 = vmatprep.mubr.bf16.mxu0 0
      %4895 = vmatmul.mubr.bf16.gmra.mxu0 %v4857
      %v4896 = vpop.f32.mrf.mxu0
      %v4897 = vadd.f32 0.0, %v4896
      %v4898 = vpop.f32.mrf.mxu0
      %v4899 = vpop.f32.mrf.mxu0
      %v4900 = vadd.f32 0.0, %v4899
      %v4901 = vpop.f32.mrf.mxu0
      %4902 = vdwg.mxu0
      %4904 = vrot.lane.b32.xlu0 %v4826, 96
      %v4905 = vpop.permute.xlu0 %4904
      %v4907 = vsel %vm808, %v4802, 0
      %v4910 = vsel %vm808, %v4905, 0
      %4912 = vmatprep.subr.bf16.mxu0 0
      %4913 = vmatpush1.bf16.xpose.msra.mxu0 0
      %4914 = vmatprep.subr.bf16.mxu0 0
      %4915 = vmatpush1.bf16.xpose.msra.mxu0 0
      %4916 = vmatprep.subr.bf16.mxu0 0
      %4917 = vmatpush1.bf16.xpose.msra.mxu0 0
      %4918 = vmatprep.subr.bf16.mxu0 0
      %4919 = vmatpush1.bf16.xpose.msra.mxu0 0
      %4920 = vmatprep.subr.bf16.mxu0 0
      %4921 = vmatpush1.bf16.xpose.msra.mxu0 0
      %4922 = vmatprep.subr.bf16.mxu0 0
      %4923 = vmatpush1.bf16.xpose.msra.mxu0 0
      %4924 = vmatprep.subr.bf16.mxu0 0
      %4925 = vmatpush1.bf16.xpose.msra.mxu0 0
      %4926 = vmatprep.subr.bf16.mxu0 0
      %4927 = vmatpush1.bf16.xpose.msra.mxu0 %v4910
      %4928 = vmatprep.subr.bf16.mxu0 0
      %4929 = vmatpush2.bf16.xpose.msra.mxu0 0
      %4930 = vmatprep.subr.bf16.mxu0 0
      %4931 = vmatpush2.bf16.xpose.msra.mxu0 0
      %4932 = vmatprep.subr.bf16.mxu0 0
      %4933 = vmatpush2.bf16.xpose.msra.mxu0 0
      %4934 = vmatprep.subr.bf16.mxu0 0
      %4935 = vmatpush2.bf16.xpose.msra.mxu0 0
      %4936 = vmatprep.subr.bf16.mxu0 0
      %4937 = vmatpush2.bf16.xpose.msra.mxu0 0
      %4938 = vmatprep.subr.bf16.mxu0 0
      %4939 = vmatpush2.bf16.xpose.msra.mxu0 0
      %4940 = vmatprep.subr.bf16.mxu0 0
      %4941 = vmatpush2.bf16.xpose.msra.mxu0 0
      %4942 = vmatprep.subr.bf16.mxu0 0
      %4943 = vmatpush2.bf16.xpose.msra.mxu0 0
      %4944 = vmatprep.mubr.bf16.mxu0 0
      %4945 = vmatmul.mubr.bf16.gmra.mxu0 %v4907
      %v4946 = vpop.f32.mrf.mxu0
      %v4947 = vadd.f32 0.0, %v4946
      %v4948 = vpop.f32.mrf.mxu0
      %v4949 = vpop.f32.mrf.mxu0
      %v4950 = vadd.f32 0.0, %v4949
      %v4951 = vpop.f32.mrf.mxu0
      %4952 = vdwg.mxu0
      %4954 = vrot.lane.b32.xlu0 %v4827, 96
      %v4955 = vpop.permute.xlu0 %4954
      %v4957 = vsel %vm808, %v4803, 0
      %v4960 = vsel %vm808, %v4955, 0
      %4962 = vmatprep.subr.bf16.mxu0 0
      %4963 = vmatpush1.bf16.xpose.msra.mxu0 0
      %4964 = vmatprep.subr.bf16.mxu0 0
      %4965 = vmatpush1.bf16.xpose.msra.mxu0 0
      %4966 = vmatprep.subr.bf16.mxu0 0
      %4967 = vmatpush1.bf16.xpose.msra.mxu0 0
      %4968 = vmatprep.subr.bf16.mxu0 0
      %4969 = vmatpush1.bf16.xpose.msra.mxu0 0
      %4970 = vmatprep.subr.bf16.mxu0 0
      %4971 = vmatpush1.bf16.xpose.msra.mxu0 0
      %4972 = vmatprep.subr.bf16.mxu0 0
      %4973 = vmatpush1.bf16.xpose.msra.mxu0 0
      %4974 = vmatprep.subr.bf16.mxu0 0
      %4975 = vmatpush1.bf16.xpose.msra.mxu0 0
      %4976 = vmatprep.subr.bf16.mxu0 0
      %4977 = vmatpush1.bf16.xpose.msra.mxu0 %v4960
      %4978 = vmatprep.subr.bf16.mxu0 0
      %4979 = vmatpush2.bf16.xpose.msra.mxu0 0
      %4980 = vmatprep.subr.bf16.mxu0 0
      %4981 = vmatpush2.bf16.xpose.msra.mxu0 0
      %4982 = vmatprep.subr.bf16.mxu0 0
      %4983 = vmatpush2.bf16.xpose.msra.mxu0 0
      %4984 = vmatprep.subr.bf16.mxu0 0
      %4985 = vmatpush2.bf16.xpose.msra.mxu0 0
      %4986 = vmatprep.subr.bf16.mxu0 0
      %4987 = vmatpush2.bf16.xpose.msra.mxu0 0
      %4988 = vmatprep.subr.bf16.mxu0 0
      %4989 = vmatpush2.bf16.xpose.msra.mxu0 0
      %4990 = vmatprep.subr.bf16.mxu0 0
      %4991 = vmatpush2.bf16.xpose.msra.mxu0 0
      %4992 = vmatprep.subr.bf16.mxu0 0
      %4993 = vmatpush2.bf16.xpose.msra.mxu0 0
      %4994 = vmatprep.mubr.bf16.mxu0 0
      %4995 = vmatmul.mubr.bf16.gmra.mxu0 %v4957
      %v4996 = vpop.f32.mrf.mxu0
      %v4997 = vadd.f32 0.0, %v4996
      %v4998 = vpop.f32.mrf.mxu0
      %v4999 = vpop.f32.mrf.mxu0
      %v5000 = vadd.f32 0.0, %v4999
      %v5001 = vpop.f32.mrf.mxu0
      %5002 = vdwg.mxu0
      %5004 = vrot.lane.b32.xlu0 %v4828, 96
      %v5005 = vpop.permute.xlu0 %5004
      %v5007 = vsel %vm808, %v4804, 0
      %v5010 = vsel %vm808, %v5005, 0
      %5012 = vmatprep.subr.bf16.mxu0 0
      %5013 = vmatpush1.bf16.xpose.msra.mxu0 0
      %5014 = vmatprep.subr.bf16.mxu0 0
      %5015 = vmatpush1.bf16.xpose.msra.mxu0 0
      %5016 = vmatprep.subr.bf16.mxu0 0
      %5017 = vmatpush1.bf16.xpose.msra.mxu0 0
      %5018 = vmatprep.subr.bf16.mxu0 0
      %5019 = vmatpush1.bf16.xpose.msra.mxu0 0
      %5020 = vmatprep.subr.bf16.mxu0 0
      %5021 = vmatpush1.bf16.xpose.msra.mxu0 0
      %5022 = vmatprep.subr.bf16.mxu0 0
      %5023 = vmatpush1.bf16.xpose.msra.mxu0 0
      %5024 = vmatprep.subr.bf16.mxu0 0
      %5025 = vmatpush1.bf16.xpose.msra.mxu0 0
      %5026 = vmatprep.subr.bf16.mxu0 0
      %5027 = vmatpush1.bf16.xpose.msra.mxu0 %v5010
      %5028 = vmatprep.subr.bf16.mxu0 0
      %5029 = vmatpush2.bf16.xpose.msra.mxu0 0
      %5030 = vmatprep.subr.bf16.mxu0 0
      %5031 = vmatpush2.bf16.xpose.msra.mxu0 0
      %5032 = vmatprep.subr.bf16.mxu0 0
      %5033 = vmatpush2.bf16.xpose.msra.mxu0 0
      %5034 = vmatprep.subr.bf16.mxu0 0
      %5035 = vmatpush2.bf16.xpose.msra.mxu0 0
      %5036 = vmatprep.subr.bf16.mxu0 0
      %5037 = vmatpush2.bf16.xpose.msra.mxu0 0
      %5038 = vmatprep.subr.bf16.mxu0 0
      %5039 = vmatpush2.bf16.xpose.msra.mxu0 0
      %5040 = vmatprep.subr.bf16.mxu0 0
      %5041 = vmatpush2.bf16.xpose.msra.mxu0 0
      %5042 = vmatprep.subr.bf16.mxu0 0
      %5043 = vmatpush2.bf16.xpose.msra.mxu0 0
      %5044 = vmatprep.mubr.bf16.mxu0 0
      %5045 = vmatmul.mubr.bf16.gmra.mxu0 %v5007
      %v5046 = vpop.f32.mrf.mxu0
      %v5047 = vadd.f32 0.0, %v5046
      %v5048 = vpop.f32.mrf.mxu0
      %v5049 = vpop.f32.mrf.mxu0
      %v5050 = vadd.f32 0.0, %v5049
      %v5051 = vpop.f32.mrf.mxu0
      %5052 = vdwg.mxu0
      %v5053 = vmul.f32 %v4897, 0.35355338
      %v5054 = vmul.f32 %v4900, 0.35355338
      %v5055 = vmul.f32 %v4947, 0.35355338
      %v5056 = vmul.f32 %v4950, 0.35355338
      %v5057 = vmul.f32 %v4997, 0.35355338
      %v5058 = vmul.f32 %v5000, 0.35355338
      %v5059 = vmul.f32 %v5047, 0.35355338
      %v5060 = vmul.f32 %v5050, 0.35355338
      %vm5061 = vcmask 121856
      %v5062 = vsel %vm5061, %v5053, -inf
      %5063 = vmax.xlane.f32.xlu0 %v5062
      %v5064 = vpop.xlane.xlu0 %5063
      %vm5065 = vcmask 120832
      %v5066 = vsel %vm5065, %v5054, -inf
      %5067 = vmax.xlane.f32.xlu0 %v5066
      %v5068 = vpop.xlane.xlu0 %5067
      %v5069 = vsel %vm5061, %v5055, -inf
      %5070 = vmax.xlane.f32.xlu0 %v5069
      %v5071 = vpop.xlane.xlu0 %5070
      %v5072 = vsel %vm5065, %v5056, -inf
      %5073 = vmax.xlane.f32.xlu0 %v5072
      %v5074 = vpop.xlane.xlu0 %5073
      %v5075 = vsel %vm5061, %v5057, -inf
      %5076 = vmax.xlane.f32.xlu0 %v5075
      %v5077 = vpop.xlane.xlu0 %5076
      %v5078 = vsel %vm5065, %v5058, -inf
      %5079 = vmax.xlane.f32.xlu0 %v5078
      %v5080 = vpop.xlane.xlu0 %5079
      %v5081 = vsel %vm5061, %v5059, -inf
      %5082 = vmax.xlane.f32.xlu0 %v5081
      %v5083 = vpop.xlane.xlu0 %5082
      %v5084 = vsel %vm5065, %v5060, -inf
      %5085 = vmax.xlane.f32.xlu0 %v5084
      %v5086 = vpop.xlane.xlu0 %5085
      %v5087 = vsub.f32 %v5053, %v5064
      %v5088 = vsub.f32 %v5054, %v5068
      %v5089 = vsub.f32 %v5055, %v5071
      %v5090 = vsub.f32 %v5056, %v5074
      %v5091 = vsub.f32 %v5057, %v5077
      %v5092 = vsub.f32 %v5058, %v5080
      %v5093 = vsub.f32 %v5059, %v5083
      %v5094 = vsub.f32 %v5060, %v5086
      %v5095 = vmul.f32 %v5087, 1.442695
      %v5096 = vpow.pop %v5095
      %v5097 = vmul.f32 %v5088, 1.442695
      %v5098 = vpow.pop %v5097
      %v5099 = vmul.f32 %v5089, 1.442695
      %v5100 = vpow.pop %v5099
      %v5101 = vmul.f32 %v5090, 1.442695
      %v5102 = vpow.pop %v5101
      %v5103 = vmul.f32 %v5091, 1.442695
      %v5104 = vpow.pop %v5103
      %v5105 = vmul.f32 %v5092, 1.442695
      %v5106 = vpow.pop %v5105
      %v5107 = vmul.f32 %v5093, 1.442695
      %v5108 = vpow.pop %v5107
      %v5109 = vmul.f32 %v5094, 1.442695
      %v5110 = vpow.pop %v5109
      %v5111 = vsel %vm5061, %v5096, 0.0
      %5112 = vadd.xlane.f32.xlu0 %v5111
      %v5113 = vpop.xlane.xlu0 %5112
      %v5114 = vsel %vm5065, %v5098, 0.0
      %5115 = vadd.xlane.f32.xlu0 %v5114
      %v5116 = vpop.xlane.xlu0 %5115
      %v5117 = vsel %vm5061, %v5100, 0.0
      %5118 = vadd.xlane.f32.xlu0 %v5117
      %v5119 = vpop.xlane.xlu0 %5118
      %v5120 = vsel %vm5065, %v5102, 0.0
      %5121 = vadd.xlane.f32.xlu0 %v5120
      %v5122 = vpop.xlane.xlu0 %5121
      %v5123 = vsel %vm5061, %v5104, 0.0
      %5124 = vadd.xlane.f32.xlu0 %v5123
      %v5125 = vpop.xlane.xlu0 %5124
      %v5126 = vsel %vm5065, %v5106, 0.0
      %5127 = vadd.xlane.f32.xlu0 %v5126
      %v5128 = vpop.xlane.xlu0 %5127
      %v5129 = vsel %vm5061, %v5108, 0.0
      %5130 = vadd.xlane.f32.xlu0 %v5129
      %v5131 = vpop.xlane.xlu0 %5130
      %v5132 = vsel %vm5065, %v5110, 0.0
      %5133 = vadd.xlane.f32.xlu0 %v5132
      %v5134 = vpop.xlane.xlu0 %5133
      %v5135 = vrcp.pop %v5113
      %v5136 = vrcp.pop %v5116
      %v5137 = vrcp.pop %v5119
      %v5138 = vrcp.pop %v5122
      %v5139 = vrcp.pop %v5125
      %v5140 = vrcp.pop %v5128
      %v5141 = vrcp.pop %v5131
      %v5142 = vrcp.pop %v5134
      %v5143 = vmul.f32 %v5096, %v5135
      %v5144 = vmul.f32 %v5098, %v5136
      %v5145 = vmul.f32 %v5100, %v5137
      %v5146 = vmul.f32 %v5102, %v5138
      %v5147 = vmul.f32 %v5104, %v5139
      %v5148 = vmul.f32 %v5106, %v5140
      %v5149 = vmul.f32 %v5108, %v5141
      %v5150 = vmul.f32 %v5110, %v5142
      %v5151 = vpack.c.bf16 %v5144, %v5143
      %v5152 = vpack.c.bf16 %v5146, %v5145
      %v5153 = vpack.c.bf16 %v5148, %v5147
      %v5154 = vpack.c.bf16 %v5150, %v5149
      %5156 = vrot.lane.b32.xlu0 %v4849, 64
      %v5157 = vpop.permute.xlu0 %5156
      %v5159 = vsel %vm5061, %v5151, 0
      %vm5161 = vcmask 1046528
      %vm5162 = vcmask 1047552
      %v5163 = vsel %vm5161, 4294967295, 65535
      %v5164 = vsel %vm5162, %v5163, 0
      %v5166 = vand.u32 %v5157, %v5164
      %5168 = vmatprep.subr.bf16.mxu0 0
      %5169 = vmatpush1.bf16.msra.mxu0 0
      %5170 = vmatprep.subr.bf16.mxu0 0
      %5171 = vmatpush1.bf16.msra.mxu0 0
      %5172 = vmatprep.subr.bf16.mxu0 0
      %5173 = vmatpush1.bf16.msra.mxu0 0
      %5174 = vmatprep.subr.bf16.mxu0 0
      %5175 = vmatpush1.bf16.msra.mxu0 0
      %5176 = vmatprep.subr.bf16.mxu0 0
      %5177 = vmatpush1.bf16.msra.mxu0 0
      %5178 = vmatprep.subr.bf16.mxu0 0
      %5179 = vmatpush1.bf16.msra.mxu0 0
      %5180 = vmatprep.subr.bf16.mxu0 0
      %5181 = vmatpush1.bf16.msra.mxu0 0
      %5182 = vmatprep.subr.bf16.mxu0 0
      %5183 = vmatpush1.bf16.msra.mxu0 %v5166
      %5184 = vmatprep.subr.bf16.mxu0 0
      %5185 = vmatpush2.bf16.msra.mxu0 0
      %5186 = vmatprep.subr.bf16.mxu0 0
      %5187 = vmatpush2.bf16.msra.mxu0 0
      %5188 = vmatprep.subr.bf16.mxu0 0
      %5189 = vmatpush2.bf16.msra.mxu0 0
      %5190 = vmatprep.subr.bf16.mxu0 0
      %5191 = vmatpush2.bf16.msra.mxu0 0
      %5192 = vmatprep.subr.bf16.mxu0 0
      %5193 = vmatpush2.bf16.msra.mxu0 0
      %5194 = vmatprep.subr.bf16.mxu0 0
      %5195 = vmatpush2.bf16.msra.mxu0 0
      %5196 = vmatprep.subr.bf16.mxu0 0
      %5197 = vmatpush2.bf16.msra.mxu0 0
      %5198 = vmatprep.subr.bf16.mxu0 0
      %5199 = vmatpush2.bf16.msra.mxu0 0
      %5200 = vmatprep.mubr.bf16.mxu0 0
      %5201 = vmatmul.mubr.bf16.gmra.mxu0 %v5159
      %v5202 = vpop.f32.mrf.mxu0
      %v5203 = vadd.f32 0.0, %v5202
      %v5204 = vpop.f32.mrf.mxu0
      %v5205 = vpop.f32.mrf.mxu0
      %v5206 = vadd.f32 0.0, %v5205
      %v5207 = vpop.f32.mrf.mxu0
      %5208 = vdwg.mxu0
      %5210 = vrot.lane.b32.xlu0 %v4850, 64
      %v5211 = vpop.permute.xlu0 %5210
      %v5213 = vsel %vm5061, %v5152, 0
      %v5216 = vand.u32 %v5211, %v5164
      %5218 = vmatprep.subr.bf16.mxu0 0
      %5219 = vmatpush1.bf16.msra.mxu0 0
      %5220 = vmatprep.subr.bf16.mxu0 0
      %5221 = vmatpush1.bf16.msra.mxu0 0
      %5222 = vmatprep.subr.bf16.mxu0 0
      %5223 = vmatpush1.bf16.msra.mxu0 0
      %5224 = vmatprep.subr.bf16.mxu0 0
      %5225 = vmatpush1.bf16.msra.mxu0 0
      %5226 = vmatprep.subr.bf16.mxu0 0
      %5227 = vmatpush1.bf16.msra.mxu0 0
      %5228 = vmatprep.subr.bf16.mxu0 0
      %5229 = vmatpush1.bf16.msra.mxu0 0
      %5230 = vmatprep.subr.bf16.mxu0 0
      %5231 = vmatpush1.bf16.msra.mxu0 0
      %5232 = vmatprep.subr.bf16.mxu0 0
      %5233 = vmatpush1.bf16.msra.mxu0 %v5216
      %5234 = vmatprep.subr.bf16.mxu0 0
      %5235 = vmatpush2.bf16.msra.mxu0 0
      %5236 = vmatprep.subr.bf16.mxu0 0
      %5237 = vmatpush2.bf16.msra.mxu0 0
      %5238 = vmatprep.subr.bf16.mxu0 0
      %5239 = vmatpush2.bf16.msra.mxu0 0
      %5240 = vmatprep.subr.bf16.mxu0 0
      %5241 = vmatpush2.bf16.msra.mxu0 0
      %5242 = vmatprep.subr.bf16.mxu0 0
      %5243 = vmatpush2.bf16.msra.mxu0 0
      %5244 = vmatprep.subr.bf16.mxu0 0
      %5245 = vmatpush2.bf16.msra.mxu0 0
      %5246 = vmatprep.subr.bf16.mxu0 0
      %5247 = vmatpush2.bf16.msra.mxu0 0
      %5248 = vmatprep.subr.bf16.mxu0 0
      %5249 = vmatpush2.bf16.msra.mxu0 0
      %5250 = vmatprep.mubr.bf16.mxu0 0
      %5251 = vmatmul.mubr.bf16.gmra.mxu0 %v5213
      %v5252 = vpop.f32.mrf.mxu0
      %v5253 = vadd.f32 0.0, %v5252
      %v5254 = vpop.f32.mrf.mxu0
      %v5255 = vpop.f32.mrf.mxu0
      %v5256 = vadd.f32 0.0, %v5255
      %v5257 = vpop.f32.mrf.mxu0
      %5258 = vdwg.mxu0
      %5260 = vrot.lane.b32.xlu0 %v4851, 64
      %v5261 = vpop.permute.xlu0 %5260
      %v5263 = vsel %vm5061, %v5153, 0
      %v5266 = vand.u32 %v5261, %v5164
      %5268 = vmatprep.subr.bf16.mxu0 0
      %5269 = vmatpush1.bf16.msra.mxu0 0
      %5270 = vmatprep.subr.bf16.mxu0 0
      %5271 = vmatpush1.bf16.msra.mxu0 0
      %5272 = vmatprep.subr.bf16.mxu0 0
      %5273 = vmatpush1.bf16.msra.mxu0 0
      %5274 = vmatprep.subr.bf16.mxu0 0
      %5275 = vmatpush1.bf16.msra.mxu0 0
      %5276 = vmatprep.subr.bf16.mxu0 0
      %5277 = vmatpush1.bf16.msra.mxu0 0
      %5278 = vmatprep.subr.bf16.mxu0 0
      %5279 = vmatpush1.bf16.msra.mxu0 0
      %5280 = vmatprep.subr.bf16.mxu0 0
      %5281 = vmatpush1.bf16.msra.mxu0 0
      %5282 = vmatprep.subr.bf16.mxu0 0
      %5283 = vmatpush1.bf16.msra.mxu0 %v5266
      %5284 = vmatprep.subr.bf16.mxu0 0
      %5285 = vmatpush2.bf16.msra.mxu0 0
      %5286 = vmatprep.subr.bf16.mxu0 0
      %5287 = vmatpush2.bf16.msra.mxu0 0
      %5288 = vmatprep.subr.bf16.mxu0 0
      %5289 = vmatpush2.bf16.msra.mxu0 0
      %5290 = vmatprep.subr.bf16.mxu0 0
      %5291 = vmatpush2.bf16.msra.mxu0 0
      %5292 = vmatprep.subr.bf16.mxu0 0
      %5293 = vmatpush2.bf16.msra.mxu0 0
      %5294 = vmatprep.subr.bf16.mxu0 0
      %5295 = vmatpush2.bf16.msra.mxu0 0
      %5296 = vmatprep.subr.bf16.mxu0 0
      %5297 = vmatpush2.bf16.msra.mxu0 0
      %5298 = vmatprep.subr.bf16.mxu0 0
      %5299 = vmatpush2.bf16.msra.mxu0 0
      %5300 = vmatprep.mubr.bf16.mxu0 0
      %5301 = vmatmul.mubr.bf16.gmra.mxu0 %v5263
      %v5302 = vpop.f32.mrf.mxu0
      %v5303 = vadd.f32 0.0, %v5302
      %v5304 = vpop.f32.mrf.mxu0
      %v5305 = vpop.f32.mrf.mxu0
      %v5306 = vadd.f32 0.0, %v5305
      %v5307 = vpop.f32.mrf.mxu0
      %5308 = vdwg.mxu0
      %5310 = vrot.lane.b32.xlu0 %v4852, 64
      %v5311 = vpop.permute.xlu0 %5310
      %v5313 = vsel %vm5061, %v5154, 0
      %v5316 = vand.u32 %v5311, %v5164
      %5318 = vmatprep.subr.bf16.mxu0 0
      %5319 = vmatpush1.bf16.msra.mxu0 0
      %5320 = vmatprep.subr.bf16.mxu0 0
      %5321 = vmatpush1.bf16.msra.mxu0 0
      %5322 = vmatprep.subr.bf16.mxu0 0
      %5323 = vmatpush1.bf16.msra.mxu0 0
      %5324 = vmatprep.subr.bf16.mxu0 0
      %5325 = vmatpush1.bf16.msra.mxu0 0
      %5326 = vmatprep.subr.bf16.mxu0 0
      %5327 = vmatpush1.bf16.msra.mxu0 0
      %5328 = vmatprep.subr.bf16.mxu0 0
      %5329 = vmatpush1.bf16.msra.mxu0 0
      %5330 = vmatprep.subr.bf16.mxu0 0
      %5331 = vmatpush1.bf16.msra.mxu0 0
      %5332 = vmatprep.subr.bf16.mxu0 0
      %5333 = vmatpush1.bf16.msra.mxu0 %v5316
      %5334 = vmatprep.subr.bf16.mxu0 0
      %5335 = vmatpush2.bf16.msra.mxu0 0
      %5336 = vmatprep.subr.bf16.mxu0 0
      %5337 = vmatpush2.bf16.msra.mxu0 0
      %5338 = vmatprep.subr.bf16.mxu0 0
      %5339 = vmatpush2.bf16.msra.mxu0 0
      %5340 = vmatprep.subr.bf16.mxu0 0
      %5341 = vmatpush2.bf16.msra.mxu0 0
      %5342 = vmatprep.subr.bf16.mxu0 0
      %5343 = vmatpush2.bf16.msra.mxu0 0
      %5344 = vmatprep.subr.bf16.mxu0 0
      %5345 = vmatpush2.bf16.msra.mxu0 0
      %5346 = vmatprep.subr.bf16.mxu0 0
      %5347 = vmatpush2.bf16.msra.mxu0 0
      %5348 = vmatprep.subr.bf16.mxu0 0
      %5349 = vmatpush2.bf16.msra.mxu0 0
      %5350 = vmatprep.mubr.bf16.mxu0 0
      %5351 = vmatmul.mubr.bf16.gmra.mxu0 %v5313
      %v5352 = vpop.f32.mrf.mxu0
      %v5353 = vadd.f32 0.0, %v5352
      %v5354 = vpop.f32.mrf.mxu0
      %v5355 = vpop.f32.mrf.mxu0
      %v5356 = vadd.f32 0.0, %v5355
      %v5357 = vpop.f32.mrf.mxu0
      %5358 = vdwg.mxu0
      %5359 = vst.msk [vmem:[#allocation2] sm:$0xff] %vm808, %v5203
      %vm5360 = vcmask 63488
      %5361 = vst.msk [vmem:[#allocation2 + $0x8] sm:$0x7f] %vm5360, %v5206
      %5364 = vrot.lane.b32.xlu0 %v5253, 8
      %v5365 = vpop.permute.xlu0 %5364
      %5366 = vrot.lane.b32.xlu0 %v5256, 8
      %v5367 = vpop.permute.xlu0 %5366
      %vm5370 = vcmask 130112
      %5371 = vst.msk [vmem:[#allocation2] sm:$0xff] %vm5370, %v5365
      %vm5372 = vcmask 129088
      %5373 = vst.msk [vmem:[#allocation2 + $0x8] sm:$0x7f] %vm5372, %v5367
      %5376 = vrot.lane.b32.xlu0 %v5303, 16
      %v5377 = vpop.permute.xlu0 %5376
      %5378 = vrot.lane.b32.xlu0 %v5306, 16
      %v5379 = vpop.permute.xlu0 %5378
      %vm5382 = vcmask 195712
      %5383 = vst.msk [vmem:[#allocation2] sm:$0xff] %vm5382, %v5377
      %vm5384 = vcmask 194688
      %5385 = vst.msk [vmem:[#allocation2 + $0x8] sm:$0x7f] %vm5384, %v5379
      %5388 = vrot.lane.b32.xlu0 %v5353, 24
      %v5389 = vpop.permute.xlu0 %5388
      %5390 = vrot.lane.b32.xlu0 %v5356, 24
      %v5391 = vpop.permute.xlu0 %5390
      %vm5394 = vcmask 261312
      %5395 = vst.msk [vmem:[#allocation2] sm:$0xff] %vm5394, %v5389
      %vm5396 = vcmask 260288
      %5397 = vst.msk [vmem:[#allocation2 + $0x8] sm:$0x7f] %vm5396, %v5391
      %v5398 = vld [vmem:[#allocation2] sm:$0xff]
      %v5399 = vld [vmem:[#allocation2 + $0x8] sm:$0x7f]
      %v5400 = vpack.c.bf16 %v5399, %v5398
      %v5401 = vlaneseq
      %v5402 = vshrl.u32 %v5401, 7
      %v5403 = vsub.s32 5, %v5402
      %v5404 = vrot.slane %v474, %v5403
      %v5409 = vunpack.c.l.b16 %v4694
      %v5410 = vunpack.c.l.b16 %v4695
      %v5411 = vunpack.c.l.b16 %v4696
      %v5412 = vunpack.c.l.b16 %v4697
      %v5413 = vpack.c.b16 %v5410, %v5409
      %v5414 = vpack.c.b16 %v5412, %v5411
      %v5418 = vsel %vm631, %v5400, 0
      %5420 = vmatprep.subr.bf16.mxu0 0
      %5421 = vmatpush1.bf16.msra.mxu0 0
      %5422 = vmatprep.subr.bf16.mxu0 0
      %5423 = vmatpush1.bf16.msra.mxu0 0
      %5424 = vmatprep.subr.bf16.mxu0 0
      %5425 = vmatpush1.bf16.msra.mxu0 0
      %5426 = vmatprep.subr.bf16.mxu0 0
      %5427 = vmatpush1.bf16.msra.mxu0 0
      %5428 = vmatprep.subr.bf16.mxu0 0
      %5429 = vmatpush1.bf16.msra.mxu0 0
      %5430 = vmatprep.subr.bf16.mxu0 0
      %5431 = vmatpush1.bf16.msra.mxu0 0
      %5432 = vmatprep.subr.bf16.mxu0 0
      %5433 = vmatpush1.bf16.msra.mxu0 %v5414
      %5434 = vmatprep.subr.bf16.mxu0 0
      %5435 = vmatpush1.bf16.msra.mxu0 %v5413
      %5436 = vmatprep.subr.bf16.mxu0 0
      %5437 = vmatpush2.bf16.msra.mxu0 0
      %5438 = vmatprep.subr.bf16.mxu0 0
      %5439 = vmatpush2.bf16.msra.mxu0 0
      %5440 = vmatprep.subr.bf16.mxu0 0
      %5441 = vmatpush2.bf16.msra.mxu0 0
      %5442 = vmatprep.subr.bf16.mxu0 0
      %5443 = vmatpush2.bf16.msra.mxu0 0
      %5444 = vmatprep.subr.bf16.mxu0 0
      %5445 = vmatpush2.bf16.msra.mxu0 0
      %5446 = vmatprep.subr.bf16.mxu0 0
      %5447 = vmatpush2.bf16.msra.mxu0 0
      %5448 = vmatprep.subr.bf16.mxu0 0
      %5449 = vmatpush2.bf16.msra.mxu0 0
      %5450 = vmatprep.subr.bf16.mxu0 0
      %5451 = vmatpush2.bf16.msra.mxu0 0
      %5452 = vmatprep.mubr.bf16.mxu0 0
      %5453 = vmatmul.mubr.bf16.gmra.mxu0 %v5418
      %v5454 = vpop.f32.mrf.mxu0
      %v5455 = vadd.f32 %v5404, %v5454
      %v5456 = vpop.f32.mrf.mxu0
      %v5457 = vpop.f32.mrf.mxu0
      %v5458 = vadd.f32 %v5404, %v5457
      %v5459 = vpop.f32.mrf.mxu0
      %5460 = vdwg.mxu0
      %v5461 = vadd.f32 %v4688, %v5455
      %v5462 = vadd.f32 %v4689, %v5458
      %v5463 = vsel %vm631, %v5461, 0.0
      %5464 = vadd.xlane.f32.xlu0 %v5463
      %v5465 = vpop.xlane.xlu0 %5464
      %v5466 = vsel %vm635, %v5462, 0.0
      %5467 = vadd.xlane.f32.xlu0 %v5466
      %v5468 = vpop.xlane.xlu0 %5467
      %v5469 = vmul.f32 %v5465, %v639
      %v5470 = vmul.f32 %v5468, %v639
      %v5471 = vsub.f32 %v5461, %v5469
      %v5472 = vsub.f32 %v5462, %v5470
      %v5473 = vmul.f32 %v5471, %v5471
      %v5474 = vmul.f32 %v5472, %v5472
      %v5475 = vsel %vm631, %v5473, 0.0
      %5476 = vadd.xlane.f32.xlu0 %v5475
      %v5477 = vpop.xlane.xlu0 %5476
      %v5478 = vsel %vm635, %v5474, 0.0
      %5479 = vadd.xlane.f32.xlu0 %v5478
      %v5480 = vpop.xlane.xlu0 %5479
      %v5481 = vmul.f32 %v5477, %v639
      %v5482 = vmul.f32 %v5480, %v639
      %v5483 = vadd.f32 %v5481, 1e-12
      %v5484 = vadd.f32 %v5482, 1e-12
      %v5485 = vrsqrt.pop %v5483
      %v5486 = vrsqrt.pop %v5484
      %v5487 = vmul.f32 %v5471, %v5485
      %v5488 = vmul.f32 %v5472, %v5486
      %v5489 = vlaneseq
      %v5490 = vshrl.u32 %v5489, 7
      %v5491 = vsub.s32 6, %v5490
      %v5492 = vrot.slane %v474, %v5491
      %v5493 = vmul.f32 %v5487, %v5492
      %v5494 = vmul.f32 %v5488, %v5492
      %v5495 = vlaneseq
      %v5496 = vshrl.u32 %v5495, 7
      %v5497 = vsub.s32 7, %v5496
      %v5498 = vrot.slane %v474, %v5497
      %v5499 = vadd.f32 %v5493, %v5498
      %v5500 = vadd.f32 %v5494, %v5498
      %v5501 = vpack.c.bf16 %v5500, %v5499
      %v5502 = vld [vmem:[%s12] sm:$0xf]
      %v5503 = vld [vmem:[%s12 + $0x4] sm:$0xf]
      %v5504 = vld [vmem:[%s12 + $0x8] sm:$0xf]
      %v5505 = vld [vmem:[%s12 + $0xc] sm:$0xf]
      %v5506 = vlaneseq
      %v5507 = vshrl.u32 %v5506, 7
      %v5508 = vsub.s32 2, %v5507
      %v5509 = vrot.slane %v476, %v5508
      %v5514 = vunpack.c.l.b16 %v5502
      %v5515 = vunpack.c.l.b16 %v5503
      %v5516 = vunpack.c.l.b16 %v5504
      %v5517 = vunpack.c.l.b16 %v5505
      %v5518 = vpack.c.b16 %v5515, %v5514
      %v5519 = vpack.c.b16 %v5517, %v5516
      %v5523 = vsel %vm631, %v5501, 0
      %5525 = vmatprep.subr.bf16.mxu0 0
      %5526 = vmatpush1.bf16.msra.mxu0 0
      %5527 = vmatprep.subr.bf16.mxu0 0
      %5528 = vmatpush1.bf16.msra.mxu0 0
      %5529 = vmatprep.subr.bf16.mxu0 0
      %5530 = vmatpush1.bf16.msra.mxu0 0
      %5531 = vmatprep.subr.bf16.mxu0 0
      %5532 = vmatpush1.bf16.msra.mxu0 0
      %5533 = vmatprep.subr.bf16.mxu0 0
      %5534 = vmatpush1.bf16.msra.mxu0 0
      %5535 = vmatprep.subr.bf16.mxu0 0
      %5536 = vmatpush1.bf16.msra.mxu0 0
      %5537 = vmatprep.subr.bf16.mxu0 0
      %5538 = vmatpush1.bf16.msra.mxu0 %v5519
      %5539 = vmatprep.subr.bf16.mxu0 0
      %5540 = vmatpush1.bf16.msra.mxu0 %v5518
      %5541 = vmatprep.subr.bf16.mxu0 0
      %5542 = vmatpush2.bf16.msra.mxu0 0
      %5543 = vmatprep.subr.bf16.mxu0 0
      %5544 = vmatpush2.bf16.msra.mxu0 0
      %5545 = vmatprep.subr.bf16.mxu0 0
      %5546 = vmatpush2.bf16.msra.mxu0 0
      %5547 = vmatprep.subr.bf16.mxu0 0
      %5548 = vmatpush2.bf16.msra.mxu0 0
      %5549 = vmatprep.subr.bf16.mxu0 0
      %5550 = vmatpush2.bf16.msra.mxu0 0
      %5551 = vmatprep.subr.bf16.mxu0 0
      %5552 = vmatpush2.bf16.msra.mxu0 0
      %5553 = vmatprep.subr.bf16.mxu0 0
      %5554 = vmatpush2.bf16.msra.mxu0 0
      %5555 = vmatprep.subr.bf16.mxu0 0
      %5556 = vmatpush2.bf16.msra.mxu0 0
      %5557 = vmatprep.mubr.bf16.mxu0 0
      %5558 = vmatmul.mubr.bf16.gmra.mxu0 %v5523
      %v5559 = vpop.f32.mrf.mxu0
      %v5560 = vadd.f32 %v5509, %v5559
      %v5561 = vpop.f32.mrf.mxu0
      %v5562 = vpop.f32.mrf.mxu0
      %v5563 = vadd.f32 %v5509, %v5562
      %v5564 = vpop.f32.mrf.mxu0
      %5565 = vdwg.mxu0
      %v5566 = vmul.f32 %v5560, 0.5
      %v5567 = vmul.f32 %v5563, 0.5
      %v5568 = vmul.f32 %v5560, 0.70710677
      %v5569 = vmul.f32 %v5563, 0.70710677
      %v5570 = verf.f32.pop %v5568
      %v5571 = verf.f32.pop %v5569
      %v5572 = vadd.f32 %v5570, 1.0
      %v5573 = vadd.f32 %v5571, 1.0
      %v5574 = vmul.f32 %v5566, %v5572
      %v5575 = vmul.f32 %v5567, %v5573
      %v5576 = vpack.c.bf16 %v5575, %v5574
      %v5577 = vld [vmem:[%s13] sm:$0xf]
      %v5578 = vld [vmem:[%s13 + $0x4] sm:$0xf]
      %v5579 = vld [vmem:[%s13 + $0x8] sm:$0xf]
      %v5580 = vld [vmem:[%s13 + $0xc] sm:$0xf]
      %v5581 = vld [vmem:[%s13 + $0x10] sm:$0xf]
      %v5582 = vld [vmem:[%s13 + $0x14] sm:$0xf]
      %v5583 = vld [vmem:[%s13 + $0x18] sm:$0xf]
      %v5584 = vld [vmem:[%s13 + $0x1c] sm:$0xf]
      %v5585 = vld [vmem:[%s13 + $0x20] sm:$0xf]
      %v5586 = vld [vmem:[%s13 + $0x24] sm:$0xf]
      %v5587 = vld [vmem:[%s13 + $0x28] sm:$0xf]
      %v5588 = vld [vmem:[%s13 + $0x2c] sm:$0xf]
      %v5589 = vld [vmem:[%s13 + $0x30] sm:$0xf]
      %v5590 = vld [vmem:[%s13 + $0x34] sm:$0xf]
      %v5591 = vld [vmem:[%s13 + $0x38] sm:$0xf]
      %v5592 = vld [vmem:[%s13 + $0x3c] sm:$0xf]
      %v5593 = vlaneseq
      %v5594 = vshrl.u32 %v5593, 7
      %v5595 = vsub.s32 0, %v5594
      %v5596 = vrot.slane %v475, %v5595
      %v5613 = vunpack.c.l.b16 %v5577
      %v5614 = vunpack.c.l.b16 %v5578
      %v5615 = vunpack.c.l.b16 %v5579
      %v5616 = vunpack.c.l.b16 %v5580
      %v5617 = vunpack.c.l.b16 %v5581
      %v5618 = vunpack.c.l.b16 %v5582
      %v5619 = vunpack.c.l.b16 %v5583
      %v5620 = vunpack.c.l.b16 %v5584
      %v5621 = vunpack.c.l.b16 %v5585
      %v5622 = vunpack.c.l.b16 %v5586
      %v5623 = vunpack.c.l.b16 %v5587
      %v5624 = vunpack.c.l.b16 %v5588
      %v5625 = vunpack.c.l.b16 %v5589
      %v5626 = vunpack.c.l.b16 %v5590
      %v5627 = vunpack.c.l.b16 %v5591
      %v5628 = vunpack.c.l.b16 %v5592
      %v5629 = vpack.c.b16 %v5614, %v5613
      %v5630 = vpack.c.b16 %v5616, %v5615
      %v5631 = vpack.c.b16 %v5618, %v5617
      %v5632 = vpack.c.b16 %v5620, %v5619
      %v5633 = vpack.c.b16 %v5622, %v5621
      %v5634 = vpack.c.b16 %v5624, %v5623
      %v5635 = vpack.c.b16 %v5626, %v5625
      %v5636 = vpack.c.b16 %v5628, %v5627
      %5645 = vmatprep.subr.bf16.mxu0 0
      %5646 = vmatpush1.bf16.msra.mxu0 %v5636
      %5647 = vmatprep.subr.bf16.mxu0 0
      %5648 = vmatpush1.bf16.msra.mxu0 %v5635
      %5649 = vmatprep.subr.bf16.mxu0 0
      %5650 = vmatpush1.bf16.msra.mxu0 %v5634
      %5651 = vmatprep.subr.bf16.mxu0 0
      %5652 = vmatpush1.bf16.msra.mxu0 %v5633
      %5653 = vmatprep.subr.bf16.mxu0 0
      %5654 = vmatpush1.bf16.msra.mxu0 %v5632
      %5655 = vmatprep.subr.bf16.mxu0 0
      %5656 = vmatpush1.bf16.msra.mxu0 %v5631
      %5657 = vmatprep.subr.bf16.mxu0 0
      %5658 = vmatpush1.bf16.msra.mxu0 %v5630
      %5659 = vmatprep.subr.bf16.mxu0 0
      %5660 = vmatpush1.bf16.msra.mxu0 %v5629
      %5661 = vmatprep.subr.bf16.mxu0 0
      %5662 = vmatpush2.bf16.msra.mxu0 0
      %5663 = vmatprep.subr.bf16.mxu0 0
      %5664 = vmatpush2.bf16.msra.mxu0 0
      %5665 = vmatprep.subr.bf16.mxu0 0
      %5666 = vmatpush2.bf16.msra.mxu0 0
      %5667 = vmatprep.subr.bf16.mxu0 0
      %5668 = vmatpush2.bf16.msra.mxu0 0
      %5669 = vmatprep.subr.bf16.mxu0 0
      %5670 = vmatpush2.bf16.msra.mxu0 0
      %5671 = vmatprep.subr.bf16.mxu0 0
      %5672 = vmatpush2.bf16.msra.mxu0 0
      %5673 = vmatprep.subr.bf16.mxu0 0
      %5674 = vmatpush2.bf16.msra.mxu0 0
      %5675 = vmatprep.subr.bf16.mxu0 0
      %5676 = vmatpush2.bf16.msra.mxu0 0
      %5677 = vmatprep.mubr.bf16.mxu0 0
      %5678 = vmatmul.mubr.bf16.gmra.mxu0 %v5576
      %v5679 = vpop.f32.mrf.mxu0
      %v5680 = vadd.f32 %v5596, %v5679
      %v5681 = vpop.f32.mrf.mxu0
      %v5682 = vpop.f32.mrf.mxu0
      %v5683 = vadd.f32 %v5596, %v5682
      %v5684 = vpop.f32.mrf.mxu0
      %5685 = vdwg.mxu0
      %v5686 = vadd.f32 %v5499, %v5680
      %v5687 = vadd.f32 %v5500, %v5683
      %v5688 = vsel %vm631, %v5686, 0.0
      %5689 = vadd.xlane.f32.xlu0 %v5688
      %v5690 = vpop.xlane.xlu0 %5689
      %v5691 = vsel %vm635, %v5687, 0.0
      %5692 = vadd.xlane.f32.xlu0 %v5691
      %v5693 = vpop.xlane.xlu0 %5692
      %v5694 = vmul.f32 %v5690, %v639
      %v5695 = vmul.f32 %v5693, %v639
      %v5696 = vsub.f32 %v5686, %v5694
      %v5697 = vsub.f32 %v5687, %v5695
      %v5698 = vmul.f32 %v5696, %v5696
      %v5699 = vmul.f32 %v5697, %v5697
      %v5700 = vsel %vm631, %v5698, 0.0
      %5701 = vadd.xlane.f32.xlu0 %v5700
      %v5702 = vpop.xlane.xlu0 %5701
      %v5703 = vsel %vm635, %v5699, 0.0
      %5704 = vadd.xlane.f32.xlu0 %v5703
      %v5705 = vpop.xlane.xlu0 %5704
      %v5706 = vmul.f32 %v5702, %v639
      %v5707 = vmul.f32 %v5705, %v639
      %v5708 = vadd.f32 %v5706, 1e-12
      %v5709 = vadd.f32 %v5707, 1e-12
      %v5710 = vrsqrt.pop %v5708
      %v5711 = vrsqrt.pop %v5709
      %v5712 = vmul.f32 %v5696, %v5710
      %v5713 = vmul.f32 %v5697, %v5711
      %v5714 = vlaneseq
      %v5715 = vshrl.u32 %v5714, 7
      %v5716 = vsub.s32 1, %v5715
      %v5717 = vrot.slane %v475, %v5716
      %v5718 = vmul.f32 %v5712, %v5717
      %v5719 = vmul.f32 %v5713, %v5717
      %v5720 = vlaneseq
      %v5721 = vshrl.u32 %v5720, 7
      %v5722 = vsub.s32 2, %v5721
      %v5723 = vrot.slane %v475, %v5722
      %v5724 = vadd.f32 %v5718, %v5723
      %v5725 = vadd.f32 %v5719, %v5723
      %5726 = vst.msk [vmem:[%s467] sm:$0xff] %vm631, %v5724
      %5727 = vst.msk [vmem:[%s467 + $0x8] sm:$0x7f] %vm635, %v5725
      %p5728 = scmp.lt.s32.totalorder %s25, 1
      %s5729 = scalar_select %p5728, %s25, 1
      %s5730 = smul.addr %s5729, 2
      %s5731 = smul.addr %s5730, 8
      %s5732 = scalar_lea.vmem %s14, %s5731
      // Predicated region
      $region77: #{_lambda_.1} parent=75 // pred_check
        %p5733 = pneg %p342
      $region78: #{_lambda_.1} parent=75 // pred_check_branch
        %5735 = sbr.rel (%p5733) target = $region80
      $region79: #{_lambda_.1} parent=75 // pred_region
        _
      $region80: #{_lambda_.1} parent=75 // pred_fallthru
        _
    $region76: #{_lambda_.1} parent=5 // pred_fallthru
      _
    %p5736 = scmp.le.s32.totalorder 2, %s20
    // Predicated region
    $region81: #{_lambda_.1} parent=5 // pred_check
      %p5737 = pneg %p5736
    $region82: #{_lambda_.1} parent=5 // pred_check_branch
      %5739 = sbr.rel (%p5737) target = $region84
    $region83: #{_lambda_.1} parent=5 // pred_region
      %s5740 = ssub.s32 %s20, 2
      // Predicated region
      $region85: #{_lambda_.1} parent=83 // pred_check
        %p5741 = pneg %p348
      $region86: #{_lambda_.1} parent=83 // pred_check_branch
        %5743 = sbr.rel (%p5741) target = $region88
      $region87: #{_lambda_.1} parent=83 // pred_region
        %p5744 = scmp.lt.s32.totalorder %s26, 1
        %s5745 = scalar_select %p5744, %s26, 1
        %s5746 = smul.addr %s5745, 2
        %s5747 = smul.addr %s5746, 8
        %s5748 = scalar_lea.vmem %s14, %s5747
      $region88: #{_lambda_.1} parent=83 // pred_fallthru
        _
    $region84: #{_lambda_.1} parent=5 // pred_fallthru
      _
  $region6: #{_lambda_.1} parent=0 // loop_footer
    %s24 = sadd.s32 1, %s20
  $region7: #{_lambda_.1} parent=0 // loop_footer_branch
    %19 = sbr.rel target = $region3
  $region8: #{_lambda_.1} parent=0 // loop_exit
    _

</llo_original>
